<compile_context>
chip_gen: v7x
topology: tpu7x:2x2x1
jax: 0.10.0
libtpu: 0.0.40
codegen_flags: <defaults>
</compile_context>

<pallas_src>
import functools
import math

import jax
import jax.numpy as jnp
from jax import lax
from jax.experimental import pallas as pl
from jax.experimental.pallas import tpu as pltpu
import numpy as np


def _round_up(v, k):
    return -(-v // k) * k


# ---------------------------------------------------------------------------
# Constant selector / placement matrices (numpy, hoisted out of the kernel).
# Flat row-major convention: lane index c = i*m + j for node pair (i, j).
# ---------------------------------------------------------------------------
def _build_constants(m, dout):
    mm = m * m
    idx = np.arange(mm)
    i_of = idx // m
    j_of = idx % m
    k = np.arange(m)[:, None]
    b_row = (i_of[None, :] == k).astype(np.float32)        # (m, mm): 1 iff c//m == k
    b_col = (j_of[None, :] == k).astype(np.float32)        # (m, mm): 1 iff c%m  == k
    b_diag = b_row * b_col                                  # (m, mm): 1 iff c == k*m+k
    eye_flat = (i_of == j_of).astype(np.float32)[None, :]   # (1, mm)

    perm_t = np.zeros((mm, mm), np.float32)                 # x @ perm_t == per-channel transpose
    perm_t[j_of * m + i_of, idx] = 1.0

    # one-matmul spatial-feature extractor:
    #   x (din, mm) contracted with sfeat over lanes -> [diag | rows/m | cols/m | trace/m | tot/m^2]
    sfeat = np.concatenate([
        b_diag,
        b_row / m,
        b_col / m,
        np.repeat(eye_flat / m, m, axis=0),
        np.full((m, mm), 1.0 / (m * m), np.float32),
    ], axis=0)                                               # (5m, mm)

    # fused transpose + placement RHS: [perm_t ; b_diag ; b_row ; b_col]
    rhs2 = np.concatenate([perm_t, b_diag, b_row, b_col], axis=0)   # (mm + 3m, mm)

    # radius-2 helpers: flat (dout, m*m) <-> stacked (dout*m, m) converters + block masks
    dm = dout * m
    a = np.arange(dm)
    l_t = ((a[None, :] // m) == np.arange(dout)[:, None]).astype(np.float32)   # (dout, dm)
    spread = ((a[None, :] % m) == np.arange(m)[:, None]).astype(np.float32)    # (m, dm)
    m_mask = (i_of[None, :] == (a[:, None] % m)).astype(np.float32)            # (dm, mm)
    block_mask = ((a[:, None] // m) == (a[None, :] // m)).astype(np.float32)   # (dm, dm)

    return dict(rhs2=rhs2, b_col=b_col, l_t=l_t, spread=spread, m_mask=m_mask,
                block_mask=block_mask, sfeat=sfeat, eye_flat=eye_flat)


# ---------------------------------------------------------------------------
# The fused kernel: all equivariant layers + per-layer readout sums + MLPReadout
# for ONE graph per grid step.
# ---------------------------------------------------------------------------
def _ring_gnn_kernel(*refs, dims, m, dout, layer_norm, residual):
    f32 = jnp.float32
    mm = m * m
    n_layers = len(dims)
    n4 = 4 * dout

    (x_ref, rhs2_ref, bcol_ref, lt_ref, spread_ref, mmask_ref, bmask_ref,
     sfeat_ref, eye_ref) = refs[0:9]
    pos = 9
    layer_refs = refs[pos:pos + 3 * n_layers]; pos += 3 * n_layers
    w1_refs = refs[pos:pos + n_layers + 1]; pos += n_layers + 1
    b1_ref, w2_ref, b2_ref, w3_ref, b3_ref = refs[pos:pos + 5]; pos += 5
    out_ref = refs[pos]
    afeat_scr = refs[pos + 1]
    lhs_scr = refs[pos + 2]

    dot2 = functools.partial(jnp.dot, preferred_element_type=f32)
    cl = (((1,), (1,)), ((), ()))   # contract lane dims:   (p, w) x (q, w) -> (p, q)
    cr = (((0,), (0,)), ((), ()))   # contract sublane dims: (p, w) x (p, v) -> (w, v)

    def dott(a, b, dn):
        return lax.dot_general(a, b, dn, preferred_element_type=f32)

    eye_flat = eye_ref[...]
    b_col = bcol_ref[...]
    l_t = lt_ref[...]
    spread = spread_ref[...]
    m_mask = mmask_ref[...]
    block_mask = bmask_ref[...]
    sfeat = sfeat_ref[...]
    rhs2 = rhs2_ref[...]

    def to_stacked(flat):   # (dout, mm) -> (dout*m, m):  st[s*m+i, j] = flat[s, i*m+j]
        rep = dott(l_t, flat, cr)                    # (dout*m, mm)
        return dott(rep * m_mask, b_col, cl)         # (dout*m, m)

    def to_flat(st):        # (dout*m, m) -> (dout, mm)
        sp = dot2(st, b_col)                         # (dout*m, mm)
        return dot2(l_t, sp * m_mask)                # (dout, mm)

    # keep zero-padded columns of wall3 multiplying finite (zero) values
    afeat_scr[...] = jnp.zeros(afeat_scr.shape, f32)

    x = x_ref[0]                                     # (d0, m*m), lane-dense
    feat_sums = [jnp.sum(x, axis=1, keepdims=True)]  # per-channel readout sums (XLU reduce)

    for li in range(n_layers):
        din = dims[li][0]
        p = _round_up(din, 8)
        wmix_ref, wall3_ref, chan_ref = layer_refs[3 * li:3 * li + 3]

        # (1) channel mix for the identity / transpose basis ops (+ residual Linear rows)
        P = dot2(wmix_ref[...], x)                   # (2*n4, mm)

        # (2) all spatial features in ONE matmul, then restack blocks along sublanes
        feats = dott(x, sfeat, cl)                   # (din, 5m)
        for f in range(5):
            afeat_scr[f * p:f * p + din, :] = feats[:, f * m:(f + 1) * m]

        # (3) all 13 non-identity basis contractions in ONE matmul
        #     rows: [diag-placed | row-placed | col-placed], broadcast trick folds the
        #     trace/total (scalar) ops into the diag-/row-placed blocks.
        G3 = dot2(wall3_ref[...], afeat_scr[0:5 * p, :])     # (3*n4, m)

        # (4) fused per-channel transpose + spatial placement: one wide MXU matmul
        lhs_scr[:, 0:mm] = P[n4:2 * n4]
        lhs_scr[:, mm:mm + m] = G3[0:n4]
        lhs_scr[:, mm + m:mm + 2 * m] = G3[n4:2 * n4]
        lhs_scr[:, mm + 2 * m:mm + 3 * m] = G3[2 * n4:3 * n4]
        y = P[0:n4] + dot2(lhs_scr[...], rhs2)        # (n4, mm)

        y00 = y[0:dout]
        y10 = y[dout:2 * dout]
        y11 = y[2 * dout:3 * dout]
        yres = y[3 * dout:4 * dout]

        chan = chan_ref[...]                          # (dout, 8), loaded once per layer
        db00 = chan[:, 0:1]; db10 = chan[:, 1:2]
        all_b = chan[:, 2:3]; res_b = chan[:, 3:4]
        ln_g = chan[:, 4:5]; ln_b = chan[:, 5:6]
        sw0 = chan[:, 6:7]; sw1 = chan[:, 7:8]

        out0 = y00 + db00 * eye_flat                  # j == 0 term (+ diag bias)
        t = y10 + db10 * eye_flat

        # radius-2 chained term: per-channel (m,m)@(m,m) as one block-diagonal MXU matmul
        y11_st = to_stacked(y11)                      # (dout*m, m)
        t_st = to_stacked(t)                          # (dout*m, m)
        bd = dot2(y11_st, spread) * block_mask        # block-diag(Y11) (dout*m, dout*m)
        out1 = to_flat(dot2(bd, t_st))                # (dout, mm)

        out = sw0 * out0 + sw1 * out1 + all_b

        if layer_norm:
            # Ring-GNN LayerNorm: normalize over the (node, node) dims per feature channel.
            mean = jnp.mean(out, axis=1, keepdims=True)
            cent = out - mean
            var = jnp.mean(cent * cent, axis=1, keepdims=True)
            out = ln_g * cent * lax.rsqrt(var + 1e-6) + ln_b

        out = jnp.maximum(out, 0.0)                   # ReLU

        if residual:
            out = out + yres + res_b                  # Linear(inputs) residual
        # TODO(synk): F.dropout omitted -- eval-mode (identity) semantics.

        x = out
        feat_sums.append(jnp.sum(x, axis=1, keepdims=True))

    # ---- MLPReadout (Linear -> ReLU -> Linear -> ReLU -> Linear), fused in-kernel ----
    pre = b1_ref[...]
    for fc, w1p in zip(feat_sums, w1_refs):
        pre = pre + dott(fc, w1p[...], cr)            # (1, F//2)
    h = jnp.maximum(pre, 0.0)
    h = jnp.maximum(dot2(h, w2_ref[...]) + b2_ref[...], 0.0)
    out_ref[0] = dot2(h, w3_ref[...]) + b3_ref[...]


# ---------------------------------------------------------------------------
# Forward wrapper: one pallas_call, batched over graphs via grid=(B,).
# ---------------------------------------------------------------------------
def ring_gnn_forward(params, x_no_edge_feat, x_with_edge_feat=None, *,
                     edge_feat=False, layer_norm=True, residual=True):
    x4 = x_with_edge_feat if edge_feat else x_no_edge_feat       # (B, D0, m, m), NCHW
    B, d0, m, _ = x4.shape
    mm = m * m
    x_flat = x4.reshape(B, d0, mm)                               # lane-dense (B, D0, m*m)

    layers = params['layers']
    dims = tuple((int(lp['w_mix'].shape[1]), int(lp['w_mix'].shape[0]) // 8) for lp in layers)
    assert len({dd for _, dd in dims}) == 1, "kernel assumes a single hidden width"
    dout = dims[0][1]
    n4 = 4 * dout
    n_layers = len(dims)
    pmax = max(_round_up(din, 8) for din, _ in dims)

    c = _build_constants(m, dout)

    inputs = [x_flat,
              jnp.asarray(c['rhs2']), jnp.asarray(c['b_col']), jnp.asarray(c['l_t']),
              jnp.asarray(c['spread']), jnp.asarray(c['m_mask']), jnp.asarray(c['block_mask']),
              jnp.asarray(c['sfeat']), jnp.asarray(c['eye_flat'])]
    for lp in layers:
        inputs += [lp['w_mix'], lp['wall3'], lp['chan']]

    r = params['readout']
    w1 = r['w'][0]
    sizes = [d0] + [dd for _, dd in dims]
    off = 0
    for s in sizes:                                              # row-split of first readout Linear
        inputs.append(w1[off:off + s, :])
        off += s
    inputs += [r['b'][0], r['w'][1], r['b'][1], r['w'][2], r['b'][2]]

    def _whole(a):
        nd = jnp.ndim(a)
        shp = tuple(jnp.shape(a))
        return pl.BlockSpec(shp, lambda b, _n=nd: (0,) * _n)     # whole array, never re-DMA'd

    in_specs = [pl.BlockSpec((1, d0, mm), lambda b: (b, 0, 0))] + [_whole(a) for a in inputs[1:]]
    out_dim = int(r['w'][2].shape[1])

    kern = functools.partial(_ring_gnn_kernel, dims=dims, m=m, dout=dout,
                             layer_norm=layer_norm, residual=residual)
    out = pl.pallas_call(
        kern,
        out_shape=jax.ShapeDtypeStruct((B, 1, out_dim), jnp.float32),
        grid=(B,),
        in_specs=in_specs,
        out_specs=pl.BlockSpec((1, 1, out_dim), lambda b: (b, 0, 0)),
        scratch_shapes=[pltpu.VMEM((5 * pmax, m), jnp.float32),          # restacked features
                        pltpu.VMEM((n4, mm + 3 * m), jnp.float32)],      # fused-y LHS
        compiler_params=pltpu.CompilerParams(dimension_semantics=("parallel",)),
    )(*inputs)
    return out.reshape(B, out_dim)


# ---------------------------------------------------------------------------
# Parameter construction (deterministic, shapes per RingGNNNet.__init__).
# ---------------------------------------------------------------------------
def _make_layer_params(key, din, dout, avg_node_num):
    k1, k2, k3, k4 = jax.random.split(key, 4)
    scale = math.sqrt(2.0 / (din + dout))
    c00 = jax.random.normal(k1, (din, dout, 15), jnp.float32) * scale
    c10 = jax.random.normal(k2, (din, dout, 15), jnp.float32) * scale
    c11 = jax.random.normal(k3, (din, dout, 15), jnp.float32) * scale
    w_res = jax.random.normal(k4, (dout, din), jnp.float32) / math.sqrt(din)
    b_res = jnp.zeros((dout,), jnp.float32)
    k2_init = 0.5 / avg_node_num

    def bb(b):  # (4*dout, din) coefficient block for basis op b: [c00 | c10 | c11 | residual]
        res = w_res if b == 9 else jnp.zeros((dout, din), jnp.float32)
        return jnp.concatenate([c00[:, :, b].T, c10[:, :, b].T, c11[:, :, b].T, res], axis=0)

    p = _round_up(din, 8)

    def padc(w):  # zero-pad contraction columns din -> din_pad (matches kernel's afeat layout)
        return jnp.pad(w, ((0, 0), (0, p - din)))

    w_mix = jnp.concatenate([bb(9), bb(10)], axis=0)                         # x / x^T ops
    zer = jnp.zeros((4 * dout, p), jnp.float32)
    # feature-column order: [diag | rows/m | cols/m | trace/m | total/m^2]
    blk_diag = jnp.concatenate([padc(bb(0)), padc(bb(2)), padc(bb(3)),
                                padc(bb(1)), padc(bb(4))], axis=1)           # diagonal placement
    blk_row = jnp.concatenate([padc(bb(11)), padc(bb(6)), padc(bb(5)),
                               padc(bb(13)), padc(bb(14))], axis=1)          # row (and global) placement
    blk_col = jnp.concatenate([padc(bb(12)), padc(bb(8)), padc(bb(7)),
                               zer, zer], axis=1)                            # column placement
    wall3 = jnp.concatenate([blk_diag, blk_row, blk_col], axis=0)            # (12*dout, 5*din_pad)

    z = jnp.zeros((dout,), jnp.float32)
    o = jnp.ones((dout,), jnp.float32)
    # packed per-channel params: [db00, db10, all_bias, res_b, ln_g, ln_b, switch0, switch1]
    chan = jnp.stack([z, z, z, b_res, o, z, o, o * k2_init], axis=1)         # (dout, 8)

    return dict(
        w_mix=w_mix, wall3=wall3, chan=chan,
        # raw pieces kept only for the pure-JAX reference check
        c00=c00, c10=c10, c11=c11, w_res=w_res,
        db00=jnp.zeros((dout, 1, 1), jnp.float32),
        db10=jnp.zeros((dout, 1, 1), jnp.float32),
        all_bias=jnp.zeros((dout, 1, 1), jnp.float32),
        res_b=b_res.reshape(dout, 1, 1),
        ln_g=jnp.ones((dout, 1, 1), jnp.float32),
        ln_b=jnp.zeros((dout, 1, 1), jnp.float32),
        switch=jnp.array([1.0, k2_init], jnp.float32),
    )


def init_ring_gnn_params(key, net_params):
    assert net_params['radius'] == 2, "kernel specialized to radius=2 (repo default)"
    if net_params['edge_feat']:
        d0 = 1 + net_params['num_atom_type'] + net_params['num_bond_type']
    else:
        d0 = 1 + net_params['num_atom_type']
    depths = [d0] + [net_params['hidden_dim']] * net_params['L']

    layers = []
    for din, dout in zip(depths[:-1], depths[1:]):
        key, sub = jax.random.split(key)
        layers.append(_make_layer_params(sub, din, dout, net_params['avg_node_num']))

    f = int(sum(depths))                                        # MLPReadout(sum(depths), 1, L=2)
    rdims = [f, f // 2, f // 4, 1]
    ws, bs = [], []
    for i in range(3):
        key, sub = jax.random.split(key)
        ws.append(jax.random.normal(sub, (rdims[i], rdims[i + 1]), jnp.float32) / math.sqrt(rdims[i]))
        bs.append(jnp.zeros((1, rdims[i + 1]), jnp.float32))

    return dict(layers=layers, readout=dict(w=ws, b=bs))


# ---------------------------------------------------------------------------
# Pure-JAX reference (mirrors the PyTorch code) for a sanity check.
# ---------------------------------------------------------------------------
def _ref_ops_2_to_2(x):
    d, m, _ = x.shape
    fm = float(m)
    eye = jnp.eye(m, dtype=x.dtype)[None]
    diag = jnp.diagonal(x, axis1=-2, axis2=-1)
    sum_diag = jnp.sum(diag, axis=-1)
    rows = jnp.sum(x, axis=-1)
    cols = jnp.sum(x, axis=-2)
    tot = jnp.sum(rows, axis=-1)
    de = lambda v: v[:, :, None] * eye
    ops = [
        de(diag),
        de(jnp.broadcast_to(sum_diag[:, None], (d, m))) / fm,
        de(rows) / fm,
        de(cols) / fm,
        de(jnp.broadcast_to(tot[:, None], (d, m))) / (fm * fm),
        jnp.broadcast_to(cols[:, :, None], x.shape) / fm,
        jnp.broadcast_to(rows[:, :, None], x.shape) / fm,
        jnp.broadcast_to(cols[:, None, :], x.shape) / fm,
        jnp.broadcast_to(rows[:, None, :], x.shape) / fm,
        x,
        jnp.swapaxes(x, -1, -2),
        jnp.broadcast_to(diag[:, :, None], x.shape),
        jnp.broadcast_to(diag[:, None, :], x.shape),
        jnp.broadcast_to(sum_diag[:, None, None], x.shape) / fm,
        jnp.broadcast_to(tot[:, None, None], x.shape) / (fm * fm),
    ]
    return jnp.stack(ops, axis=1)  # (D, 15, m, m)


def _ref_layer(x, p):
    m = x.shape[-1]
    ops = _ref_ops_2_to_2(x)
    eye = jnp.eye(m, dtype=x.dtype)[None]
    contract = lambda c: jnp.einsum('dsb,dbij->sij', c, ops)
    y00 = contract(p['c00']) + p['db00'] * eye
    y10 = contract(p['c10']) + p['db10'] * eye
    y11 = contract(p['c11'])
    out1 = jnp.einsum('scd,sde->sce', y11, y10)
    out = p['switch'][0] * y00 + p['switch'][1] * out1 + p['all_bias']
    mean = jnp.mean(out, axis=(1, 2), keepdims=True)
    var = jnp.mean((out - mean) ** 2, axis=(1, 2), keepdims=True)
    out = p['ln_g'] * (out - mean) / jnp.sqrt(var + 1e-6) + p['ln_b']
    out = jnp.maximum(out, 0.0)
    res = jnp.einsum('sd,dij->sij', p['w_res'], x) + p['res_b']
    return out + res


def _ref_forward(params, x_nchw):
    x = x_nchw[0]
    sums = [jnp.sum(x, axis=(1, 2))]
    for p in params['layers']:
        x = _ref_layer(x, p)
        sums.append(jnp.sum(x, axis=(1, 2)))
    feat = jnp.concatenate(sums)[None, :]
    r = params['readout']
    h = jnp.maximum(feat @ r['w'][0] + r['b'][0], 0.0)
    h = jnp.maximum(h @ r['w'][1] + r['b'][1], 0.0)
    return h @ r['w'][2] + r['b'][2]


# ---------------------------------------------------------------------------
if __name__ == "__main__":
    net_params = dict(num_atom_type=4, num_bond_type=3, avg_node_num=16, radius=2,
                      hidden_dim=16, dropout=0.0, L=2, layer_norm=True, residual=True,
                      edge_feat=False, device=None)

    key = jax.random.PRNGKey(0)
    key, pkey, xkey = jax.random.split(key, 3)
    params = init_ring_gnn_params(pkey, net_params)

    batch = 2
    n_nodes = 16
    d0 = 1 + net_params['num_atom_type']
    x_no_edge_feat = jax.random.normal(xkey, (batch, d0, n_nodes, n_nodes), jnp.float32)
    x_with_edge_feat = None  # edge_feat=False -> unused, matching the PyTorch forward

    fwd = jax.jit(functools.partial(
        ring_gnn_forward,
        edge_feat=net_params['edge_feat'],
        layer_norm=net_params['layer_norm'],
        residual=net_params['residual']))

    out = fwd(params, x_no_edge_feat, x_with_edge_feat)
    out = jax.block_until_ready(out)

    assert out.shape == (batch, 1)
    assert bool(jnp.all(jnp.isfinite(out)))

    ref = jnp.concatenate([_ref_forward(params, x_no_edge_feat[b:b + 1]) for b in range(batch)],
                          axis=0)
    ref = jax.block_until_ready(ref)
    assert np.allclose(np.asarray(out), np.asarray(ref), rtol=1e-3, atol=1e-3), (out, ref)

    print("KERNEL_OK")
</pallas_src>

<mosaic_0001>
module attributes {stable_mosaic.version = 11 : i64} {
  func.func @_ring_gnn_kernel(%arg0: i32, %arg1: memref<1x5x256xf32, #tpu.memory_space<vmem>>, %arg2: memref<304x256xf32, #tpu.memory_space<vmem>>, %arg3: memref<16x256xf32, #tpu.memory_space<vmem>>, %arg4: memref<16x256xf32, #tpu.memory_space<vmem>>, %arg5: memref<16x256xf32, #tpu.memory_space<vmem>>, %arg6: memref<256x256xf32, #tpu.memory_space<vmem>>, %arg7: memref<256x256xf32, #tpu.memory_space<vmem>>, %arg8: memref<80x256xf32, #tpu.memory_space<vmem>>, %arg9: memref<1x256xf32, #tpu.memory_space<vmem>>, %arg10: memref<128x5xf32, #tpu.memory_space<vmem>>, %arg11: memref<192x40xf32, #tpu.memory_space<vmem>>, %arg12: memref<16x8xf32, #tpu.memory_space<vmem>>, %arg13: memref<128x16xf32, #tpu.memory_space<vmem>>, %arg14: memref<192x80xf32, #tpu.memory_space<vmem>>, %arg15: memref<16x8xf32, #tpu.memory_space<vmem>>, %arg16: memref<5x18xf32, #tpu.memory_space<vmem>>, %arg17: memref<16x18xf32, #tpu.memory_space<vmem>>, %arg18: memref<16x18xf32, #tpu.memory_space<vmem>>, %arg19: memref<1x18xf32, #tpu.memory_space<vmem>>, %arg20: memref<18x9xf32, #tpu.memory_space<vmem>>, %arg21: memref<1x9xf32, #tpu.memory_space<vmem>>, %arg22: memref<9x1xf32, #tpu.memory_space<vmem>>, %arg23: memref<1x1xf32, #tpu.memory_space<vmem>>, %arg24: memref<1x1x1xf32, #tpu.memory_space<vmem>>, %arg25: memref<80x16xf32, #tpu.memory_space<vmem>>, %arg26: memref<64x304xf32, #tpu.memory_space<vmem>>) attributes {dimension_semantics = [#tpu.dimension_semantics<parallel>], iteration_bounds = array<i64: 2>, scalar_prefetch = 0 : i64, scratch_operands = 2 : i64, tpu.core_type = #tpu.core_type<tc>, window_params = [{transform_indices = @transform_0, window_bounds = array<i64: 1, 5, 256>}, {pipeline_mode = #tpu.pipeline_mode<synchronous>, transform_indices = @transform_1, window_bounds = array<i64: 304, 256>}, {pipeline_mode = #tpu.pipeline_mode<synchronous>, transform_indices = @transform_2, window_bounds = array<i64: 16, 256>}, {pipeline_mode = #tpu.pipeline_mode<synchronous>, transform_indices = @transform_3, window_bounds = array<i64: 16, 256>}, {pipeline_mode = #tpu.pipeline_mode<synchronous>, transform_indices = @transform_4, window_bounds = array<i64: 16, 256>}, {pipeline_mode = #tpu.pipeline_mode<synchronous>, transform_indices = @transform_5, window_bounds = array<i64: 256, 256>}, {pipeline_mode = #tpu.pipeline_mode<synchronous>, transform_indices = @transform_6, window_bounds = array<i64: 256, 256>}, {pipeline_mode = #tpu.pipeline_mode<synchronous>, transform_indices = @transform_7, window_bounds = array<i64: 80, 256>}, {pipeline_mode = #tpu.pipeline_mode<synchronous>, transform_indices = @transform_8, window_bounds = array<i64: 1, 256>}, {pipeline_mode = #tpu.pipeline_mode<synchronous>, transform_indices = @transform_9, window_bounds = array<i64: 128, 5>}, {pipeline_mode = #tpu.pipeline_mode<synchronous>, transform_indices = @transform_10, window_bounds = array<i64: 192, 40>}, {pipeline_mode = #tpu.pipeline_mode<synchronous>, transform_indices = @transform_11, window_bounds = array<i64: 16, 8>}, {pipeline_mode = #tpu.pipeline_mode<synchronous>, transform_indices = @transform_12, window_bounds = array<i64: 128, 16>}, {pipeline_mode = #tpu.pipeline_mode<synchronous>, transform_indices = @transform_13, window_bounds = array<i64: 192, 80>}, {pipeline_mode = #tpu.pipeline_mode<synchronous>, transform_indices = @transform_14, window_bounds = array<i64: 16, 8>}, {pipeline_mode = #tpu.pipeline_mode<synchronous>, transform_indices = @transform_15, window_bounds = array<i64: 5, 18>}, {pipeline_mode = #tpu.pipeline_mode<synchronous>, transform_indices = @transform_16, window_bounds = array<i64: 16, 18>}, {pipeline_mode = #tpu.pipeline_mode<synchronous>, transform_indices = @transform_17, window_bounds = array<i64: 16, 18>}, {pipeline_mode = #tpu.pipeline_mode<synchronous>, transform_indices = @transform_18, window_bounds = array<i64: 1, 18>}, {pipeline_mode = #tpu.pipeline_mode<synchronous>, transform_indices = @transform_19, window_bounds = array<i64: 18, 9>}, {pipeline_mode = #tpu.pipeline_mode<synchronous>, transform_indices = @transform_20, window_bounds = array<i64: 1, 9>}, {pipeline_mode = #tpu.pipeline_mode<synchronous>, transform_indices = @transform_21, window_bounds = array<i64: 9, 1>}, {pipeline_mode = #tpu.pipeline_mode<synchronous>, transform_indices = @transform_22, window_bounds = array<i64: 1, 1>}, {transform_indices = @transform_23, window_bounds = array<i64: 1, 1, 1>}]} {
    %c0 = arith.constant 0 : index
    %c0_0 = arith.constant 0 : index
    %0 = vector.load %arg9[%c0, %c0_0] : memref<1x256xf32, #tpu.memory_space<vmem>>, vector<1x256xf32>
    %c0_1 = arith.constant 0 : index
    %c0_2 = arith.constant 0 : index
    %1 = vector.load %arg3[%c0_1, %c0_2] : memref<16x256xf32, #tpu.memory_space<vmem>>, vector<16x256xf32>
    %c0_3 = arith.constant 0 : index
    %c0_4 = arith.constant 0 : index
    %2 = vector.load %arg4[%c0_3, %c0_4] : memref<16x256xf32, #tpu.memory_space<vmem>>, vector<16x256xf32>
    %c0_5 = arith.constant 0 : index
    %c0_6 = arith.constant 0 : index
    %3 = vector.load %arg5[%c0_5, %c0_6] : memref<16x256xf32, #tpu.memory_space<vmem>>, vector<16x256xf32>
    %c0_7 = arith.constant 0 : index
    %c0_8 = arith.constant 0 : index
    %4 = vector.load %arg6[%c0_7, %c0_8] : memref<256x256xf32, #tpu.memory_space<vmem>>, vector<256x256xf32>
    %c0_9 = arith.constant 0 : index
    %c0_10 = arith.constant 0 : index
    %5 = vector.load %arg7[%c0_9, %c0_10] : memref<256x256xf32, #tpu.memory_space<vmem>>, vector<256x256xf32>
    %c0_11 = arith.constant 0 : index
    %c0_12 = arith.constant 0 : index
    %6 = vector.load %arg8[%c0_11, %c0_12] : memref<80x256xf32, #tpu.memory_space<vmem>>, vector<80x256xf32>
    %c0_13 = arith.constant 0 : index
    %c0_14 = arith.constant 0 : index
    %7 = vector.load %arg2[%c0_13, %c0_14] : memref<304x256xf32, #tpu.memory_space<vmem>>, vector<304x256xf32>
    %cst = arith.constant 0.000000e+00 : f32
    %8 = vector.broadcast %cst : f32 to vector<80x16xf32>
    %c0_15 = arith.constant 0 : index
    %c0_16 = arith.constant 0 : index
    %9 = vector.load %arg25[%c0_15, %c0_16] : memref<80x16xf32, #tpu.memory_space<vmem>>, vector<80x16xf32>
    tpu.vector_store %arg25[%c0_15, %c0_16], %8 {strides = array<i32>} : memref<80x16xf32, #tpu.memory_space<vmem>>, vector<80x16xf32>,
    %c0_17 = arith.constant 0 : index
    %c0_18 = arith.constant 0 : index
    %c0_19 = arith.constant 0 : index
    %10 = vector.load %arg1[%c0_17, %c0_18, %c0_19] : memref<1x5x256xf32, #tpu.memory_space<vmem>>, vector<1x5x256xf32>
    %11 = vector.shape_cast %10 : vector<1x5x256xf32> to vector<5x256xf32>
    %cst_20 = arith.constant dense<0.000000e+00> : vector<5xf32>
    %12 = vector.multi_reduction <add>, %11, %cst_20 [1] : vector<5x256xf32> to vector<5xf32>
    %13 = vector.shape_cast %12 : vector<5xf32> to vector<5x1xf32>
    %c0_21 = arith.constant 0 : index
    %c0_22 = arith.constant 0 : index
    %14 = vector.load %arg10[%c0_21, %c0_22] : memref<128x5xf32, #tpu.memory_space<vmem>>, vector<128x5xf32>
    %cst_23 = arith.constant dense<0.000000e+00> : vector<128x256xf32>
    %15 = tpu.matmul %14, %11, %cst_23 {dimension_numbers = #tpu.dot_dimension_numbers<[1], [0], [0], [1], [0, 0, 1, 1], [], []>} : vector<128x5xf32>, vector<5x256xf32>, vector<128x256xf32> -> vector<128x256xf32>
    %cst_24 = arith.constant dense<0.000000e+00> : vector<5x80xf32>
    %16 = tpu.matmul %11, %6, %cst_24 {dimension_numbers = #tpu.dot_dimension_numbers<[1], [1], [0], [0], [0, 0, 1, 0], [], []>} : vector<5x256xf32>, vector<80x256xf32>, vector<5x80xf32> -> vector<5x80xf32>
    %17 = vector.extract_strided_slice %16 {offsets = [0, 0], sizes = [5, 16], strides = [1, 1]} : vector<5x80xf32> to vector<5x16xf32>
    %c0_25 = arith.constant 0 : index
    %c0_26 = arith.constant 0 : index
    %18 = vector.load %arg25[%c0_25, %c0_26] : memref<80x16xf32, #tpu.memory_space<vmem>>, vector<5x16xf32>
    tpu.vector_store %arg25[%c0_25, %c0_26], %17 {strides = array<i32>} : memref<80x16xf32, #tpu.memory_space<vmem>>, vector<5x16xf32>,
    %19 = vector.extract_strided_slice %16 {offsets = [0, 16], sizes = [5, 16], strides = [1, 1]} : vector<5x80xf32> to vector<5x16xf32>
    %c8 = arith.constant 8 : index
    %c0_27 = arith.constant 0 : index
    %20 = vector.load %arg25[%c8, %c0_27] : memref<80x16xf32, #tpu.memory_space<vmem>>, vector<5x16xf32>
    tpu.vector_store %arg25[%c8, %c0_27], %19 {strides = array<i32>} : memref<80x16xf32, #tpu.memory_space<vmem>>, vector<5x16xf32>,
    %21 = vector.extract_strided_slice %16 {offsets = [0, 32], sizes = [5, 16], strides = [1, 1]} : vector<5x80xf32> to vector<5x16xf32>
    %c16 = arith.constant 16 : index
    %c0_28 = arith.constant 0 : index
    %22 = vector.load %arg25[%c16, %c0_28] : memref<80x16xf32, #tpu.memory_space<vmem>>, vector<5x16xf32>
    tpu.vector_store %arg25[%c16, %c0_28], %21 {strides = array<i32>} : memref<80x16xf32, #tpu.memory_space<vmem>>, vector<5x16xf32>,
    %23 = vector.extract_strided_slice %16 {offsets = [0, 48], sizes = [5, 16], strides = [1, 1]} : vector<5x80xf32> to vector<5x16xf32>
    %c24 = arith.constant 24 : index
    %c0_29 = arith.constant 0 : index
    %24 = vector.load %arg25[%c24, %c0_29] : memref<80x16xf32, #tpu.memory_space<vmem>>, vector<5x16xf32>
    tpu.vector_store %arg25[%c24, %c0_29], %23 {strides = array<i32>} : memref<80x16xf32, #tpu.memory_space<vmem>>, vector<5x16xf32>,
    %25 = vector.extract_strided_slice %16 {offsets = [0, 64], sizes = [5, 16], strides = [1, 1]} : vector<5x80xf32> to vector<5x16xf32>
    %c32 = arith.constant 32 : index
    %c0_30 = arith.constant 0 : index
    %26 = vector.load %arg25[%c32, %c0_30] : memref<80x16xf32, #tpu.memory_space<vmem>>, vector<5x16xf32>
    tpu.vector_store %arg25[%c32, %c0_30], %25 {strides = array<i32>} : memref<80x16xf32, #tpu.memory_space<vmem>>, vector<5x16xf32>,
    %c0_31 = arith.constant 0 : index
    %c0_32 = arith.constant 0 : index
    %27 = vector.load %arg11[%c0_31, %c0_32] : memref<192x40xf32, #tpu.memory_space<vmem>>, vector<192x40xf32>
    %c0_33 = arith.constant 0 : index
    %c0_34 = arith.constant 0 : index
    %28 = vector.load %arg25[%c0_33, %c0_34] : memref<80x16xf32, #tpu.memory_space<vmem>>, vector<40x16xf32>
    %cst_35 = arith.constant dense<0.000000e+00> : vector<192x16xf32>
    %29 = tpu.matmul %27, %28, %cst_35 {dimension_numbers = #tpu.dot_dimension_numbers<[1], [0], [0], [1], [0, 0, 1, 1], [], []>} : vector<192x40xf32>, vector<40x16xf32>, vector<192x16xf32> -> vector<192x16xf32>
    %30 = vector.extract_strided_slice %15 {offsets = [64, 0], sizes = [64, 256], strides = [1, 1]} : vector<128x256xf32> to vector<64x256xf32>
    %c0_36 = arith.constant 0 : index
    %c0_37 = arith.constant 0 : index
    %31 = vector.load %arg26[%c0_36, %c0_37] : memref<64x304xf32, #tpu.memory_space<vmem>>, vector<64x256xf32>
    tpu.vector_store %arg26[%c0_36, %c0_37], %30 {strides = array<i32>} : memref<64x304xf32, #tpu.memory_space<vmem>>, vector<64x256xf32>,
    %32 = vector.extract_strided_slice %29 {offsets = [0, 0], sizes = [64, 16], strides = [1, 1]} : vector<192x16xf32> to vector<64x16xf32>
    %c0_38 = arith.constant 0 : index
    %c256 = arith.constant 256 : index
    %33 = vector.load %arg26[%c0_38, %c256] : memref<64x304xf32, #tpu.memory_space<vmem>>, vector<64x16xf32>
    tpu.vector_store %arg26[%c0_38, %c256], %32 {strides = array<i32>} : memref<64x304xf32, #tpu.memory_space<vmem>>, vector<64x16xf32>,
    %34 = vector.extract_strided_slice %29 {offsets = [64, 0], sizes = [64, 16], strides = [1, 1]} : vector<192x16xf32> to vector<64x16xf32>
    %c0_39 = arith.constant 0 : index
    %c272 = arith.constant 272 : index
    %35 = vector.load %arg26[%c0_39, %c272] : memref<64x304xf32, #tpu.memory_space<vmem>>, vector<64x16xf32>
    tpu.vector_store %arg26[%c0_39, %c272], %34 {strides = array<i32>} : memref<64x304xf32, #tpu.memory_space<vmem>>, vector<64x16xf32>,
    %36 = vector.extract_strided_slice %29 {offsets = [128, 0], sizes = [64, 16], strides = [1, 1]} : vector<192x16xf32> to vector<64x16xf32>
    %c0_40 = arith.constant 0 : index
    %c288 = arith.constant 288 : index
    %37 = vector.load %arg26[%c0_40, %c288] : memref<64x304xf32, #tpu.memory_space<vmem>>, vector<64x16xf32>
    tpu.vector_store %arg26[%c0_40, %c288], %36 {strides = array<i32>} : memref<64x304xf32, #tpu.memory_space<vmem>>, vector<64x16xf32>,
    %38 = vector.extract_strided_slice %15 {offsets = [0, 0], sizes = [64, 256], strides = [1, 1]} : vector<128x256xf32> to vector<64x256xf32>
    %c0_41 = arith.constant 0 : index
    %c0_42 = arith.constant 0 : index
    %39 = vector.load %arg26[%c0_41, %c0_42] : memref<64x304xf32, #tpu.memory_space<vmem>>, vector<64x304xf32>
    %cst_43 = arith.constant dense<0.000000e+00> : vector<64x256xf32>
    %40 = tpu.matmul %39, %7, %cst_43 {dimension_numbers = #tpu.dot_dimension_numbers<[1], [0], [0], [1], [0, 0, 1, 1], [], []>} : vector<64x304xf32>, vector<304x256xf32>, vector<64x256xf32> -> vector<64x256xf32>
    %41 = arith.addf %38, %40 : vector<64x256xf32>
    %42 = vector.extract_strided_slice %41 {offsets = [0, 0], sizes = [16, 256], strides = [1, 1]} : vector<64x256xf32> to vector<16x256xf32>
    %43 = vector.extract_strided_slice %41 {offsets = [16, 0], sizes = [16, 256], strides = [1, 1]} : vector<64x256xf32> to vector<16x256xf32>
    %44 = vector.extract_strided_slice %41 {offsets = [32, 0], sizes = [16, 256], strides = [1, 1]} : vector<64x256xf32> to vector<16x256xf32>
    %45 = vector.extract_strided_slice %41 {offsets = [48, 0], sizes = [16, 256], strides = [1, 1]} : vector<64x256xf32> to vector<16x256xf32>
    %c0_44 = arith.constant 0 : index
    %c0_45 = arith.constant 0 : index
    %46 = vector.load %arg12[%c0_44, %c0_45] : memref<16x8xf32, #tpu.memory_space<vmem>>, vector<16x8xf32>
    %47 = vector.extract_strided_slice %46 {offsets = [0, 0], sizes = [16, 1], strides = [1, 1]} : vector<16x8xf32> to vector<16x1xf32>
    %48 = vector.extract_strided_slice %46 {offsets = [0, 1], sizes = [16, 1], strides = [1, 1]} : vector<16x8xf32> to vector<16x1xf32>
    %49 = vector.extract_strided_slice %46 {offsets = [0, 2], sizes = [16, 1], strides = [1, 1]} : vector<16x8xf32> to vector<16x1xf32>
    %50 = vector.extract_strided_slice %46 {offsets = [0, 3], sizes = [16, 1], strides = [1, 1]} : vector<16x8xf32> to vector<16x1xf32>
    %51 = vector.extract_strided_slice %46 {offsets = [0, 4], sizes = [16, 1], strides = [1, 1]} : vector<16x8xf32> to vector<16x1xf32>
    %52 = vector.extract_strided_slice %46 {offsets = [0, 5], sizes = [16, 1], strides = [1, 1]} : vector<16x8xf32> to vector<16x1xf32>
    %53 = vector.extract_strided_slice %46 {offsets = [0, 6], sizes = [16, 1], strides = [1, 1]} : vector<16x8xf32> to vector<16x1xf32>
    %54 = vector.extract_strided_slice %46 {offsets = [0, 7], sizes = [16, 1], strides = [1, 1]} : vector<16x8xf32> to vector<16x1xf32>
    %55 = vector.broadcast %47 : vector<16x1xf32> to vector<16x256xf32>
    %56 = vector.broadcast %0 : vector<1x256xf32> to vector<16x256xf32>
    %57 = arith.mulf %55, %56 : vector<16x256xf32>
    %58 = arith.addf %42, %57 : vector<16x256xf32>
    %59 = vector.broadcast %48 : vector<16x1xf32> to vector<16x256xf32>
    %60 = vector.broadcast %0 : vector<1x256xf32> to vector<16x256xf32>
    %61 = arith.mulf %59, %60 : vector<16x256xf32>
    %62 = arith.addf %43, %61 : vector<16x256xf32>
    %cst_46 = arith.constant dense<0.000000e+00> : vector<256x256xf32>
    %63 = tpu.matmul %2, %44, %cst_46 {dimension_numbers = #tpu.dot_dimension_numbers<[0], [0], [1], [1], [0, 1, 1, 1], [], []>} : vector<16x256xf32>, vector<16x256xf32>, vector<256x256xf32> -> vector<256x256xf32>
    %64 = arith.mulf %63, %4 : vector<256x256xf32>
    %cst_47 = arith.constant dense<0.000000e+00> : vector<256x16xf32>
    %65 = tpu.matmul %64, %1, %cst_47 {dimension_numbers = #tpu.dot_dimension_numbers<[1], [1], [0], [0], [0, 0, 1, 0], [], []>} : vector<256x256xf32>, vector<16x256xf32>, vector<256x16xf32> -> vector<256x16xf32>
    %cst_48 = arith.constant dense<0.000000e+00> : vector<256x256xf32>
    %66 = tpu.matmul %2, %62, %cst_48 {dimension_numbers = #tpu.dot_dimension_numbers<[0], [0], [1], [1], [0, 1, 1, 1], [], []>} : vector<16x256xf32>, vector<16x256xf32>, vector<256x256xf32> -> vector<256x256xf32>
    %67 = arith.mulf %66, %4 : vector<256x256xf32>
    %cst_49 = arith.constant dense<0.000000e+00> : vector<256x16xf32>
    %68 = tpu.matmul %67, %1, %cst_49 {dimension_numbers = #tpu.dot_dimension_numbers<[1], [1], [0], [0], [0, 0, 1, 0], [], []>} : vector<256x256xf32>, vector<16x256xf32>, vector<256x16xf32> -> vector<256x16xf32>
    %cst_50 = arith.constant dense<0.000000e+00> : vector<256x256xf32>
    %69 = tpu.matmul %65, %3, %cst_50 {dimension_numbers = #tpu.dot_dimension_numbers<[1], [0], [0], [1], [0, 0, 1, 1], [], []>} : vector<256x16xf32>, vector<16x256xf32>, vector<256x256xf32> -> vector<256x256xf32>
    %70 = arith.mulf %69, %5 : vector<256x256xf32>
    %cst_51 = arith.constant dense<0.000000e+00> : vector<256x16xf32>
    %71 = tpu.matmul %70, %68, %cst_51 {dimension_numbers = #tpu.dot_dimension_numbers<[1], [0], [0], [1], [0, 0, 1, 1], [], []>} : vector<256x256xf32>, vector<256x16xf32>, vector<256x16xf32> -> vector<256x16xf32>
    %cst_52 = arith.constant dense<0.000000e+00> : vector<256x256xf32>
    %72 = tpu.matmul %71, %1, %cst_52 {dimension_numbers = #tpu.dot_dimension_numbers<[1], [0], [0], [1], [0, 0, 1, 1], [], []>} : vector<256x16xf32>, vector<16x256xf32>, vector<256x256xf32> -> vector<256x256xf32>
    %73 = arith.mulf %72, %4 : vector<256x256xf32>
    %cst_53 = arith.constant dense<0.000000e+00> : vector<16x256xf32>
    %74 = tpu.matmul %2, %73, %cst_53 {dimension_numbers = #tpu.dot_dimension_numbers<[1], [0], [0], [1], [0, 0, 1, 1], [], []>} : vector<16x256xf32>, vector<256x256xf32>, vector<16x256xf32> -> vector<16x256xf32>
    %75 = vector.broadcast %53 : vector<16x1xf32> to vector<16x256xf32>
    %76 = arith.mulf %75, %58 : vector<16x256xf32>
    %77 = vector.broadcast %54 : vector<16x1xf32> to vector<16x256xf32>
    %78 = arith.mulf %77, %74 : vector<16x256xf32>
    %79 = arith.addf %76, %78 : vector<16x256xf32>
    %80 = vector.broadcast %49 : vector<16x1xf32> to vector<16x256xf32>
    %81 = arith.addf %79, %80 : vector<16x256xf32>
    %cst_54 = arith.constant dense<0.000000e+00> : vector<16xf32>
    %82 = vector.multi_reduction <add>, %81, %cst_54 [1] : vector<16x256xf32> to vector<16xf32>
    %83 = vector.shape_cast %82 : vector<16xf32> to vector<16x1xf32>
    %cst_55 = arith.constant 2.560000e+02 : f32
    %84 = vector.broadcast %cst_55 : f32 to vector<16x1xf32>
    %85 = arith.divf %83, %84 : vector<16x1xf32>
    %86 = vector.broadcast %85 : vector<16x1xf32> to vector<16x256xf32>
    %87 = arith.subf %81, %86 : vector<16x256xf32>
    %88 = arith.mulf %87, %87 : vector<16x256xf32>
    %cst_56 = arith.constant dense<0.000000e+00> : vector<16xf32>
    %89 = vector.multi_reduction <add>, %88, %cst_56 [1] : vector<16x256xf32> to vector<16xf32>
    %90 = vector.shape_cast %89 : vector<16xf32> to vector<16x1xf32>
    %cst_57 = arith.constant 2.560000e+02 : f32
    %91 = vector.broadcast %cst_57 : f32 to vector<16x1xf32>
    %92 = arith.divf %90, %91 : vector<16x1xf32>
    %93 = vector.broadcast %51 : vector<16x1xf32> to vector<16x256xf32>
    %94 = arith.mulf %93, %87 : vector<16x256xf32>
    %cst_58 = arith.constant 9.99999997E-7 : f32
    %95 = vector.broadcast %cst_58 : f32 to vector<16x1xf32>
    %96 = arith.addf %92, %95 : vector<16x1xf32>
    %97 = math.rsqrt %96 : vector<16x1xf32>
    %98 = vector.broadcast %97 : vector<16x1xf32> to vector<16x256xf32>
    %99 = arith.mulf %94, %98 : vector<16x256xf32>
    %100 = vector.broadcast %52 : vector<16x1xf32> to vector<16x256xf32>
    %101 = arith.addf %99, %100 : vector<16x256xf32>
    %cst_59 = arith.constant 0.000000e+00 : f32
    %102 = vector.broadcast %cst_59 : f32 to vector<16x256xf32>
    %103 = arith.maximumf %101, %102 : vector<16x256xf32>
    %104 = arith.addf %103, %45 : vector<16x256xf32>
    %105 = vector.broadcast %50 : vector<16x1xf32> to vector<16x256xf32>
    %106 = arith.addf %104, %105 : vector<16x256xf32>
    %cst_60 = arith.constant dense<0.000000e+00> : vector<16xf32>
    %107 = vector.multi_reduction <add>, %106, %cst_60 [1] : vector<16x256xf32> to vector<16xf32>
    %108 = vector.shape_cast %107 : vector<16xf32> to vector<16x1xf32>
    %c0_61 = arith.constant 0 : index
    %c0_62 = arith.constant 0 : index
    %109 = vector.load %arg13[%c0_61, %c0_62] : memref<128x16xf32, #tpu.memory_space<vmem>>, vector<128x16xf32>
    %cst_63 = arith.constant dense<0.000000e+00> : vector<128x256xf32>
    %110 = tpu.matmul %109, %106, %cst_63 {dimension_numbers = #tpu.dot_dimension_numbers<[1], [0], [0], [1], [0, 0, 1, 1], [], []>} : vector<128x16xf32>, vector<16x256xf32>, vector<128x256xf32> -> vector<128x256xf32>
    %cst_64 = arith.constant dense<0.000000e+00> : vector<16x80xf32>
    %111 = tpu.matmul %106, %6, %cst_64 {dimension_numbers = #tpu.dot_dimension_numbers<[1], [1], [0], [0], [0, 0, 1, 0], [], []>} : vector<16x256xf32>, vector<80x256xf32>, vector<16x80xf32> -> vector<16x80xf32>
    %112 = vector.extract_strided_slice %111 {offsets = [0, 0], sizes = [16, 16], strides = [1, 1]} : vector<16x80xf32> to vector<16x16xf32>
    %c0_65 = arith.constant 0 : index
    %c0_66 = arith.constant 0 : index
    %113 = vector.load %arg25[%c0_65, %c0_66] : memref<80x16xf32, #tpu.memory_space<vmem>>, vector<16x16xf32>
    tpu.vector_store %arg25[%c0_65, %c0_66], %112 {strides = array<i32>} : memref<80x16xf32, #tpu.memory_space<vmem>>, vector<16x16xf32>,
    %114 = vector.extract_strided_slice %111 {offsets = [0, 16], sizes = [16, 16], strides = [1, 1]} : vector<16x80xf32> to vector<16x16xf32>
    %c16_67 = arith.constant 16 : index
    %c0_68 = arith.constant 0 : index
    %115 = vector.load %arg25[%c16_67, %c0_68] : memref<80x16xf32, #tpu.memory_space<vmem>>, vector<16x16xf32>
    tpu.vector_store %arg25[%c16_67, %c0_68], %114 {strides = array<i32>} : memref<80x16xf32, #tpu.memory_space<vmem>>, vector<16x16xf32>,
    %116 = vector.extract_strided_slice %111 {offsets = [0, 32], sizes = [16, 16], strides = [1, 1]} : vector<16x80xf32> to vector<16x16xf32>
    %c32_69 = arith.constant 32 : index
    %c0_70 = arith.constant 0 : index
    %117 = vector.load %arg25[%c32_69, %c0_70] : memref<80x16xf32, #tpu.memory_space<vmem>>, vector<16x16xf32>
    tpu.vector_store %arg25[%c32_69, %c0_70], %116 {strides = array<i32>} : memref<80x16xf32, #tpu.memory_space<vmem>>, vector<16x16xf32>,
    %118 = vector.extract_strided_slice %111 {offsets = [0, 48], sizes = [16, 16], strides = [1, 1]} : vector<16x80xf32> to vector<16x16xf32>
    %c48 = arith.constant 48 : index
    %c0_71 = arith.constant 0 : index
    %119 = vector.load %arg25[%c48, %c0_71] : memref<80x16xf32, #tpu.memory_space<vmem>>, vector<16x16xf32>
    tpu.vector_store %arg25[%c48, %c0_71], %118 {strides = array<i32>} : memref<80x16xf32, #tpu.memory_space<vmem>>, vector<16x16xf32>,
    %120 = vector.extract_strided_slice %111 {offsets = [0, 64], sizes = [16, 16], strides = [1, 1]} : vector<16x80xf32> to vector<16x16xf32>
    %c64 = arith.constant 64 : index
    %c0_72 = arith.constant 0 : index
    %121 = vector.load %arg25[%c64, %c0_72] : memref<80x16xf32, #tpu.memory_space<vmem>>, vector<16x16xf32>
    tpu.vector_store %arg25[%c64, %c0_72], %120 {strides = array<i32>} : memref<80x16xf32, #tpu.memory_space<vmem>>, vector<16x16xf32>,
    %c0_73 = arith.constant 0 : index
    %c0_74 = arith.constant 0 : index
    %122 = vector.load %arg14[%c0_73, %c0_74] : memref<192x80xf32, #tpu.memory_space<vmem>>, vector<192x80xf32>
    %c0_75 = arith.constant 0 : index
    %c0_76 = arith.constant 0 : index
    %123 = vector.load %arg25[%c0_75, %c0_76] : memref<80x16xf32, #tpu.memory_space<vmem>>, vector<80x16xf32>
    %cst_77 = arith.constant dense<0.000000e+00> : vector<192x16xf32>
    %124 = tpu.matmul %122, %123, %cst_77 {dimension_numbers = #tpu.dot_dimension_numbers<[1], [0], [0], [1], [0, 0, 1, 1], [], []>} : vector<192x80xf32>, vector<80x16xf32>, vector<192x16xf32> -> vector<192x16xf32>
    %125 = vector.extract_strided_slice %110 {offsets = [64, 0], sizes = [64, 256], strides = [1, 1]} : vector<128x256xf32> to vector<64x256xf32>
    %c0_78 = arith.constant 0 : index
    %c0_79 = arith.constant 0 : index
    %126 = vector.load %arg26[%c0_78, %c0_79] : memref<64x304xf32, #tpu.memory_space<vmem>>, vector<64x256xf32>
    tpu.vector_store %arg26[%c0_78, %c0_79], %125 {strides = array<i32>} : memref<64x304xf32, #tpu.memory_space<vmem>>, vector<64x256xf32>,
    %127 = vector.extract_strided_slice %124 {offsets = [0, 0], sizes = [64, 16], strides = [1, 1]} : vector<192x16xf32> to vector<64x16xf32>
    %c0_80 = arith.constant 0 : index
    %c256_81 = arith.constant 256 : index
    %128 = vector.load %arg26[%c0_80, %c256_81] : memref<64x304xf32, #tpu.memory_space<vmem>>, vector<64x16xf32>
    tpu.vector_store %arg26[%c0_80, %c256_81], %127 {strides = array<i32>} : memref<64x304xf32, #tpu.memory_space<vmem>>, vector<64x16xf32>,
    %129 = vector.extract_strided_slice %124 {offsets = [64, 0], sizes = [64, 16], strides = [1, 1]} : vector<192x16xf32> to vector<64x16xf32>
    %c0_82 = arith.constant 0 : index
    %c272_83 = arith.constant 272 : index
    %130 = vector.load %arg26[%c0_82, %c272_83] : memref<64x304xf32, #tpu.memory_space<vmem>>, vector<64x16xf32>
    tpu.vector_store %arg26[%c0_82, %c272_83], %129 {strides = array<i32>} : memref<64x304xf32, #tpu.memory_space<vmem>>, vector<64x16xf32>,
    %131 = vector.extract_strided_slice %124 {offsets = [128, 0], sizes = [64, 16], strides = [1, 1]} : vector<192x16xf32> to vector<64x16xf32>
    %c0_84 = arith.constant 0 : index
    %c288_85 = arith.constant 288 : index
    %132 = vector.load %arg26[%c0_84, %c288_85] : memref<64x304xf32, #tpu.memory_space<vmem>>, vector<64x16xf32>
    tpu.vector_store %arg26[%c0_84, %c288_85], %131 {strides = array<i32>} : memref<64x304xf32, #tpu.memory_space<vmem>>, vector<64x16xf32>,
    %133 = vector.extract_strided_slice %110 {offsets = [0, 0], sizes = [64, 256], strides = [1, 1]} : vector<128x256xf32> to vector<64x256xf32>
    %c0_86 = arith.constant 0 : index
    %c0_87 = arith.constant 0 : index
    %134 = vector.load %arg26[%c0_86, %c0_87] : memref<64x304xf32, #tpu.memory_space<vmem>>, vector<64x304xf32>
    %cst_88 = arith.constant dense<0.000000e+00> : vector<64x256xf32>
    %135 = tpu.matmul %134, %7, %cst_88 {dimension_numbers = #tpu.dot_dimension_numbers<[1], [0], [0], [1], [0, 0, 1, 1], [], []>} : vector<64x304xf32>, vector<304x256xf32>, vector<64x256xf32> -> vector<64x256xf32>
    %136 = arith.addf %133, %135 : vector<64x256xf32>
    %137 = vector.extract_strided_slice %136 {offsets = [0, 0], sizes = [16, 256], strides = [1, 1]} : vector<64x256xf32> to vector<16x256xf32>
    %138 = vector.extract_strided_slice %136 {offsets = [16, 0], sizes = [16, 256], strides = [1, 1]} : vector<64x256xf32> to vector<16x256xf32>
    %139 = vector.extract_strided_slice %136 {offsets = [32, 0], sizes = [16, 256], strides = [1, 1]} : vector<64x256xf32> to vector<16x256xf32>
    %140 = vector.extract_strided_slice %136 {offsets = [48, 0], sizes = [16, 256], strides = [1, 1]} : vector<64x256xf32> to vector<16x256xf32>
    %c0_89 = arith.constant 0 : index
    %c0_90 = arith.constant 0 : index
    %141 = vector.load %arg15[%c0_89, %c0_90] : memref<16x8xf32, #tpu.memory_space<vmem>>, vector<16x8xf32>
    %142 = vector.extract_strided_slice %141 {offsets = [0, 0], sizes = [16, 1], strides = [1, 1]} : vector<16x8xf32> to vector<16x1xf32>
    %143 = vector.extract_strided_slice %141 {offsets = [0, 1], sizes = [16, 1], strides = [1, 1]} : vector<16x8xf32> to vector<16x1xf32>
    %144 = vector.extract_strided_slice %141 {offsets = [0, 2], sizes = [16, 1], strides = [1, 1]} : vector<16x8xf32> to vector<16x1xf32>
    %145 = vector.extract_strided_slice %141 {offsets = [0, 3], sizes = [16, 1], strides = [1, 1]} : vector<16x8xf32> to vector<16x1xf32>
    %146 = vector.extract_strided_slice %141 {offsets = [0, 4], sizes = [16, 1], strides = [1, 1]} : vector<16x8xf32> to vector<16x1xf32>
    %147 = vector.extract_strided_slice %141 {offsets = [0, 5], sizes = [16, 1], strides = [1, 1]} : vector<16x8xf32> to vector<16x1xf32>
    %148 = vector.extract_strided_slice %141 {offsets = [0, 6], sizes = [16, 1], strides = [1, 1]} : vector<16x8xf32> to vector<16x1xf32>
    %149 = vector.extract_strided_slice %141 {offsets = [0, 7], sizes = [16, 1], strides = [1, 1]} : vector<16x8xf32> to vector<16x1xf32>
    %150 = vector.broadcast %142 : vector<16x1xf32> to vector<16x256xf32>
    %151 = vector.broadcast %0 : vector<1x256xf32> to vector<16x256xf32>
    %152 = arith.mulf %150, %151 : vector<16x256xf32>
    %153 = arith.addf %137, %152 : vector<16x256xf32>
    %154 = vector.broadcast %143 : vector<16x1xf32> to vector<16x256xf32>
    %155 = vector.broadcast %0 : vector<1x256xf32> to vector<16x256xf32>
    %156 = arith.mulf %154, %155 : vector<16x256xf32>
    %157 = arith.addf %138, %156 : vector<16x256xf32>
    %cst_91 = arith.constant dense<0.000000e+00> : vector<256x256xf32>
    %158 = tpu.matmul %2, %139, %cst_91 {dimension_numbers = #tpu.dot_dimension_numbers<[0], [0], [1], [1], [0, 1, 1, 1], [], []>} : vector<16x256xf32>, vector<16x256xf32>, vector<256x256xf32> -> vector<256x256xf32>
    %159 = arith.mulf %158, %4 : vector<256x256xf32>
    %cst_92 = arith.constant dense<0.000000e+00> : vector<256x16xf32>
    %160 = tpu.matmul %159, %1, %cst_92 {dimension_numbers = #tpu.dot_dimension_numbers<[1], [1], [0], [0], [0, 0, 1, 0], [], []>} : vector<256x256xf32>, vector<16x256xf32>, vector<256x16xf32> -> vector<256x16xf32>
    %cst_93 = arith.constant dense<0.000000e+00> : vector<256x256xf32>
    %161 = tpu.matmul %2, %157, %cst_93 {dimension_numbers = #tpu.dot_dimension_numbers<[0], [0], [1], [1], [0, 1, 1, 1], [], []>} : vector<16x256xf32>, vector<16x256xf32>, vector<256x256xf32> -> vector<256x256xf32>
    %162 = arith.mulf %161, %4 : vector<256x256xf32>
    %cst_94 = arith.constant dense<0.000000e+00> : vector<256x16xf32>
    %163 = tpu.matmul %162, %1, %cst_94 {dimension_numbers = #tpu.dot_dimension_numbers<[1], [1], [0], [0], [0, 0, 1, 0], [], []>} : vector<256x256xf32>, vector<16x256xf32>, vector<256x16xf32> -> vector<256x16xf32>
    %cst_95 = arith.constant dense<0.000000e+00> : vector<256x256xf32>
    %164 = tpu.matmul %160, %3, %cst_95 {dimension_numbers = #tpu.dot_dimension_numbers<[1], [0], [0], [1], [0, 0, 1, 1], [], []>} : vector<256x16xf32>, vector<16x256xf32>, vector<256x256xf32> -> vector<256x256xf32>
    %165 = arith.mulf %164, %5 : vector<256x256xf32>
    %cst_96 = arith.constant dense<0.000000e+00> : vector<256x16xf32>
    %166 = tpu.matmul %165, %163, %cst_96 {dimension_numbers = #tpu.dot_dimension_numbers<[1], [0], [0], [1], [0, 0, 1, 1], [], []>} : vector<256x256xf32>, vector<256x16xf32>, vector<256x16xf32> -> vector<256x16xf32>
    %cst_97 = arith.constant dense<0.000000e+00> : vector<256x256xf32>
    %167 = tpu.matmul %166, %1, %cst_97 {dimension_numbers = #tpu.dot_dimension_numbers<[1], [0], [0], [1], [0, 0, 1, 1], [], []>} : vector<256x16xf32>, vector<16x256xf32>, vector<256x256xf32> -> vector<256x256xf32>
    %168 = arith.mulf %167, %4 : vector<256x256xf32>
    %cst_98 = arith.constant dense<0.000000e+00> : vector<16x256xf32>
    %169 = tpu.matmul %2, %168, %cst_98 {dimension_numbers = #tpu.dot_dimension_numbers<[1], [0], [0], [1], [0, 0, 1, 1], [], []>} : vector<16x256xf32>, vector<256x256xf32>, vector<16x256xf32> -> vector<16x256xf32>
    %170 = vector.broadcast %148 : vector<16x1xf32> to vector<16x256xf32>
    %171 = arith.mulf %170, %153 : vector<16x256xf32>
    %172 = vector.broadcast %149 : vector<16x1xf32> to vector<16x256xf32>
    %173 = arith.mulf %172, %169 : vector<16x256xf32>
    %174 = arith.addf %171, %173 : vector<16x256xf32>
    %175 = vector.broadcast %144 : vector<16x1xf32> to vector<16x256xf32>
    %176 = arith.addf %174, %175 : vector<16x256xf32>
    %cst_99 = arith.constant dense<0.000000e+00> : vector<16xf32>
    %177 = vector.multi_reduction <add>, %176, %cst_99 [1] : vector<16x256xf32> to vector<16xf32>
    %178 = vector.shape_cast %177 : vector<16xf32> to vector<16x1xf32>
    %cst_100 = arith.constant 2.560000e+02 : f32
    %179 = vector.broadcast %cst_100 : f32 to vector<16x1xf32>
    %180 = arith.divf %178, %179 : vector<16x1xf32>
    %181 = vector.broadcast %180 : vector<16x1xf32> to vector<16x256xf32>
    %182 = arith.subf %176, %181 : vector<16x256xf32>
    %183 = arith.mulf %182, %182 : vector<16x256xf32>
    %cst_101 = arith.constant dense<0.000000e+00> : vector<16xf32>
    %184 = vector.multi_reduction <add>, %183, %cst_101 [1] : vector<16x256xf32> to vector<16xf32>
    %185 = vector.shape_cast %184 : vector<16xf32> to vector<16x1xf32>
    %cst_102 = arith.constant 2.560000e+02 : f32
    %186 = vector.broadcast %cst_102 : f32 to vector<16x1xf32>
    %187 = arith.divf %185, %186 : vector<16x1xf32>
    %188 = vector.broadcast %146 : vector<16x1xf32> to vector<16x256xf32>
    %189 = arith.mulf %188, %182 : vector<16x256xf32>
    %cst_103 = arith.constant 9.99999997E-7 : f32
    %190 = vector.broadcast %cst_103 : f32 to vector<16x1xf32>
    %191 = arith.addf %187, %190 : vector<16x1xf32>
    %192 = math.rsqrt %191 : vector<16x1xf32>
    %193 = vector.broadcast %192 : vector<16x1xf32> to vector<16x256xf32>
    %194 = arith.mulf %189, %193 : vector<16x256xf32>
    %195 = vector.broadcast %147 : vector<16x1xf32> to vector<16x256xf32>
    %196 = arith.addf %194, %195 : vector<16x256xf32>
    %cst_104 = arith.constant 0.000000e+00 : f32
    %197 = vector.broadcast %cst_104 : f32 to vector<16x256xf32>
    %198 = arith.maximumf %196, %197 : vector<16x256xf32>
    %199 = arith.addf %198, %140 : vector<16x256xf32>
    %200 = vector.broadcast %145 : vector<16x1xf32> to vector<16x256xf32>
    %201 = arith.addf %199, %200 : vector<16x256xf32>
    %cst_105 = arith.constant dense<0.000000e+00> : vector<16xf32>
    %202 = vector.multi_reduction <add>, %201, %cst_105 [1] : vector<16x256xf32> to vector<16xf32>
    %203 = vector.shape_cast %202 : vector<16xf32> to vector<16x1xf32>
    %c0_106 = arith.constant 0 : index
    %c0_107 = arith.constant 0 : index
    %204 = vector.load %arg19[%c0_106, %c0_107] : memref<1x18xf32, #tpu.memory_space<vmem>>, vector<1x18xf32>
    %c0_108 = arith.constant 0 : index
    %c0_109 = arith.constant 0 : index
    %205 = vector.load %arg16[%c0_108, %c0_109] : memref<5x18xf32, #tpu.memory_space<vmem>>, vector<5x18xf32>
    %cst_110 = arith.constant dense<0.000000e+00> : vector<1x18xf32>
    %206 = tpu.matmul %13, %205, %cst_110 {dimension_numbers = #tpu.dot_dimension_numbers<[0], [0], [1], [1], [0, 1, 1, 1], [], []>} : vector<5x1xf32>, vector<5x18xf32>, vector<1x18xf32> -> vector<1x18xf32>
    %207 = arith.addf %204, %206 : vector<1x18xf32>
    %c0_111 = arith.constant 0 : index
    %c0_112 = arith.constant 0 : index
    %208 = vector.load %arg17[%c0_111, %c0_112] : memref<16x18xf32, #tpu.memory_space<vmem>>, vector<16x18xf32>
    %cst_113 = arith.constant dense<0.000000e+00> : vector<1x18xf32>
    %209 = tpu.matmul %108, %208, %cst_113 {dimension_numbers = #tpu.dot_dimension_numbers<[0], [0], [1], [1], [0, 1, 1, 1], [], []>} : vector<16x1xf32>, vector<16x18xf32>, vector<1x18xf32> -> vector<1x18xf32>
    %210 = arith.addf %207, %209 : vector<1x18xf32>
    %c0_114 = arith.constant 0 : index
    %c0_115 = arith.constant 0 : index
    %211 = vector.load %arg18[%c0_114, %c0_115] : memref<16x18xf32, #tpu.memory_space<vmem>>, vector<16x18xf32>
    %cst_116 = arith.constant dense<0.000000e+00> : vector<1x18xf32>
    %212 = tpu.matmul %203, %211, %cst_116 {dimension_numbers = #tpu.dot_dimension_numbers<[0], [0], [1], [1], [0, 1, 1, 1], [], []>} : vector<16x1xf32>, vector<16x18xf32>, vector<1x18xf32> -> vector<1x18xf32>
    %213 = arith.addf %210, %212 : vector<1x18xf32>
    %cst_117 = arith.constant 0.000000e+00 : f32
    %214 = vector.broadcast %cst_117 : f32 to vector<1x18xf32>
    %215 = arith.maximumf %213, %214 : vector<1x18xf32>
    %c0_118 = arith.constant 0 : index
    %c0_119 = arith.constant 0 : index
    %216 = vector.load %arg20[%c0_118, %c0_119] : memref<18x9xf32, #tpu.memory_space<vmem>>, vector<18x9xf32>
    %cst_120 = arith.constant dense<0.000000e+00> : vector<1x9xf32>
    %217 = tpu.matmul %215, %216, %cst_120 {dimension_numbers = #tpu.dot_dimension_numbers<[1], [0], [0], [1], [0, 0, 1, 1], [], []>} : vector<1x18xf32>, vector<18x9xf32>, vector<1x9xf32> -> vector<1x9xf32>
    %c0_121 = arith.constant 0 : index
    %c0_122 = arith.constant 0 : index
    %218 = vector.load %arg21[%c0_121, %c0_122] : memref<1x9xf32, #tpu.memory_space<vmem>>, vector<1x9xf32>
    %219 = arith.addf %217, %218 : vector<1x9xf32>
    %cst_123 = arith.constant 0.000000e+00 : f32
    %220 = vector.broadcast %cst_123 : f32 to vector<1x9xf32>
    %221 = arith.maximumf %219, %220 : vector<1x9xf32>
    %c0_124 = arith.constant 0 : index
    %c0_125 = arith.constant 0 : index
    %222 = vector.load %arg22[%c0_124, %c0_125] : memref<9x1xf32, #tpu.memory_space<vmem>>, vector<9x1xf32>
    %cst_126 = arith.constant dense<0.000000e+00> : vector<1x1xf32>
    %223 = tpu.matmul %221, %222, %cst_126 {dimension_numbers = #tpu.dot_dimension_numbers<[1], [0], [0], [1], [0, 0, 1, 1], [], []>} : vector<1x9xf32>, vector<9x1xf32>, vector<1x1xf32> -> vector<1x1xf32>
    %c0_127 = arith.constant 0 : index
    %c0_128 = arith.constant 0 : index
    %224 = vector.load %arg23[%c0_127, %c0_128] : memref<1x1xf32, #tpu.memory_space<vmem>>, vector<1x1xf32>
    %225 = arith.addf %223, %224 : vector<1x1xf32>
    %c0_129 = arith.constant 0 : index
    %c0_130 = arith.constant 0 : index
    %c0_131 = arith.constant 0 : index
    %226 = vector.load %arg24[%c0_129, %c0_130, %c0_131] : memref<1x1x1xf32, #tpu.memory_space<vmem>>, vector<1x1x1xf32>
    %227 = vector.shape_cast %226 : vector<1x1x1xf32> to vector<1x1xf32>
    %228 = vector.shape_cast %225 : vector<1x1xf32> to vector<1x1x1xf32>
    tpu.vector_store %arg24[%c0_129, %c0_130, %c0_131], %228 {strides = array<i32>} : memref<1x1x1xf32, #tpu.memory_space<vmem>>, vector<1x1x1xf32>,
    return
  }
  func.func @transform_0(%arg0: i32) -> (i32, i32, i32) {
    %c0_i32 = arith.constant 0 : i32
    %c0_i32_0 = arith.constant 0 : i32
    %c0_i32_1 = arith.constant 0 : i32
    return %arg0, %c0_i32, %c0_i32_0 : i32, i32, i32
  }
  func.func @transform_1(%arg0: i32) -> (i32, i32) {
    %c0_i32 = arith.constant 0 : i32
    %c0_i32_0 = arith.constant 0 : i32
    %c0_i32_1 = arith.constant 0 : i32
    return %c0_i32, %c0_i32_0 : i32, i32
  }
  func.func @transform_2(%arg0: i32) -> (i32, i32) {
    %c0_i32 = arith.constant 0 : i32
    %c0_i32_0 = arith.constant 0 : i32
    %c0_i32_1 = arith.constant 0 : i32
    return %c0_i32, %c0_i32_0 : i32, i32
  }
  func.func @transform_3(%arg0: i32) -> (i32, i32) {
    %c0_i32 = arith.constant 0 : i32
    %c0_i32_0 = arith.constant 0 : i32
    %c0_i32_1 = arith.constant 0 : i32
    return %c0_i32, %c0_i32_0 : i32, i32
  }
  func.func @transform_4(%arg0: i32) -> (i32, i32) {
    %c0_i32 = arith.constant 0 : i32
    %c0_i32_0 = arith.constant 0 : i32
    %c0_i32_1 = arith.constant 0 : i32
    return %c0_i32, %c0_i32_0 : i32, i32
  }
  func.func @transform_5(%arg0: i32) -> (i32, i32) {
    %c0_i32 = arith.constant 0 : i32
    %c0_i32_0 = arith.constant 0 : i32
    %c0_i32_1 = arith.constant 0 : i32
    return %c0_i32, %c0_i32_0 : i32, i32
  }
  func.func @transform_6(%arg0: i32) -> (i32, i32) {
    %c0_i32 = arith.constant 0 : i32
    %c0_i32_0 = arith.constant 0 : i32
    %c0_i32_1 = arith.constant 0 : i32
    return %c0_i32, %c0_i32_0 : i32, i32
  }
  func.func @transform_7(%arg0: i32) -> (i32, i32) {
    %c0_i32 = arith.constant 0 : i32
    %c0_i32_0 = arith.constant 0 : i32
    %c0_i32_1 = arith.constant 0 : i32
    return %c0_i32, %c0_i32_0 : i32, i32
  }
  func.func @transform_8(%arg0: i32) -> (i32, i32) {
    %c0_i32 = arith.constant 0 : i32
    %c0_i32_0 = arith.constant 0 : i32
    %c0_i32_1 = arith.constant 0 : i32
    return %c0_i32, %c0_i32_0 : i32, i32
  }
  func.func @transform_9(%arg0: i32) -> (i32, i32) {
    %c0_i32 = arith.constant 0 : i32
    %c0_i32_0 = arith.constant 0 : i32
    %c0_i32_1 = arith.constant 0 : i32
    return %c0_i32, %c0_i32_0 : i32, i32
  }
  func.func @transform_10(%arg0: i32) -> (i32, i32) {
    %c0_i32 = arith.constant 0 : i32
    %c0_i32_0 = arith.constant 0 : i32
    %c0_i32_1 = arith.constant 0 : i32
    return %c0_i32, %c0_i32_0 : i32, i32
  }
  func.func @transform_11(%arg0: i32) -> (i32, i32) {
    %c0_i32 = arith.constant 0 : i32
    %c0_i32_0 = arith.constant 0 : i32
    %c0_i32_1 = arith.constant 0 : i32
    return %c0_i32, %c0_i32_0 : i32, i32
  }
  func.func @transform_12(%arg0: i32) -> (i32, i32) {
    %c0_i32 = arith.constant 0 : i32
    %c0_i32_0 = arith.constant 0 : i32
    %c0_i32_1 = arith.constant 0 : i32
    return %c0_i32, %c0_i32_0 : i32, i32
  }
  func.func @transform_13(%arg0: i32) -> (i32, i32) {
    %c0_i32 = arith.constant 0 : i32
    %c0_i32_0 = arith.constant 0 : i32
    %c0_i32_1 = arith.constant 0 : i32
    return %c0_i32, %c0_i32_0 : i32, i32
  }
  func.func @transform_14(%arg0: i32) -> (i32, i32) {
    %c0_i32 = arith.constant 0 : i32
    %c0_i32_0 = arith.constant 0 : i32
    %c0_i32_1 = arith.constant 0 : i32
    return %c0_i32, %c0_i32_0 : i32, i32
  }
  func.func @transform_15(%arg0: i32) -> (i32, i32) {
    %c0_i32 = arith.constant 0 : i32
    %c0_i32_0 = arith.constant 0 : i32
    %c0_i32_1 = arith.constant 0 : i32
    return %c0_i32, %c0_i32_0 : i32, i32
  }
  func.func @transform_16(%arg0: i32) -> (i32, i32) {
    %c0_i32 = arith.constant 0 : i32
    %c0_i32_0 = arith.constant 0 : i32
    %c0_i32_1 = arith.constant 0 : i32
    return %c0_i32, %c0_i32_0 : i32, i32
  }
  func.func @transform_17(%arg0: i32) -> (i32, i32) {
    %c0_i32 = arith.constant 0 : i32
    %c0_i32_0 = arith.constant 0 : i32
    %c0_i32_1 = arith.constant 0 : i32
    return %c0_i32, %c0_i32_0 : i32, i32
  }
  func.func @transform_18(%arg0: i32) -> (i32, i32) {
    %c0_i32 = arith.constant 0 : i32
    %c0_i32_0 = arith.constant 0 : i32
    %c0_i32_1 = arith.constant 0 : i32
    return %c0_i32, %c0_i32_0 : i32, i32
  }
  func.func @transform_19(%arg0: i32) -> (i32, i32) {
    %c0_i32 = arith.constant 0 : i32
    %c0_i32_0 = arith.constant 0 : i32
    %c0_i32_1 = arith.constant 0 : i32
    return %c0_i32, %c0_i32_0 : i32, i32
  }
  func.func @transform_20(%arg0: i32) -> (i32, i32) {
    %c0_i32 = arith.constant 0 : i32
    %c0_i32_0 = arith.constant 0 : i32
    %c0_i32_1 = arith.constant 0 : i32
    return %c0_i32, %c0_i32_0 : i32, i32
  }
  func.func @transform_21(%arg0: i32) -> (i32, i32) {
    %c0_i32 = arith.constant 0 : i32
    %c0_i32_0 = arith.constant 0 : i32
    %c0_i32_1 = arith.constant 0 : i32
    return %c0_i32, %c0_i32_0 : i32, i32
  }
  func.func @transform_22(%arg0: i32) -> (i32, i32) {
    %c0_i32 = arith.constant 0 : i32
    %c0_i32_0 = arith.constant 0 : i32
    %c0_i32_1 = arith.constant 0 : i32
    return %c0_i32, %c0_i32_0 : i32, i32
  }
  func.func @transform_23(%arg0: i32) -> (i32, i32, i32) {
    %c0_i32 = arith.constant 0 : i32
    %c0_i32_0 = arith.constant 0 : i32
    %c0_i32_1 = arith.constant 0 : i32
    return %arg0, %c0_i32, %c0_i32_0 : i32, i32, i32
  }
}

</mosaic_0001>

<llo_original>
// kernel: ring_gnn_forward.1
$region0: #{ring_gnn_forward.1}
  #allocation0 [shape = 'u32[]', space=smem, size = 0x4, offset = 0x4, fixed_abs, tag = 'smem constant byte address 0x4 - core index']
  #allocation1 [shape = 'u32[144,128]{1,0:T(1,128)}', space=vmem, size = 0x12000, scoped, tag = 'internal scratch']
  #allocation2 [shape = 'f32[80,16]{1,0:T(8,128)}', space=vmem, size = 0xa000, scoped, tag = 'scratch operand']
  #allocation3 [shape = 'f32[64,304]{1,0:T(8,128)}', space=vmem, size = 0x18000, scoped, tag = 'scratch operand']
  #allocation4 [shape = 'f32[1,1]{1,0:T(1,128)S(1)}', space=vmem, size = 0x200, scoped, tag = 'scoped memory for ring_gnn_forward.1']
  %s0 = inlined_call_operand.vmem [shape: f32[2,5,256], index: 0, kind: input, shape index: {}]
  %s1 = inlined_call_operand.vmem [shape: f32[304,256], index: 1, kind: input, shape index: {}]
  %s2 = inlined_call_operand.hbm [shape: f32[16,256], index: 2, kind: input, shape index: {}, may-alias: {2,4}]
  %s3 = inlined_call_operand.hbm [shape: f32[16,256], index: 3, kind: input, shape index: {}]
  %s4 = inlined_call_operand.hbm [shape: f32[16,256], index: 4, kind: input, shape index: {}, may-alias: {2,4}]
  %s5 = inlined_call_operand.hbm [shape: f32[256,256], index: 5, kind: input, shape index: {}]
  %s6 = inlined_call_operand.vmem [shape: f32[256,256], index: 6, kind: input, shape index: {}]
  %s7 = inlined_call_operand.vmem [shape: f32[80,256], index: 7, kind: input, shape index: {}]
  %s8 = inlined_call_operand.vmem [shape: f32[1,256], index: 8, kind: input, shape index: {}]
  %s9 = inlined_call_operand.vmem [shape: f32[128,5], index: 9, kind: input, shape index: {}]
  %s10 = inlined_call_operand.vmem [shape: f32[192,40], index: 10, kind: input, shape index: {}]
  %s11 = inlined_call_operand.vmem [shape: f32[16,8], index: 11, kind: input, shape index: {}]
  %s12 = inlined_call_operand.vmem [shape: f32[128,16], index: 12, kind: input, shape index: {}]
  %s13 = inlined_call_operand.vmem [shape: f32[192,80], index: 13, kind: input, shape index: {}]
  %s14 = inlined_call_operand.vmem [shape: f32[16,8], index: 14, kind: input, shape index: {}]
  %s15 = inlined_call_operand.vmem [shape: f32[5,18], index: 15, kind: input, shape index: {}]
  %s16 = inlined_call_operand.vmem [shape: f32[16,18], index: 16, kind: input, shape index: {}]
  %s17 = inlined_call_operand.vmem [shape: f32[16,18], index: 17, kind: input, shape index: {}]
  %s18 = inlined_call_operand.vmem [shape: f32[1,18], index: 18, kind: input, shape index: {}]
  %s19 = inlined_call_operand.vmem [shape: f32[18,9], index: 19, kind: input, shape index: {}]
  %s20 = inlined_call_operand.hbm [shape: f32[1,9], index: 20, kind: input, shape index: {}]
  %s21 = inlined_call_operand.vmem [shape: f32[9,1], index: 21, kind: input, shape index: {}]
  %s22 = inlined_call_operand.<no memory space> [shape: f32[1,1], index: 22, kind: input, shape index: {}]
  %s23 = inlined_call_operand.vmem [shape: f32[2,1,1], index: 23, kind: output, shape index: {}]
  %s24 = sld [smem:[#allocation0]]
  $region145: #{ring_gnn_forward.1} parent=0
    _
  %s26 = ssub.s32 1, %s24
  %s27 = scalar_select 0, %s26, %s24
  %v28 = vstv %s22
  %29 = vst [vmem:[#allocation4] sm:$0x1] %v28
  $region1: #{ring_gnn_forward.1} parent=0
    #allocation5 [shape = 'u8[16384]{0}', space=vmem, size = 0x4000, scoped, tag = 'input window, operand 2, single buffered']
    #allocation6 [shape = 's32[2]{0}', space=sflag, size = 0x8, scoped, tag = 'scoped memory for ring_gnn_forward.1']
    #allocation7 [shape = 'u8[16384]{0}', space=vmem, size = 0x4000, scoped, tag = 'input window, operand 3, single buffered']
    #allocation8 [shape = 's32[1]{0}', space=sflag, size = 0x4, scoped, tag = 'scoped memory for ring_gnn_forward.1']
    #allocation9 [shape = 'u8[16384]{0}', space=vmem, size = 0x4000, scoped, tag = 'input window, operand 4, single buffered']
    #allocation10 [shape = 'u8[262144]{0}', space=vmem, size = 0x40000, scoped, tag = 'input window, operand 5, single buffered']
    #allocation11 [shape = 's32[1]{0}', space=sflag, size = 0x4, scoped, tag = 'scoped memory for ring_gnn_forward.1']
    #allocation12 [shape = 'u8[512]{0}', space=vmem, size = 0x400, scoped, tag = 'input window, operand 20, single buffered']
    %30 = vsyncpa [#allocation6], 0
    %31 = vsyncpa [#allocation8], 0
    %32 = vsyncpa [#allocation11], 0
    loop: start=0, step=1, limit=4
    $region2: #{ring_gnn_forward.1} parent=1 // loop_pre_header
      _
    $region3: #{ring_gnn_forward.1} parent=1 // loop_header
      %s34 = sphi 0, %s38
      %p35 = scmp.ge.s32.totalorder %s34, 4
      %s44 = sphi 0, %s46
      %s47 = sphi 0, %s44
      %s48 = sphi 0, %s47
      %s64 = sphi 0, %s48
      %s68 = sphi 0, %s68
      %s70 = sphi 0, %s68
      %s71 = sphi 0, %s70
      %s85 = sphi 0, %s71
      %s89 = sphi 0, %s89
      %s91 = sphi 0, %s89
      %s92 = sphi 0, %s91
      %s106 = sphi 0, %s92
      %s110 = sphi 0, %s110
      %s112 = sphi 0, %s110
      %s113 = sphi 0, %s112
      %s127 = sphi 0, %s113
      %s131 = sphi 0, %s131
      %s133 = sphi 0, %s131
      %s134 = sphi 0, %s133
      %s148 = sphi 0, %s134
      %s152 = sphi 0, %s152
      %s154 = sphi 0, %s152
      %s155 = sphi 0, %s154
      %s169 = sphi 0, %s155
      %s173 = sphi 0, %s173
      %s175 = sphi 0, %s173
      %s176 = sphi 0, %s175
      %s190 = sphi 0, %s176
      %s194 = sphi 0, %s194
      %s196 = sphi 0, %s194
      %s197 = sphi 0, %s196
      %s211 = sphi 0, %s197
      %s215 = sphi 0, %s215
      %s217 = sphi 0, %s215
      %s218 = sphi 0, %s217
      %s232 = sphi 0, %s218
      %s236 = sphi 0, %s236
      %s238 = sphi 0, %s236
      %s239 = sphi 0, %s238
      %s253 = sphi 0, %s239
      %s257 = sphi 0, %s257
      %s259 = sphi 0, %s257
      %s260 = sphi 0, %s259
      %s274 = sphi 0, %s260
      %s278 = sphi 0, %s278
      %s280 = sphi 0, %s278
      %s281 = sphi 0, %s280
      %s295 = sphi 0, %s281
      %s299 = sphi 0, %s299
      %s301 = sphi 0, %s299
      %s302 = sphi 0, %s301
      %s316 = sphi 0, %s302
      %s320 = sphi 0, %s320
      %s322 = sphi 0, %s320
      %s323 = sphi 0, %s322
      %s337 = sphi 0, %s323
      %s341 = sphi 0, %s341
      %s343 = sphi 0, %s341
      %s344 = sphi 0, %s343
      %s358 = sphi 0, %s344
      %s362 = sphi 0, %s362
      %s364 = sphi 0, %s362
      %s365 = sphi 0, %s364
      %s379 = sphi 0, %s365
      %s383 = sphi 0, %s383
      %s385 = sphi 0, %s383
      %s386 = sphi 0, %s385
      %s400 = sphi 0, %s386
      %s404 = sphi 0, %s404
      %s406 = sphi 0, %s404
      %s407 = sphi 0, %s406
      %s421 = sphi 0, %s407
      %s425 = sphi 0, %s425
      %s427 = sphi 0, %s425
      %s428 = sphi 0, %s427
      %s442 = sphi 0, %s428
      %s446 = sphi 0, %s446
      %s448 = sphi 0, %s446
      %s449 = sphi 0, %s448
      %s463 = sphi 0, %s449
      %s467 = sphi 0, %s467
      %s469 = sphi 0, %s467
      %s470 = sphi 0, %s469
      %s484 = sphi 0, %s470
      %s488 = sphi 0, %s488
      %s490 = sphi 0, %s488
      %s491 = sphi 0, %s490
      %s505 = sphi 0, %s491
      %s509 = sphi 0, %s509
      %s511 = sphi 0, %s509
      %s512 = sphi 0, %s511
      %s526 = sphi 0, %s512
      %s532 = sphi 0, %s534
      %s535 = sphi 0, %s532
      %s536 = sphi 0, %s535
      %s552 = sphi 0, %s536
    $region4: #{ring_gnn_forward.1} parent=1 // loop_header_branch
      %37 = sbr.rel (%p35) target = $region8
    $region5: #{ring_gnn_forward.1} parent=1 // loop_body
      %s39 = ssub.s32 %s34, 1
      %s40 = ssub.s32 %s34, 2
      %s41 = sadd.s32 %s34, 1
      %s42 = ssub.s32 %s34, %s41
      %p43 = scmp.eq.s32.totalorder %s42, 0
      %s45 = sadd.s32 %s44, 1
      %s46 = scalar_select %p43, %s44, %s45
      %p49 = pneg %p43
      %p50 = scmp.eq.s32.totalorder %s34, 1
      %p51 = por %p49, %p50
      %p52 = scmp.ne.s32.totalorder %s44, %s47
      %p53 = scmp.eq.s32.totalorder %s34, 0
      %p54 = por %p52, %p53
      %p55 = scmp.ne.s32.totalorder %s44, %s47
      %p56 = scmp.eq.s32.totalorder %s39, 1
      %p57 = por %p55, %p56
      %p58 = scmp.ne.s32.totalorder %s47, %s48
      %p59 = scmp.eq.s32.totalorder %s39, 0
      %p60 = por %p58, %p59
      %p61 = scmp.ne.s32.totalorder %s47, %s48
      %p62 = scmp.eq.s32.totalorder %s40, 1
      %p63 = por %p61, %p62
      %p65 = scmp.ne.s32.totalorder %s48, %s64
      %p66 = scmp.eq.s32.totalorder %s40, 0
      %p67 = por %p65, %p66
      %s69 = sadd.s32 %s68, 1
      %p72 = scmp.eq.s32.totalorder %s34, 1
      %p73 = scmp.ne.s32.totalorder %s68, %s70
      %p74 = scmp.eq.s32.totalorder %s34, 0
      %p75 = por %p73, %p74
      %p76 = scmp.ne.s32.totalorder %s68, %s70
      %p77 = scmp.eq.s32.totalorder %s39, 1
      %p78 = por %p76, %p77
      %p79 = scmp.ne.s32.totalorder %s70, %s71
      %p80 = scmp.eq.s32.totalorder %s39, 0
      %p81 = por %p79, %p80
      %p82 = scmp.ne.s32.totalorder %s70, %s71
      %p83 = scmp.eq.s32.totalorder %s40, 1
      %p84 = por %p82, %p83
      %p86 = scmp.ne.s32.totalorder %s71, %s85
      %p87 = scmp.eq.s32.totalorder %s40, 0
      %p88 = por %p86, %p87
      %s90 = sadd.s32 %s89, 1
      %p93 = scmp.eq.s32.totalorder %s34, 1
      %p94 = scmp.ne.s32.totalorder %s89, %s91
      %p95 = scmp.eq.s32.totalorder %s34, 0
      %p96 = por %p94, %p95
      %p97 = scmp.ne.s32.totalorder %s89, %s91
      %p98 = scmp.eq.s32.totalorder %s39, 1
      %p99 = por %p97, %p98
      %p100 = scmp.ne.s32.totalorder %s91, %s92
      %p101 = scmp.eq.s32.totalorder %s39, 0
      %p102 = por %p100, %p101
      %p103 = scmp.ne.s32.totalorder %s91, %s92
      %p104 = scmp.eq.s32.totalorder %s40, 1
      %p105 = por %p103, %p104
      %p107 = scmp.ne.s32.totalorder %s92, %s106
      %p108 = scmp.eq.s32.totalorder %s40, 0
      %p109 = por %p107, %p108
      %s111 = sadd.s32 %s110, 1
      %p114 = scmp.eq.s32.totalorder %s34, 1
      %p115 = scmp.ne.s32.totalorder %s110, %s112
      %p116 = scmp.eq.s32.totalorder %s34, 0
      %p117 = por %p115, %p116
      %p118 = scmp.ne.s32.totalorder %s110, %s112
      %p119 = scmp.eq.s32.totalorder %s39, 1
      %p120 = por %p118, %p119
      %p121 = scmp.ne.s32.totalorder %s112, %s113
      %p122 = scmp.eq.s32.totalorder %s39, 0
      %p123 = por %p121, %p122
      %p124 = scmp.ne.s32.totalorder %s112, %s113
      %p125 = scmp.eq.s32.totalorder %s40, 1
      %p126 = por %p124, %p125
      %p128 = scmp.ne.s32.totalorder %s113, %s127
      %p129 = scmp.eq.s32.totalorder %s40, 0
      %p130 = por %p128, %p129
      %s132 = sadd.s32 %s131, 1
      %p135 = scmp.eq.s32.totalorder %s34, 1
      %p136 = scmp.ne.s32.totalorder %s131, %s133
      %p137 = scmp.eq.s32.totalorder %s34, 0
      %p138 = por %p136, %p137
      %p139 = scmp.ne.s32.totalorder %s131, %s133
      %p140 = scmp.eq.s32.totalorder %s39, 1
      %p141 = por %p139, %p140
      %p142 = scmp.ne.s32.totalorder %s133, %s134
      %p143 = scmp.eq.s32.totalorder %s39, 0
      %p144 = por %p142, %p143
      %p145 = scmp.ne.s32.totalorder %s133, %s134
      %p146 = scmp.eq.s32.totalorder %s40, 1
      %p147 = por %p145, %p146
      %p149 = scmp.ne.s32.totalorder %s134, %s148
      %p150 = scmp.eq.s32.totalorder %s40, 0
      %p151 = por %p149, %p150
      %s153 = sadd.s32 %s152, 1
      %p156 = scmp.eq.s32.totalorder %s34, 1
      %p157 = scmp.ne.s32.totalorder %s152, %s154
      %p158 = scmp.eq.s32.totalorder %s34, 0
      %p159 = por %p157, %p158
      %p160 = scmp.ne.s32.totalorder %s152, %s154
      %p161 = scmp.eq.s32.totalorder %s39, 1
      %p162 = por %p160, %p161
      %p163 = scmp.ne.s32.totalorder %s154, %s155
      %p164 = scmp.eq.s32.totalorder %s39, 0
      %p165 = por %p163, %p164
      %p166 = scmp.ne.s32.totalorder %s154, %s155
      %p167 = scmp.eq.s32.totalorder %s40, 1
      %p168 = por %p166, %p167
      %p170 = scmp.ne.s32.totalorder %s155, %s169
      %p171 = scmp.eq.s32.totalorder %s40, 0
      %p172 = por %p170, %p171
      %s174 = sadd.s32 %s173, 1
      %p177 = scmp.eq.s32.totalorder %s34, 1
      %p178 = scmp.ne.s32.totalorder %s173, %s175
      %p179 = scmp.eq.s32.totalorder %s34, 0
      %p180 = por %p178, %p179
      %p181 = scmp.ne.s32.totalorder %s173, %s175
      %p182 = scmp.eq.s32.totalorder %s39, 1
      %p183 = por %p181, %p182
      %p184 = scmp.ne.s32.totalorder %s175, %s176
      %p185 = scmp.eq.s32.totalorder %s39, 0
      %p186 = por %p184, %p185
      %p187 = scmp.ne.s32.totalorder %s175, %s176
      %p188 = scmp.eq.s32.totalorder %s40, 1
      %p189 = por %p187, %p188
      %p191 = scmp.ne.s32.totalorder %s176, %s190
      %p192 = scmp.eq.s32.totalorder %s40, 0
      %p193 = por %p191, %p192
      %s195 = sadd.s32 %s194, 1
      %p198 = scmp.eq.s32.totalorder %s34, 1
      %p199 = scmp.ne.s32.totalorder %s194, %s196
      %p200 = scmp.eq.s32.totalorder %s34, 0
      %p201 = por %p199, %p200
      %p202 = scmp.ne.s32.totalorder %s194, %s196
      %p203 = scmp.eq.s32.totalorder %s39, 1
      %p204 = por %p202, %p203
      %p205 = scmp.ne.s32.totalorder %s196, %s197
      %p206 = scmp.eq.s32.totalorder %s39, 0
      %p207 = por %p205, %p206
      %p208 = scmp.ne.s32.totalorder %s196, %s197
      %p209 = scmp.eq.s32.totalorder %s40, 1
      %p210 = por %p208, %p209
      %p212 = scmp.ne.s32.totalorder %s197, %s211
      %p213 = scmp.eq.s32.totalorder %s40, 0
      %p214 = por %p212, %p213
      %s216 = sadd.s32 %s215, 1
      %p219 = scmp.eq.s32.totalorder %s34, 1
      %p220 = scmp.ne.s32.totalorder %s215, %s217
      %p221 = scmp.eq.s32.totalorder %s34, 0
      %p222 = por %p220, %p221
      %p223 = scmp.ne.s32.totalorder %s215, %s217
      %p224 = scmp.eq.s32.totalorder %s39, 1
      %p225 = por %p223, %p224
      %p226 = scmp.ne.s32.totalorder %s217, %s218
      %p227 = scmp.eq.s32.totalorder %s39, 0
      %p228 = por %p226, %p227
      %p229 = scmp.ne.s32.totalorder %s217, %s218
      %p230 = scmp.eq.s32.totalorder %s40, 1
      %p231 = por %p229, %p230
      %p233 = scmp.ne.s32.totalorder %s218, %s232
      %p234 = scmp.eq.s32.totalorder %s40, 0
      %p235 = por %p233, %p234
      %s237 = sadd.s32 %s236, 1
      %p240 = scmp.eq.s32.totalorder %s34, 1
      %p241 = scmp.ne.s32.totalorder %s236, %s238
      %p242 = scmp.eq.s32.totalorder %s34, 0
      %p243 = por %p241, %p242
      %p244 = scmp.ne.s32.totalorder %s236, %s238
      %p245 = scmp.eq.s32.totalorder %s39, 1
      %p246 = por %p244, %p245
      %p247 = scmp.ne.s32.totalorder %s238, %s239
      %p248 = scmp.eq.s32.totalorder %s39, 0
      %p249 = por %p247, %p248
      %p250 = scmp.ne.s32.totalorder %s238, %s239
      %p251 = scmp.eq.s32.totalorder %s40, 1
      %p252 = por %p250, %p251
      %p254 = scmp.ne.s32.totalorder %s239, %s253
      %p255 = scmp.eq.s32.totalorder %s40, 0
      %p256 = por %p254, %p255
      %s258 = sadd.s32 %s257, 1
      %p261 = scmp.eq.s32.totalorder %s34, 1
      %p262 = scmp.ne.s32.totalorder %s257, %s259
      %p263 = scmp.eq.s32.totalorder %s34, 0
      %p264 = por %p262, %p263
      %p265 = scmp.ne.s32.totalorder %s257, %s259
      %p266 = scmp.eq.s32.totalorder %s39, 1
      %p267 = por %p265, %p266
      %p268 = scmp.ne.s32.totalorder %s259, %s260
      %p269 = scmp.eq.s32.totalorder %s39, 0
      %p270 = por %p268, %p269
      %p271 = scmp.ne.s32.totalorder %s259, %s260
      %p272 = scmp.eq.s32.totalorder %s40, 1
      %p273 = por %p271, %p272
      %p275 = scmp.ne.s32.totalorder %s260, %s274
      %p276 = scmp.eq.s32.totalorder %s40, 0
      %p277 = por %p275, %p276
      %s279 = sadd.s32 %s278, 1
      %p282 = scmp.eq.s32.totalorder %s34, 1
      %p283 = scmp.ne.s32.totalorder %s278, %s280
      %p284 = scmp.eq.s32.totalorder %s34, 0
      %p285 = por %p283, %p284
      %p286 = scmp.ne.s32.totalorder %s278, %s280
      %p287 = scmp.eq.s32.totalorder %s39, 1
      %p288 = por %p286, %p287
      %p289 = scmp.ne.s32.totalorder %s280, %s281
      %p290 = scmp.eq.s32.totalorder %s39, 0
      %p291 = por %p289, %p290
      %p292 = scmp.ne.s32.totalorder %s280, %s281
      %p293 = scmp.eq.s32.totalorder %s40, 1
      %p294 = por %p292, %p293
      %p296 = scmp.ne.s32.totalorder %s281, %s295
      %p297 = scmp.eq.s32.totalorder %s40, 0
      %p298 = por %p296, %p297
      %s300 = sadd.s32 %s299, 1
      %p303 = scmp.eq.s32.totalorder %s34, 1
      %p304 = scmp.ne.s32.totalorder %s299, %s301
      %p305 = scmp.eq.s32.totalorder %s34, 0
      %p306 = por %p304, %p305
      %p307 = scmp.ne.s32.totalorder %s299, %s301
      %p308 = scmp.eq.s32.totalorder %s39, 1
      %p309 = por %p307, %p308
      %p310 = scmp.ne.s32.totalorder %s301, %s302
      %p311 = scmp.eq.s32.totalorder %s39, 0
      %p312 = por %p310, %p311
      %p313 = scmp.ne.s32.totalorder %s301, %s302
      %p314 = scmp.eq.s32.totalorder %s40, 1
      %p315 = por %p313, %p314
      %p317 = scmp.ne.s32.totalorder %s302, %s316
      %p318 = scmp.eq.s32.totalorder %s40, 0
      %p319 = por %p317, %p318
      %s321 = sadd.s32 %s320, 1
      %p324 = scmp.eq.s32.totalorder %s34, 1
      %p325 = scmp.ne.s32.totalorder %s320, %s322
      %p326 = scmp.eq.s32.totalorder %s34, 0
      %p327 = por %p325, %p326
      %p328 = scmp.ne.s32.totalorder %s320, %s322
      %p329 = scmp.eq.s32.totalorder %s39, 1
      %p330 = por %p328, %p329
      %p331 = scmp.ne.s32.totalorder %s322, %s323
      %p332 = scmp.eq.s32.totalorder %s39, 0
      %p333 = por %p331, %p332
      %p334 = scmp.ne.s32.totalorder %s322, %s323
      %p335 = scmp.eq.s32.totalorder %s40, 1
      %p336 = por %p334, %p335
      %p338 = scmp.ne.s32.totalorder %s323, %s337
      %p339 = scmp.eq.s32.totalorder %s40, 0
      %p340 = por %p338, %p339
      %s342 = sadd.s32 %s341, 1
      %p345 = scmp.eq.s32.totalorder %s34, 1
      %p346 = scmp.ne.s32.totalorder %s341, %s343
      %p347 = scmp.eq.s32.totalorder %s34, 0
      %p348 = por %p346, %p347
      %p349 = scmp.ne.s32.totalorder %s341, %s343
      %p350 = scmp.eq.s32.totalorder %s39, 1
      %p351 = por %p349, %p350
      %p352 = scmp.ne.s32.totalorder %s343, %s344
      %p353 = scmp.eq.s32.totalorder %s39, 0
      %p354 = por %p352, %p353
      %p355 = scmp.ne.s32.totalorder %s343, %s344
      %p356 = scmp.eq.s32.totalorder %s40, 1
      %p357 = por %p355, %p356
      %p359 = scmp.ne.s32.totalorder %s344, %s358
      %p360 = scmp.eq.s32.totalorder %s40, 0
      %p361 = por %p359, %p360
      %s363 = sadd.s32 %s362, 1
      %p366 = scmp.eq.s32.totalorder %s34, 1
      %p367 = scmp.ne.s32.totalorder %s362, %s364
      %p368 = scmp.eq.s32.totalorder %s34, 0
      %p369 = por %p367, %p368
      %p370 = scmp.ne.s32.totalorder %s362, %s364
      %p371 = scmp.eq.s32.totalorder %s39, 1
      %p372 = por %p370, %p371
      %p373 = scmp.ne.s32.totalorder %s364, %s365
      %p374 = scmp.eq.s32.totalorder %s39, 0
      %p375 = por %p373, %p374
      %p376 = scmp.ne.s32.totalorder %s364, %s365
      %p377 = scmp.eq.s32.totalorder %s40, 1
      %p378 = por %p376, %p377
      %p380 = scmp.ne.s32.totalorder %s365, %s379
      %p381 = scmp.eq.s32.totalorder %s40, 0
      %p382 = por %p380, %p381
      %s384 = sadd.s32 %s383, 1
      %p387 = scmp.eq.s32.totalorder %s34, 1
      %p388 = scmp.ne.s32.totalorder %s383, %s385
      %p389 = scmp.eq.s32.totalorder %s34, 0
      %p390 = por %p388, %p389
      %p391 = scmp.ne.s32.totalorder %s383, %s385
      %p392 = scmp.eq.s32.totalorder %s39, 1
      %p393 = por %p391, %p392
      %p394 = scmp.ne.s32.totalorder %s385, %s386
      %p395 = scmp.eq.s32.totalorder %s39, 0
      %p396 = por %p394, %p395
      %p397 = scmp.ne.s32.totalorder %s385, %s386
      %p398 = scmp.eq.s32.totalorder %s40, 1
      %p399 = por %p397, %p398
      %p401 = scmp.ne.s32.totalorder %s386, %s400
      %p402 = scmp.eq.s32.totalorder %s40, 0
      %p403 = por %p401, %p402
      %s405 = sadd.s32 %s404, 1
      %p408 = scmp.eq.s32.totalorder %s34, 1
      %p409 = scmp.ne.s32.totalorder %s404, %s406
      %p410 = scmp.eq.s32.totalorder %s34, 0
      %p411 = por %p409, %p410
      %p412 = scmp.ne.s32.totalorder %s404, %s406
      %p413 = scmp.eq.s32.totalorder %s39, 1
      %p414 = por %p412, %p413
      %p415 = scmp.ne.s32.totalorder %s406, %s407
      %p416 = scmp.eq.s32.totalorder %s39, 0
      %p417 = por %p415, %p416
      %p418 = scmp.ne.s32.totalorder %s406, %s407
      %p419 = scmp.eq.s32.totalorder %s40, 1
      %p420 = por %p418, %p419
      %p422 = scmp.ne.s32.totalorder %s407, %s421
      %p423 = scmp.eq.s32.totalorder %s40, 0
      %p424 = por %p422, %p423
      %s426 = sadd.s32 %s425, 1
      %p429 = scmp.eq.s32.totalorder %s34, 1
      %p430 = scmp.ne.s32.totalorder %s425, %s427
      %p431 = scmp.eq.s32.totalorder %s34, 0
      %p432 = por %p430, %p431
      %p433 = scmp.ne.s32.totalorder %s425, %s427
      %p434 = scmp.eq.s32.totalorder %s39, 1
      %p435 = por %p433, %p434
      %p436 = scmp.ne.s32.totalorder %s427, %s428
      %p437 = scmp.eq.s32.totalorder %s39, 0
      %p438 = por %p436, %p437
      %p439 = scmp.ne.s32.totalorder %s427, %s428
      %p440 = scmp.eq.s32.totalorder %s40, 1
      %p441 = por %p439, %p440
      %p443 = scmp.ne.s32.totalorder %s428, %s442
      %p444 = scmp.eq.s32.totalorder %s40, 0
      %p445 = por %p443, %p444
      %s447 = sadd.s32 %s446, 1
      %p450 = scmp.eq.s32.totalorder %s34, 1
      %p451 = scmp.ne.s32.totalorder %s446, %s448
      %p452 = scmp.eq.s32.totalorder %s34, 0
      %p453 = por %p451, %p452
      %p454 = scmp.ne.s32.totalorder %s446, %s448
      %p455 = scmp.eq.s32.totalorder %s39, 1
      %p456 = por %p454, %p455
      %p457 = scmp.ne.s32.totalorder %s448, %s449
      %p458 = scmp.eq.s32.totalorder %s39, 0
      %p459 = por %p457, %p458
      %p460 = scmp.ne.s32.totalorder %s448, %s449
      %p461 = scmp.eq.s32.totalorder %s40, 1
      %p462 = por %p460, %p461
      %p464 = scmp.ne.s32.totalorder %s449, %s463
      %p465 = scmp.eq.s32.totalorder %s40, 0
      %p466 = por %p464, %p465
      %s468 = sadd.s32 %s467, 1
      %p471 = scmp.eq.s32.totalorder %s34, 1
      %p472 = scmp.ne.s32.totalorder %s467, %s469
      %p473 = scmp.eq.s32.totalorder %s34, 0
      %p474 = por %p472, %p473
      %p475 = scmp.ne.s32.totalorder %s467, %s469
      %p476 = scmp.eq.s32.totalorder %s39, 1
      %p477 = por %p475, %p476
      %p478 = scmp.ne.s32.totalorder %s469, %s470
      %p479 = scmp.eq.s32.totalorder %s39, 0
      %p480 = por %p478, %p479
      %p481 = scmp.ne.s32.totalorder %s469, %s470
      %p482 = scmp.eq.s32.totalorder %s40, 1
      %p483 = por %p481, %p482
      %p485 = scmp.ne.s32.totalorder %s470, %s484
      %p486 = scmp.eq.s32.totalorder %s40, 0
      %p487 = por %p485, %p486
      %s489 = sadd.s32 %s488, 1
      %p492 = scmp.eq.s32.totalorder %s34, 1
      %p493 = scmp.ne.s32.totalorder %s488, %s490
      %p494 = scmp.eq.s32.totalorder %s34, 0
      %p495 = por %p493, %p494
      %p496 = scmp.ne.s32.totalorder %s488, %s490
      %p497 = scmp.eq.s32.totalorder %s39, 1
      %p498 = por %p496, %p497
      %p499 = scmp.ne.s32.totalorder %s490, %s491
      %p500 = scmp.eq.s32.totalorder %s39, 0
      %p501 = por %p499, %p500
      %p502 = scmp.ne.s32.totalorder %s490, %s491
      %p503 = scmp.eq.s32.totalorder %s40, 1
      %p504 = por %p502, %p503
      %p506 = scmp.ne.s32.totalorder %s491, %s505
      %p507 = scmp.eq.s32.totalorder %s40, 0
      %p508 = por %p506, %p507
      %s510 = sadd.s32 %s509, 1
      %p513 = scmp.eq.s32.totalorder %s34, 1
      %p514 = scmp.ne.s32.totalorder %s509, %s511
      %p515 = scmp.eq.s32.totalorder %s34, 0
      %p516 = por %p514, %p515
      %p517 = scmp.ne.s32.totalorder %s509, %s511
      %p518 = scmp.eq.s32.totalorder %s39, 1
      %p519 = por %p517, %p518
      %p520 = scmp.ne.s32.totalorder %s511, %s512
      %p521 = scmp.eq.s32.totalorder %s39, 0
      %p522 = por %p520, %p521
      %p523 = scmp.ne.s32.totalorder %s511, %s512
      %p524 = scmp.eq.s32.totalorder %s40, 1
      %p525 = por %p523, %p524
      %p527 = scmp.ne.s32.totalorder %s512, %s526
      %p528 = scmp.eq.s32.totalorder %s40, 0
      %p529 = por %p527, %p528
      %s530 = ssub.s32 %s34, %s41
      %p531 = scmp.eq.s32.totalorder %s530, 0
      %s533 = sadd.s32 %s532, 1
      %s534 = scalar_select %p531, %s532, %s533
      %p537 = pneg %p531
      %p538 = scmp.eq.s32.totalorder %s34, 1
      %p539 = por %p537, %p538
      %p540 = scmp.ne.s32.totalorder %s532, %s535
      %p541 = scmp.eq.s32.totalorder %s34, 0
      %p542 = por %p540, %p541
      %p543 = scmp.ne.s32.totalorder %s532, %s535
      %p544 = scmp.eq.s32.totalorder %s39, 1
      %p545 = por %p543, %p544
      %p546 = scmp.ne.s32.totalorder %s535, %s536
      %p547 = scmp.eq.s32.totalorder %s39, 0
      %p548 = por %p546, %p547
      %p549 = scmp.ne.s32.totalorder %s535, %s536
      %p550 = scmp.eq.s32.totalorder %s40, 1
      %p551 = por %p549, %p550
      %p553 = scmp.ne.s32.totalorder %s536, %s552
      %p554 = scmp.eq.s32.totalorder %s40, 0
      %p555 = por %p553, %p554
      %p556 = scmp.le.s32.totalorder 1, %s34
      %p557 = scmp.lt.s32.totalorder %s34, 3
      %p558 = pnand %p556, %p557
      %p559 = pneg %p558
      // Predicated region
      $region9: #{ring_gnn_forward.1} parent=5 // pred_check
        _
      $region10: #{ring_gnn_forward.1} parent=5 // pred_check_branch
        %561 = sbr.rel (%p558) target = $region12
      $region11: #{ring_gnn_forward.1} parent=5 // pred_region
        %s562 = ssub.s32 %s34, 1
        // Predicated region
        $region13: #{ring_gnn_forward.1} parent=11 // pred_check
          %p563 = pneg %p81
        $region14: #{ring_gnn_forward.1} parent=11 // pred_check_branch
          %565 = sbr.rel (%p563) target = $region16
        $region15: #{ring_gnn_forward.1} parent=11 // pred_region
          _
        $region16: #{ring_gnn_forward.1} parent=11 // pred_fallthru
          _
        // Predicated region
        $region17: #{ring_gnn_forward.1} parent=11 // pred_check
          %p566 = pneg %p102
        $region18: #{ring_gnn_forward.1} parent=11 // pred_check_branch
          %568 = sbr.rel (%p566) target = $region20
        $region19: #{ring_gnn_forward.1} parent=11 // pred_region
          %s570 = ssub.s32 512, 512
          %571 = vsyncadd [#allocation6], %s570
          %s572 = sshll.u32 [#allocation5], 4
          %s573 = int_to_ptr.vmem [resolvable:$true] %s572
          %578 = dma.hbm_to_vmem [thread:$0]  %s2, 512, %s573, [#allocation6], 256, 256, 16
        $region20: #{ring_gnn_forward.1} parent=11 // pred_fallthru
          _
        // Predicated region
        $region21: #{ring_gnn_forward.1} parent=11 // pred_check
          %p579 = pneg %p123
        $region22: #{ring_gnn_forward.1} parent=11 // pred_check_branch
          %581 = sbr.rel (%p579) target = $region24
        $region23: #{ring_gnn_forward.1} parent=11 // pred_region
          %s583 = ssub.s32 512, 512
          %584 = vsyncadd [#allocation8], %s583
          %s585 = sshll.u32 [#allocation7], 4
          %s586 = int_to_ptr.vmem [resolvable:$true] %s585
          %591 = dma.hbm_to_vmem [thread:$0]  %s3, 512, %s586, [#allocation8], 256, 256, 16
        $region24: #{ring_gnn_forward.1} parent=11 // pred_fallthru
          _
        // Predicated region
        $region25: #{ring_gnn_forward.1} parent=11 // pred_check
          %p592 = pneg %p144
        $region26: #{ring_gnn_forward.1} parent=11 // pred_check_branch
          %594 = sbr.rel (%p592) target = $region28
        $region27: #{ring_gnn_forward.1} parent=11 // pred_region
          %s596 = ssub.s32 512, 512
          %597 = vsyncadd [#allocation8], %s596
          %s598 = sshll.u32 [#allocation9], 4
          %s599 = int_to_ptr.vmem [resolvable:$true] %s598
          %604 = dma.hbm_to_vmem [thread:$0]  %s4, 512, %s599, [#allocation8], 256, 256, 16
        $region28: #{ring_gnn_forward.1} parent=11 // pred_fallthru
          _
        // Predicated region
        $region29: #{ring_gnn_forward.1} parent=11 // pred_check
          %p605 = pneg %p165
        $region30: #{ring_gnn_forward.1} parent=11 // pred_check_branch
          %607 = sbr.rel (%p605) target = $region32
        $region31: #{ring_gnn_forward.1} parent=11 // pred_region
          %s609 = ssub.s32 8192, 8192
          %610 = vsyncadd [#allocation11], %s609
          %s611 = sshll.u32 [#allocation10], 4
          %s612 = int_to_ptr.vmem [resolvable:$true] %s611
          %617 = dma.hbm_to_vmem [thread:$0]  %s5, 8192, %s612, [#allocation11], 256, 256, 16
        $region32: #{ring_gnn_forward.1} parent=11 // pred_fallthru
          _
        // Predicated region
        $region33: #{ring_gnn_forward.1} parent=11 // pred_check
          %p618 = pneg %p186
        $region34: #{ring_gnn_forward.1} parent=11 // pred_check_branch
          %620 = sbr.rel (%p618) target = $region36
        $region35: #{ring_gnn_forward.1} parent=11 // pred_region
          _
        $region36: #{ring_gnn_forward.1} parent=11 // pred_fallthru
          _
        // Predicated region
        $region37: #{ring_gnn_forward.1} parent=11 // pred_check
          %p621 = pneg %p207
        $region38: #{ring_gnn_forward.1} parent=11 // pred_check_branch
          %623 = sbr.rel (%p621) target = $region40
        $region39: #{ring_gnn_forward.1} parent=11 // pred_region
          _
        $region40: #{ring_gnn_forward.1} parent=11 // pred_fallthru
          _
        // Predicated region
        $region41: #{ring_gnn_forward.1} parent=11 // pred_check
          %p624 = pneg %p228
        $region42: #{ring_gnn_forward.1} parent=11 // pred_check_branch
          %626 = sbr.rel (%p624) target = $region44
        $region43: #{ring_gnn_forward.1} parent=11 // pred_region
          _
        $region44: #{ring_gnn_forward.1} parent=11 // pred_fallthru
          _
        // Predicated region
        $region45: #{ring_gnn_forward.1} parent=11 // pred_check
          %p627 = pneg %p249
        $region46: #{ring_gnn_forward.1} parent=11 // pred_check_branch
          %629 = sbr.rel (%p627) target = $region48
        $region47: #{ring_gnn_forward.1} parent=11 // pred_region
          _
        $region48: #{ring_gnn_forward.1} parent=11 // pred_fallthru
          _
        // Predicated region
        $region49: #{ring_gnn_forward.1} parent=11 // pred_check
          %p630 = pneg %p270
        $region50: #{ring_gnn_forward.1} parent=11 // pred_check_branch
          %632 = sbr.rel (%p630) target = $region52
        $region51: #{ring_gnn_forward.1} parent=11 // pred_region
          _
        $region52: #{ring_gnn_forward.1} parent=11 // pred_fallthru
          _
        // Predicated region
        $region53: #{ring_gnn_forward.1} parent=11 // pred_check
          %p633 = pneg %p291
        $region54: #{ring_gnn_forward.1} parent=11 // pred_check_branch
          %635 = sbr.rel (%p633) target = $region56
        $region55: #{ring_gnn_forward.1} parent=11 // pred_region
          _
        $region56: #{ring_gnn_forward.1} parent=11 // pred_fallthru
          _
        // Predicated region
        $region57: #{ring_gnn_forward.1} parent=11 // pred_check
          %p636 = pneg %p312
        $region58: #{ring_gnn_forward.1} parent=11 // pred_check_branch
          %638 = sbr.rel (%p636) target = $region60
        $region59: #{ring_gnn_forward.1} parent=11 // pred_region
          _
        $region60: #{ring_gnn_forward.1} parent=11 // pred_fallthru
          _
        // Predicated region
        $region61: #{ring_gnn_forward.1} parent=11 // pred_check
          %p639 = pneg %p333
        $region62: #{ring_gnn_forward.1} parent=11 // pred_check_branch
          %641 = sbr.rel (%p639) target = $region64
        $region63: #{ring_gnn_forward.1} parent=11 // pred_region
          _
        $region64: #{ring_gnn_forward.1} parent=11 // pred_fallthru
          _
        // Predicated region
        $region65: #{ring_gnn_forward.1} parent=11 // pred_check
          %p642 = pneg %p354
        $region66: #{ring_gnn_forward.1} parent=11 // pred_check_branch
          %644 = sbr.rel (%p642) target = $region68
        $region67: #{ring_gnn_forward.1} parent=11 // pred_region
          _
        $region68: #{ring_gnn_forward.1} parent=11 // pred_fallthru
          _
        // Predicated region
        $region69: #{ring_gnn_forward.1} parent=11 // pred_check
          %p645 = pneg %p375
        $region70: #{ring_gnn_forward.1} parent=11 // pred_check_branch
          %647 = sbr.rel (%p645) target = $region72
        $region71: #{ring_gnn_forward.1} parent=11 // pred_region
          _
        $region72: #{ring_gnn_forward.1} parent=11 // pred_fallthru
          _
        // Predicated region
        $region73: #{ring_gnn_forward.1} parent=11 // pred_check
          %p648 = pneg %p396
        $region74: #{ring_gnn_forward.1} parent=11 // pred_check_branch
          %650 = sbr.rel (%p648) target = $region76
        $region75: #{ring_gnn_forward.1} parent=11 // pred_region
          _
        $region76: #{ring_gnn_forward.1} parent=11 // pred_fallthru
          _
        // Predicated region
        $region77: #{ring_gnn_forward.1} parent=11 // pred_check
          %p651 = pneg %p417
        $region78: #{ring_gnn_forward.1} parent=11 // pred_check_branch
          %653 = sbr.rel (%p651) target = $region80
        $region79: #{ring_gnn_forward.1} parent=11 // pred_region
          _
        $region80: #{ring_gnn_forward.1} parent=11 // pred_fallthru
          _
        // Predicated region
        $region81: #{ring_gnn_forward.1} parent=11 // pred_check
          %p654 = pneg %p438
        $region82: #{ring_gnn_forward.1} parent=11 // pred_check_branch
          %656 = sbr.rel (%p654) target = $region84
        $region83: #{ring_gnn_forward.1} parent=11 // pred_region
          _
        $region84: #{ring_gnn_forward.1} parent=11 // pred_fallthru
          _
        // Predicated region
        $region85: #{ring_gnn_forward.1} parent=11 // pred_check
          %p657 = pneg %p459
        $region86: #{ring_gnn_forward.1} parent=11 // pred_check_branch
          %659 = sbr.rel (%p657) target = $region88
        $region87: #{ring_gnn_forward.1} parent=11 // pred_region
          _
        $region88: #{ring_gnn_forward.1} parent=11 // pred_fallthru
          _
        // Predicated region
        $region89: #{ring_gnn_forward.1} parent=11 // pred_check
          %p660 = pneg %p480
        $region90: #{ring_gnn_forward.1} parent=11 // pred_check_branch
          %662 = sbr.rel (%p660) target = $region92
        $region91: #{ring_gnn_forward.1} parent=11 // pred_region
          %s664 = ssub.s32 16, 16
          %665 = vsyncadd [#allocation11], %s664
          %s667 = sshll.u32 [#allocation12], 4
          %s668 = int_to_ptr.vmem [resolvable:$true] %s667
          %670 = dma.hbm_to_vmem [thread:$0]  %s20, 16, %s668, [#allocation11]
        $region92: #{ring_gnn_forward.1} parent=11 // pred_fallthru
          _
        // Predicated region
        $region93: #{ring_gnn_forward.1} parent=11 // pred_check
          %p671 = pneg %p501
        $region94: #{ring_gnn_forward.1} parent=11 // pred_check_branch
          %673 = sbr.rel (%p671) target = $region96
        $region95: #{ring_gnn_forward.1} parent=11 // pred_region
          _
        $region96: #{ring_gnn_forward.1} parent=11 // pred_fallthru
          _
        // Predicated region
        $region97: #{ring_gnn_forward.1} parent=11 // pred_check
          %p674 = pneg %p522
        $region98: #{ring_gnn_forward.1} parent=11 // pred_check_branch
          %676 = sbr.rel (%p674) target = $region100
        $region99: #{ring_gnn_forward.1} parent=11 // pred_region
          _
        $region100: #{ring_gnn_forward.1} parent=11 // pred_fallthru
          _
      $region12: #{ring_gnn_forward.1} parent=5 // pred_fallthru
        _
      %p677 = scmp.lt.s32.totalorder %s34, 2
      // Predicated region
      $region101: #{ring_gnn_forward.1} parent=5 // pred_check
        %p678 = pneg %p677
      $region102: #{ring_gnn_forward.1} parent=5 // pred_check_branch
        %680 = sbr.rel (%p678) target = $region104
      $region103: #{ring_gnn_forward.1} parent=5 // pred_region
        // Predicated region
        $region105: #{ring_gnn_forward.1} parent=103 // pred_check
          %p681 = pneg %p54
        $region106: #{ring_gnn_forward.1} parent=103 // pred_check_branch
          %683 = sbr.rel (%p681) target = $region108
        $region107: #{ring_gnn_forward.1} parent=103 // pred_region
          %p684 = scmp.lt.s32.totalorder %s34, 1
          %s685 = scalar_select %p684, %s34, 1
          %s686 = smul.addr %s685, 2
          %s687 = smul.addr %s686, 8
          %s688 = scalar_lea.vmem %s0, %s687
        $region108: #{ring_gnn_forward.1} parent=103 // pred_fallthru
          _
      $region104: #{ring_gnn_forward.1} parent=5 // pred_fallthru
        _
      %p689 = scmp.le.s32.totalorder 1, %s34
      %p690 = scmp.lt.s32.totalorder %s34, 3
      %p691 = pnand %p689, %p690
      %p692 = pneg %p691
      // Predicated region
      $region109: #{ring_gnn_forward.1} parent=5 // pred_check
        _
      $region110: #{ring_gnn_forward.1} parent=5 // pred_check_branch
        %694 = sbr.rel (%p691) target = $region112
      $region111: #{ring_gnn_forward.1} parent=5 // pred_region
        %s695 = ssub.s32 %s34, 1
        // Predicated region
        $region113: #{ring_gnn_forward.1} parent=111 // pred_check
          %p696 = pneg %p102
        $region114: #{ring_gnn_forward.1} parent=111 // pred_check_branch
          %698 = sbr.rel (%p696) target = $region116
        $region115: #{ring_gnn_forward.1} parent=111 // pred_region
          %699 = dma.done [#allocation6], 512
        $region116: #{ring_gnn_forward.1} parent=111 // pred_fallthru
          _
        // Predicated region
        $region117: #{ring_gnn_forward.1} parent=111 // pred_check
          %p700 = pneg %p123
        $region118: #{ring_gnn_forward.1} parent=111 // pred_check_branch
          %702 = sbr.rel (%p700) target = $region120
        $region119: #{ring_gnn_forward.1} parent=111 // pred_region
          %703 = dma.done [#allocation8], 512
        $region120: #{ring_gnn_forward.1} parent=111 // pred_fallthru
          _
        // Predicated region
        $region121: #{ring_gnn_forward.1} parent=111 // pred_check
          %p704 = pneg %p144
        $region122: #{ring_gnn_forward.1} parent=111 // pred_check_branch
          %706 = sbr.rel (%p704) target = $region124
        $region123: #{ring_gnn_forward.1} parent=111 // pred_region
          %707 = dma.done [#allocation8], 512
        $region124: #{ring_gnn_forward.1} parent=111 // pred_fallthru
          _
        // Predicated region
        $region125: #{ring_gnn_forward.1} parent=111 // pred_check
          %p708 = pneg %p165
        $region126: #{ring_gnn_forward.1} parent=111 // pred_check_branch
          %710 = sbr.rel (%p708) target = $region128
        $region127: #{ring_gnn_forward.1} parent=111 // pred_region
          %711 = dma.done [#allocation11], 8192
        $region128: #{ring_gnn_forward.1} parent=111 // pred_fallthru
          _
        // Predicated region
        $region129: #{ring_gnn_forward.1} parent=111 // pred_check
          %p712 = pneg %p480
        $region130: #{ring_gnn_forward.1} parent=111 // pred_check_branch
          %714 = sbr.rel (%p712) target = $region132
        $region131: #{ring_gnn_forward.1} parent=111 // pred_region
          %715 = dma.done [#allocation11], 16
        $region132: #{ring_gnn_forward.1} parent=111 // pred_fallthru
          _
        %p716 = scmp.lt.s32.totalorder %s39, 1
        %s717 = scalar_select %p716, %s39, 1
        %s718 = smul.addr %s717, 2
        %s719 = smul.addr %s718, 8
        %s720 = scalar_lea.vmem %s0, %s719
        %p721 = pneg %p60
        %p722 = pneg %p57
        %p723 = pneg %p81
        %p724 = pneg %p78
        %p725 = pneg %p102
        %p726 = pneg %p99
        %p727 = pneg %p123
        %p728 = pneg %p120
        %p729 = pneg %p144
        %p730 = pneg %p141
        %p731 = pneg %p165
        %p732 = pneg %p162
        %p733 = pneg %p186
        %p734 = pneg %p183
        %p735 = pneg %p207
        %p736 = pneg %p204
        %p737 = pneg %p228
        %p738 = pneg %p225
        %p739 = pneg %p249
        %p740 = pneg %p246
        %p741 = pneg %p270
        %p742 = pneg %p267
        %p743 = pneg %p291
        %p744 = pneg %p288
        %p745 = pneg %p312
        %p746 = pneg %p309
        %p747 = pneg %p333
        %p748 = pneg %p330
        %p749 = pneg %p354
        %p750 = pneg %p351
        %p751 = pneg %p375
        %p752 = pneg %p372
        %p753 = pneg %p396
        %p754 = pneg %p393
        %p755 = pneg %p417
        %p756 = pneg %p414
        %p757 = pneg %p438
        %p758 = pneg %p435
        %p759 = pneg %p459
        %p760 = pneg %p456
        %p761 = pneg %p480
        %p762 = pneg %p477
        %p763 = pneg %p501
        %p764 = pneg %p498
        %p765 = pneg %p522
        %p766 = pneg %p519
        %p767 = pneg %p548
        %p768 = pneg %p545
        %p769 = scmp.lt.s32.totalorder %s39, 1
        %s770 = scalar_select %p769, %s39, 1
        %s771 = scalar_lea.vmem %s23, %s770
        %p772 = scmp.lt.s32.totalorder %s39, 1
        %s773 = scalar_select %p772, %s39, 1
        %s774 = smul.addr %s773, 2
        %s775 = smul.addr %s774, 8
        %s776 = scalar_lea.vmem %s0, %s775
        %p777 = scmp.lt.s32.totalorder %s39, 1
        %s778 = scalar_select %p777, %s39, 1
        %s779 = scalar_lea.vmem %s23, %s778
        %v780 = vld [vmem:[%s8] sm:$0x3]
        %v781 = vld [vmem:[#allocation5] sm:$0xff]
        %v782 = vld [vmem:[#allocation5 + $0x8] sm:$0xff]
        %v783 = vld [vmem:[#allocation5 + $0x10] sm:$0xff]
        %v784 = vld [vmem:[#allocation5 + $0x18] sm:$0xff]
        %v785 = vld [vmem:[#allocation7] sm:$0xff]
        %v786 = vld [vmem:[#allocation7 + $0x8] sm:$0xff]
        %v787 = vld [vmem:[#allocation7 + $0x10] sm:$0xff]
        %v788 = vld [vmem:[#allocation7 + $0x18] sm:$0xff]
        %v789 = vld [vmem:[#allocation9] sm:$0xff]
        %v790 = vld [vmem:[#allocation9 + $0x8] sm:$0xff]
        %v791 = vld [vmem:[#allocation9 + $0x10] sm:$0xff]
        %v792 = vld [vmem:[#allocation9 + $0x18] sm:$0xff]
        %v793 = vld [vmem:[#allocation10] sm:$0xff]
        %v794 = vld [vmem:[#allocation10 + $0x8] sm:$0xff]
        %v795 = vld [vmem:[#allocation10 + $0x10] sm:$0xff]
        %v796 = vld [vmem:[#allocation10 + $0x18] sm:$0xff]
        %v797 = vld [vmem:[#allocation10 + $0x20] sm:$0xff]
        %v798 = vld [vmem:[#allocation10 + $0x28] sm:$0xff]
        %v799 = vld [vmem:[#allocation10 + $0x30] sm:$0xff]
        %v800 = vld [vmem:[#allocation10 + $0x38] sm:$0xff]
        %v801 = vld [vmem:[#allocation10 + $0x40] sm:$0xff]
        %v802 = vld [vmem:[#allocation10 + $0x48] sm:$0xff]
        %v803 = vld [vmem:[#allocation10 + $0x50] sm:$0xff]
        %v804 = vld [vmem:[#allocation10 + $0x58] sm:$0xff]
        %v805 = vld [vmem:[#allocation10 + $0x60] sm:$0xff]
        %v806 = vld [vmem:[#allocation10 + $0x68] sm:$0xff]
        %v807 = vld [vmem:[#allocation10 + $0x70] sm:$0xff]
        %v808 = vld [vmem:[#allocation10 + $0x78] sm:$0xff]
        %v809 = vld [vmem:[#allocation10 + $0x80] sm:$0xff]
        %v810 = vld [vmem:[#allocation10 + $0x88] sm:$0xff]
        %v811 = vld [vmem:[#allocation10 + $0x90] sm:$0xff]
        %v812 = vld [vmem:[#allocation10 + $0x98] sm:$0xff]
        %v813 = vld [vmem:[#allocation10 + $0xa0] sm:$0xff]
        %v814 = vld [vmem:[#allocation10 + $0xa8] sm:$0xff]
        %v815 = vld [vmem:[#allocation10 + $0xb0] sm:$0xff]
        %v816 = vld [vmem:[#allocation10 + $0xb8] sm:$0xff]
        %v817 = vld [vmem:[#allocation10 + $0xc0] sm:$0xff]
        %v818 = vld [vmem:[#allocation10 + $0xc8] sm:$0xff]
        %v819 = vld [vmem:[#allocation10 + $0xd0] sm:$0xff]
        %v820 = vld [vmem:[#allocation10 + $0xd8] sm:$0xff]
        %v821 = vld [vmem:[#allocation10 + $0xe0] sm:$0xff]
        %v822 = vld [vmem:[#allocation10 + $0xe8] sm:$0xff]
        %v823 = vld [vmem:[#allocation10 + $0xf0] sm:$0xff]
        %v824 = vld [vmem:[#allocation10 + $0xf8] sm:$0xff]
        %v825 = vld [vmem:[#allocation10 + $0x100] sm:$0xff]
        %v826 = vld [vmem:[#allocation10 + $0x108] sm:$0xff]
        %v827 = vld [vmem:[#allocation10 + $0x110] sm:$0xff]
        %v828 = vld [vmem:[#allocation10 + $0x118] sm:$0xff]
        %v829 = vld [vmem:[#allocation10 + $0x120] sm:$0xff]
        %v830 = vld [vmem:[#allocation10 + $0x128] sm:$0xff]
        %v831 = vld [vmem:[#allocation10 + $0x130] sm:$0xff]
        %v832 = vld [vmem:[#allocation10 + $0x138] sm:$0xff]
        %v833 = vld [vmem:[#allocation10 + $0x140] sm:$0xff]
        %v834 = vld [vmem:[#allocation10 + $0x148] sm:$0xff]
        %v835 = vld [vmem:[#allocation10 + $0x150] sm:$0xff]
        %v836 = vld [vmem:[#allocation10 + $0x158] sm:$0xff]
        %v837 = vld [vmem:[#allocation10 + $0x160] sm:$0xff]
        %v838 = vld [vmem:[#allocation10 + $0x168] sm:$0xff]
        %v839 = vld [vmem:[#allocation10 + $0x170] sm:$0xff]
        %v840 = vld [vmem:[#allocation10 + $0x178] sm:$0xff]
        %v841 = vld [vmem:[#allocation10 + $0x180] sm:$0xff]
        %v842 = vld [vmem:[#allocation10 + $0x188] sm:$0xff]
        %v843 = vld [vmem:[#allocation10 + $0x190] sm:$0xff]
        %v844 = vld [vmem:[#allocation10 + $0x198] sm:$0xff]
        %v845 = vld [vmem:[#allocation10 + $0x1a0] sm:$0xff]
        %v846 = vld [vmem:[#allocation10 + $0x1a8] sm:$0xff]
        %v847 = vld [vmem:[#allocation10 + $0x1b0] sm:$0xff]
        %v848 = vld [vmem:[#allocation10 + $0x1b8] sm:$0xff]
        %v849 = vld [vmem:[#allocation10 + $0x1c0] sm:$0xff]
        %v850 = vld [vmem:[#allocation10 + $0x1c8] sm:$0xff]
        %v851 = vld [vmem:[#allocation10 + $0x1d0] sm:$0xff]
        %v852 = vld [vmem:[#allocation10 + $0x1d8] sm:$0xff]
        %v853 = vld [vmem:[#allocation10 + $0x1e0] sm:$0xff]
        %v854 = vld [vmem:[#allocation10 + $0x1e8] sm:$0xff]
        %v855 = vld [vmem:[#allocation10 + $0x1f0] sm:$0xff]
        %v856 = vld [vmem:[#allocation10 + $0x1f8] sm:$0xff]
        %v857 = vld [vmem:[%s6] sm:$0xff]
        %v858 = vld [vmem:[%s6 + $0x8] sm:$0xff]
        %v859 = vld [vmem:[%s6 + $0x10] sm:$0xff]
        %v860 = vld [vmem:[%s6 + $0x18] sm:$0xff]
        %v861 = vld [vmem:[%s6 + $0x20] sm:$0xff]
        %v862 = vld [vmem:[%s6 + $0x28] sm:$0xff]
        %v863 = vld [vmem:[%s6 + $0x30] sm:$0xff]
        %v864 = vld [vmem:[%s6 + $0x38] sm:$0xff]
        %v865 = vld [vmem:[%s6 + $0x40] sm:$0xff]
        %v866 = vld [vmem:[%s6 + $0x48] sm:$0xff]
        %v867 = vld [vmem:[%s6 + $0x50] sm:$0xff]
        %v868 = vld [vmem:[%s6 + $0x58] sm:$0xff]
        %v869 = vld [vmem:[%s6 + $0x60] sm:$0xff]
        %v870 = vld [vmem:[%s6 + $0x68] sm:$0xff]
        %v871 = vld [vmem:[%s6 + $0x70] sm:$0xff]
        %v872 = vld [vmem:[%s6 + $0x78] sm:$0xff]
        %v873 = vld [vmem:[%s6 + $0x80] sm:$0xff]
        %v874 = vld [vmem:[%s6 + $0x88] sm:$0xff]
        %v875 = vld [vmem:[%s6 + $0x90] sm:$0xff]
        %v876 = vld [vmem:[%s6 + $0x98] sm:$0xff]
        %v877 = vld [vmem:[%s6 + $0xa0] sm:$0xff]
        %v878 = vld [vmem:[%s6 + $0xa8] sm:$0xff]
        %v879 = vld [vmem:[%s6 + $0xb0] sm:$0xff]
        %v880 = vld [vmem:[%s6 + $0xb8] sm:$0xff]
        %v881 = vld [vmem:[%s6 + $0xc0] sm:$0xff]
        %v882 = vld [vmem:[%s6 + $0xc8] sm:$0xff]
        %v883 = vld [vmem:[%s6 + $0xd0] sm:$0xff]
        %v884 = vld [vmem:[%s6 + $0xd8] sm:$0xff]
        %v885 = vld [vmem:[%s6 + $0xe0] sm:$0xff]
        %v886 = vld [vmem:[%s6 + $0xe8] sm:$0xff]
        %v887 = vld [vmem:[%s6 + $0xf0] sm:$0xff]
        %v888 = vld [vmem:[%s6 + $0xf8] sm:$0xff]
        %v889 = vld [vmem:[%s6 + $0x100] sm:$0xff]
        %v890 = vld [vmem:[%s6 + $0x108] sm:$0xff]
        %v891 = vld [vmem:[%s6 + $0x110] sm:$0xff]
        %v892 = vld [vmem:[%s6 + $0x118] sm:$0xff]
        %v893 = vld [vmem:[%s6 + $0x120] sm:$0xff]
        %v894 = vld [vmem:[%s6 + $0x128] sm:$0xff]
        %v895 = vld [vmem:[%s6 + $0x130] sm:$0xff]
        %v896 = vld [vmem:[%s6 + $0x138] sm:$0xff]
        %v897 = vld [vmem:[%s6 + $0x140] sm:$0xff]
        %v898 = vld [vmem:[%s6 + $0x148] sm:$0xff]
        %v899 = vld [vmem:[%s6 + $0x150] sm:$0xff]
        %v900 = vld [vmem:[%s6 + $0x158] sm:$0xff]
        %v901 = vld [vmem:[%s6 + $0x160] sm:$0xff]
        %v902 = vld [vmem:[%s6 + $0x168] sm:$0xff]
        %v903 = vld [vmem:[%s6 + $0x170] sm:$0xff]
        %v904 = vld [vmem:[%s6 + $0x178] sm:$0xff]
        %v905 = vld [vmem:[%s6 + $0x180] sm:$0xff]
        %v906 = vld [vmem:[%s6 + $0x188] sm:$0xff]
        %v907 = vld [vmem:[%s6 + $0x190] sm:$0xff]
        %v908 = vld [vmem:[%s6 + $0x198] sm:$0xff]
        %v909 = vld [vmem:[%s6 + $0x1a0] sm:$0xff]
        %v910 = vld [vmem:[%s6 + $0x1a8] sm:$0xff]
        %v911 = vld [vmem:[%s6 + $0x1b0] sm:$0xff]
        %v912 = vld [vmem:[%s6 + $0x1b8] sm:$0xff]
        %v913 = vld [vmem:[%s6 + $0x1c0] sm:$0xff]
        %v914 = vld [vmem:[%s6 + $0x1c8] sm:$0xff]
        %v915 = vld [vmem:[%s6 + $0x1d0] sm:$0xff]
        %v916 = vld [vmem:[%s6 + $0x1d8] sm:$0xff]
        %v917 = vld [vmem:[%s6 + $0x1e0] sm:$0xff]
        %v918 = vld [vmem:[%s6 + $0x1e8] sm:$0xff]
        %v919 = vld [vmem:[%s6 + $0x1f0] sm:$0xff]
        %v920 = vld [vmem:[%s6 + $0x1f8] sm:$0xff]
        %v921 = vld [vmem:[%s7] sm:$0xff]
        %v922 = vld [vmem:[%s7 + $0x8] sm:$0xff]
        %v923 = vld [vmem:[%s7 + $0x10] sm:$0xff]
        %v924 = vld [vmem:[%s7 + $0x18] sm:$0xff]
        %v925 = vld [vmem:[%s7 + $0x20] sm:$0xff]
        %v926 = vld [vmem:[%s7 + $0x28] sm:$0xff]
        %v927 = vld [vmem:[%s7 + $0x30] sm:$0xff]
        %v928 = vld [vmem:[%s7 + $0x38] sm:$0xff]
        %v929 = vld [vmem:[%s7 + $0x40] sm:$0xff]
        %v930 = vld [vmem:[%s7 + $0x48] sm:$0xff]
        %v931 = vld [vmem:[%s7 + $0x50] sm:$0xff]
        %v932 = vld [vmem:[%s7 + $0x58] sm:$0xff]
        %v933 = vld [vmem:[%s7 + $0x60] sm:$0xff]
        %v934 = vld [vmem:[%s7 + $0x68] sm:$0xff]
        %v935 = vld [vmem:[%s7 + $0x70] sm:$0xff]
        %v936 = vld [vmem:[%s7 + $0x78] sm:$0xff]
        %v937 = vld [vmem:[%s7 + $0x80] sm:$0xff]
        %v938 = vld [vmem:[%s7 + $0x88] sm:$0xff]
        %v939 = vld [vmem:[%s7 + $0x90] sm:$0xff]
        %v940 = vld [vmem:[%s7 + $0x98] sm:$0xff]
        %v941 = vld [vmem:[%s1] sm:$0xff]
        %v942 = vld [vmem:[%s1 + $0x8] sm:$0xff]
        %v943 = vld [vmem:[%s1 + $0x10] sm:$0xff]
        %v944 = vld [vmem:[%s1 + $0x18] sm:$0xff]
        %v945 = vld [vmem:[%s1 + $0x20] sm:$0xff]
        %v946 = vld [vmem:[%s1 + $0x28] sm:$0xff]
        %v947 = vld [vmem:[%s1 + $0x30] sm:$0xff]
        %v948 = vld [vmem:[%s1 + $0x38] sm:$0xff]
        %v949 = vld [vmem:[%s1 + $0x40] sm:$0xff]
        %v950 = vld [vmem:[%s1 + $0x48] sm:$0xff]
        %v951 = vld [vmem:[%s1 + $0x50] sm:$0xff]
        %v952 = vld [vmem:[%s1 + $0x58] sm:$0xff]
        %v953 = vld [vmem:[%s1 + $0x60] sm:$0xff]
        %v954 = vld [vmem:[%s1 + $0x68] sm:$0xff]
        %v955 = vld [vmem:[%s1 + $0x70] sm:$0xff]
        %v956 = vld [vmem:[%s1 + $0x78] sm:$0xff]
        %v957 = vld [vmem:[%s1 + $0x80] sm:$0xff]
        %v958 = vld [vmem:[%s1 + $0x88] sm:$0xff]
        %v959 = vld [vmem:[%s1 + $0x90] sm:$0xff]
        %v960 = vld [vmem:[%s1 + $0x98] sm:$0xff]
        %v961 = vld [vmem:[%s1 + $0xa0] sm:$0xff]
        %v962 = vld [vmem:[%s1 + $0xa8] sm:$0xff]
        %v963 = vld [vmem:[%s1 + $0xb0] sm:$0xff]
        %v964 = vld [vmem:[%s1 + $0xb8] sm:$0xff]
        %v965 = vld [vmem:[%s1 + $0xc0] sm:$0xff]
        %v966 = vld [vmem:[%s1 + $0xc8] sm:$0xff]
        %v967 = vld [vmem:[%s1 + $0xd0] sm:$0xff]
        %v968 = vld [vmem:[%s1 + $0xd8] sm:$0xff]
        %v969 = vld [vmem:[%s1 + $0xe0] sm:$0xff]
        %v970 = vld [vmem:[%s1 + $0xe8] sm:$0xff]
        %v971 = vld [vmem:[%s1 + $0xf0] sm:$0xff]
        %v972 = vld [vmem:[%s1 + $0xf8] sm:$0xff]
        %v973 = vld [vmem:[%s1 + $0x100] sm:$0xff]
        %v974 = vld [vmem:[%s1 + $0x108] sm:$0xff]
        %v975 = vld [vmem:[%s1 + $0x110] sm:$0xff]
        %v976 = vld [vmem:[%s1 + $0x118] sm:$0xff]
        %v977 = vld [vmem:[%s1 + $0x120] sm:$0xff]
        %v978 = vld [vmem:[%s1 + $0x128] sm:$0xff]
        %v979 = vld [vmem:[%s1 + $0x130] sm:$0xff]
        %v980 = vld [vmem:[%s1 + $0x138] sm:$0xff]
        %v981 = vld [vmem:[%s1 + $0x140] sm:$0xff]
        %v982 = vld [vmem:[%s1 + $0x148] sm:$0xff]
        %v983 = vld [vmem:[%s1 + $0x150] sm:$0xff]
        %v984 = vld [vmem:[%s1 + $0x158] sm:$0xff]
        %v985 = vld [vmem:[%s1 + $0x160] sm:$0xff]
        %v986 = vld [vmem:[%s1 + $0x168] sm:$0xff]
        %v987 = vld [vmem:[%s1 + $0x170] sm:$0xff]
        %v988 = vld [vmem:[%s1 + $0x178] sm:$0xff]
        %v989 = vld [vmem:[%s1 + $0x180] sm:$0xff]
        %v990 = vld [vmem:[%s1 + $0x188] sm:$0xff]
        %v991 = vld [vmem:[%s1 + $0x190] sm:$0xff]
        %v992 = vld [vmem:[%s1 + $0x198] sm:$0xff]
        %v993 = vld [vmem:[%s1 + $0x1a0] sm:$0xff]
        %v994 = vld [vmem:[%s1 + $0x1a8] sm:$0xff]
        %v995 = vld [vmem:[%s1 + $0x1b0] sm:$0xff]
        %v996 = vld [vmem:[%s1 + $0x1b8] sm:$0xff]
        %v997 = vld [vmem:[%s1 + $0x1c0] sm:$0xff]
        %v998 = vld [vmem:[%s1 + $0x1c8] sm:$0xff]
        %v999 = vld [vmem:[%s1 + $0x1d0] sm:$0xff]
        %v1000 = vld [vmem:[%s1 + $0x1d8] sm:$0xff]
        %v1001 = vld [vmem:[%s1 + $0x1e0] sm:$0xff]
        %v1002 = vld [vmem:[%s1 + $0x1e8] sm:$0xff]
        %v1003 = vld [vmem:[%s1 + $0x1f0] sm:$0xff]
        %v1004 = vld [vmem:[%s1 + $0x1f8] sm:$0xff]
        %v1005 = vld [vmem:[%s1 + $0x200] sm:$0xff]
        %v1006 = vld [vmem:[%s1 + $0x208] sm:$0xff]
        %v1007 = vld [vmem:[%s1 + $0x210] sm:$0xff]
        %v1008 = vld [vmem:[%s1 + $0x218] sm:$0xff]
        %v1009 = vld [vmem:[%s1 + $0x220] sm:$0xff]
        %v1010 = vld [vmem:[%s1 + $0x228] sm:$0xff]
        %v1011 = vld [vmem:[%s1 + $0x230] sm:$0xff]
        %v1012 = vld [vmem:[%s1 + $0x238] sm:$0xff]
        %v1013 = vld [vmem:[%s1 + $0x240] sm:$0xff]
        %v1014 = vld [vmem:[%s1 + $0x248] sm:$0xff]
        %v1015 = vld [vmem:[%s1 + $0x250] sm:$0xff]
        %v1016 = vld [vmem:[%s1 + $0x258] sm:$0xff]
        %vm1017 = vcmask 130048
        %1018 = vst.msk [vmem:[#allocation2] sm:$0xff] %vm1017, 0.0
        %1019 = vst.msk [vmem:[#allocation2 + $0x8] sm:$0xff] %vm1017, 0.0
        %1020 = vst.msk [vmem:[#allocation2 + $0x10] sm:$0xff] %vm1017, 0.0
        %1021 = vst.msk [vmem:[#allocation2 + $0x18] sm:$0xff] %vm1017, 0.0
        %1022 = vst.msk [vmem:[#allocation2 + $0x20] sm:$0xff] %vm1017, 0.0
        %1023 = vst.msk [vmem:[#allocation2 + $0x28] sm:$0xff] %vm1017, 0.0
        %1024 = vst.msk [vmem:[#allocation2 + $0x30] sm:$0xff] %vm1017, 0.0
        %1025 = vst.msk [vmem:[#allocation2 + $0x38] sm:$0xff] %vm1017, 0.0
        %1026 = vst.msk [vmem:[#allocation2 + $0x40] sm:$0xff] %vm1017, 0.0
        %1027 = vst.msk [vmem:[#allocation2 + $0x48] sm:$0xff] %vm1017, 0.0
        %v1028 = vld [vmem:[%s776] sm:$0x1f]
        %v1029 = vld [vmem:[%s776 + $0x8] sm:$0x1f]
        %vm1030 = vcmask 1044480
        %v1031 = vsel %vm1030, %v1028, 0.0
        %v1032 = vsel %vm1030, %v1029, 0.0
        %v1033 = vadd.f32 %v1031, %v1032
        %1034 = vadd.xlane.f32.xlu0 %v1033
        %v1035 = vpop.xlane.xlu0 %1034
        %v1036 = vld [vmem:[%s9] sm:$0xff]
        %v1037 = vld [vmem:[%s9 + $0x8] sm:$0xff]
        %v1038 = vld [vmem:[%s9 + $0x10] sm:$0xff]
        %v1039 = vld [vmem:[%s9 + $0x18] sm:$0xff]
        %v1040 = vld [vmem:[%s9 + $0x20] sm:$0xff]
        %v1041 = vld [vmem:[%s9 + $0x28] sm:$0xff]
        %v1042 = vld [vmem:[%s9 + $0x30] sm:$0xff]
        %v1043 = vld [vmem:[%s9 + $0x38] sm:$0xff]
        %v1044 = vld [vmem:[%s9 + $0x40] sm:$0xff]
        %v1045 = vld [vmem:[%s9 + $0x48] sm:$0xff]
        %v1046 = vld [vmem:[%s9 + $0x50] sm:$0xff]
        %v1047 = vld [vmem:[%s9 + $0x58] sm:$0xff]
        %v1048 = vld [vmem:[%s9 + $0x60] sm:$0xff]
        %v1049 = vld [vmem:[%s9 + $0x68] sm:$0xff]
        %v1050 = vld [vmem:[%s9 + $0x70] sm:$0xff]
        %v1051 = vld [vmem:[%s9 + $0x78] sm:$0xff]
        %vm1052 = vcmask 39936
        %v1054 = vsel %vm1052, %v1036, 0
        %v1057 = vsel %vm1052, %v1037, 0
        %v1060 = vsel %vm1052, %v1038, 0
        %v1063 = vsel %vm1052, %v1039, 0
        %v1066 = vsel %vm1052, %v1040, 0
        %v1069 = vsel %vm1052, %v1041, 0
        %v1072 = vsel %vm1052, %v1042, 0
        %v1075 = vsel %vm1052, %v1043, 0
        %v1078 = vsel %vm1052, %v1044, 0
        %v1081 = vsel %vm1052, %v1045, 0
        %v1084 = vsel %vm1052, %v1046, 0
        %v1087 = vsel %vm1052, %v1047, 0
        %v1090 = vsel %vm1052, %v1048, 0
        %v1093 = vsel %vm1052, %v1049, 0
        %v1096 = vsel %vm1052, %v1050, 0
        %v1099 = vsel %vm1052, %v1051, 0
        %v1102 = vsel %vm1030, %v1028, 0
        %v1105 = vsel %vm1030, %v1029, 0
        %1107 = vmatprep.subr.mxu0 %v1105
        %1108 = vmatpush1.msra.mxu0 %v1102
        %1109 = vmatprep.subr.mxu0 0.0
        %1110 = vmatpush1.msra.mxu0 0.0
        %1111 = vmatprep.subr.mxu0 0.0
        %1112 = vmatpush1.msra.mxu0 0.0
        %1113 = vmatprep.subr.mxu0 0.0
        %1114 = vmatpush1.msra.mxu0 0.0
        %1115 = vmatprep.subr.mxu0 0.0
        %1116 = vmatpush1.msra.mxu0 0.0
        %1117 = vmatprep.subr.mxu0 0.0
        %1118 = vmatpush1.msra.mxu0 0.0
        %1119 = vmatprep.subr.mxu0 0.0
        %1120 = vmatpush1.msra.mxu0 0.0
        %1121 = vmatprep.subr.mxu0 0.0
        %1122 = vmatpush1.msra.mxu0 0.0
        %1123 = vmatprep.subr.mxu0 0.0
        %1124 = vmatpush1.msra.mxu0 0.0
        %1125 = vmatprep.subr.mxu0 0.0
        %1126 = vmatpush1.msra.mxu0 0.0
        %1127 = vmatprep.subr.mxu0 0.0
        %1128 = vmatpush1.msra.mxu0 0.0
        %1129 = vmatprep.subr.mxu0 0.0
        %1130 = vmatpush1.msra.mxu0 0.0
        %1131 = vmatprep.subr.mxu0 0.0
        %1132 = vmatpush1.msra.mxu0 0.0
        %1133 = vmatprep.subr.mxu0 0.0
        %1134 = vmatpush1.msra.mxu0 0.0
        %1135 = vmatprep.subr.mxu0 0.0
        %1136 = vmatpush1.msra.mxu0 0.0
        %1137 = vmatprep.subr.mxu0 0.0
        %1138 = vmatpush1.msra.mxu0 0.0
        %1139 = vmatprep.subr.mxu0 0.0
        %1140 = vmatpush1.msra.mxu0 0.0
        %1141 = vmatprep.subr.mxu0 0.0
        %1142 = vmatpush1.msra.mxu0 0.0
        %1143 = vmatprep.subr.mxu0 0.0
        %1144 = vmatpush1.msra.mxu0 0.0
        %1145 = vmatprep.subr.mxu0 0.0
        %1146 = vmatpush1.msra.mxu0 0.0
        %1147 = vmatprep.subr.mxu0 0.0
        %1148 = vmatpush1.msra.mxu0 0.0
        %1149 = vmatprep.subr.mxu0 0.0
        %1150 = vmatpush1.msra.mxu0 0.0
        %1151 = vmatprep.subr.mxu0 0.0
        %1152 = vmatpush1.msra.mxu0 0.0
        %1153 = vmatprep.subr.mxu0 0.0
        %1154 = vmatpush1.msra.mxu0 0.0
        %1155 = vmatprep.subr.mxu0 0.0
        %1156 = vmatpush1.msra.mxu0 0.0
        %1157 = vmatprep.subr.mxu0 0.0
        %1158 = vmatpush1.msra.mxu0 0.0
        %1159 = vmatprep.subr.mxu0 0.0
        %1160 = vmatpush1.msra.mxu0 0.0
        %1161 = vmatprep.subr.mxu0 0.0
        %1162 = vmatpush1.msra.mxu0 0.0
        %1163 = vmatprep.subr.mxu0 0.0
        %1164 = vmatpush1.msra.mxu0 0.0
        %1165 = vmatprep.subr.mxu0 0.0
        %1166 = vmatpush1.msra.mxu0 0.0
        %1167 = vmatprep.subr.mxu0 0.0
        %1168 = vmatpush1.msra.mxu0 0.0
        %1169 = vmatprep.subr.mxu0 0.0
        %1170 = vmatpush1.msra.mxu0 0.0
        %1171 = vmatprep.mubr.f32.mxu0 0.0
        %1172 = vmatmul.mubr.f32.gmra.mrb[0].mxu0 %v1054
        %v1173 = vpop.f32.mrb[0].mxu0
        %v1174 = vadd.f32 0.0, %v1173
        %v1175 = vpop.f32.mrb[0].mxu0
        %v1176 = vadd.f32 0.0, %v1175
        %1177 = vmatprep.mubr.f32.mxu0 0.0
        %1178 = vmatmul.mubr.f32.gmra.mrb[0].mxu0 %v1057
        %v1179 = vpop.f32.mrb[0].mxu0
        %v1180 = vadd.f32 0.0, %v1179
        %v1181 = vpop.f32.mrb[0].mxu0
        %v1182 = vadd.f32 0.0, %v1181
        %1183 = vmatprep.mubr.f32.mxu0 0.0
        %1184 = vmatmul.mubr.f32.gmra.mrb[0].mxu0 %v1060
        %v1185 = vpop.f32.mrb[0].mxu0
        %v1186 = vadd.f32 0.0, %v1185
        %v1187 = vpop.f32.mrb[0].mxu0
        %v1188 = vadd.f32 0.0, %v1187
        %1189 = vmatprep.mubr.f32.mxu0 0.0
        %1190 = vmatmul.mubr.f32.gmra.mrb[0].mxu0 %v1063
        %v1191 = vpop.f32.mrb[0].mxu0
        %v1192 = vadd.f32 0.0, %v1191
        %v1193 = vpop.f32.mrb[0].mxu0
        %v1194 = vadd.f32 0.0, %v1193
        %1195 = vmatprep.mubr.f32.mxu0 0.0
        %1196 = vmatmul.mubr.f32.gmra.mrb[0].mxu0 %v1066
        %v1197 = vpop.f32.mrb[0].mxu0
        %v1198 = vadd.f32 0.0, %v1197
        %v1199 = vpop.f32.mrb[0].mxu0
        %v1200 = vadd.f32 0.0, %v1199
        %1201 = vmatprep.mubr.f32.mxu0 0.0
        %1202 = vmatmul.mubr.f32.gmra.mrb[0].mxu0 %v1069
        %v1203 = vpop.f32.mrb[0].mxu0
        %v1204 = vadd.f32 0.0, %v1203
        %v1205 = vpop.f32.mrb[0].mxu0
        %v1206 = vadd.f32 0.0, %v1205
        %1207 = vmatprep.mubr.f32.mxu0 0.0
        %1208 = vmatmul.mubr.f32.gmra.mrb[0].mxu0 %v1072
        %v1209 = vpop.f32.mrb[0].mxu0
        %v1210 = vadd.f32 0.0, %v1209
        %v1211 = vpop.f32.mrb[0].mxu0
        %v1212 = vadd.f32 0.0, %v1211
        %1213 = vmatprep.mubr.f32.mxu0 0.0
        %1214 = vmatmul.mubr.f32.gmra.mrb[0].mxu0 %v1075
        %v1215 = vpop.f32.mrb[0].mxu0
        %v1216 = vadd.f32 0.0, %v1215
        %v1217 = vpop.f32.mrb[0].mxu0
        %v1218 = vadd.f32 0.0, %v1217
        %1219 = vmatprep.mubr.f32.mxu0 0.0
        %1220 = vmatmul.mubr.f32.gmra.mrb[0].mxu0 %v1078
        %v1221 = vpop.f32.mrb[0].mxu0
        %v1222 = vadd.f32 0.0, %v1221
        %v1223 = vpop.f32.mrb[0].mxu0
        %v1224 = vadd.f32 0.0, %v1223
        %1225 = vmatprep.mubr.f32.mxu0 0.0
        %1226 = vmatmul.mubr.f32.gmra.mrb[0].mxu0 %v1081
        %v1227 = vpop.f32.mrb[0].mxu0
        %v1228 = vadd.f32 0.0, %v1227
        %v1229 = vpop.f32.mrb[0].mxu0
        %v1230 = vadd.f32 0.0, %v1229
        %1231 = vmatprep.mubr.f32.mxu0 0.0
        %1232 = vmatmul.mubr.f32.gmra.mrb[0].mxu0 %v1084
        %v1233 = vpop.f32.mrb[0].mxu0
        %v1234 = vadd.f32 0.0, %v1233
        %v1235 = vpop.f32.mrb[0].mxu0
        %v1236 = vadd.f32 0.0, %v1235
        %1237 = vmatprep.mubr.f32.mxu0 0.0
        %1238 = vmatmul.mubr.f32.gmra.mrb[0].mxu0 %v1087
        %v1239 = vpop.f32.mrb[0].mxu0
        %v1240 = vadd.f32 0.0, %v1239
        %v1241 = vpop.f32.mrb[0].mxu0
        %v1242 = vadd.f32 0.0, %v1241
        %1243 = vmatprep.mubr.f32.mxu0 0.0
        %1244 = vmatmul.mubr.f32.gmra.mrb[0].mxu0 %v1090
        %v1245 = vpop.f32.mrb[0].mxu0
        %v1246 = vadd.f32 0.0, %v1245
        %v1247 = vpop.f32.mrb[0].mxu0
        %v1248 = vadd.f32 0.0, %v1247
        %1249 = vmatprep.mubr.f32.mxu0 0.0
        %1250 = vmatmul.mubr.f32.gmra.mrb[0].mxu0 %v1093
        %v1251 = vpop.f32.mrb[0].mxu0
        %v1252 = vadd.f32 0.0, %v1251
        %v1253 = vpop.f32.mrb[0].mxu0
        %v1254 = vadd.f32 0.0, %v1253
        %1255 = vmatprep.mubr.f32.mxu0 0.0
        %1256 = vmatmul.mubr.f32.gmra.mrb[0].mxu0 %v1096
        %v1257 = vpop.f32.mrb[0].mxu0
        %v1258 = vadd.f32 0.0, %v1257
        %v1259 = vpop.f32.mrb[0].mxu0
        %v1260 = vadd.f32 0.0, %v1259
        %1261 = vmatprep.mubr.f32.mxu0 0.0
        %1262 = vmatmul.mubr.f32.gmra.mrb[0].mxu0 %v1099
        %v1263 = vpop.f32.mrb[0].mxu0
        %v1264 = vadd.f32 0.0, %v1263
        %v1265 = vpop.f32.mrb[0].mxu0
        %v1266 = vadd.f32 0.0, %v1265
        %1267 = vdwg.mxu0
        %1268 = vmatprep.subr.mxu0 %v922
        %1269 = vmatpush1.xpose.msra.mxu0 %v921
        %1270 = vmatprep.subr.mxu0 %v924
        %1271 = vmatpush1.xpose.msra.mxu0 %v923
        %1272 = vmatprep.subr.mxu0 %v926
        %1273 = vmatpush1.xpose.msra.mxu0 %v925
        %1274 = vmatprep.subr.mxu0 %v928
        %1275 = vmatpush1.xpose.msra.mxu0 %v927
        %1276 = vmatprep.subr.mxu0 %v930
        %1277 = vmatpush1.xpose.msra.mxu0 %v929
        %1278 = vmatprep.subr.mxu0 %v932
        %1279 = vmatpush1.xpose.msra.mxu0 %v931
        %1280 = vmatprep.subr.mxu0 %v934
        %1281 = vmatpush1.xpose.msra.mxu0 %v933
        %1282 = vmatprep.subr.mxu0 %v936
        %1283 = vmatpush1.xpose.msra.mxu0 %v935
        %1284 = vmatprep.subr.mxu0 %v938
        %1285 = vmatpush1.xpose.msra.mxu0 %v937
        %1286 = vmatprep.subr.mxu0 %v940
        %1287 = vmatpush1.xpose.msra.mxu0 %v939
        %1288 = vmatprep.subr.mxu0 0.0
        %1289 = vmatpush1.xpose.msra.mxu0 0.0
        %1290 = vmatprep.subr.mxu0 0.0
        %1291 = vmatpush1.xpose.msra.mxu0 0.0
        %1292 = vmatprep.subr.mxu0 0.0
        %1293 = vmatpush1.xpose.msra.mxu0 0.0
        %1294 = vmatprep.subr.mxu0 0.0
        %1295 = vmatpush1.xpose.msra.mxu0 0.0
        %1296 = vmatprep.subr.mxu0 0.0
        %1297 = vmatpush1.xpose.msra.mxu0 0.0
        %1298 = vmatprep.subr.mxu0 0.0
        %1299 = vmatpush1.xpose.msra.mxu0 0.0
        %1300 = vmatprep.subr.mxu0 0.0
        %1301 = vmatpush1.xpose.msra.mxu0 0.0
        %1302 = vmatprep.subr.mxu0 0.0
        %1303 = vmatpush1.xpose.msra.mxu0 0.0
        %1304 = vmatprep.subr.mxu0 0.0
        %1305 = vmatpush1.xpose.msra.mxu0 0.0
        %1306 = vmatprep.subr.mxu0 0.0
        %1307 = vmatpush1.xpose.msra.mxu0 0.0
        %1308 = vmatprep.subr.mxu0 0.0
        %1309 = vmatpush1.xpose.msra.mxu0 0.0
        %1310 = vmatprep.subr.mxu0 0.0
        %1311 = vmatpush1.xpose.msra.mxu0 0.0
        %1312 = vmatprep.subr.mxu0 0.0
        %1313 = vmatpush1.xpose.msra.mxu0 0.0
        %1314 = vmatprep.subr.mxu0 0.0
        %1315 = vmatpush1.xpose.msra.mxu0 0.0
        %1316 = vmatprep.subr.mxu0 0.0
        %1317 = vmatpush1.xpose.msra.mxu0 0.0
        %1318 = vmatprep.subr.mxu0 0.0
        %1319 = vmatpush1.xpose.msra.mxu0 0.0
        %1320 = vmatprep.subr.mxu0 0.0
        %1321 = vmatpush1.xpose.msra.mxu0 0.0
        %1322 = vmatprep.subr.mxu0 0.0
        %1323 = vmatpush1.xpose.msra.mxu0 0.0
        %1324 = vmatprep.subr.mxu0 0.0
        %1325 = vmatpush1.xpose.msra.mxu0 0.0
        %1326 = vmatprep.subr.mxu0 0.0
        %1327 = vmatpush1.xpose.msra.mxu0 0.0
        %1328 = vmatprep.subr.mxu0 0.0
        %1329 = vmatpush1.xpose.msra.mxu0 0.0
        %1330 = vmatprep.subr.mxu0 0.0
        %1331 = vmatpush1.xpose.msra.mxu0 0.0
        %1332 = vmatprep.mubr.f32.mxu0 %v1029
        %1333 = vmatmul.mubr.f32.gmra.mrb[0].mxu0 %v1028
        %v1334 = vpop.f32.mrb[0].mxu0
        %v1335 = vadd.f32 0.0, %v1334
        %v1336 = vpop.f32.mrb[0].mxu0
        %1337 = vdwg.mxu0
        %vm1338 = vcmask 126976
        %1339 = vst.msk [vmem:[#allocation2] sm:$0x1f] %vm1338, %v1335
        %1341 = vrot.lane.b32.xlu0 %v1335, 112
        %v1342 = vpop.permute.xlu0 %1341
        %1344 = vst.msk [vmem:[#allocation2 + $0x8] sm:$0x1f] %vm1338, %v1342
        %1345 = vrot.lane.b32.xlu0 %v1335, 96
        %v1346 = vpop.permute.xlu0 %1345
        %1348 = vst.msk [vmem:[#allocation2 + $0x10] sm:$0x1f] %vm1338, %v1346
        %1349 = vrot.lane.b32.xlu0 %v1335, 80
        %v1350 = vpop.permute.xlu0 %1349
        %1352 = vst.msk [vmem:[#allocation2 + $0x18] sm:$0x1f] %vm1338, %v1350
        %1353 = vrot.lane.b32.xlu0 %v1335, 64
        %v1354 = vpop.permute.xlu0 %1353
        %1356 = vst.msk [vmem:[#allocation2 + $0x20] sm:$0x1f] %vm1338, %v1354
        %v1357 = vld [vmem:[%s10] sm:$0xff]
        %v1358 = vld [vmem:[%s10 + $0x8] sm:$0xff]
        %v1359 = vld [vmem:[%s10 + $0x10] sm:$0xff]
        %v1360 = vld [vmem:[%s10 + $0x18] sm:$0xff]
        %v1361 = vld [vmem:[%s10 + $0x20] sm:$0xff]
        %v1362 = vld [vmem:[%s10 + $0x28] sm:$0xff]
        %v1363 = vld [vmem:[%s10 + $0x30] sm:$0xff]
        %v1364 = vld [vmem:[%s10 + $0x38] sm:$0xff]
        %v1365 = vld [vmem:[%s10 + $0x40] sm:$0xff]
        %v1366 = vld [vmem:[%s10 + $0x48] sm:$0xff]
        %v1367 = vld [vmem:[%s10 + $0x50] sm:$0xff]
        %v1368 = vld [vmem:[%s10 + $0x58] sm:$0xff]
        %v1369 = vld [vmem:[%s10 + $0x60] sm:$0xff]
        %v1370 = vld [vmem:[%s10 + $0x68] sm:$0xff]
        %v1371 = vld [vmem:[%s10 + $0x70] sm:$0xff]
        %v1372 = vld [vmem:[%s10 + $0x78] sm:$0xff]
        %v1373 = vld [vmem:[%s10 + $0x80] sm:$0xff]
        %v1374 = vld [vmem:[%s10 + $0x88] sm:$0xff]
        %v1375 = vld [vmem:[%s10 + $0x90] sm:$0xff]
        %v1376 = vld [vmem:[%s10 + $0x98] sm:$0xff]
        %v1377 = vld [vmem:[%s10 + $0xa0] sm:$0xff]
        %v1378 = vld [vmem:[%s10 + $0xa8] sm:$0xff]
        %v1379 = vld [vmem:[%s10 + $0xb0] sm:$0xff]
        %v1380 = vld [vmem:[%s10 + $0xb8] sm:$0xff]
        %v1381 = vld [vmem:[#allocation2] sm:$0xff]
        %v1382 = vld [vmem:[#allocation2 + $0x8] sm:$0xff]
        %v1383 = vld [vmem:[#allocation2 + $0x10] sm:$0xff]
        %v1384 = vld [vmem:[#allocation2 + $0x18] sm:$0xff]
        %v1385 = vld [vmem:[#allocation2 + $0x20] sm:$0xff]
        %vm1386 = vcmask 326656
        %v1388 = vsel %vm1386, %v1357, 0
        %v1391 = vsel %vm1386, %v1358, 0
        %v1394 = vsel %vm1386, %v1359, 0
        %v1397 = vsel %vm1386, %v1360, 0
        %v1400 = vsel %vm1386, %v1361, 0
        %v1403 = vsel %vm1386, %v1362, 0
        %v1406 = vsel %vm1386, %v1363, 0
        %v1409 = vsel %vm1386, %v1364, 0
        %v1412 = vsel %vm1386, %v1365, 0
        %v1415 = vsel %vm1386, %v1366, 0
        %v1418 = vsel %vm1386, %v1367, 0
        %v1421 = vsel %vm1386, %v1368, 0
        %v1424 = vsel %vm1386, %v1369, 0
        %v1427 = vsel %vm1386, %v1370, 0
        %v1430 = vsel %vm1386, %v1371, 0
        %v1433 = vsel %vm1386, %v1372, 0
        %v1436 = vsel %vm1386, %v1373, 0
        %v1439 = vsel %vm1386, %v1374, 0
        %v1442 = vsel %vm1386, %v1375, 0
        %v1445 = vsel %vm1386, %v1376, 0
        %v1448 = vsel %vm1386, %v1377, 0
        %v1451 = vsel %vm1386, %v1378, 0
        %v1454 = vsel %vm1386, %v1379, 0
        %v1457 = vsel %vm1386, %v1380, 0
        %1459 = vmatprep.subr.mxu0 0.0
        %1460 = vmatpush1.msra.mxu0 %v1381
        %1461 = vmatprep.subr.mxu0 0.0
        %1462 = vmatpush1.msra.mxu0 %v1382
        %1463 = vmatprep.subr.mxu0 0.0
        %1464 = vmatpush1.msra.mxu0 %v1383
        %1465 = vmatprep.subr.mxu0 0.0
        %1466 = vmatpush1.msra.mxu0 %v1384
        %1467 = vmatprep.subr.mxu0 0.0
        %1468 = vmatpush1.msra.mxu0 %v1385
        %1469 = vmatprep.subr.mxu0 0.0
        %1470 = vmatpush1.msra.mxu0 0.0
        %1471 = vmatprep.subr.mxu0 0.0
        %1472 = vmatpush1.msra.mxu0 0.0
        %1473 = vmatprep.subr.mxu0 0.0
        %1474 = vmatpush1.msra.mxu0 0.0
        %1475 = vmatprep.subr.mxu0 0.0
        %1476 = vmatpush1.msra.mxu0 0.0
        %1477 = vmatprep.subr.mxu0 0.0
        %1478 = vmatpush1.msra.mxu0 0.0
        %1479 = vmatprep.subr.mxu0 0.0
        %1480 = vmatpush1.msra.mxu0 0.0
        %1481 = vmatprep.subr.mxu0 0.0
        %1482 = vmatpush1.msra.mxu0 0.0
        %1483 = vmatprep.subr.mxu0 0.0
        %1484 = vmatpush1.msra.mxu0 0.0
        %1485 = vmatprep.subr.mxu0 0.0
        %1486 = vmatpush1.msra.mxu0 0.0
        %1487 = vmatprep.subr.mxu0 0.0
        %1488 = vmatpush1.msra.mxu0 0.0
        %1489 = vmatprep.subr.mxu0 0.0
        %1490 = vmatpush1.msra.mxu0 0.0
        %1491 = vmatprep.subr.mxu0 0.0
        %1492 = vmatpush1.msra.mxu0 0.0
        %1493 = vmatprep.subr.mxu0 0.0
        %1494 = vmatpush1.msra.mxu0 0.0
        %1495 = vmatprep.subr.mxu0 0.0
        %1496 = vmatpush1.msra.mxu0 0.0
        %1497 = vmatprep.subr.mxu0 0.0
        %1498 = vmatpush1.msra.mxu0 0.0
        %1499 = vmatprep.subr.mxu0 0.0
        %1500 = vmatpush1.msra.mxu0 0.0
        %1501 = vmatprep.subr.mxu0 0.0
        %1502 = vmatpush1.msra.mxu0 0.0
        %1503 = vmatprep.subr.mxu0 0.0
        %1504 = vmatpush1.msra.mxu0 0.0
        %1505 = vmatprep.subr.mxu0 0.0
        %1506 = vmatpush1.msra.mxu0 0.0
        %1507 = vmatprep.subr.mxu0 0.0
        %1508 = vmatpush1.msra.mxu0 0.0
        %1509 = vmatprep.subr.mxu0 0.0
        %1510 = vmatpush1.msra.mxu0 0.0
        %1511 = vmatprep.subr.mxu0 0.0
        %1512 = vmatpush1.msra.mxu0 0.0
        %1513 = vmatprep.subr.mxu0 0.0
        %1514 = vmatpush1.msra.mxu0 0.0
        %1515 = vmatprep.subr.mxu0 0.0
        %1516 = vmatpush1.msra.mxu0 0.0
        %1517 = vmatprep.subr.mxu0 0.0
        %1518 = vmatpush1.msra.mxu0 0.0
        %1519 = vmatprep.subr.mxu0 0.0
        %1520 = vmatpush1.msra.mxu0 0.0
        %1521 = vmatprep.subr.mxu0 0.0
        %1522 = vmatpush1.msra.mxu0 0.0
        %1523 = vmatprep.mubr.f32.mxu0 0.0
        %1524 = vmatmul.mubr.f32.gmra.mrb[0].mxu0 %v1388
        %v1525 = vpop.f32.mrb[0].mxu0
        %v1526 = vadd.f32 0.0, %v1525
        %v1527 = vpop.f32.mrb[0].mxu0
        %1528 = vmatprep.mubr.f32.mxu0 0.0
        %1529 = vmatmul.mubr.f32.gmra.mrb[0].mxu0 %v1391
        %v1530 = vpop.f32.mrb[0].mxu0
        %v1531 = vadd.f32 0.0, %v1530
        %v1532 = vpop.f32.mrb[0].mxu0
        %1533 = vmatprep.mubr.f32.mxu0 0.0
        %1534 = vmatmul.mubr.f32.gmra.mrb[0].mxu0 %v1394
        %v1535 = vpop.f32.mrb[0].mxu0
        %v1536 = vadd.f32 0.0, %v1535
        %v1537 = vpop.f32.mrb[0].mxu0
        %1538 = vmatprep.mubr.f32.mxu0 0.0
        %1539 = vmatmul.mubr.f32.gmra.mrb[0].mxu0 %v1397
        %v1540 = vpop.f32.mrb[0].mxu0
        %v1541 = vadd.f32 0.0, %v1540
        %v1542 = vpop.f32.mrb[0].mxu0
        %1543 = vmatprep.mubr.f32.mxu0 0.0
        %1544 = vmatmul.mubr.f32.gmra.mrb[0].mxu0 %v1400
        %v1545 = vpop.f32.mrb[0].mxu0
        %v1546 = vadd.f32 0.0, %v1545
        %v1547 = vpop.f32.mrb[0].mxu0
        %1548 = vmatprep.mubr.f32.mxu0 0.0
        %1549 = vmatmul.mubr.f32.gmra.mrb[0].mxu0 %v1403
        %v1550 = vpop.f32.mrb[0].mxu0
        %v1551 = vadd.f32 0.0, %v1550
        %v1552 = vpop.f32.mrb[0].mxu0
        %1553 = vmatprep.mubr.f32.mxu0 0.0
        %1554 = vmatmul.mubr.f32.gmra.mrb[0].mxu0 %v1406
        %v1555 = vpop.f32.mrb[0].mxu0
        %v1556 = vadd.f32 0.0, %v1555
        %v1557 = vpop.f32.mrb[0].mxu0
        %1558 = vmatprep.mubr.f32.mxu0 0.0
        %1559 = vmatmul.mubr.f32.gmra.mrb[0].mxu0 %v1409
        %v1560 = vpop.f32.mrb[0].mxu0
        %v1561 = vadd.f32 0.0, %v1560
        %v1562 = vpop.f32.mrb[0].mxu0
        %1563 = vmatprep.mubr.f32.mxu0 0.0
        %1564 = vmatmul.mubr.f32.gmra.mrb[0].mxu0 %v1412
        %v1565 = vpop.f32.mrb[0].mxu0
        %v1566 = vadd.f32 0.0, %v1565
        %v1567 = vpop.f32.mrb[0].mxu0
        %1568 = vmatprep.mubr.f32.mxu0 0.0
        %1569 = vmatmul.mubr.f32.gmra.mrb[0].mxu0 %v1415
        %v1570 = vpop.f32.mrb[0].mxu0
        %v1571 = vadd.f32 0.0, %v1570
        %v1572 = vpop.f32.mrb[0].mxu0
        %1573 = vmatprep.mubr.f32.mxu0 0.0
        %1574 = vmatmul.mubr.f32.gmra.mrb[0].mxu0 %v1418
        %v1575 = vpop.f32.mrb[0].mxu0
        %v1576 = vadd.f32 0.0, %v1575
        %v1577 = vpop.f32.mrb[0].mxu0
        %1578 = vmatprep.mubr.f32.mxu0 0.0
        %1579 = vmatmul.mubr.f32.gmra.mrb[0].mxu0 %v1421
        %v1580 = vpop.f32.mrb[0].mxu0
        %v1581 = vadd.f32 0.0, %v1580
        %v1582 = vpop.f32.mrb[0].mxu0
        %1583 = vmatprep.mubr.f32.mxu0 0.0
        %1584 = vmatmul.mubr.f32.gmra.mrb[0].mxu0 %v1424
        %v1585 = vpop.f32.mrb[0].mxu0
        %v1586 = vadd.f32 0.0, %v1585
        %v1587 = vpop.f32.mrb[0].mxu0
        %1588 = vmatprep.mubr.f32.mxu0 0.0
        %1589 = vmatmul.mubr.f32.gmra.mrb[0].mxu0 %v1427
        %v1590 = vpop.f32.mrb[0].mxu0
        %v1591 = vadd.f32 0.0, %v1590
        %v1592 = vpop.f32.mrb[0].mxu0
        %1593 = vmatprep.mubr.f32.mxu0 0.0
        %1594 = vmatmul.mubr.f32.gmra.mrb[0].mxu0 %v1430
        %v1595 = vpop.f32.mrb[0].mxu0
        %v1596 = vadd.f32 0.0, %v1595
        %v1597 = vpop.f32.mrb[0].mxu0
        %1598 = vmatprep.mubr.f32.mxu0 0.0
        %1599 = vmatmul.mubr.f32.gmra.mrb[0].mxu0 %v1433
        %v1600 = vpop.f32.mrb[0].mxu0
        %v1601 = vadd.f32 0.0, %v1600
        %v1602 = vpop.f32.mrb[0].mxu0
        %1603 = vmatprep.mubr.f32.mxu0 0.0
        %1604 = vmatmul.mubr.f32.gmra.mrb[0].mxu0 %v1436
        %v1605 = vpop.f32.mrb[0].mxu0
        %v1606 = vadd.f32 0.0, %v1605
        %v1607 = vpop.f32.mrb[0].mxu0
        %1608 = vmatprep.mubr.f32.mxu0 0.0
        %1609 = vmatmul.mubr.f32.gmra.mrb[0].mxu0 %v1439
        %v1610 = vpop.f32.mrb[0].mxu0
        %v1611 = vadd.f32 0.0, %v1610
        %v1612 = vpop.f32.mrb[0].mxu0
        %1613 = vmatprep.mubr.f32.mxu0 0.0
        %1614 = vmatmul.mubr.f32.gmra.mrb[0].mxu0 %v1442
        %v1615 = vpop.f32.mrb[0].mxu0
        %v1616 = vadd.f32 0.0, %v1615
        %v1617 = vpop.f32.mrb[0].mxu0
        %1618 = vmatprep.mubr.f32.mxu0 0.0
        %1619 = vmatmul.mubr.f32.gmra.mrb[0].mxu0 %v1445
        %v1620 = vpop.f32.mrb[0].mxu0
        %v1621 = vadd.f32 0.0, %v1620
        %v1622 = vpop.f32.mrb[0].mxu0
        %1623 = vmatprep.mubr.f32.mxu0 0.0
        %1624 = vmatmul.mubr.f32.gmra.mrb[0].mxu0 %v1448
        %v1625 = vpop.f32.mrb[0].mxu0
        %v1626 = vadd.f32 0.0, %v1625
        %v1627 = vpop.f32.mrb[0].mxu0
        %1628 = vmatprep.mubr.f32.mxu0 0.0
        %1629 = vmatmul.mubr.f32.gmra.mrb[0].mxu0 %v1451
        %v1630 = vpop.f32.mrb[0].mxu0
        %v1631 = vadd.f32 0.0, %v1630
        %v1632 = vpop.f32.mrb[0].mxu0
        %1633 = vmatprep.mubr.f32.mxu0 0.0
        %1634 = vmatmul.mubr.f32.gmra.mrb[0].mxu0 %v1454
        %v1635 = vpop.f32.mrb[0].mxu0
        %v1636 = vadd.f32 0.0, %v1635
        %v1637 = vpop.f32.mrb[0].mxu0
        %1638 = vmatprep.mubr.f32.mxu0 0.0
        %1639 = vmatmul.mubr.f32.gmra.mrb[0].mxu0 %v1457
        %v1640 = vpop.f32.mrb[0].mxu0
        %v1641 = vadd.f32 0.0, %v1640
        %v1642 = vpop.f32.mrb[0].mxu0
        %1643 = vdwg.mxu0
        %1644 = vst [vmem:[#allocation3] sm:$0xff] %v1222
        %1645 = vst [vmem:[#allocation3 + $0x8] sm:$0xff] %v1224
        %1646 = vst [vmem:[#allocation3 + $0x18] sm:$0xff] %v1228
        %1647 = vst [vmem:[#allocation3 + $0x20] sm:$0xff] %v1230
        %1648 = vst [vmem:[#allocation3 + $0x30] sm:$0xff] %v1234
        %1649 = vst [vmem:[#allocation3 + $0x38] sm:$0xff] %v1236
        %1650 = vst [vmem:[#allocation3 + $0x48] sm:$0xff] %v1240
        %1651 = vst [vmem:[#allocation3 + $0x50] sm:$0xff] %v1242
        %1652 = vst [vmem:[#allocation3 + $0x60] sm:$0xff] %v1246
        %1653 = vst [vmem:[#allocation3 + $0x68] sm:$0xff] %v1248
        %1654 = vst [vmem:[#allocation3 + $0x78] sm:$0xff] %v1252
        %1655 = vst [vmem:[#allocation3 + $0x80] sm:$0xff] %v1254
        %1656 = vst [vmem:[#allocation3 + $0x90] sm:$0xff] %v1258
        %1657 = vst [vmem:[#allocation3 + $0x98] sm:$0xff] %v1260
        %1658 = vst [vmem:[#allocation3 + $0xa8] sm:$0xff] %v1264
        %1659 = vst [vmem:[#allocation3 + $0xb0] sm:$0xff] %v1266
        %1660 = vst.msk [vmem:[#allocation3 + $0x10] sm:$0xff] %vm1017, %v1526
        %1661 = vst.msk [vmem:[#allocation3 + $0x28] sm:$0xff] %vm1017, %v1531
        %1662 = vst.msk [vmem:[#allocation3 + $0x40] sm:$0xff] %vm1017, %v1536
        %1663 = vst.msk [vmem:[#allocation3 + $0x58] sm:$0xff] %vm1017, %v1541
        %1664 = vst.msk [vmem:[#allocation3 + $0x70] sm:$0xff] %vm1017, %v1546
        %1665 = vst.msk [vmem:[#allocation3 + $0x88] sm:$0xff] %vm1017, %v1551
        %1666 = vst.msk [vmem:[#allocation3 + $0xa0] sm:$0xff] %vm1017, %v1556
        %1667 = vst.msk [vmem:[#allocation3 + $0xb8] sm:$0xff] %vm1017, %v1561
        %1676 = vrot.lane.b32.xlu0 %v1566, 16
        %v1677 = vpop.permute.xlu0 %1676
        %1678 = vrot.lane.b32.xlu0 %v1571, 16
        %v1679 = vpop.permute.xlu0 %1678
        %1680 = vrot.lane.b32.xlu0 %v1576, 16
        %v1681 = vpop.permute.xlu0 %1680
        %1682 = vrot.lane.b32.xlu0 %v1581, 16
        %v1683 = vpop.permute.xlu0 %1682
        %1684 = vrot.lane.b32.xlu0 %v1586, 16
        %v1685 = vpop.permute.xlu0 %1684
        %1686 = vrot.lane.b32.xlu0 %v1591, 16
        %v1687 = vpop.permute.xlu0 %1686
        %1688 = vrot.lane.b32.xlu0 %v1596, 16
        %v1689 = vpop.permute.xlu0 %1688
        %1690 = vrot.lane.b32.xlu0 %v1601, 16
        %v1691 = vpop.permute.xlu0 %1690
        %vm1700 = vcmask 261248
        %1701 = vst.msk [vmem:[#allocation3 + $0x10] sm:$0xff] %vm1700, %v1677
        %1702 = vst.msk [vmem:[#allocation3 + $0x28] sm:$0xff] %vm1700, %v1679
        %1703 = vst.msk [vmem:[#allocation3 + $0x40] sm:$0xff] %vm1700, %v1681
        %1704 = vst.msk [vmem:[#allocation3 + $0x58] sm:$0xff] %vm1700, %v1683
        %1705 = vst.msk [vmem:[#allocation3 + $0x70] sm:$0xff] %vm1700, %v1685
        %1706 = vst.msk [vmem:[#allocation3 + $0x88] sm:$0xff] %vm1700, %v1687
        %1707 = vst.msk [vmem:[#allocation3 + $0xa0] sm:$0xff] %vm1700, %v1689
        %1708 = vst.msk [vmem:[#allocation3 + $0xb8] sm:$0xff] %vm1700, %v1691
        %1717 = vrot.lane.b32.xlu0 %v1606, 32
        %v1718 = vpop.permute.xlu0 %1717
        %1719 = vrot.lane.b32.xlu0 %v1611, 32
        %v1720 = vpop.permute.xlu0 %1719
        %1721 = vrot.lane.b32.xlu0 %v1616, 32
        %v1722 = vpop.permute.xlu0 %1721
        %1723 = vrot.lane.b32.xlu0 %v1621, 32
        %v1724 = vpop.permute.xlu0 %1723
        %1725 = vrot.lane.b32.xlu0 %v1626, 32
        %v1726 = vpop.permute.xlu0 %1725
        %1727 = vrot.lane.b32.xlu0 %v1631, 32
        %v1728 = vpop.permute.xlu0 %1727
        %1729 = vrot.lane.b32.xlu0 %v1636, 32
        %v1730 = vpop.permute.xlu0 %1729
        %1731 = vrot.lane.b32.xlu0 %v1641, 32
        %v1732 = vpop.permute.xlu0 %1731
        %vm1741 = vcmask 392448
        %1742 = vst.msk [vmem:[#allocation3 + $0x10] sm:$0xff] %vm1741, %v1718
        %1743 = vst.msk [vmem:[#allocation3 + $0x28] sm:$0xff] %vm1741, %v1720
        %1744 = vst.msk [vmem:[#allocation3 + $0x40] sm:$0xff] %vm1741, %v1722
        %1745 = vst.msk [vmem:[#allocation3 + $0x58] sm:$0xff] %vm1741, %v1724
        %1746 = vst.msk [vmem:[#allocation3 + $0x70] sm:$0xff] %vm1741, %v1726
        %1747 = vst.msk [vmem:[#allocation3 + $0x88] sm:$0xff] %vm1741, %v1728
        %1748 = vst.msk [vmem:[#allocation3 + $0xa0] sm:$0xff] %vm1741, %v1730
        %1749 = vst.msk [vmem:[#allocation3 + $0xb8] sm:$0xff] %vm1741, %v1732
        %v1750 = vld [vmem:[#allocation3] sm:$0xff]
        %v1751 = vld [vmem:[#allocation3 + $0x8] sm:$0xff]
        %v1752 = vld [vmem:[#allocation3 + $0x10] sm:$0xff]
        %v1753 = vld [vmem:[#allocation3 + $0x18] sm:$0xff]
        %v1754 = vld [vmem:[#allocation3 + $0x20] sm:$0xff]
        %v1755 = vld [vmem:[#allocation3 + $0x28] sm:$0xff]
        %v1756 = vld [vmem:[#allocation3 + $0x30] sm:$0xff]
        %v1757 = vld [vmem:[#allocation3 + $0x38] sm:$0xff]
        %v1758 = vld [vmem:[#allocation3 + $0x40] sm:$0xff]
        %v1759 = vld [vmem:[#allocation3 + $0x48] sm:$0xff]
        %v1760 = vld [vmem:[#allocation3 + $0x50] sm:$0xff]
        %v1761 = vld [vmem:[#allocation3 + $0x58] sm:$0xff]
        %v1762 = vld [vmem:[#allocation3 + $0x60] sm:$0xff]
        %v1763 = vld [vmem:[#allocation3 + $0x68] sm:$0xff]
        %v1764 = vld [vmem:[#allocation3 + $0x70] sm:$0xff]
        %v1765 = vld [vmem:[#allocation3 + $0x78] sm:$0xff]
        %v1766 = vld [vmem:[#allocation3 + $0x80] sm:$0xff]
        %v1767 = vld [vmem:[#allocation3 + $0x88] sm:$0xff]
        %v1768 = vld [vmem:[#allocation3 + $0x90] sm:$0xff]
        %v1769 = vld [vmem:[#allocation3 + $0x98] sm:$0xff]
        %v1770 = vld [vmem:[#allocation3 + $0xa0] sm:$0xff]
        %v1771 = vld [vmem:[#allocation3 + $0xa8] sm:$0xff]
        %v1772 = vld [vmem:[#allocation3 + $0xb0] sm:$0xff]
        %v1773 = vld [vmem:[#allocation3 + $0xb8] sm:$0xff]
        %vm1774 = vcmask 392192
        %v1776 = vsel %vm1774, %v1752, 0
        %v1779 = vsel %vm1774, %v1755, 0
        %v1782 = vsel %vm1774, %v1758, 0
        %v1785 = vsel %vm1774, %v1761, 0
        %v1788 = vsel %vm1774, %v1764, 0
        %v1791 = vsel %vm1774, %v1767, 0
        %v1794 = vsel %vm1774, %v1770, 0
        %v1797 = vsel %vm1774, %v1773, 0
        %1799 = vmatprep.subr.mxu0 %v942
        %1800 = vmatpush1.msra.mxu0 %v941
        %1801 = vmatprep.subr.mxu0 %v944
        %1802 = vmatpush1.msra.mxu0 %v943
        %1803 = vmatprep.subr.mxu0 %v946
        %1804 = vmatpush1.msra.mxu0 %v945
        %1805 = vmatprep.subr.mxu0 %v948
        %1806 = vmatpush1.msra.mxu0 %v947
        %1807 = vmatprep.subr.mxu0 %v950
        %1808 = vmatpush1.msra.mxu0 %v949
        %1809 = vmatprep.subr.mxu0 %v952
        %1810 = vmatpush1.msra.mxu0 %v951
        %1811 = vmatprep.subr.mxu0 %v954
        %1812 = vmatpush1.msra.mxu0 %v953
        %1813 = vmatprep.subr.mxu0 %v956
        %1814 = vmatpush1.msra.mxu0 %v955
        %1815 = vmatprep.subr.mxu0 %v958
        %1816 = vmatpush1.msra.mxu0 %v957
        %1817 = vmatprep.subr.mxu0 %v960
        %1818 = vmatpush1.msra.mxu0 %v959
        %1819 = vmatprep.subr.mxu0 %v962
        %1820 = vmatpush1.msra.mxu0 %v961
        %1821 = vmatprep.subr.mxu0 %v964
        %1822 = vmatpush1.msra.mxu0 %v963
        %1823 = vmatprep.subr.mxu0 %v966
        %1824 = vmatpush1.msra.mxu0 %v965
        %1825 = vmatprep.subr.mxu0 %v968
        %1826 = vmatpush1.msra.mxu0 %v967
        %1827 = vmatprep.subr.mxu0 %v970
        %1828 = vmatpush1.msra.mxu0 %v969
        %1829 = vmatprep.subr.mxu0 %v972
        %1830 = vmatpush1.msra.mxu0 %v971
        %1831 = vmatprep.subr.mxu0 %v974
        %1832 = vmatpush1.msra.mxu0 %v973
        %1833 = vmatprep.subr.mxu0 %v976
        %1834 = vmatpush1.msra.mxu0 %v975
        %1835 = vmatprep.subr.mxu0 %v978
        %1836 = vmatpush1.msra.mxu0 %v977
        %1837 = vmatprep.subr.mxu0 %v980
        %1838 = vmatpush1.msra.mxu0 %v979
        %1839 = vmatprep.subr.mxu0 %v982
        %1840 = vmatpush1.msra.mxu0 %v981
        %1841 = vmatprep.subr.mxu0 %v984
        %1842 = vmatpush1.msra.mxu0 %v983
        %1843 = vmatprep.subr.mxu0 %v986
        %1844 = vmatpush1.msra.mxu0 %v985
        %1845 = vmatprep.subr.mxu0 %v988
        %1846 = vmatpush1.msra.mxu0 %v987
        %1847 = vmatprep.subr.mxu0 %v990
        %1848 = vmatpush1.msra.mxu0 %v989
        %1849 = vmatprep.subr.mxu0 %v992
        %1850 = vmatpush1.msra.mxu0 %v991
        %1851 = vmatprep.subr.mxu0 %v994
        %1852 = vmatpush1.msra.mxu0 %v993
        %1853 = vmatprep.subr.mxu0 %v996
        %1854 = vmatpush1.msra.mxu0 %v995
        %1855 = vmatprep.subr.mxu0 %v998
        %1856 = vmatpush1.msra.mxu0 %v997
        %1857 = vmatprep.subr.mxu0 %v1000
        %1858 = vmatpush1.msra.mxu0 %v999
        %1859 = vmatprep.subr.mxu0 %v1002
        %1860 = vmatpush1.msra.mxu0 %v1001
        %1861 = vmatprep.subr.mxu0 %v1004
        %1862 = vmatpush1.msra.mxu0 %v1003
        %1863 = vmatprep.mubr.f32.mxu0 %v1751
        %1864 = vmatmul.mubr.f32.gmra.mrb[0].mxu0 %v1750
        %v1865 = vpop.f32.mrb[0].mxu0
        %v1866 = vadd.f32 0.0, %v1865
        %v1867 = vpop.f32.mrb[0].mxu0
        %v1868 = vadd.f32 0.0, %v1867
        %1869 = vmatprep.mubr.f32.mxu0 %v1754
        %1870 = vmatmul.mubr.f32.gmra.mrb[0].mxu0 %v1753
        %v1871 = vpop.f32.mrb[0].mxu0
        %v1872 = vadd.f32 0.0, %v1871
        %v1873 = vpop.f32.mrb[0].mxu0
        %v1874 = vadd.f32 0.0, %v1873
        %1875 = vmatprep.mubr.f32.mxu0 %v1757
        %1876 = vmatmul.mubr.f32.gmra.mrb[0].mxu0 %v1756
        %v1877 = vpop.f32.mrb[0].mxu0
        %v1878 = vadd.f32 0.0, %v1877
        %v1879 = vpop.f32.mrb[0].mxu0
        %v1880 = vadd.f32 0.0, %v1879
        %1881 = vmatprep.mubr.f32.mxu0 %v1760
        %1882 = vmatmul.mubr.f32.gmra.mrb[0].mxu0 %v1759
        %v1883 = vpop.f32.mrb[0].mxu0
        %v1884 = vadd.f32 0.0, %v1883
        %v1885 = vpop.f32.mrb[0].mxu0
        %v1886 = vadd.f32 0.0, %v1885
        %1887 = vmatprep.mubr.f32.mxu0 %v1763
        %1888 = vmatmul.mubr.f32.gmra.mrb[0].mxu0 %v1762
        %v1889 = vpop.f32.mrb[0].mxu0
        %v1890 = vadd.f32 0.0, %v1889
        %v1891 = vpop.f32.mrb[0].mxu0
        %v1892 = vadd.f32 0.0, %v1891
        %1893 = vmatprep.mubr.f32.mxu0 %v1766
        %1894 = vmatmul.mubr.f32.gmra.mrb[0].mxu0 %v1765
        %v1895 = vpop.f32.mrb[0].mxu0
        %v1896 = vadd.f32 0.0, %v1895
        %v1897 = vpop.f32.mrb[0].mxu0
        %v1898 = vadd.f32 0.0, %v1897
        %1899 = vmatprep.mubr.f32.mxu0 %v1769
        %1900 = vmatmul.mubr.f32.gmra.mrb[0].mxu0 %v1768
        %v1901 = vpop.f32.mrb[0].mxu0
        %v1902 = vadd.f32 0.0, %v1901
        %v1903 = vpop.f32.mrb[0].mxu0
        %v1904 = vadd.f32 0.0, %v1903
        %1905 = vmatprep.mubr.f32.mxu0 %v1772
        %1906 = vmatmul.mubr.f32.gmra.mrb[0].mxu0 %v1771
        %v1907 = vpop.f32.mrb[0].mxu0
        %v1908 = vadd.f32 0.0, %v1907
        %v1909 = vpop.f32.mrb[0].mxu0
        %v1910 = vadd.f32 0.0, %v1909
        %1911 = vdwg.mxu0
        %1912 = vmatprep.subr.mxu0 %v1006
        %1913 = vmatpush1.msra.mxu0 %v1005
        %1914 = vmatprep.subr.mxu0 %v1008
        %1915 = vmatpush1.msra.mxu0 %v1007
        %1916 = vmatprep.subr.mxu0 %v1010
        %1917 = vmatpush1.msra.mxu0 %v1009
        %1918 = vmatprep.subr.mxu0 %v1012
        %1919 = vmatpush1.msra.mxu0 %v1011
        %1920 = vmatprep.subr.mxu0 %v1014
        %1921 = vmatpush1.msra.mxu0 %v1013
        %1922 = vmatprep.subr.mxu0 %v1016
        %1923 = vmatpush1.msra.mxu0 %v1015
        %1924 = vmatprep.subr.mxu0 0.0
        %1925 = vmatpush1.msra.mxu0 0.0
        %1926 = vmatprep.subr.mxu0 0.0
        %1927 = vmatpush1.msra.mxu0 0.0
        %1928 = vmatprep.subr.mxu0 0.0
        %1929 = vmatpush1.msra.mxu0 0.0
        %1930 = vmatprep.subr.mxu0 0.0
        %1931 = vmatpush1.msra.mxu0 0.0
        %1932 = vmatprep.subr.mxu0 0.0
        %1933 = vmatpush1.msra.mxu0 0.0
        %1934 = vmatprep.subr.mxu0 0.0
        %1935 = vmatpush1.msra.mxu0 0.0
        %1936 = vmatprep.subr.mxu0 0.0
        %1937 = vmatpush1.msra.mxu0 0.0
        %1938 = vmatprep.subr.mxu0 0.0
        %1939 = vmatpush1.msra.mxu0 0.0
        %1940 = vmatprep.subr.mxu0 0.0
        %1941 = vmatpush1.msra.mxu0 0.0
        %1942 = vmatprep.subr.mxu0 0.0
        %1943 = vmatpush1.msra.mxu0 0.0
        %1944 = vmatprep.subr.mxu0 0.0
        %1945 = vmatpush1.msra.mxu0 0.0
        %1946 = vmatprep.subr.mxu0 0.0
        %1947 = vmatpush1.msra.mxu0 0.0
        %1948 = vmatprep.subr.mxu0 0.0
        %1949 = vmatpush1.msra.mxu0 0.0
        %1950 = vmatprep.subr.mxu0 0.0
        %1951 = vmatpush1.msra.mxu0 0.0
        %1952 = vmatprep.subr.mxu0 0.0
        %1953 = vmatpush1.msra.mxu0 0.0
        %1954 = vmatprep.subr.mxu0 0.0
        %1955 = vmatpush1.msra.mxu0 0.0
        %1956 = vmatprep.subr.mxu0 0.0
        %1957 = vmatpush1.msra.mxu0 0.0
        %1958 = vmatprep.subr.mxu0 0.0
        %1959 = vmatpush1.msra.mxu0 0.0
        %1960 = vmatprep.subr.mxu0 0.0
        %1961 = vmatpush1.msra.mxu0 0.0
        %1962 = vmatprep.subr.mxu0 0.0
        %1963 = vmatpush1.msra.mxu0 0.0
        %1964 = vmatprep.subr.mxu0 0.0
        %1965 = vmatpush1.msra.mxu0 0.0
        %1966 = vmatprep.subr.mxu0 0.0
        %1967 = vmatpush1.msra.mxu0 0.0
        %1968 = vmatprep.subr.mxu0 0.0
        %1969 = vmatpush1.msra.mxu0 0.0
        %1970 = vmatprep.subr.mxu0 0.0
        %1971 = vmatpush1.msra.mxu0 0.0
        %1972 = vmatprep.subr.mxu0 0.0
        %1973 = vmatpush1.msra.mxu0 0.0
        %1974 = vmatprep.subr.mxu0 0.0
        %1975 = vmatpush1.msra.mxu0 0.0
        %1976 = vmatprep.mubr.f32.mxu0 0.0
        %1977 = vmatmul.mubr.f32.gmra.mrb[0].mxu0 %v1776
        %v1978 = vpop.f32.mrb[0].mxu0
        %v1979 = vadd.f32 %v1866, %v1978
        %v1980 = vpop.f32.mrb[0].mxu0
        %v1981 = vadd.f32 %v1868, %v1980
        %1982 = vmatprep.mubr.f32.mxu0 0.0
        %1983 = vmatmul.mubr.f32.gmra.mrb[0].mxu0 %v1779
        %v1984 = vpop.f32.mrb[0].mxu0
        %v1985 = vadd.f32 %v1872, %v1984
        %v1986 = vpop.f32.mrb[0].mxu0
        %v1987 = vadd.f32 %v1874, %v1986
        %1988 = vmatprep.mubr.f32.mxu0 0.0
        %1989 = vmatmul.mubr.f32.gmra.mrb[0].mxu0 %v1782
        %v1990 = vpop.f32.mrb[0].mxu0
        %v1991 = vadd.f32 %v1878, %v1990
        %v1992 = vpop.f32.mrb[0].mxu0
        %v1993 = vadd.f32 %v1880, %v1992
        %1994 = vmatprep.mubr.f32.mxu0 0.0
        %1995 = vmatmul.mubr.f32.gmra.mrb[0].mxu0 %v1785
        %v1996 = vpop.f32.mrb[0].mxu0
        %v1997 = vadd.f32 %v1884, %v1996
        %v1998 = vpop.f32.mrb[0].mxu0
        %v1999 = vadd.f32 %v1886, %v1998
        %2000 = vmatprep.mubr.f32.mxu0 0.0
        %2001 = vmatmul.mubr.f32.gmra.mrb[0].mxu0 %v1788
        %v2002 = vpop.f32.mrb[0].mxu0
        %v2003 = vadd.f32 %v1890, %v2002
        %v2004 = vpop.f32.mrb[0].mxu0
        %v2005 = vadd.f32 %v1892, %v2004
        %2006 = vmatprep.mubr.f32.mxu0 0.0
        %2007 = vmatmul.mubr.f32.gmra.mrb[0].mxu0 %v1791
        %v2008 = vpop.f32.mrb[0].mxu0
        %v2009 = vadd.f32 %v1896, %v2008
        %v2010 = vpop.f32.mrb[0].mxu0
        %v2011 = vadd.f32 %v1898, %v2010
        %2012 = vmatprep.mubr.f32.mxu0 0.0
        %2013 = vmatmul.mubr.f32.gmra.mrb[0].mxu0 %v1794
        %v2014 = vpop.f32.mrb[0].mxu0
        %v2015 = vadd.f32 %v1902, %v2014
        %v2016 = vpop.f32.mrb[0].mxu0
        %v2017 = vadd.f32 %v1904, %v2016
        %2018 = vmatprep.mubr.f32.mxu0 0.0
        %2019 = vmatmul.mubr.f32.gmra.mrb[0].mxu0 %v1797
        %v2020 = vpop.f32.mrb[0].mxu0
        %v2021 = vadd.f32 %v1908, %v2020
        %v2022 = vpop.f32.mrb[0].mxu0
        %v2023 = vadd.f32 %v1910, %v2022
        %2024 = vdwg.mxu0
        %v2025 = vadd.f32 %v1174, %v1979
        %v2026 = vadd.f32 %v1176, %v1981
        %v2027 = vadd.f32 %v1180, %v1985
        %v2028 = vadd.f32 %v1182, %v1987
        %v2029 = vadd.f32 %v1186, %v1991
        %v2030 = vadd.f32 %v1188, %v1993
        %v2031 = vadd.f32 %v1192, %v1997
        %v2032 = vadd.f32 %v1194, %v1999
        %v2033 = vadd.f32 %v1198, %v2003
        %v2034 = vadd.f32 %v1200, %v2005
        %v2035 = vadd.f32 %v1204, %v2009
        %v2036 = vadd.f32 %v1206, %v2011
        %v2037 = vadd.f32 %v1210, %v2015
        %v2038 = vadd.f32 %v1212, %v2017
        %v2039 = vadd.f32 %v1216, %v2021
        %v2040 = vadd.f32 %v1218, %v2023
        %v2041 = vld [vmem:[%s11] sm:$0xff]
        %v2042 = vld [vmem:[%s11 + $0x8] sm:$0xff]
        %2044 = vset.pattern.permute.xlu0 0
        %2045 = vperm.xlu0 %2044, %v2041
        %v2046 = vpop.permute.xlu0 %2045
        %2049 = vset.pattern.permute.xlu0 0
        %2050 = vperm.xlu0 %2049, %v2042
        %v2051 = vpop.permute.xlu0 %2050
        %v2054 = vlaneseq
        %v2055 = vshrl.u32 %v2054, 7
        %v2056 = vsub.s32 0, %v2055
        %v2057 = vrot.slane %v780, %v2056
        %v2058 = vlaneseq
        %v2059 = vshrl.u32 %v2058, 7
        %v2060 = vsub.s32 1, %v2059
        %v2061 = vrot.slane %v780, %v2060
        %v2064 = vmul.f32 %v2046, %v2057
        %v2065 = vmul.f32 %v2046, %v2061
        %v2066 = vmul.f32 %v2051, %v2057
        %v2067 = vmul.f32 %v2051, %v2061
        %v2068 = vadd.f32 %v2025, %v2064
        %v2069 = vadd.f32 %v2026, %v2065
        %v2070 = vadd.f32 %v2027, %v2066
        %v2071 = vadd.f32 %v2028, %v2067
        %2072 = vset.pattern.permute.xlu0 1
        %2073 = vperm.xlu0 %2072, %v2041
        %v2074 = vpop.permute.xlu0 %2073
        %2076 = vset.pattern.permute.xlu0 1
        %2077 = vperm.xlu0 %2076, %v2042
        %v2078 = vpop.permute.xlu0 %2077
        %v2080 = vmul.f32 %v2074, %v2057
        %v2081 = vmul.f32 %v2074, %v2061
        %v2082 = vmul.f32 %v2078, %v2057
        %v2083 = vmul.f32 %v2078, %v2061
        %v2084 = vadd.f32 %v2029, %v2080
        %v2085 = vadd.f32 %v2030, %v2081
        %v2086 = vadd.f32 %v2031, %v2082
        %v2087 = vadd.f32 %v2032, %v2083
        %2088 = vxpose.xlu0.b32.start [1/16] %v785, 128
        %2089 = vxpose.xlu0.b32.cont [2/16] %v787, 128
        %2090 = vxpose.xlu0.b32.cont [3/16] 0.0, 128
        %2091 = vxpose.xlu0.b32.cont [4/16] 0.0, 128
        %2092 = vxpose.xlu0.b32.cont [5/16] 0.0, 128
        %2093 = vxpose.xlu0.b32.cont [6/16] 0.0, 128
        %2094 = vxpose.xlu0.b32.cont [7/16] 0.0, 128
        %2095 = vxpose.xlu0.b32.cont [8/16] 0.0, 128
        %2096 = vxpose.xlu0.b32.cont [9/16] 0.0, 128
        %2097 = vxpose.xlu0.b32.cont [10/16] 0.0, 128
        %2098 = vxpose.xlu0.b32.cont [11/16] 0.0, 128
        %2099 = vxpose.xlu0.b32.cont [12/16] 0.0, 128
        %2100 = vxpose.xlu0.b32.cont [13/16] 0.0, 128
        %2101 = vxpose.xlu0.b32.cont [14/16] 0.0, 128
        %2102 = vxpose.xlu0.b32.cont [15/16] 0.0, 128
        %2103 = vxpose.xlu0.b32.end [16/16] 0.0, 128
        %v2104 = vpop.trf.xlu0
        %v2105 = vpop.trf.xlu0
        %v2106 = vpop.trf.xlu0
        %v2107 = vpop.trf.xlu0
        %v2108 = vpop.trf.xlu0
        %v2109 = vpop.trf.xlu0
        %v2110 = vpop.trf.xlu0
        %v2111 = vpop.trf.xlu0
        %v2112 = vpop.trf.xlu0
        %v2113 = vpop.trf.xlu0
        %v2114 = vpop.trf.xlu0
        %v2115 = vpop.trf.xlu0
        %v2116 = vpop.trf.xlu0
        %v2117 = vpop.trf.xlu0
        %v2118 = vpop.trf.xlu0
        %v2119 = vpop.trf.xlu0
        %2120 = vxpose.xlu0.b32.start [1/16] %v786, 128
        %2121 = vxpose.xlu0.b32.cont [2/16] %v788, 128
        %2122 = vxpose.xlu0.b32.cont [3/16] 0.0, 128
        %2123 = vxpose.xlu0.b32.cont [4/16] 0.0, 128
        %2124 = vxpose.xlu0.b32.cont [5/16] 0.0, 128
        %2125 = vxpose.xlu0.b32.cont [6/16] 0.0, 128
        %2126 = vxpose.xlu0.b32.cont [7/16] 0.0, 128
        %2127 = vxpose.xlu0.b32.cont [8/16] 0.0, 128
        %2128 = vxpose.xlu0.b32.cont [9/16] 0.0, 128
        %2129 = vxpose.xlu0.b32.cont [10/16] 0.0, 128
        %2130 = vxpose.xlu0.b32.cont [11/16] 0.0, 128
        %2131 = vxpose.xlu0.b32.cont [12/16] 0.0, 128
        %2132 = vxpose.xlu0.b32.cont [13/16] 0.0, 128
        %2133 = vxpose.xlu0.b32.cont [14/16] 0.0, 128
        %2134 = vxpose.xlu0.b32.cont [15/16] 0.0, 128
        %2135 = vxpose.xlu0.b32.end [16/16] 0.0, 128
        %v2136 = vpop.trf.xlu0
        %v2137 = vpop.trf.xlu0
        %v2138 = vpop.trf.xlu0
        %v2139 = vpop.trf.xlu0
        %v2140 = vpop.trf.xlu0
        %v2141 = vpop.trf.xlu0
        %v2142 = vpop.trf.xlu0
        %v2143 = vpop.trf.xlu0
        %v2144 = vpop.trf.xlu0
        %v2145 = vpop.trf.xlu0
        %v2146 = vpop.trf.xlu0
        %v2147 = vpop.trf.xlu0
        %v2148 = vpop.trf.xlu0
        %v2149 = vpop.trf.xlu0
        %v2150 = vpop.trf.xlu0
        %v2151 = vpop.trf.xlu0
        %v2153 = vsel %vm1017, %v2104, 0
        %v2156 = vsel %vm1017, %v2105, 0
        %v2159 = vsel %vm1017, %v2106, 0
        %v2162 = vsel %vm1017, %v2107, 0
        %v2165 = vsel %vm1017, %v2108, 0
        %v2168 = vsel %vm1017, %v2109, 0
        %v2171 = vsel %vm1017, %v2110, 0
        %v2174 = vsel %vm1017, %v2111, 0
        %v2177 = vsel %vm1017, %v2112, 0
        %v2180 = vsel %vm1017, %v2113, 0
        %v2183 = vsel %vm1017, %v2114, 0
        %v2186 = vsel %vm1017, %v2115, 0
        %v2189 = vsel %vm1017, %v2116, 0
        %v2192 = vsel %vm1017, %v2117, 0
        %v2195 = vsel %vm1017, %v2118, 0
        %v2198 = vsel %vm1017, %v2119, 0
        %v2201 = vsel %vm1017, %v2136, 0
        %v2204 = vsel %vm1017, %v2137, 0
        %v2207 = vsel %vm1017, %v2138, 0
        %v2210 = vsel %vm1017, %v2139, 0
        %v2213 = vsel %vm1017, %v2140, 0
        %v2216 = vsel %vm1017, %v2141, 0
        %v2219 = vsel %vm1017, %v2142, 0
        %v2222 = vsel %vm1017, %v2143, 0
        %v2225 = vsel %vm1017, %v2144, 0
        %v2228 = vsel %vm1017, %v2145, 0
        %v2231 = vsel %vm1017, %v2146, 0
        %v2234 = vsel %vm1017, %v2147, 0
        %v2237 = vsel %vm1017, %v2148, 0
        %v2240 = vsel %vm1017, %v2149, 0
        %v2243 = vsel %vm1017, %v2150, 0
        %v2246 = vsel %vm1017, %v2151, 0
        %2248 = vmatprep.subr.mxu0 %v2034
        %2249 = vmatpush1.msra.mxu0 %v2033
        %2250 = vmatprep.subr.mxu0 %v2036
        %2251 = vmatpush1.msra.mxu0 %v2035
        %2252 = vmatprep.subr.mxu0 0.0
        %2253 = vmatpush1.msra.mxu0 0.0
        %2254 = vmatprep.subr.mxu0 0.0
        %2255 = vmatpush1.msra.mxu0 0.0
        %2256 = vmatprep.subr.mxu0 0.0
        %2257 = vmatpush1.msra.mxu0 0.0
        %2258 = vmatprep.subr.mxu0 0.0
        %2259 = vmatpush1.msra.mxu0 0.0
        %2260 = vmatprep.subr.mxu0 0.0
        %2261 = vmatpush1.msra.mxu0 0.0
        %2262 = vmatprep.subr.mxu0 0.0
        %2263 = vmatpush1.msra.mxu0 0.0
        %2264 = vmatprep.subr.mxu0 0.0
        %2265 = vmatpush1.msra.mxu0 0.0
        %2266 = vmatprep.subr.mxu0 0.0
        %2267 = vmatpush1.msra.mxu0 0.0
        %2268 = vmatprep.subr.mxu0 0.0
        %2269 = vmatpush1.msra.mxu0 0.0
        %2270 = vmatprep.subr.mxu0 0.0
        %2271 = vmatpush1.msra.mxu0 0.0
        %2272 = vmatprep.subr.mxu0 0.0
        %2273 = vmatpush1.msra.mxu0 0.0
        %2274 = vmatprep.subr.mxu0 0.0
        %2275 = vmatpush1.msra.mxu0 0.0
        %2276 = vmatprep.subr.mxu0 0.0
        %2277 = vmatpush1.msra.mxu0 0.0
        %2278 = vmatprep.subr.mxu0 0.0
        %2279 = vmatpush1.msra.mxu0 0.0
        %2280 = vmatprep.subr.mxu0 0.0
        %2281 = vmatpush1.msra.mxu0 0.0
        %2282 = vmatprep.subr.mxu0 0.0
        %2283 = vmatpush1.msra.mxu0 0.0
        %2284 = vmatprep.subr.mxu0 0.0
        %2285 = vmatpush1.msra.mxu0 0.0
        %2286 = vmatprep.subr.mxu0 0.0
        %2287 = vmatpush1.msra.mxu0 0.0
        %2288 = vmatprep.subr.mxu0 0.0
        %2289 = vmatpush1.msra.mxu0 0.0
        %2290 = vmatprep.subr.mxu0 0.0
        %2291 = vmatpush1.msra.mxu0 0.0
        %2292 = vmatprep.subr.mxu0 0.0
        %2293 = vmatpush1.msra.mxu0 0.0
        %2294 = vmatprep.subr.mxu0 0.0
        %2295 = vmatpush1.msra.mxu0 0.0
        %2296 = vmatprep.subr.mxu0 0.0
        %2297 = vmatpush1.msra.mxu0 0.0
        %2298 = vmatprep.subr.mxu0 0.0
        %2299 = vmatpush1.msra.mxu0 0.0
        %2300 = vmatprep.subr.mxu0 0.0
        %2301 = vmatpush1.msra.mxu0 0.0
        %2302 = vmatprep.subr.mxu0 0.0
        %2303 = vmatpush1.msra.mxu0 0.0
        %2304 = vmatprep.subr.mxu0 0.0
        %2305 = vmatpush1.msra.mxu0 0.0
        %2306 = vmatprep.subr.mxu0 0.0
        %2307 = vmatpush1.msra.mxu0 0.0
        %2308 = vmatprep.subr.mxu0 0.0
        %2309 = vmatpush1.msra.mxu0 0.0
        %2310 = vmatprep.subr.mxu0 0.0
        %2311 = vmatpush1.msra.mxu0 0.0
        %2312 = vmatprep.mubr.f32.mxu0 0.0
        %2313 = vmatmul.mubr.f32.gmra.mrb[0].mxu0 %v2153
        %v2314 = vpop.f32.mrb[0].mxu0
        %v2315 = vadd.f32 0.0, %v2314
        %v2316 = vpop.f32.mrb[0].mxu0
        %v2317 = vadd.f32 0.0, %v2316
        %2318 = vmatprep.mubr.f32.mxu0 0.0
        %2319 = vmatmul.mubr.f32.gmra.mrb[0].mxu0 %v2156
        %v2320 = vpop.f32.mrb[0].mxu0
        %v2321 = vadd.f32 0.0, %v2320
        %v2322 = vpop.f32.mrb[0].mxu0
        %v2323 = vadd.f32 0.0, %v2322
        %2324 = vmatprep.mubr.f32.mxu0 0.0
        %2325 = vmatmul.mubr.f32.gmra.mrb[0].mxu0 %v2159
        %v2326 = vpop.f32.mrb[0].mxu0
        %v2327 = vadd.f32 0.0, %v2326
        %v2328 = vpop.f32.mrb[0].mxu0
        %v2329 = vadd.f32 0.0, %v2328
        %2330 = vmatprep.mubr.f32.mxu0 0.0
        %2331 = vmatmul.mubr.f32.gmra.mrb[0].mxu0 %v2162
        %v2332 = vpop.f32.mrb[0].mxu0
        %v2333 = vadd.f32 0.0, %v2332
        %v2334 = vpop.f32.mrb[0].mxu0
        %v2335 = vadd.f32 0.0, %v2334
        %2336 = vmatprep.mubr.f32.mxu0 0.0
        %2337 = vmatmul.mubr.f32.gmra.mrb[0].mxu0 %v2165
        %v2338 = vpop.f32.mrb[0].mxu0
        %v2339 = vadd.f32 0.0, %v2338
        %v2340 = vpop.f32.mrb[0].mxu0
        %v2341 = vadd.f32 0.0, %v2340
        %2342 = vmatprep.mubr.f32.mxu0 0.0
        %2343 = vmatmul.mubr.f32.gmra.mrb[0].mxu0 %v2168
        %v2344 = vpop.f32.mrb[0].mxu0
        %v2345 = vadd.f32 0.0, %v2344
        %v2346 = vpop.f32.mrb[0].mxu0
        %v2347 = vadd.f32 0.0, %v2346
        %2348 = vmatprep.mubr.f32.mxu0 0.0
        %2349 = vmatmul.mubr.f32.gmra.mrb[0].mxu0 %v2171
        %v2350 = vpop.f32.mrb[0].mxu0
        %v2351 = vadd.f32 0.0, %v2350
        %v2352 = vpop.f32.mrb[0].mxu0
        %v2353 = vadd.f32 0.0, %v2352
        %2354 = vmatprep.mubr.f32.mxu0 0.0
        %2355 = vmatmul.mubr.f32.gmra.mrb[0].mxu0 %v2174
        %v2356 = vpop.f32.mrb[0].mxu0
        %v2357 = vadd.f32 0.0, %v2356
        %v2358 = vpop.f32.mrb[0].mxu0
        %v2359 = vadd.f32 0.0, %v2358
        %2360 = vmatprep.mubr.f32.mxu0 0.0
        %2361 = vmatmul.mubr.f32.gmra.mrb[0].mxu0 %v2177
        %v2362 = vpop.f32.mrb[0].mxu0
        %v2363 = vadd.f32 0.0, %v2362
        %v2364 = vpop.f32.mrb[0].mxu0
        %v2365 = vadd.f32 0.0, %v2364
        %2366 = vmatprep.mubr.f32.mxu0 0.0
        %2367 = vmatmul.mubr.f32.gmra.mrb[0].mxu0 %v2180
        %v2368 = vpop.f32.mrb[0].mxu0
        %v2369 = vadd.f32 0.0, %v2368
        %v2370 = vpop.f32.mrb[0].mxu0
        %v2371 = vadd.f32 0.0, %v2370
        %2372 = vmatprep.mubr.f32.mxu0 0.0
        %2373 = vmatmul.mubr.f32.gmra.mrb[0].mxu0 %v2183
        %v2374 = vpop.f32.mrb[0].mxu0
        %v2375 = vadd.f32 0.0, %v2374
        %v2376 = vpop.f32.mrb[0].mxu0
        %v2377 = vadd.f32 0.0, %v2376
        %2378 = vmatprep.mubr.f32.mxu0 0.0
        %2379 = vmatmul.mubr.f32.gmra.mrb[0].mxu0 %v2186
        %v2380 = vpop.f32.mrb[0].mxu0
        %v2381 = vadd.f32 0.0, %v2380
        %v2382 = vpop.f32.mrb[0].mxu0
        %v2383 = vadd.f32 0.0, %v2382
        %2384 = vmatprep.mubr.f32.mxu0 0.0
        %2385 = vmatmul.mubr.f32.gmra.mrb[0].mxu0 %v2189
        %v2386 = vpop.f32.mrb[0].mxu0
        %v2387 = vadd.f32 0.0, %v2386
        %v2388 = vpop.f32.mrb[0].mxu0
        %v2389 = vadd.f32 0.0, %v2388
        %2390 = vmatprep.mubr.f32.mxu0 0.0
        %2391 = vmatmul.mubr.f32.gmra.mrb[0].mxu0 %v2192
        %v2392 = vpop.f32.mrb[0].mxu0
        %v2393 = vadd.f32 0.0, %v2392
        %v2394 = vpop.f32.mrb[0].mxu0
        %v2395 = vadd.f32 0.0, %v2394
        %2396 = vmatprep.mubr.f32.mxu0 0.0
        %2397 = vmatmul.mubr.f32.gmra.mrb[0].mxu0 %v2195
        %v2398 = vpop.f32.mrb[0].mxu0
        %v2399 = vadd.f32 0.0, %v2398
        %v2400 = vpop.f32.mrb[0].mxu0
        %v2401 = vadd.f32 0.0, %v2400
        %2402 = vmatprep.mubr.f32.mxu0 0.0
        %2403 = vmatmul.mubr.f32.gmra.mrb[0].mxu0 %v2198
        %v2404 = vpop.f32.mrb[0].mxu0
        %v2405 = vadd.f32 0.0, %v2404
        %v2406 = vpop.f32.mrb[0].mxu0
        %v2407 = vadd.f32 0.0, %v2406
        %2408 = vmatprep.mubr.f32.mxu0 0.0
        %2409 = vmatmul.mubr.f32.gmra.mrb[0].mxu0 %v2201
        %v2410 = vpop.f32.mrb[0].mxu0
        %v2411 = vadd.f32 0.0, %v2410
        %v2412 = vpop.f32.mrb[0].mxu0
        %v2413 = vadd.f32 0.0, %v2412
        %2414 = vmatprep.mubr.f32.mxu0 0.0
        %2415 = vmatmul.mubr.f32.gmra.mrb[0].mxu0 %v2204
        %v2416 = vpop.f32.mrb[0].mxu0
        %v2417 = vadd.f32 0.0, %v2416
        %v2418 = vpop.f32.mrb[0].mxu0
        %v2419 = vadd.f32 0.0, %v2418
        %2420 = vmatprep.mubr.f32.mxu0 0.0
        %2421 = vmatmul.mubr.f32.gmra.mrb[0].mxu0 %v2207
        %v2422 = vpop.f32.mrb[0].mxu0
        %v2423 = vadd.f32 0.0, %v2422
        %v2424 = vpop.f32.mrb[0].mxu0
        %v2425 = vadd.f32 0.0, %v2424
        %2426 = vmatprep.mubr.f32.mxu0 0.0
        %2427 = vmatmul.mubr.f32.gmra.mrb[0].mxu0 %v2210
        %v2428 = vpop.f32.mrb[0].mxu0
        %v2429 = vadd.f32 0.0, %v2428
        %v2430 = vpop.f32.mrb[0].mxu0
        %v2431 = vadd.f32 0.0, %v2430
        %2432 = vmatprep.mubr.f32.mxu0 0.0
        %2433 = vmatmul.mubr.f32.gmra.mrb[0].mxu0 %v2213
        %v2434 = vpop.f32.mrb[0].mxu0
        %v2435 = vadd.f32 0.0, %v2434
        %v2436 = vpop.f32.mrb[0].mxu0
        %v2437 = vadd.f32 0.0, %v2436
        %2438 = vmatprep.mubr.f32.mxu0 0.0
        %2439 = vmatmul.mubr.f32.gmra.mrb[0].mxu0 %v2216
        %v2440 = vpop.f32.mrb[0].mxu0
        %v2441 = vadd.f32 0.0, %v2440
        %v2442 = vpop.f32.mrb[0].mxu0
        %v2443 = vadd.f32 0.0, %v2442
        %2444 = vmatprep.mubr.f32.mxu0 0.0
        %2445 = vmatmul.mubr.f32.gmra.mrb[0].mxu0 %v2219
        %v2446 = vpop.f32.mrb[0].mxu0
        %v2447 = vadd.f32 0.0, %v2446
        %v2448 = vpop.f32.mrb[0].mxu0
        %v2449 = vadd.f32 0.0, %v2448
        %2450 = vmatprep.mubr.f32.mxu0 0.0
        %2451 = vmatmul.mubr.f32.gmra.mrb[0].mxu0 %v2222
        %v2452 = vpop.f32.mrb[0].mxu0
        %v2453 = vadd.f32 0.0, %v2452
        %v2454 = vpop.f32.mrb[0].mxu0
        %v2455 = vadd.f32 0.0, %v2454
        %2456 = vmatprep.mubr.f32.mxu0 0.0
        %2457 = vmatmul.mubr.f32.gmra.mrb[0].mxu0 %v2225
        %v2458 = vpop.f32.mrb[0].mxu0
        %v2459 = vadd.f32 0.0, %v2458
        %v2460 = vpop.f32.mrb[0].mxu0
        %v2461 = vadd.f32 0.0, %v2460
        %2462 = vmatprep.mubr.f32.mxu0 0.0
        %2463 = vmatmul.mubr.f32.gmra.mrb[0].mxu0 %v2228
        %v2464 = vpop.f32.mrb[0].mxu0
        %v2465 = vadd.f32 0.0, %v2464
        %v2466 = vpop.f32.mrb[0].mxu0
        %v2467 = vadd.f32 0.0, %v2466
        %2468 = vmatprep.mubr.f32.mxu0 0.0
        %2469 = vmatmul.mubr.f32.gmra.mrb[0].mxu0 %v2231
        %v2470 = vpop.f32.mrb[0].mxu0
        %v2471 = vadd.f32 0.0, %v2470
        %v2472 = vpop.f32.mrb[0].mxu0
        %v2473 = vadd.f32 0.0, %v2472
        %2474 = vmatprep.mubr.f32.mxu0 0.0
        %2475 = vmatmul.mubr.f32.gmra.mrb[0].mxu0 %v2234
        %v2476 = vpop.f32.mrb[0].mxu0
        %v2477 = vadd.f32 0.0, %v2476
        %v2478 = vpop.f32.mrb[0].mxu0
        %v2479 = vadd.f32 0.0, %v2478
        %2480 = vmatprep.mubr.f32.mxu0 0.0
        %2481 = vmatmul.mubr.f32.gmra.mrb[0].mxu0 %v2237
        %v2482 = vpop.f32.mrb[0].mxu0
        %v2483 = vadd.f32 0.0, %v2482
        %v2484 = vpop.f32.mrb[0].mxu0
        %v2485 = vadd.f32 0.0, %v2484
        %2486 = vmatprep.mubr.f32.mxu0 0.0
        %2487 = vmatmul.mubr.f32.gmra.mrb[0].mxu0 %v2240
        %v2488 = vpop.f32.mrb[0].mxu0
        %v2489 = vadd.f32 0.0, %v2488
        %v2490 = vpop.f32.mrb[0].mxu0
        %v2491 = vadd.f32 0.0, %v2490
        %2492 = vmatprep.mubr.f32.mxu0 0.0
        %2493 = vmatmul.mubr.f32.gmra.mrb[0].mxu0 %v2243
        %v2494 = vpop.f32.mrb[0].mxu0
        %v2495 = vadd.f32 0.0, %v2494
        %v2496 = vpop.f32.mrb[0].mxu0
        %v2497 = vadd.f32 0.0, %v2496
        %2498 = vmatprep.mubr.f32.mxu0 0.0
        %2499 = vmatmul.mubr.f32.gmra.mrb[0].mxu0 %v2246
        %v2500 = vpop.f32.mrb[0].mxu0
        %v2501 = vadd.f32 0.0, %v2500
        %v2502 = vpop.f32.mrb[0].mxu0
        %v2503 = vadd.f32 0.0, %v2502
        %2504 = vdwg.mxu0
        %v2505 = vmul.f32 %v2315, %v793
        %v2506 = vmul.f32 %v2317, %v794
        %v2507 = vmul.f32 %v2321, %v795
        %v2508 = vmul.f32 %v2323, %v796
        %v2509 = vmul.f32 %v2327, %v797
        %v2510 = vmul.f32 %v2329, %v798
        %v2511 = vmul.f32 %v2333, %v799
        %v2512 = vmul.f32 %v2335, %v800
        %v2513 = vmul.f32 %v2339, %v801
        %v2514 = vmul.f32 %v2341, %v802
        %v2515 = vmul.f32 %v2345, %v803
        %v2516 = vmul.f32 %v2347, %v804
        %v2517 = vmul.f32 %v2351, %v805
        %v2518 = vmul.f32 %v2353, %v806
        %v2519 = vmul.f32 %v2357, %v807
        %v2520 = vmul.f32 %v2359, %v808
        %v2521 = vmul.f32 %v2363, %v809
        %v2522 = vmul.f32 %v2365, %v810
        %v2523 = vmul.f32 %v2369, %v811
        %v2524 = vmul.f32 %v2371, %v812
        %v2525 = vmul.f32 %v2375, %v813
        %v2526 = vmul.f32 %v2377, %v814
        %v2527 = vmul.f32 %v2381, %v815
        %v2528 = vmul.f32 %v2383, %v816
        %v2529 = vmul.f32 %v2387, %v817
        %v2530 = vmul.f32 %v2389, %v818
        %v2531 = vmul.f32 %v2393, %v819
        %v2532 = vmul.f32 %v2395, %v820
        %v2533 = vmul.f32 %v2399, %v821
        %v2534 = vmul.f32 %v2401, %v822
        %v2535 = vmul.f32 %v2405, %v823
        %v2536 = vmul.f32 %v2407, %v824
        %v2537 = vmul.f32 %v2411, %v825
        %v2538 = vmul.f32 %v2413, %v826
        %v2539 = vmul.f32 %v2417, %v827
        %v2540 = vmul.f32 %v2419, %v828
        %v2541 = vmul.f32 %v2423, %v829
        %v2542 = vmul.f32 %v2425, %v830
        %v2543 = vmul.f32 %v2429, %v831
        %v2544 = vmul.f32 %v2431, %v832
        %v2545 = vmul.f32 %v2435, %v833
        %v2546 = vmul.f32 %v2437, %v834
        %v2547 = vmul.f32 %v2441, %v835
        %v2548 = vmul.f32 %v2443, %v836
        %v2549 = vmul.f32 %v2447, %v837
        %v2550 = vmul.f32 %v2449, %v838
        %v2551 = vmul.f32 %v2453, %v839
        %v2552 = vmul.f32 %v2455, %v840
        %v2553 = vmul.f32 %v2459, %v841
        %v2554 = vmul.f32 %v2461, %v842
        %v2555 = vmul.f32 %v2465, %v843
        %v2556 = vmul.f32 %v2467, %v844
        %v2557 = vmul.f32 %v2471, %v845
        %v2558 = vmul.f32 %v2473, %v846
        %v2559 = vmul.f32 %v2477, %v847
        %v2560 = vmul.f32 %v2479, %v848
        %v2561 = vmul.f32 %v2483, %v849
        %v2562 = vmul.f32 %v2485, %v850
        %v2563 = vmul.f32 %v2489, %v851
        %v2564 = vmul.f32 %v2491, %v852
        %v2565 = vmul.f32 %v2495, %v853
        %v2566 = vmul.f32 %v2497, %v854
        %v2567 = vmul.f32 %v2501, %v855
        %v2568 = vmul.f32 %v2503, %v856
        %2569 = vmatprep.subr.mxu0 %v782
        %2570 = vmatpush1.xpose.msra.mxu0 %v781
        %2571 = vmatprep.subr.mxu0 %v784
        %2572 = vmatpush1.xpose.msra.mxu0 %v783
        %2573 = vmatprep.subr.mxu0 0.0
        %2574 = vmatpush1.xpose.msra.mxu0 0.0
        %2575 = vmatprep.subr.mxu0 0.0
        %2576 = vmatpush1.xpose.msra.mxu0 0.0
        %2577 = vmatprep.subr.mxu0 0.0
        %2578 = vmatpush1.xpose.msra.mxu0 0.0
        %2579 = vmatprep.subr.mxu0 0.0
        %2580 = vmatpush1.xpose.msra.mxu0 0.0
        %2581 = vmatprep.subr.mxu0 0.0
        %2582 = vmatpush1.xpose.msra.mxu0 0.0
        %2583 = vmatprep.subr.mxu0 0.0
        %2584 = vmatpush1.xpose.msra.mxu0 0.0
        %2585 = vmatprep.subr.mxu0 0.0
        %2586 = vmatpush1.xpose.msra.mxu0 0.0
        %2587 = vmatprep.subr.mxu0 0.0
        %2588 = vmatpush1.xpose.msra.mxu0 0.0
        %2589 = vmatprep.subr.mxu0 0.0
        %2590 = vmatpush1.xpose.msra.mxu0 0.0
        %2591 = vmatprep.subr.mxu0 0.0
        %2592 = vmatpush1.xpose.msra.mxu0 0.0
        %2593 = vmatprep.subr.mxu0 0.0
        %2594 = vmatpush1.xpose.msra.mxu0 0.0
        %2595 = vmatprep.subr.mxu0 0.0
        %2596 = vmatpush1.xpose.msra.mxu0 0.0
        %2597 = vmatprep.subr.mxu0 0.0
        %2598 = vmatpush1.xpose.msra.mxu0 0.0
        %2599 = vmatprep.subr.mxu0 0.0
        %2600 = vmatpush1.xpose.msra.mxu0 0.0
        %2601 = vmatprep.subr.mxu0 0.0
        %2602 = vmatpush1.xpose.msra.mxu0 0.0
        %2603 = vmatprep.subr.mxu0 0.0
        %2604 = vmatpush1.xpose.msra.mxu0 0.0
        %2605 = vmatprep.subr.mxu0 0.0
        %2606 = vmatpush1.xpose.msra.mxu0 0.0
        %2607 = vmatprep.subr.mxu0 0.0
        %2608 = vmatpush1.xpose.msra.mxu0 0.0
        %2609 = vmatprep.subr.mxu0 0.0
        %2610 = vmatpush1.xpose.msra.mxu0 0.0
        %2611 = vmatprep.subr.mxu0 0.0
        %2612 = vmatpush1.xpose.msra.mxu0 0.0
        %2613 = vmatprep.subr.mxu0 0.0
        %2614 = vmatpush1.xpose.msra.mxu0 0.0
        %2615 = vmatprep.subr.mxu0 0.0
        %2616 = vmatpush1.xpose.msra.mxu0 0.0
        %2617 = vmatprep.subr.mxu0 0.0
        %2618 = vmatpush1.xpose.msra.mxu0 0.0
        %2619 = vmatprep.subr.mxu0 0.0
        %2620 = vmatpush1.xpose.msra.mxu0 0.0
        %2621 = vmatprep.subr.mxu0 0.0
        %2622 = vmatpush1.xpose.msra.mxu0 0.0
        %2623 = vmatprep.subr.mxu0 0.0
        %2624 = vmatpush1.xpose.msra.mxu0 0.0
        %2625 = vmatprep.subr.mxu0 0.0
        %2626 = vmatpush1.xpose.msra.mxu0 0.0
        %2627 = vmatprep.subr.mxu0 0.0
        %2628 = vmatpush1.xpose.msra.mxu0 0.0
        %2629 = vmatprep.subr.mxu0 0.0
        %2630 = vmatpush1.xpose.msra.mxu0 0.0
        %2631 = vmatprep.subr.mxu0 0.0
        %2632 = vmatpush1.xpose.msra.mxu0 0.0
        %2633 = vmatprep.mubr.f32.mxu0 %v2506
        %2634 = vmatmul.mubr.f32.gmra.mrb[0].mxu0 %v2505
        %v2635 = vpop.f32.mrb[0].mxu0
        %v2636 = vadd.f32 0.0, %v2635
        %v2637 = vpop.f32.mrb[0].mxu0
        %2638 = vmatprep.mubr.f32.mxu0 %v2508
        %2639 = vmatmul.mubr.f32.gmra.mrb[0].mxu0 %v2507
        %v2640 = vpop.f32.mrb[0].mxu0
        %v2641 = vadd.f32 0.0, %v2640
        %v2642 = vpop.f32.mrb[0].mxu0
        %2643 = vmatprep.mubr.f32.mxu0 %v2510
        %2644 = vmatmul.mubr.f32.gmra.mrb[0].mxu0 %v2509
        %v2645 = vpop.f32.mrb[0].mxu0
        %v2646 = vadd.f32 0.0, %v2645
        %v2647 = vpop.f32.mrb[0].mxu0
        %2648 = vmatprep.mubr.f32.mxu0 %v2512
        %2649 = vmatmul.mubr.f32.gmra.mrb[0].mxu0 %v2511
        %v2650 = vpop.f32.mrb[0].mxu0
        %v2651 = vadd.f32 0.0, %v2650
        %v2652 = vpop.f32.mrb[0].mxu0
        %2653 = vmatprep.mubr.f32.mxu0 %v2514
        %2654 = vmatmul.mubr.f32.gmra.mrb[0].mxu0 %v2513
        %v2655 = vpop.f32.mrb[0].mxu0
        %v2656 = vadd.f32 0.0, %v2655
        %v2657 = vpop.f32.mrb[0].mxu0
        %2658 = vmatprep.mubr.f32.mxu0 %v2516
        %2659 = vmatmul.mubr.f32.gmra.mrb[0].mxu0 %v2515
        %v2660 = vpop.f32.mrb[0].mxu0
        %v2661 = vadd.f32 0.0, %v2660
        %v2662 = vpop.f32.mrb[0].mxu0
        %2663 = vmatprep.mubr.f32.mxu0 %v2518
        %2664 = vmatmul.mubr.f32.gmra.mrb[0].mxu0 %v2517
        %v2665 = vpop.f32.mrb[0].mxu0
        %v2666 = vadd.f32 0.0, %v2665
        %v2667 = vpop.f32.mrb[0].mxu0
        %2668 = vmatprep.mubr.f32.mxu0 %v2520
        %2669 = vmatmul.mubr.f32.gmra.mrb[0].mxu0 %v2519
        %v2670 = vpop.f32.mrb[0].mxu0
        %v2671 = vadd.f32 0.0, %v2670
        %v2672 = vpop.f32.mrb[0].mxu0
        %2673 = vmatprep.mubr.f32.mxu0 %v2522
        %2674 = vmatmul.mubr.f32.gmra.mrb[0].mxu0 %v2521
        %v2675 = vpop.f32.mrb[0].mxu0
        %v2676 = vadd.f32 0.0, %v2675
        %v2677 = vpop.f32.mrb[0].mxu0
        %2678 = vmatprep.mubr.f32.mxu0 %v2524
        %2679 = vmatmul.mubr.f32.gmra.mrb[0].mxu0 %v2523
        %v2680 = vpop.f32.mrb[0].mxu0
        %v2681 = vadd.f32 0.0, %v2680
        %v2682 = vpop.f32.mrb[0].mxu0
        %2683 = vmatprep.mubr.f32.mxu0 %v2526
        %2684 = vmatmul.mubr.f32.gmra.mrb[0].mxu0 %v2525
        %v2685 = vpop.f32.mrb[0].mxu0
        %v2686 = vadd.f32 0.0, %v2685
        %v2687 = vpop.f32.mrb[0].mxu0
        %2688 = vmatprep.mubr.f32.mxu0 %v2528
        %2689 = vmatmul.mubr.f32.gmra.mrb[0].mxu0 %v2527
        %v2690 = vpop.f32.mrb[0].mxu0
        %v2691 = vadd.f32 0.0, %v2690
        %v2692 = vpop.f32.mrb[0].mxu0
        %2693 = vmatprep.mubr.f32.mxu0 %v2530
        %2694 = vmatmul.mubr.f32.gmra.mrb[0].mxu0 %v2529
        %v2695 = vpop.f32.mrb[0].mxu0
        %v2696 = vadd.f32 0.0, %v2695
        %v2697 = vpop.f32.mrb[0].mxu0
        %2698 = vmatprep.mubr.f32.mxu0 %v2532
        %2699 = vmatmul.mubr.f32.gmra.mrb[0].mxu0 %v2531
        %v2700 = vpop.f32.mrb[0].mxu0
        %v2701 = vadd.f32 0.0, %v2700
        %v2702 = vpop.f32.mrb[0].mxu0
        %2703 = vmatprep.mubr.f32.mxu0 %v2534
        %2704 = vmatmul.mubr.f32.gmra.mrb[0].mxu0 %v2533
        %v2705 = vpop.f32.mrb[0].mxu0
        %v2706 = vadd.f32 0.0, %v2705
        %v2707 = vpop.f32.mrb[0].mxu0
        %2708 = vmatprep.mubr.f32.mxu0 %v2536
        %2709 = vmatmul.mubr.f32.gmra.mrb[0].mxu0 %v2535
        %v2710 = vpop.f32.mrb[0].mxu0
        %v2711 = vadd.f32 0.0, %v2710
        %v2712 = vpop.f32.mrb[0].mxu0
        %2713 = vmatprep.mubr.f32.mxu0 %v2538
        %2714 = vmatmul.mubr.f32.gmra.mrb[0].mxu0 %v2537
        %v2715 = vpop.f32.mrb[0].mxu0
        %v2716 = vadd.f32 0.0, %v2715
        %v2717 = vpop.f32.mrb[0].mxu0
        %2718 = vmatprep.mubr.f32.mxu0 %v2540
        %2719 = vmatmul.mubr.f32.gmra.mrb[0].mxu0 %v2539
        %v2720 = vpop.f32.mrb[0].mxu0
        %v2721 = vadd.f32 0.0, %v2720
        %v2722 = vpop.f32.mrb[0].mxu0
        %2723 = vmatprep.mubr.f32.mxu0 %v2542
        %2724 = vmatmul.mubr.f32.gmra.mrb[0].mxu0 %v2541
        %v2725 = vpop.f32.mrb[0].mxu0
        %v2726 = vadd.f32 0.0, %v2725
        %v2727 = vpop.f32.mrb[0].mxu0
        %2728 = vmatprep.mubr.f32.mxu0 %v2544
        %2729 = vmatmul.mubr.f32.gmra.mrb[0].mxu0 %v2543
        %v2730 = vpop.f32.mrb[0].mxu0
        %v2731 = vadd.f32 0.0, %v2730
        %v2732 = vpop.f32.mrb[0].mxu0
        %2733 = vmatprep.mubr.f32.mxu0 %v2546
        %2734 = vmatmul.mubr.f32.gmra.mrb[0].mxu0 %v2545
        %v2735 = vpop.f32.mrb[0].mxu0
        %v2736 = vadd.f32 0.0, %v2735
        %v2737 = vpop.f32.mrb[0].mxu0
        %2738 = vmatprep.mubr.f32.mxu0 %v2548
        %2739 = vmatmul.mubr.f32.gmra.mrb[0].mxu0 %v2547
        %v2740 = vpop.f32.mrb[0].mxu0
        %v2741 = vadd.f32 0.0, %v2740
        %v2742 = vpop.f32.mrb[0].mxu0
        %2743 = vmatprep.mubr.f32.mxu0 %v2550
        %2744 = vmatmul.mubr.f32.gmra.mrb[0].mxu0 %v2549
        %v2745 = vpop.f32.mrb[0].mxu0
        %v2746 = vadd.f32 0.0, %v2745
        %v2747 = vpop.f32.mrb[0].mxu0
        %2748 = vmatprep.mubr.f32.mxu0 %v2552
        %2749 = vmatmul.mubr.f32.gmra.mrb[0].mxu0 %v2551
        %v2750 = vpop.f32.mrb[0].mxu0
        %v2751 = vadd.f32 0.0, %v2750
        %v2752 = vpop.f32.mrb[0].mxu0
        %2753 = vmatprep.mubr.f32.mxu0 %v2554
        %2754 = vmatmul.mubr.f32.gmra.mrb[0].mxu0 %v2553
        %v2755 = vpop.f32.mrb[0].mxu0
        %v2756 = vadd.f32 0.0, %v2755
        %v2757 = vpop.f32.mrb[0].mxu0
        %2758 = vmatprep.mubr.f32.mxu0 %v2556
        %2759 = vmatmul.mubr.f32.gmra.mrb[0].mxu0 %v2555
        %v2760 = vpop.f32.mrb[0].mxu0
        %v2761 = vadd.f32 0.0, %v2760
        %v2762 = vpop.f32.mrb[0].mxu0
        %2763 = vmatprep.mubr.f32.mxu0 %v2558
        %2764 = vmatmul.mubr.f32.gmra.mrb[0].mxu0 %v2557
        %v2765 = vpop.f32.mrb[0].mxu0
        %v2766 = vadd.f32 0.0, %v2765
        %v2767 = vpop.f32.mrb[0].mxu0
        %2768 = vmatprep.mubr.f32.mxu0 %v2560
        %2769 = vmatmul.mubr.f32.gmra.mrb[0].mxu0 %v2559
        %v2770 = vpop.f32.mrb[0].mxu0
        %v2771 = vadd.f32 0.0, %v2770
        %v2772 = vpop.f32.mrb[0].mxu0
        %2773 = vmatprep.mubr.f32.mxu0 %v2562
        %2774 = vmatmul.mubr.f32.gmra.mrb[0].mxu0 %v2561
        %v2775 = vpop.f32.mrb[0].mxu0
        %v2776 = vadd.f32 0.0, %v2775
        %v2777 = vpop.f32.mrb[0].mxu0
        %2778 = vmatprep.mubr.f32.mxu0 %v2564
        %2779 = vmatmul.mubr.f32.gmra.mrb[0].mxu0 %v2563
        %v2780 = vpop.f32.mrb[0].mxu0
        %v2781 = vadd.f32 0.0, %v2780
        %v2782 = vpop.f32.mrb[0].mxu0
        %2783 = vmatprep.mubr.f32.mxu0 %v2566
        %2784 = vmatmul.mubr.f32.gmra.mrb[0].mxu0 %v2565
        %v2785 = vpop.f32.mrb[0].mxu0
        %v2786 = vadd.f32 0.0, %v2785
        %v2787 = vpop.f32.mrb[0].mxu0
        %2788 = vmatprep.mubr.f32.mxu0 %v2568
        %2789 = vmatmul.mubr.f32.gmra.mrb[0].mxu0 %v2567
        %v2790 = vpop.f32.mrb[0].mxu0
        %v2791 = vadd.f32 0.0, %v2790
        %v2792 = vpop.f32.mrb[0].mxu0
        %2793 = vdwg.mxu0
        %2794 = vmatprep.subr.mxu0 %v2085
        %2795 = vmatpush1.msra.mxu0 %v2084
        %2796 = vmatprep.subr.mxu0 %v2087
        %2797 = vmatpush1.msra.mxu0 %v2086
        %2798 = vmatprep.subr.mxu0 0.0
        %2799 = vmatpush1.msra.mxu0 0.0
        %2800 = vmatprep.subr.mxu0 0.0
        %2801 = vmatpush1.msra.mxu0 0.0
        %2802 = vmatprep.subr.mxu0 0.0
        %2803 = vmatpush1.msra.mxu0 0.0
        %2804 = vmatprep.subr.mxu0 0.0
        %2805 = vmatpush1.msra.mxu0 0.0
        %2806 = vmatprep.subr.mxu0 0.0
        %2807 = vmatpush1.msra.mxu0 0.0
        %2808 = vmatprep.subr.mxu0 0.0
        %2809 = vmatpush1.msra.mxu0 0.0
        %2810 = vmatprep.subr.mxu0 0.0
        %2811 = vmatpush1.msra.mxu0 0.0
        %2812 = vmatprep.subr.mxu0 0.0
        %2813 = vmatpush1.msra.mxu0 0.0
        %2814 = vmatprep.subr.mxu0 0.0
        %2815 = vmatpush1.msra.mxu0 0.0
        %2816 = vmatprep.subr.mxu0 0.0
        %2817 = vmatpush1.msra.mxu0 0.0
        %2818 = vmatprep.subr.mxu0 0.0
        %2819 = vmatpush1.msra.mxu0 0.0
        %2820 = vmatprep.subr.mxu0 0.0
        %2821 = vmatpush1.msra.mxu0 0.0
        %2822 = vmatprep.subr.mxu0 0.0
        %2823 = vmatpush1.msra.mxu0 0.0
        %2824 = vmatprep.subr.mxu0 0.0
        %2825 = vmatpush1.msra.mxu0 0.0
        %2826 = vmatprep.subr.mxu0 0.0
        %2827 = vmatpush1.msra.mxu0 0.0
        %2828 = vmatprep.subr.mxu0 0.0
        %2829 = vmatpush1.msra.mxu0 0.0
        %2830 = vmatprep.subr.mxu0 0.0
        %2831 = vmatpush1.msra.mxu0 0.0
        %2832 = vmatprep.subr.mxu0 0.0
        %2833 = vmatpush1.msra.mxu0 0.0
        %2834 = vmatprep.subr.mxu0 0.0
        %2835 = vmatpush1.msra.mxu0 0.0
        %2836 = vmatprep.subr.mxu0 0.0
        %2837 = vmatpush1.msra.mxu0 0.0
        %2838 = vmatprep.subr.mxu0 0.0
        %2839 = vmatpush1.msra.mxu0 0.0
        %2840 = vmatprep.subr.mxu0 0.0
        %2841 = vmatpush1.msra.mxu0 0.0
        %2842 = vmatprep.subr.mxu0 0.0
        %2843 = vmatpush1.msra.mxu0 0.0
        %2844 = vmatprep.subr.mxu0 0.0
        %2845 = vmatpush1.msra.mxu0 0.0
        %2846 = vmatprep.subr.mxu0 0.0
        %2847 = vmatpush1.msra.mxu0 0.0
        %2848 = vmatprep.subr.mxu0 0.0
        %2849 = vmatpush1.msra.mxu0 0.0
        %2850 = vmatprep.subr.mxu0 0.0
        %2851 = vmatpush1.msra.mxu0 0.0
        %2852 = vmatprep.subr.mxu0 0.0
        %2853 = vmatpush1.msra.mxu0 0.0
        %2854 = vmatprep.subr.mxu0 0.0
        %2855 = vmatpush1.msra.mxu0 0.0
        %2856 = vmatprep.subr.mxu0 0.0
        %2857 = vmatpush1.msra.mxu0 0.0
        %2858 = vmatprep.mubr.f32.mxu0 0.0
        %2859 = vmatmul.mubr.f32.gmra.mrb[0].mxu0 %v2153
        %v2860 = vpop.f32.mrb[0].mxu0
        %v2861 = vadd.f32 0.0, %v2860
        %v2862 = vpop.f32.mrb[0].mxu0
        %v2863 = vadd.f32 0.0, %v2862
        %2864 = vmatprep.mubr.f32.mxu0 0.0
        %2865 = vmatmul.mubr.f32.gmra.mrb[0].mxu0 %v2156
        %v2866 = vpop.f32.mrb[0].mxu0
        %v2867 = vadd.f32 0.0, %v2866
        %v2868 = vpop.f32.mrb[0].mxu0
        %v2869 = vadd.f32 0.0, %v2868
        %2870 = vmatprep.mubr.f32.mxu0 0.0
        %2871 = vmatmul.mubr.f32.gmra.mrb[0].mxu0 %v2159
        %v2872 = vpop.f32.mrb[0].mxu0
        %v2873 = vadd.f32 0.0, %v2872
        %v2874 = vpop.f32.mrb[0].mxu0
        %v2875 = vadd.f32 0.0, %v2874
        %2876 = vmatprep.mubr.f32.mxu0 0.0
        %2877 = vmatmul.mubr.f32.gmra.mrb[0].mxu0 %v2162
        %v2878 = vpop.f32.mrb[0].mxu0
        %v2879 = vadd.f32 0.0, %v2878
        %v2880 = vpop.f32.mrb[0].mxu0
        %v2881 = vadd.f32 0.0, %v2880
        %2882 = vmatprep.mubr.f32.mxu0 0.0
        %2883 = vmatmul.mubr.f32.gmra.mrb[0].mxu0 %v2165
        %v2884 = vpop.f32.mrb[0].mxu0
        %v2885 = vadd.f32 0.0, %v2884
        %v2886 = vpop.f32.mrb[0].mxu0
        %v2887 = vadd.f32 0.0, %v2886
        %2888 = vmatprep.mubr.f32.mxu0 0.0
        %2889 = vmatmul.mubr.f32.gmra.mrb[0].mxu0 %v2168
        %v2890 = vpop.f32.mrb[0].mxu0
        %v2891 = vadd.f32 0.0, %v2890
        %v2892 = vpop.f32.mrb[0].mxu0
        %v2893 = vadd.f32 0.0, %v2892
        %2894 = vmatprep.mubr.f32.mxu0 0.0
        %2895 = vmatmul.mubr.f32.gmra.mrb[0].mxu0 %v2171
        %v2896 = vpop.f32.mrb[0].mxu0
        %v2897 = vadd.f32 0.0, %v2896
        %v2898 = vpop.f32.mrb[0].mxu0
        %v2899 = vadd.f32 0.0, %v2898
        %2900 = vmatprep.mubr.f32.mxu0 0.0
        %2901 = vmatmul.mubr.f32.gmra.mrb[0].mxu0 %v2174
        %v2902 = vpop.f32.mrb[0].mxu0
        %v2903 = vadd.f32 0.0, %v2902
        %v2904 = vpop.f32.mrb[0].mxu0
        %v2905 = vadd.f32 0.0, %v2904
        %2906 = vmatprep.mubr.f32.mxu0 0.0
        %2907 = vmatmul.mubr.f32.gmra.mrb[0].mxu0 %v2177
        %v2908 = vpop.f32.mrb[0].mxu0
        %v2909 = vadd.f32 0.0, %v2908
        %v2910 = vpop.f32.mrb[0].mxu0
        %v2911 = vadd.f32 0.0, %v2910
        %2912 = vmatprep.mubr.f32.mxu0 0.0
        %2913 = vmatmul.mubr.f32.gmra.mrb[0].mxu0 %v2180
        %v2914 = vpop.f32.mrb[0].mxu0
        %v2915 = vadd.f32 0.0, %v2914
        %v2916 = vpop.f32.mrb[0].mxu0
        %v2917 = vadd.f32 0.0, %v2916
        %2918 = vmatprep.mubr.f32.mxu0 0.0
        %2919 = vmatmul.mubr.f32.gmra.mrb[0].mxu0 %v2183
        %v2920 = vpop.f32.mrb[0].mxu0
        %v2921 = vadd.f32 0.0, %v2920
        %v2922 = vpop.f32.mrb[0].mxu0
        %v2923 = vadd.f32 0.0, %v2922
        %2924 = vmatprep.mubr.f32.mxu0 0.0
        %2925 = vmatmul.mubr.f32.gmra.mrb[0].mxu0 %v2186
        %v2926 = vpop.f32.mrb[0].mxu0
        %v2927 = vadd.f32 0.0, %v2926
        %v2928 = vpop.f32.mrb[0].mxu0
        %v2929 = vadd.f32 0.0, %v2928
        %2930 = vmatprep.mubr.f32.mxu0 0.0
        %2931 = vmatmul.mubr.f32.gmra.mrb[0].mxu0 %v2189
        %v2932 = vpop.f32.mrb[0].mxu0
        %v2933 = vadd.f32 0.0, %v2932
        %v2934 = vpop.f32.mrb[0].mxu0
        %v2935 = vadd.f32 0.0, %v2934
        %2936 = vmatprep.mubr.f32.mxu0 0.0
        %2937 = vmatmul.mubr.f32.gmra.mrb[0].mxu0 %v2192
        %v2938 = vpop.f32.mrb[0].mxu0
        %v2939 = vadd.f32 0.0, %v2938
        %v2940 = vpop.f32.mrb[0].mxu0
        %v2941 = vadd.f32 0.0, %v2940
        %2942 = vmatprep.mubr.f32.mxu0 0.0
        %2943 = vmatmul.mubr.f32.gmra.mrb[0].mxu0 %v2195
        %v2944 = vpop.f32.mrb[0].mxu0
        %v2945 = vadd.f32 0.0, %v2944
        %v2946 = vpop.f32.mrb[0].mxu0
        %v2947 = vadd.f32 0.0, %v2946
        %2948 = vmatprep.mubr.f32.mxu0 0.0
        %2949 = vmatmul.mubr.f32.gmra.mrb[0].mxu0 %v2198
        %v2950 = vpop.f32.mrb[0].mxu0
        %v2951 = vadd.f32 0.0, %v2950
        %v2952 = vpop.f32.mrb[0].mxu0
        %v2953 = vadd.f32 0.0, %v2952
        %2954 = vmatprep.mubr.f32.mxu0 0.0
        %2955 = vmatmul.mubr.f32.gmra.mrb[0].mxu0 %v2201
        %v2956 = vpop.f32.mrb[0].mxu0
        %v2957 = vadd.f32 0.0, %v2956
        %v2958 = vpop.f32.mrb[0].mxu0
        %v2959 = vadd.f32 0.0, %v2958
        %2960 = vmatprep.mubr.f32.mxu0 0.0
        %2961 = vmatmul.mubr.f32.gmra.mrb[0].mxu0 %v2204
        %v2962 = vpop.f32.mrb[0].mxu0
        %v2963 = vadd.f32 0.0, %v2962
        %v2964 = vpop.f32.mrb[0].mxu0
        %v2965 = vadd.f32 0.0, %v2964
        %2966 = vmatprep.mubr.f32.mxu0 0.0
        %2967 = vmatmul.mubr.f32.gmra.mrb[0].mxu0 %v2207
        %v2968 = vpop.f32.mrb[0].mxu0
        %v2969 = vadd.f32 0.0, %v2968
        %v2970 = vpop.f32.mrb[0].mxu0
        %v2971 = vadd.f32 0.0, %v2970
        %2972 = vmatprep.mubr.f32.mxu0 0.0
        %2973 = vmatmul.mubr.f32.gmra.mrb[0].mxu0 %v2210
        %v2974 = vpop.f32.mrb[0].mxu0
        %v2975 = vadd.f32 0.0, %v2974
        %v2976 = vpop.f32.mrb[0].mxu0
        %v2977 = vadd.f32 0.0, %v2976
        %2978 = vmatprep.mubr.f32.mxu0 0.0
        %2979 = vmatmul.mubr.f32.gmra.mrb[0].mxu0 %v2213
        %v2980 = vpop.f32.mrb[0].mxu0
        %v2981 = vadd.f32 0.0, %v2980
        %v2982 = vpop.f32.mrb[0].mxu0
        %v2983 = vadd.f32 0.0, %v2982
        %2984 = vmatprep.mubr.f32.mxu0 0.0
        %2985 = vmatmul.mubr.f32.gmra.mrb[0].mxu0 %v2216
        %v2986 = vpop.f32.mrb[0].mxu0
        %v2987 = vadd.f32 0.0, %v2986
        %v2988 = vpop.f32.mrb[0].mxu0
        %v2989 = vadd.f32 0.0, %v2988
        %2990 = vmatprep.mubr.f32.mxu0 0.0
        %2991 = vmatmul.mubr.f32.gmra.mrb[0].mxu0 %v2219
        %v2992 = vpop.f32.mrb[0].mxu0
        %v2993 = vadd.f32 0.0, %v2992
        %v2994 = vpop.f32.mrb[0].mxu0
        %v2995 = vadd.f32 0.0, %v2994
        %2996 = vmatprep.mubr.f32.mxu0 0.0
        %2997 = vmatmul.mubr.f32.gmra.mrb[0].mxu0 %v2222
        %v2998 = vpop.f32.mrb[0].mxu0
        %v2999 = vadd.f32 0.0, %v2998
        %v3000 = vpop.f32.mrb[0].mxu0
        %v3001 = vadd.f32 0.0, %v3000
        %3002 = vmatprep.mubr.f32.mxu0 0.0
        %3003 = vmatmul.mubr.f32.gmra.mrb[0].mxu0 %v2225
        %v3004 = vpop.f32.mrb[0].mxu0
        %v3005 = vadd.f32 0.0, %v3004
        %v3006 = vpop.f32.mrb[0].mxu0
        %v3007 = vadd.f32 0.0, %v3006
        %3008 = vmatprep.mubr.f32.mxu0 0.0
        %3009 = vmatmul.mubr.f32.gmra.mrb[0].mxu0 %v2228
        %v3010 = vpop.f32.mrb[0].mxu0
        %v3011 = vadd.f32 0.0, %v3010
        %v3012 = vpop.f32.mrb[0].mxu0
        %v3013 = vadd.f32 0.0, %v3012
        %3014 = vmatprep.mubr.f32.mxu0 0.0
        %3015 = vmatmul.mubr.f32.gmra.mrb[0].mxu0 %v2231
        %v3016 = vpop.f32.mrb[0].mxu0
        %v3017 = vadd.f32 0.0, %v3016
        %v3018 = vpop.f32.mrb[0].mxu0
        %v3019 = vadd.f32 0.0, %v3018
        %3020 = vmatprep.mubr.f32.mxu0 0.0
        %3021 = vmatmul.mubr.f32.gmra.mrb[0].mxu0 %v2234
        %v3022 = vpop.f32.mrb[0].mxu0
        %v3023 = vadd.f32 0.0, %v3022
        %v3024 = vpop.f32.mrb[0].mxu0
        %v3025 = vadd.f32 0.0, %v3024
        %3026 = vmatprep.mubr.f32.mxu0 0.0
        %3027 = vmatmul.mubr.f32.gmra.mrb[0].mxu0 %v2237
        %v3028 = vpop.f32.mrb[0].mxu0
        %v3029 = vadd.f32 0.0, %v3028
        %v3030 = vpop.f32.mrb[0].mxu0
        %v3031 = vadd.f32 0.0, %v3030
        %3032 = vmatprep.mubr.f32.mxu0 0.0
        %3033 = vmatmul.mubr.f32.gmra.mrb[0].mxu0 %v2240
        %v3034 = vpop.f32.mrb[0].mxu0
        %v3035 = vadd.f32 0.0, %v3034
        %v3036 = vpop.f32.mrb[0].mxu0
        %v3037 = vadd.f32 0.0, %v3036
        %3038 = vmatprep.mubr.f32.mxu0 0.0
        %3039 = vmatmul.mubr.f32.gmra.mrb[0].mxu0 %v2243
        %v3040 = vpop.f32.mrb[0].mxu0
        %v3041 = vadd.f32 0.0, %v3040
        %v3042 = vpop.f32.mrb[0].mxu0
        %v3043 = vadd.f32 0.0, %v3042
        %3044 = vmatprep.mubr.f32.mxu0 0.0
        %3045 = vmatmul.mubr.f32.gmra.mrb[0].mxu0 %v2246
        %v3046 = vpop.f32.mrb[0].mxu0
        %v3047 = vadd.f32 0.0, %v3046
        %v3048 = vpop.f32.mrb[0].mxu0
        %v3049 = vadd.f32 0.0, %v3048
        %3050 = vdwg.mxu0
        %v3051 = vmul.f32 %v2861, %v793
        %v3052 = vmul.f32 %v2863, %v794
        %v3053 = vmul.f32 %v2867, %v795
        %v3054 = vmul.f32 %v2869, %v796
        %v3055 = vmul.f32 %v2873, %v797
        %v3056 = vmul.f32 %v2875, %v798
        %v3057 = vmul.f32 %v2879, %v799
        %v3058 = vmul.f32 %v2881, %v800
        %v3059 = vmul.f32 %v2885, %v801
        %v3060 = vmul.f32 %v2887, %v802
        %v3061 = vmul.f32 %v2891, %v803
        %v3062 = vmul.f32 %v2893, %v804
        %v3063 = vmul.f32 %v2897, %v805
        %v3064 = vmul.f32 %v2899, %v806
        %v3065 = vmul.f32 %v2903, %v807
        %v3066 = vmul.f32 %v2905, %v808
        %v3067 = vmul.f32 %v2909, %v809
        %v3068 = vmul.f32 %v2911, %v810
        %v3069 = vmul.f32 %v2915, %v811
        %v3070 = vmul.f32 %v2917, %v812
        %v3071 = vmul.f32 %v2921, %v813
        %v3072 = vmul.f32 %v2923, %v814
        %v3073 = vmul.f32 %v2927, %v815
        %v3074 = vmul.f32 %v2929, %v816
        %v3075 = vmul.f32 %v2933, %v817
        %v3076 = vmul.f32 %v2935, %v818
        %v3077 = vmul.f32 %v2939, %v819
        %v3078 = vmul.f32 %v2941, %v820
        %v3079 = vmul.f32 %v2945, %v821
        %v3080 = vmul.f32 %v2947, %v822
        %v3081 = vmul.f32 %v2951, %v823
        %v3082 = vmul.f32 %v2953, %v824
        %v3083 = vmul.f32 %v2957, %v825
        %v3084 = vmul.f32 %v2959, %v826
        %v3085 = vmul.f32 %v2963, %v827
        %v3086 = vmul.f32 %v2965, %v828
        %v3087 = vmul.f32 %v2969, %v829
        %v3088 = vmul.f32 %v2971, %v830
        %v3089 = vmul.f32 %v2975, %v831
        %v3090 = vmul.f32 %v2977, %v832
        %v3091 = vmul.f32 %v2981, %v833
        %v3092 = vmul.f32 %v2983, %v834
        %v3093 = vmul.f32 %v2987, %v835
        %v3094 = vmul.f32 %v2989, %v836
        %v3095 = vmul.f32 %v2993, %v837
        %v3096 = vmul.f32 %v2995, %v838
        %v3097 = vmul.f32 %v2999, %v839
        %v3098 = vmul.f32 %v3001, %v840
        %v3099 = vmul.f32 %v3005, %v841
        %v3100 = vmul.f32 %v3007, %v842
        %v3101 = vmul.f32 %v3011, %v843
        %v3102 = vmul.f32 %v3013, %v844
        %v3103 = vmul.f32 %v3017, %v845
        %v3104 = vmul.f32 %v3019, %v846
        %v3105 = vmul.f32 %v3023, %v847
        %v3106 = vmul.f32 %v3025, %v848
        %v3107 = vmul.f32 %v3029, %v849
        %v3108 = vmul.f32 %v3031, %v850
        %v3109 = vmul.f32 %v3035, %v851
        %v3110 = vmul.f32 %v3037, %v852
        %v3111 = vmul.f32 %v3041, %v853
        %v3112 = vmul.f32 %v3043, %v854
        %v3113 = vmul.f32 %v3047, %v855
        %v3114 = vmul.f32 %v3049, %v856
        %3115 = vmatprep.subr.mxu0 %v782
        %3116 = vmatpush1.xpose.msra.mxu0 %v781
        %3117 = vmatprep.subr.mxu0 %v784
        %3118 = vmatpush1.xpose.msra.mxu0 %v783
        %3119 = vmatprep.subr.mxu0 0.0
        %3120 = vmatpush1.xpose.msra.mxu0 0.0
        %3121 = vmatprep.subr.mxu0 0.0
        %3122 = vmatpush1.xpose.msra.mxu0 0.0
        %3123 = vmatprep.subr.mxu0 0.0
        %3124 = vmatpush1.xpose.msra.mxu0 0.0
        %3125 = vmatprep.subr.mxu0 0.0
        %3126 = vmatpush1.xpose.msra.mxu0 0.0
        %3127 = vmatprep.subr.mxu0 0.0
        %3128 = vmatpush1.xpose.msra.mxu0 0.0
        %3129 = vmatprep.subr.mxu0 0.0
        %3130 = vmatpush1.xpose.msra.mxu0 0.0
        %3131 = vmatprep.subr.mxu0 0.0
        %3132 = vmatpush1.xpose.msra.mxu0 0.0
        %3133 = vmatprep.subr.mxu0 0.0
        %3134 = vmatpush1.xpose.msra.mxu0 0.0
        %3135 = vmatprep.subr.mxu0 0.0
        %3136 = vmatpush1.xpose.msra.mxu0 0.0
        %3137 = vmatprep.subr.mxu0 0.0
        %3138 = vmatpush1.xpose.msra.mxu0 0.0
        %3139 = vmatprep.subr.mxu0 0.0
        %3140 = vmatpush1.xpose.msra.mxu0 0.0
        %3141 = vmatprep.subr.mxu0 0.0
        %3142 = vmatpush1.xpose.msra.mxu0 0.0
        %3143 = vmatprep.subr.mxu0 0.0
        %3144 = vmatpush1.xpose.msra.mxu0 0.0
        %3145 = vmatprep.subr.mxu0 0.0
        %3146 = vmatpush1.xpose.msra.mxu0 0.0
        %3147 = vmatprep.subr.mxu0 0.0
        %3148 = vmatpush1.xpose.msra.mxu0 0.0
        %3149 = vmatprep.subr.mxu0 0.0
        %3150 = vmatpush1.xpose.msra.mxu0 0.0
        %3151 = vmatprep.subr.mxu0 0.0
        %3152 = vmatpush1.xpose.msra.mxu0 0.0
        %3153 = vmatprep.subr.mxu0 0.0
        %3154 = vmatpush1.xpose.msra.mxu0 0.0
        %3155 = vmatprep.subr.mxu0 0.0
        %3156 = vmatpush1.xpose.msra.mxu0 0.0
        %3157 = vmatprep.subr.mxu0 0.0
        %3158 = vmatpush1.xpose.msra.mxu0 0.0
        %3159 = vmatprep.subr.mxu0 0.0
        %3160 = vmatpush1.xpose.msra.mxu0 0.0
        %3161 = vmatprep.subr.mxu0 0.0
        %3162 = vmatpush1.xpose.msra.mxu0 0.0
        %3163 = vmatprep.subr.mxu0 0.0
        %3164 = vmatpush1.xpose.msra.mxu0 0.0
        %3165 = vmatprep.subr.mxu0 0.0
        %3166 = vmatpush1.xpose.msra.mxu0 0.0
        %3167 = vmatprep.subr.mxu0 0.0
        %3168 = vmatpush1.xpose.msra.mxu0 0.0
        %3169 = vmatprep.subr.mxu0 0.0
        %3170 = vmatpush1.xpose.msra.mxu0 0.0
        %3171 = vmatprep.subr.mxu0 0.0
        %3172 = vmatpush1.xpose.msra.mxu0 0.0
        %3173 = vmatprep.subr.mxu0 0.0
        %3174 = vmatpush1.xpose.msra.mxu0 0.0
        %3175 = vmatprep.subr.mxu0 0.0
        %3176 = vmatpush1.xpose.msra.mxu0 0.0
        %3177 = vmatprep.subr.mxu0 0.0
        %3178 = vmatpush1.xpose.msra.mxu0 0.0
        %3179 = vmatprep.mubr.f32.mxu0 %v3052
        %3180 = vmatmul.mubr.f32.gmra.mrb[0].mxu0 %v3051
        %v3181 = vpop.f32.mrb[0].mxu0
        %v3182 = vadd.f32 0.0, %v3181
        %v3183 = vpop.f32.mrb[0].mxu0
        %3184 = vmatprep.mubr.f32.mxu0 %v3054
        %3185 = vmatmul.mubr.f32.gmra.mrb[0].mxu0 %v3053
        %v3186 = vpop.f32.mrb[0].mxu0
        %v3187 = vadd.f32 0.0, %v3186
        %v3188 = vpop.f32.mrb[0].mxu0
        %3189 = vmatprep.mubr.f32.mxu0 %v3056
        %3190 = vmatmul.mubr.f32.gmra.mrb[0].mxu0 %v3055
        %v3191 = vpop.f32.mrb[0].mxu0
        %v3192 = vadd.f32 0.0, %v3191
        %v3193 = vpop.f32.mrb[0].mxu0
        %3194 = vmatprep.mubr.f32.mxu0 %v3058
        %3195 = vmatmul.mubr.f32.gmra.mrb[0].mxu0 %v3057
        %v3196 = vpop.f32.mrb[0].mxu0
        %v3197 = vadd.f32 0.0, %v3196
        %v3198 = vpop.f32.mrb[0].mxu0
        %3199 = vmatprep.mubr.f32.mxu0 %v3060
        %3200 = vmatmul.mubr.f32.gmra.mrb[0].mxu0 %v3059
        %v3201 = vpop.f32.mrb[0].mxu0
        %v3202 = vadd.f32 0.0, %v3201
        %v3203 = vpop.f32.mrb[0].mxu0
        %3204 = vmatprep.mubr.f32.mxu0 %v3062
        %3205 = vmatmul.mubr.f32.gmra.mrb[0].mxu0 %v3061
        %v3206 = vpop.f32.mrb[0].mxu0
        %v3207 = vadd.f32 0.0, %v3206
        %v3208 = vpop.f32.mrb[0].mxu0
        %3209 = vmatprep.mubr.f32.mxu0 %v3064
        %3210 = vmatmul.mubr.f32.gmra.mrb[0].mxu0 %v3063
        %v3211 = vpop.f32.mrb[0].mxu0
        %v3212 = vadd.f32 0.0, %v3211
        %v3213 = vpop.f32.mrb[0].mxu0
        %3214 = vmatprep.mubr.f32.mxu0 %v3066
        %3215 = vmatmul.mubr.f32.gmra.mrb[0].mxu0 %v3065
        %v3216 = vpop.f32.mrb[0].mxu0
        %v3217 = vadd.f32 0.0, %v3216
        %v3218 = vpop.f32.mrb[0].mxu0
        %3219 = vmatprep.mubr.f32.mxu0 %v3068
        %3220 = vmatmul.mubr.f32.gmra.mrb[0].mxu0 %v3067
        %v3221 = vpop.f32.mrb[0].mxu0
        %v3222 = vadd.f32 0.0, %v3221
        %v3223 = vpop.f32.mrb[0].mxu0
        %3224 = vmatprep.mubr.f32.mxu0 %v3070
        %3225 = vmatmul.mubr.f32.gmra.mrb[0].mxu0 %v3069
        %v3226 = vpop.f32.mrb[0].mxu0
        %v3227 = vadd.f32 0.0, %v3226
        %v3228 = vpop.f32.mrb[0].mxu0
        %3229 = vmatprep.mubr.f32.mxu0 %v3072
        %3230 = vmatmul.mubr.f32.gmra.mrb[0].mxu0 %v3071
        %v3231 = vpop.f32.mrb[0].mxu0
        %v3232 = vadd.f32 0.0, %v3231
        %v3233 = vpop.f32.mrb[0].mxu0
        %3234 = vmatprep.mubr.f32.mxu0 %v3074
        %3235 = vmatmul.mubr.f32.gmra.mrb[0].mxu0 %v3073
        %v3236 = vpop.f32.mrb[0].mxu0
        %v3237 = vadd.f32 0.0, %v3236
        %v3238 = vpop.f32.mrb[0].mxu0
        %3239 = vmatprep.mubr.f32.mxu0 %v3076
        %3240 = vmatmul.mubr.f32.gmra.mrb[0].mxu0 %v3075
        %v3241 = vpop.f32.mrb[0].mxu0
        %v3242 = vadd.f32 0.0, %v3241
        %v3243 = vpop.f32.mrb[0].mxu0
        %3244 = vmatprep.mubr.f32.mxu0 %v3078
        %3245 = vmatmul.mubr.f32.gmra.mrb[0].mxu0 %v3077
        %v3246 = vpop.f32.mrb[0].mxu0
        %v3247 = vadd.f32 0.0, %v3246
        %v3248 = vpop.f32.mrb[0].mxu0
        %3249 = vmatprep.mubr.f32.mxu0 %v3080
        %3250 = vmatmul.mubr.f32.gmra.mrb[0].mxu0 %v3079
        %v3251 = vpop.f32.mrb[0].mxu0
        %v3252 = vadd.f32 0.0, %v3251
        %v3253 = vpop.f32.mrb[0].mxu0
        %3254 = vmatprep.mubr.f32.mxu0 %v3082
        %3255 = vmatmul.mubr.f32.gmra.mrb[0].mxu0 %v3081
        %v3256 = vpop.f32.mrb[0].mxu0
        %v3257 = vadd.f32 0.0, %v3256
        %v3258 = vpop.f32.mrb[0].mxu0
        %3259 = vmatprep.mubr.f32.mxu0 %v3084
        %3260 = vmatmul.mubr.f32.gmra.mrb[0].mxu0 %v3083
        %v3261 = vpop.f32.mrb[0].mxu0
        %v3262 = vadd.f32 0.0, %v3261
        %v3263 = vpop.f32.mrb[0].mxu0
        %3264 = vmatprep.mubr.f32.mxu0 %v3086
        %3265 = vmatmul.mubr.f32.gmra.mrb[0].mxu0 %v3085
        %v3266 = vpop.f32.mrb[0].mxu0
        %v3267 = vadd.f32 0.0, %v3266
        %v3268 = vpop.f32.mrb[0].mxu0
        %3269 = vmatprep.mubr.f32.mxu0 %v3088
        %3270 = vmatmul.mubr.f32.gmra.mrb[0].mxu0 %v3087
        %v3271 = vpop.f32.mrb[0].mxu0
        %v3272 = vadd.f32 0.0, %v3271
        %v3273 = vpop.f32.mrb[0].mxu0
        %3274 = vmatprep.mubr.f32.mxu0 %v3090
        %3275 = vmatmul.mubr.f32.gmra.mrb[0].mxu0 %v3089
        %v3276 = vpop.f32.mrb[0].mxu0
        %v3277 = vadd.f32 0.0, %v3276
        %v3278 = vpop.f32.mrb[0].mxu0
        %3279 = vmatprep.mubr.f32.mxu0 %v3092
        %3280 = vmatmul.mubr.f32.gmra.mrb[0].mxu0 %v3091
        %v3281 = vpop.f32.mrb[0].mxu0
        %v3282 = vadd.f32 0.0, %v3281
        %v3283 = vpop.f32.mrb[0].mxu0
        %3284 = vmatprep.mubr.f32.mxu0 %v3094
        %3285 = vmatmul.mubr.f32.gmra.mrb[0].mxu0 %v3093
        %v3286 = vpop.f32.mrb[0].mxu0
        %v3287 = vadd.f32 0.0, %v3286
        %v3288 = vpop.f32.mrb[0].mxu0
        %3289 = vmatprep.mubr.f32.mxu0 %v3096
        %3290 = vmatmul.mubr.f32.gmra.mrb[0].mxu0 %v3095
        %v3291 = vpop.f32.mrb[0].mxu0
        %v3292 = vadd.f32 0.0, %v3291
        %v3293 = vpop.f32.mrb[0].mxu0
        %3294 = vmatprep.mubr.f32.mxu0 %v3098
        %3295 = vmatmul.mubr.f32.gmra.mrb[0].mxu0 %v3097
        %v3296 = vpop.f32.mrb[0].mxu0
        %v3297 = vadd.f32 0.0, %v3296
        %v3298 = vpop.f32.mrb[0].mxu0
        %3299 = vmatprep.mubr.f32.mxu0 %v3100
        %3300 = vmatmul.mubr.f32.gmra.mrb[0].mxu0 %v3099
        %v3301 = vpop.f32.mrb[0].mxu0
        %v3302 = vadd.f32 0.0, %v3301
        %v3303 = vpop.f32.mrb[0].mxu0
        %3304 = vmatprep.mubr.f32.mxu0 %v3102
        %3305 = vmatmul.mubr.f32.gmra.mrb[0].mxu0 %v3101
        %v3306 = vpop.f32.mrb[0].mxu0
        %v3307 = vadd.f32 0.0, %v3306
        %v3308 = vpop.f32.mrb[0].mxu0
        %3309 = vmatprep.mubr.f32.mxu0 %v3104
        %3310 = vmatmul.mubr.f32.gmra.mrb[0].mxu0 %v3103
        %v3311 = vpop.f32.mrb[0].mxu0
        %v3312 = vadd.f32 0.0, %v3311
        %v3313 = vpop.f32.mrb[0].mxu0
        %3314 = vmatprep.mubr.f32.mxu0 %v3106
        %3315 = vmatmul.mubr.f32.gmra.mrb[0].mxu0 %v3105
        %v3316 = vpop.f32.mrb[0].mxu0
        %v3317 = vadd.f32 0.0, %v3316
        %v3318 = vpop.f32.mrb[0].mxu0
        %3319 = vmatprep.mubr.f32.mxu0 %v3108
        %3320 = vmatmul.mubr.f32.gmra.mrb[0].mxu0 %v3107
        %v3321 = vpop.f32.mrb[0].mxu0
        %v3322 = vadd.f32 0.0, %v3321
        %v3323 = vpop.f32.mrb[0].mxu0
        %3324 = vmatprep.mubr.f32.mxu0 %v3110
        %3325 = vmatmul.mubr.f32.gmra.mrb[0].mxu0 %v3109
        %v3326 = vpop.f32.mrb[0].mxu0
        %v3327 = vadd.f32 0.0, %v3326
        %v3328 = vpop.f32.mrb[0].mxu0
        %3329 = vmatprep.mubr.f32.mxu0 %v3112
        %3330 = vmatmul.mubr.f32.gmra.mrb[0].mxu0 %v3111
        %v3331 = vpop.f32.mrb[0].mxu0
        %v3332 = vadd.f32 0.0, %v3331
        %v3333 = vpop.f32.mrb[0].mxu0
        %3334 = vmatprep.mubr.f32.mxu0 %v3114
        %3335 = vmatmul.mubr.f32.gmra.mrb[0].mxu0 %v3113
        %v3336 = vpop.f32.mrb[0].mxu0
        %v3337 = vadd.f32 0.0, %v3336
        %v3338 = vpop.f32.mrb[0].mxu0
        %3339 = vdwg.mxu0
        %v3341 = vsel %vm1017, %v2636, 0
        %v3344 = vsel %vm1017, %v2641, 0
        %v3347 = vsel %vm1017, %v2646, 0
        %v3350 = vsel %vm1017, %v2651, 0
        %v3353 = vsel %vm1017, %v2656, 0
        %v3356 = vsel %vm1017, %v2661, 0
        %v3359 = vsel %vm1017, %v2666, 0
        %v3362 = vsel %vm1017, %v2671, 0
        %v3365 = vsel %vm1017, %v2676, 0
        %v3368 = vsel %vm1017, %v2681, 0
        %v3371 = vsel %vm1017, %v2686, 0
        %v3374 = vsel %vm1017, %v2691, 0
        %v3377 = vsel %vm1017, %v2696, 0
        %v3380 = vsel %vm1017, %v2701, 0
        %v3383 = vsel %vm1017, %v2706, 0
        %v3386 = vsel %vm1017, %v2711, 0
        %v3389 = vsel %vm1017, %v2716, 0
        %v3392 = vsel %vm1017, %v2721, 0
        %v3395 = vsel %vm1017, %v2726, 0
        %v3398 = vsel %vm1017, %v2731, 0
        %v3401 = vsel %vm1017, %v2736, 0
        %v3404 = vsel %vm1017, %v2741, 0
        %v3407 = vsel %vm1017, %v2746, 0
        %v3410 = vsel %vm1017, %v2751, 0
        %v3413 = vsel %vm1017, %v2756, 0
        %v3416 = vsel %vm1017, %v2761, 0
        %v3419 = vsel %vm1017, %v2766, 0
        %v3422 = vsel %vm1017, %v2771, 0
        %v3425 = vsel %vm1017, %v2776, 0
        %v3428 = vsel %vm1017, %v2781, 0
        %v3431 = vsel %vm1017, %v2786, 0
        %v3434 = vsel %vm1017, %v2791, 0
        %3436 = vmatprep.subr.mxu0 %v790
        %3437 = vmatpush1.msra.mxu0 %v789
        %3438 = vmatprep.subr.mxu0 %v792
        %3439 = vmatpush1.msra.mxu0 %v791
        %3440 = vmatprep.subr.mxu0 0.0
        %3441 = vmatpush1.msra.mxu0 0.0
        %3442 = vmatprep.subr.mxu0 0.0
        %3443 = vmatpush1.msra.mxu0 0.0
        %3444 = vmatprep.subr.mxu0 0.0
        %3445 = vmatpush1.msra.mxu0 0.0
        %3446 = vmatprep.subr.mxu0 0.0
        %3447 = vmatpush1.msra.mxu0 0.0
        %3448 = vmatprep.subr.mxu0 0.0
        %3449 = vmatpush1.msra.mxu0 0.0
        %3450 = vmatprep.subr.mxu0 0.0
        %3451 = vmatpush1.msra.mxu0 0.0
        %3452 = vmatprep.subr.mxu0 0.0
        %3453 = vmatpush1.msra.mxu0 0.0
        %3454 = vmatprep.subr.mxu0 0.0
        %3455 = vmatpush1.msra.mxu0 0.0
        %3456 = vmatprep.subr.mxu0 0.0
        %3457 = vmatpush1.msra.mxu0 0.0
        %3458 = vmatprep.subr.mxu0 0.0
        %3459 = vmatpush1.msra.mxu0 0.0
        %3460 = vmatprep.subr.mxu0 0.0
        %3461 = vmatpush1.msra.mxu0 0.0
        %3462 = vmatprep.subr.mxu0 0.0
        %3463 = vmatpush1.msra.mxu0 0.0
        %3464 = vmatprep.subr.mxu0 0.0
        %3465 = vmatpush1.msra.mxu0 0.0
        %3466 = vmatprep.subr.mxu0 0.0
        %3467 = vmatpush1.msra.mxu0 0.0
        %3468 = vmatprep.subr.mxu0 0.0
        %3469 = vmatpush1.msra.mxu0 0.0
        %3470 = vmatprep.subr.mxu0 0.0
        %3471 = vmatpush1.msra.mxu0 0.0
        %3472 = vmatprep.subr.mxu0 0.0
        %3473 = vmatpush1.msra.mxu0 0.0
        %3474 = vmatprep.subr.mxu0 0.0
        %3475 = vmatpush1.msra.mxu0 0.0
        %3476 = vmatprep.subr.mxu0 0.0
        %3477 = vmatpush1.msra.mxu0 0.0
        %3478 = vmatprep.subr.mxu0 0.0
        %3479 = vmatpush1.msra.mxu0 0.0
        %3480 = vmatprep.subr.mxu0 0.0
        %3481 = vmatpush1.msra.mxu0 0.0
        %3482 = vmatprep.subr.mxu0 0.0
        %3483 = vmatpush1.msra.mxu0 0.0
        %3484 = vmatprep.subr.mxu0 0.0
        %3485 = vmatpush1.msra.mxu0 0.0
        %3486 = vmatprep.subr.mxu0 0.0
        %3487 = vmatpush1.msra.mxu0 0.0
        %3488 = vmatprep.subr.mxu0 0.0
        %3489 = vmatpush1.msra.mxu0 0.0
        %3490 = vmatprep.subr.mxu0 0.0
        %3491 = vmatpush1.msra.mxu0 0.0
        %3492 = vmatprep.subr.mxu0 0.0
        %3493 = vmatpush1.msra.mxu0 0.0
        %3494 = vmatprep.subr.mxu0 0.0
        %3495 = vmatpush1.msra.mxu0 0.0
        %3496 = vmatprep.subr.mxu0 0.0
        %3497 = vmatpush1.msra.mxu0 0.0
        %3498 = vmatprep.subr.mxu0 0.0
        %3499 = vmatpush1.msra.mxu0 0.0
        %3500 = vmatprep.mubr.f32.mxu0 0.0
        %3501 = vmatmul.mubr.f32.gmra.mrb[0].mxu0 %v3341
        %v3502 = vpop.f32.mrb[0].mxu0
        %v3503 = vadd.f32 0.0, %v3502
        %v3504 = vpop.f32.mrb[0].mxu0
        %v3505 = vadd.f32 0.0, %v3504
        %3506 = vmatprep.mubr.f32.mxu0 0.0
        %3507 = vmatmul.mubr.f32.gmra.mrb[0].mxu0 %v3344
        %v3508 = vpop.f32.mrb[0].mxu0
        %v3509 = vadd.f32 0.0, %v3508
        %v3510 = vpop.f32.mrb[0].mxu0
        %v3511 = vadd.f32 0.0, %v3510
        %3512 = vmatprep.mubr.f32.mxu0 0.0
        %3513 = vmatmul.mubr.f32.gmra.mrb[0].mxu0 %v3347
        %v3514 = vpop.f32.mrb[0].mxu0
        %v3515 = vadd.f32 0.0, %v3514
        %v3516 = vpop.f32.mrb[0].mxu0
        %v3517 = vadd.f32 0.0, %v3516
        %3518 = vmatprep.mubr.f32.mxu0 0.0
        %3519 = vmatmul.mubr.f32.gmra.mrb[0].mxu0 %v3350
        %v3520 = vpop.f32.mrb[0].mxu0
        %v3521 = vadd.f32 0.0, %v3520
        %v3522 = vpop.f32.mrb[0].mxu0
        %v3523 = vadd.f32 0.0, %v3522
        %3524 = vmatprep.mubr.f32.mxu0 0.0
        %3525 = vmatmul.mubr.f32.gmra.mrb[0].mxu0 %v3353
        %v3526 = vpop.f32.mrb[0].mxu0
        %v3527 = vadd.f32 0.0, %v3526
        %v3528 = vpop.f32.mrb[0].mxu0
        %v3529 = vadd.f32 0.0, %v3528
        %3530 = vmatprep.mubr.f32.mxu0 0.0
        %3531 = vmatmul.mubr.f32.gmra.mrb[0].mxu0 %v3356
        %v3532 = vpop.f32.mrb[0].mxu0
        %v3533 = vadd.f32 0.0, %v3532
        %v3534 = vpop.f32.mrb[0].mxu0
        %v3535 = vadd.f32 0.0, %v3534
        %3536 = vmatprep.mubr.f32.mxu0 0.0
        %3537 = vmatmul.mubr.f32.gmra.mrb[0].mxu0 %v3359
        %v3538 = vpop.f32.mrb[0].mxu0
        %v3539 = vadd.f32 0.0, %v3538
        %v3540 = vpop.f32.mrb[0].mxu0
        %v3541 = vadd.f32 0.0, %v3540
        %3542 = vmatprep.mubr.f32.mxu0 0.0
        %3543 = vmatmul.mubr.f32.gmra.mrb[0].mxu0 %v3362
        %v3544 = vpop.f32.mrb[0].mxu0
        %v3545 = vadd.f32 0.0, %v3544
        %v3546 = vpop.f32.mrb[0].mxu0
        %v3547 = vadd.f32 0.0, %v3546
        %3548 = vmatprep.mubr.f32.mxu0 0.0
        %3549 = vmatmul.mubr.f32.gmra.mrb[0].mxu0 %v3365
        %v3550 = vpop.f32.mrb[0].mxu0
        %v3551 = vadd.f32 0.0, %v3550
        %v3552 = vpop.f32.mrb[0].mxu0
        %v3553 = vadd.f32 0.0, %v3552
        %3554 = vmatprep.mubr.f32.mxu0 0.0
        %3555 = vmatmul.mubr.f32.gmra.mrb[0].mxu0 %v3368
        %v3556 = vpop.f32.mrb[0].mxu0
        %v3557 = vadd.f32 0.0, %v3556
        %v3558 = vpop.f32.mrb[0].mxu0
        %v3559 = vadd.f32 0.0, %v3558
        %3560 = vmatprep.mubr.f32.mxu0 0.0
        %3561 = vmatmul.mubr.f32.gmra.mrb[0].mxu0 %v3371
        %v3562 = vpop.f32.mrb[0].mxu0
        %v3563 = vadd.f32 0.0, %v3562
        %v3564 = vpop.f32.mrb[0].mxu0
        %v3565 = vadd.f32 0.0, %v3564
        %3566 = vmatprep.mubr.f32.mxu0 0.0
        %3567 = vmatmul.mubr.f32.gmra.mrb[0].mxu0 %v3374
        %v3568 = vpop.f32.mrb[0].mxu0
        %v3569 = vadd.f32 0.0, %v3568
        %v3570 = vpop.f32.mrb[0].mxu0
        %v3571 = vadd.f32 0.0, %v3570
        %3572 = vmatprep.mubr.f32.mxu0 0.0
        %3573 = vmatmul.mubr.f32.gmra.mrb[0].mxu0 %v3377
        %v3574 = vpop.f32.mrb[0].mxu0
        %v3575 = vadd.f32 0.0, %v3574
        %v3576 = vpop.f32.mrb[0].mxu0
        %v3577 = vadd.f32 0.0, %v3576
        %3578 = vmatprep.mubr.f32.mxu0 0.0
        %3579 = vmatmul.mubr.f32.gmra.mrb[0].mxu0 %v3380
        %v3580 = vpop.f32.mrb[0].mxu0
        %v3581 = vadd.f32 0.0, %v3580
        %v3582 = vpop.f32.mrb[0].mxu0
        %v3583 = vadd.f32 0.0, %v3582
        %3584 = vmatprep.mubr.f32.mxu0 0.0
        %3585 = vmatmul.mubr.f32.gmra.mrb[0].mxu0 %v3383
        %v3586 = vpop.f32.mrb[0].mxu0
        %v3587 = vadd.f32 0.0, %v3586
        %v3588 = vpop.f32.mrb[0].mxu0
        %v3589 = vadd.f32 0.0, %v3588
        %3590 = vmatprep.mubr.f32.mxu0 0.0
        %3591 = vmatmul.mubr.f32.gmra.mrb[0].mxu0 %v3386
        %v3592 = vpop.f32.mrb[0].mxu0
        %v3593 = vadd.f32 0.0, %v3592
        %v3594 = vpop.f32.mrb[0].mxu0
        %v3595 = vadd.f32 0.0, %v3594
        %3596 = vmatprep.mubr.f32.mxu0 0.0
        %3597 = vmatmul.mubr.f32.gmra.mrb[0].mxu0 %v3389
        %v3598 = vpop.f32.mrb[0].mxu0
        %v3599 = vadd.f32 0.0, %v3598
        %v3600 = vpop.f32.mrb[0].mxu0
        %v3601 = vadd.f32 0.0, %v3600
        %3602 = vmatprep.mubr.f32.mxu0 0.0
        %3603 = vmatmul.mubr.f32.gmra.mrb[0].mxu0 %v3392
        %v3604 = vpop.f32.mrb[0].mxu0
        %v3605 = vadd.f32 0.0, %v3604
        %v3606 = vpop.f32.mrb[0].mxu0
        %v3607 = vadd.f32 0.0, %v3606
        %3608 = vmatprep.mubr.f32.mxu0 0.0
        %3609 = vmatmul.mubr.f32.gmra.mrb[0].mxu0 %v3395
        %v3610 = vpop.f32.mrb[0].mxu0
        %v3611 = vadd.f32 0.0, %v3610
        %v3612 = vpop.f32.mrb[0].mxu0
        %v3613 = vadd.f32 0.0, %v3612
        %3614 = vmatprep.mubr.f32.mxu0 0.0
        %3615 = vmatmul.mubr.f32.gmra.mrb[0].mxu0 %v3398
        %v3616 = vpop.f32.mrb[0].mxu0
        %v3617 = vadd.f32 0.0, %v3616
        %v3618 = vpop.f32.mrb[0].mxu0
        %v3619 = vadd.f32 0.0, %v3618
        %3620 = vmatprep.mubr.f32.mxu0 0.0
        %3621 = vmatmul.mubr.f32.gmra.mrb[0].mxu0 %v3401
        %v3622 = vpop.f32.mrb[0].mxu0
        %v3623 = vadd.f32 0.0, %v3622
        %v3624 = vpop.f32.mrb[0].mxu0
        %v3625 = vadd.f32 0.0, %v3624
        %3626 = vmatprep.mubr.f32.mxu0 0.0
        %3627 = vmatmul.mubr.f32.gmra.mrb[0].mxu0 %v3404
        %v3628 = vpop.f32.mrb[0].mxu0
        %v3629 = vadd.f32 0.0, %v3628
        %v3630 = vpop.f32.mrb[0].mxu0
        %v3631 = vadd.f32 0.0, %v3630
        %3632 = vmatprep.mubr.f32.mxu0 0.0
        %3633 = vmatmul.mubr.f32.gmra.mrb[0].mxu0 %v3407
        %v3634 = vpop.f32.mrb[0].mxu0
        %v3635 = vadd.f32 0.0, %v3634
        %v3636 = vpop.f32.mrb[0].mxu0
        %v3637 = vadd.f32 0.0, %v3636
        %3638 = vmatprep.mubr.f32.mxu0 0.0
        %3639 = vmatmul.mubr.f32.gmra.mrb[0].mxu0 %v3410
        %v3640 = vpop.f32.mrb[0].mxu0
        %v3641 = vadd.f32 0.0, %v3640
        %v3642 = vpop.f32.mrb[0].mxu0
        %v3643 = vadd.f32 0.0, %v3642
        %3644 = vmatprep.mubr.f32.mxu0 0.0
        %3645 = vmatmul.mubr.f32.gmra.mrb[0].mxu0 %v3413
        %v3646 = vpop.f32.mrb[0].mxu0
        %v3647 = vadd.f32 0.0, %v3646
        %v3648 = vpop.f32.mrb[0].mxu0
        %v3649 = vadd.f32 0.0, %v3648
        %3650 = vmatprep.mubr.f32.mxu0 0.0
        %3651 = vmatmul.mubr.f32.gmra.mrb[0].mxu0 %v3416
        %v3652 = vpop.f32.mrb[0].mxu0
        %v3653 = vadd.f32 0.0, %v3652
        %v3654 = vpop.f32.mrb[0].mxu0
        %v3655 = vadd.f32 0.0, %v3654
        %3656 = vmatprep.mubr.f32.mxu0 0.0
        %3657 = vmatmul.mubr.f32.gmra.mrb[0].mxu0 %v3419
        %v3658 = vpop.f32.mrb[0].mxu0
        %v3659 = vadd.f32 0.0, %v3658
        %v3660 = vpop.f32.mrb[0].mxu0
        %v3661 = vadd.f32 0.0, %v3660
        %3662 = vmatprep.mubr.f32.mxu0 0.0
        %3663 = vmatmul.mubr.f32.gmra.mrb[0].mxu0 %v3422
        %v3664 = vpop.f32.mrb[0].mxu0
        %v3665 = vadd.f32 0.0, %v3664
        %v3666 = vpop.f32.mrb[0].mxu0
        %v3667 = vadd.f32 0.0, %v3666
        %3668 = vmatprep.mubr.f32.mxu0 0.0
        %3669 = vmatmul.mubr.f32.gmra.mrb[0].mxu0 %v3425
        %v3670 = vpop.f32.mrb[0].mxu0
        %v3671 = vadd.f32 0.0, %v3670
        %v3672 = vpop.f32.mrb[0].mxu0
        %v3673 = vadd.f32 0.0, %v3672
        %3674 = vmatprep.mubr.f32.mxu0 0.0
        %3675 = vmatmul.mubr.f32.gmra.mrb[0].mxu0 %v3428
        %v3676 = vpop.f32.mrb[0].mxu0
        %v3677 = vadd.f32 0.0, %v3676
        %v3678 = vpop.f32.mrb[0].mxu0
        %v3679 = vadd.f32 0.0, %v3678
        %3680 = vmatprep.mubr.f32.mxu0 0.0
        %3681 = vmatmul.mubr.f32.gmra.mrb[0].mxu0 %v3431
        %v3682 = vpop.f32.mrb[0].mxu0
        %v3683 = vadd.f32 0.0, %v3682
        %v3684 = vpop.f32.mrb[0].mxu0
        %v3685 = vadd.f32 0.0, %v3684
        %3686 = vmatprep.mubr.f32.mxu0 0.0
        %3687 = vmatmul.mubr.f32.gmra.mrb[0].mxu0 %v3434
        %v3688 = vpop.f32.mrb[0].mxu0
        %v3689 = vadd.f32 0.0, %v3688
        %v3690 = vpop.f32.mrb[0].mxu0
        %v3691 = vadd.f32 0.0, %v3690
        %3692 = vdwg.mxu0
        %v3693 = vmul.f32 %v3503, %v857
        %v3694 = vmul.f32 %v3505, %v858
        %v3695 = vmul.f32 %v3509, %v859
        %v3696 = vmul.f32 %v3511, %v860
        %v3697 = vmul.f32 %v3515, %v861
        %v3698 = vmul.f32 %v3517, %v862
        %v3699 = vmul.f32 %v3521, %v863
        %v3700 = vmul.f32 %v3523, %v864
        %v3701 = vmul.f32 %v3527, %v865
        %v3702 = vmul.f32 %v3529, %v866
        %v3703 = vmul.f32 %v3533, %v867
        %v3704 = vmul.f32 %v3535, %v868
        %v3705 = vmul.f32 %v3539, %v869
        %v3706 = vmul.f32 %v3541, %v870
        %v3707 = vmul.f32 %v3545, %v871
        %v3708 = vmul.f32 %v3547, %v872
        %v3709 = vmul.f32 %v3551, %v873
        %v3710 = vmul.f32 %v3553, %v874
        %v3711 = vmul.f32 %v3557, %v875
        %v3712 = vmul.f32 %v3559, %v876
        %v3713 = vmul.f32 %v3563, %v877
        %v3714 = vmul.f32 %v3565, %v878
        %v3715 = vmul.f32 %v3569, %v879
        %v3716 = vmul.f32 %v3571, %v880
        %v3717 = vmul.f32 %v3575, %v881
        %v3718 = vmul.f32 %v3577, %v882
        %v3719 = vmul.f32 %v3581, %v883
        %v3720 = vmul.f32 %v3583, %v884
        %v3721 = vmul.f32 %v3587, %v885
        %v3722 = vmul.f32 %v3589, %v886
        %v3723 = vmul.f32 %v3593, %v887
        %v3724 = vmul.f32 %v3595, %v888
        %v3725 = vmul.f32 %v3599, %v889
        %v3726 = vmul.f32 %v3601, %v890
        %v3727 = vmul.f32 %v3605, %v891
        %v3728 = vmul.f32 %v3607, %v892
        %v3729 = vmul.f32 %v3611, %v893
        %v3730 = vmul.f32 %v3613, %v894
        %v3731 = vmul.f32 %v3617, %v895
        %v3732 = vmul.f32 %v3619, %v896
        %v3733 = vmul.f32 %v3623, %v897
        %v3734 = vmul.f32 %v3625, %v898
        %v3735 = vmul.f32 %v3629, %v899
        %v3736 = vmul.f32 %v3631, %v900
        %v3737 = vmul.f32 %v3635, %v901
        %v3738 = vmul.f32 %v3637, %v902
        %v3739 = vmul.f32 %v3641, %v903
        %v3740 = vmul.f32 %v3643, %v904
        %v3741 = vmul.f32 %v3647, %v905
        %v3742 = vmul.f32 %v3649, %v906
        %v3743 = vmul.f32 %v3653, %v907
        %v3744 = vmul.f32 %v3655, %v908
        %v3745 = vmul.f32 %v3659, %v909
        %v3746 = vmul.f32 %v3661, %v910
        %v3747 = vmul.f32 %v3665, %v911
        %v3748 = vmul.f32 %v3667, %v912
        %v3749 = vmul.f32 %v3671, %v913
        %v3750 = vmul.f32 %v3673, %v914
        %v3751 = vmul.f32 %v3677, %v915
        %v3752 = vmul.f32 %v3679, %v916
        %v3753 = vmul.f32 %v3683, %v917
        %v3754 = vmul.f32 %v3685, %v918
        %v3755 = vmul.f32 %v3689, %v919
        %v3756 = vmul.f32 %v3691, %v920
        %3757 = vmatprep.subr.mxu0 0.0
        %3758 = vmatpush1.msra.mxu0 %v3182
        %3759 = vmatprep.subr.mxu0 0.0
        %3760 = vmatpush1.msra.mxu0 %v3187
        %3761 = vmatprep.subr.mxu0 0.0
        %3762 = vmatpush1.msra.mxu0 %v3192
        %3763 = vmatprep.subr.mxu0 0.0
        %3764 = vmatpush1.msra.mxu0 %v3197
        %3765 = vmatprep.subr.mxu0 0.0
        %3766 = vmatpush1.msra.mxu0 %v3202
        %3767 = vmatprep.subr.mxu0 0.0
        %3768 = vmatpush1.msra.mxu0 %v3207
        %3769 = vmatprep.subr.mxu0 0.0
        %3770 = vmatpush1.msra.mxu0 %v3212
        %3771 = vmatprep.subr.mxu0 0.0
        %3772 = vmatpush1.msra.mxu0 %v3217
        %3773 = vmatprep.subr.mxu0 0.0
        %3774 = vmatpush1.msra.mxu0 %v3222
        %3775 = vmatprep.subr.mxu0 0.0
        %3776 = vmatpush1.msra.mxu0 %v3227
        %3777 = vmatprep.subr.mxu0 0.0
        %3778 = vmatpush1.msra.mxu0 %v3232
        %3779 = vmatprep.subr.mxu0 0.0
        %3780 = vmatpush1.msra.mxu0 %v3237
        %3781 = vmatprep.subr.mxu0 0.0
        %3782 = vmatpush1.msra.mxu0 %v3242
        %3783 = vmatprep.subr.mxu0 0.0
        %3784 = vmatpush1.msra.mxu0 %v3247
        %3785 = vmatprep.subr.mxu0 0.0
        %3786 = vmatpush1.msra.mxu0 %v3252
        %3787 = vmatprep.subr.mxu0 0.0
        %3788 = vmatpush1.msra.mxu0 %v3257
        %3789 = vmatprep.subr.mxu0 0.0
        %3790 = vmatpush1.msra.mxu0 %v3262
        %3791 = vmatprep.subr.mxu0 0.0
        %3792 = vmatpush1.msra.mxu0 %v3267
        %3793 = vmatprep.subr.mxu0 0.0
        %3794 = vmatpush1.msra.mxu0 %v3272
        %3795 = vmatprep.subr.mxu0 0.0
        %3796 = vmatpush1.msra.mxu0 %v3277
        %3797 = vmatprep.subr.mxu0 0.0
        %3798 = vmatpush1.msra.mxu0 %v3282
        %3799 = vmatprep.subr.mxu0 0.0
        %3800 = vmatpush1.msra.mxu0 %v3287
        %3801 = vmatprep.subr.mxu0 0.0
        %3802 = vmatpush1.msra.mxu0 %v3292
        %3803 = vmatprep.subr.mxu0 0.0
        %3804 = vmatpush1.msra.mxu0 %v3297
        %3805 = vmatprep.subr.mxu0 0.0
        %3806 = vmatpush1.msra.mxu0 %v3302
        %3807 = vmatprep.subr.mxu0 0.0
        %3808 = vmatpush1.msra.mxu0 %v3307
        %3809 = vmatprep.subr.mxu0 0.0
        %3810 = vmatpush1.msra.mxu0 %v3312
        %3811 = vmatprep.subr.mxu0 0.0
        %3812 = vmatpush1.msra.mxu0 %v3317
        %3813 = vmatprep.subr.mxu0 0.0
        %3814 = vmatpush1.msra.mxu0 %v3322
        %3815 = vmatprep.subr.mxu0 0.0
        %3816 = vmatpush1.msra.mxu0 %v3327
        %3817 = vmatprep.subr.mxu0 0.0
        %3818 = vmatpush1.msra.mxu0 %v3332
        %3819 = vmatprep.subr.mxu0 0.0
        %3820 = vmatpush1.msra.mxu0 %v3337
        %3821 = vmatprep.mubr.f32.mxu0 %v3694
        %3822 = vmatmul.mubr.f32.gmra.mrb[0].mxu0 %v3693
        %v3823 = vpop.f32.mrb[0].mxu0
        %v3824 = vadd.f32 0.0, %v3823
        %v3825 = vpop.f32.mrb[0].mxu0
        %3826 = vmatprep.mubr.f32.mxu0 %v3696
        %3827 = vmatmul.mubr.f32.gmra.mrb[0].mxu0 %v3695
        %v3828 = vpop.f32.mrb[0].mxu0
        %v3829 = vadd.f32 0.0, %v3828
        %v3830 = vpop.f32.mrb[0].mxu0
        %3831 = vmatprep.mubr.f32.mxu0 %v3698
        %3832 = vmatmul.mubr.f32.gmra.mrb[0].mxu0 %v3697
        %v3833 = vpop.f32.mrb[0].mxu0
        %v3834 = vadd.f32 0.0, %v3833
        %v3835 = vpop.f32.mrb[0].mxu0
        %3836 = vmatprep.mubr.f32.mxu0 %v3700
        %3837 = vmatmul.mubr.f32.gmra.mrb[0].mxu0 %v3699
        %v3838 = vpop.f32.mrb[0].mxu0
        %v3839 = vadd.f32 0.0, %v3838
        %v3840 = vpop.f32.mrb[0].mxu0
        %3841 = vmatprep.mubr.f32.mxu0 %v3702
        %3842 = vmatmul.mubr.f32.gmra.mrb[0].mxu0 %v3701
        %v3843 = vpop.f32.mrb[0].mxu0
        %v3844 = vadd.f32 0.0, %v3843
        %v3845 = vpop.f32.mrb[0].mxu0
        %3846 = vmatprep.mubr.f32.mxu0 %v3704
        %3847 = vmatmul.mubr.f32.gmra.mrb[0].mxu0 %v3703
        %v3848 = vpop.f32.mrb[0].mxu0
        %v3849 = vadd.f32 0.0, %v3848
        %v3850 = vpop.f32.mrb[0].mxu0
        %3851 = vmatprep.mubr.f32.mxu0 %v3706
        %3852 = vmatmul.mubr.f32.gmra.mrb[0].mxu0 %v3705
        %v3853 = vpop.f32.mrb[0].mxu0
        %v3854 = vadd.f32 0.0, %v3853
        %v3855 = vpop.f32.mrb[0].mxu0
        %3856 = vmatprep.mubr.f32.mxu0 %v3708
        %3857 = vmatmul.mubr.f32.gmra.mrb[0].mxu0 %v3707
        %v3858 = vpop.f32.mrb[0].mxu0
        %v3859 = vadd.f32 0.0, %v3858
        %v3860 = vpop.f32.mrb[0].mxu0
        %3861 = vmatprep.mubr.f32.mxu0 %v3710
        %3862 = vmatmul.mubr.f32.gmra.mrb[0].mxu0 %v3709
        %v3863 = vpop.f32.mrb[0].mxu0
        %v3864 = vadd.f32 0.0, %v3863
        %v3865 = vpop.f32.mrb[0].mxu0
        %3866 = vmatprep.mubr.f32.mxu0 %v3712
        %3867 = vmatmul.mubr.f32.gmra.mrb[0].mxu0 %v3711
        %v3868 = vpop.f32.mrb[0].mxu0
        %v3869 = vadd.f32 0.0, %v3868
        %v3870 = vpop.f32.mrb[0].mxu0
        %3871 = vmatprep.mubr.f32.mxu0 %v3714
        %3872 = vmatmul.mubr.f32.gmra.mrb[0].mxu0 %v3713
        %v3873 = vpop.f32.mrb[0].mxu0
        %v3874 = vadd.f32 0.0, %v3873
        %v3875 = vpop.f32.mrb[0].mxu0
        %3876 = vmatprep.mubr.f32.mxu0 %v3716
        %3877 = vmatmul.mubr.f32.gmra.mrb[0].mxu0 %v3715
        %v3878 = vpop.f32.mrb[0].mxu0
        %v3879 = vadd.f32 0.0, %v3878
        %v3880 = vpop.f32.mrb[0].mxu0
        %3881 = vmatprep.mubr.f32.mxu0 %v3718
        %3882 = vmatmul.mubr.f32.gmra.mrb[0].mxu0 %v3717
        %v3883 = vpop.f32.mrb[0].mxu0
        %v3884 = vadd.f32 0.0, %v3883
        %v3885 = vpop.f32.mrb[0].mxu0
        %3886 = vmatprep.mubr.f32.mxu0 %v3720
        %3887 = vmatmul.mubr.f32.gmra.mrb[0].mxu0 %v3719
        %v3888 = vpop.f32.mrb[0].mxu0
        %v3889 = vadd.f32 0.0, %v3888
        %v3890 = vpop.f32.mrb[0].mxu0
        %3891 = vmatprep.mubr.f32.mxu0 %v3722
        %3892 = vmatmul.mubr.f32.gmra.mrb[0].mxu0 %v3721
        %v3893 = vpop.f32.mrb[0].mxu0
        %v3894 = vadd.f32 0.0, %v3893
        %v3895 = vpop.f32.mrb[0].mxu0
        %3896 = vmatprep.mubr.f32.mxu0 %v3724
        %3897 = vmatmul.mubr.f32.gmra.mrb[0].mxu0 %v3723
        %v3898 = vpop.f32.mrb[0].mxu0
        %v3899 = vadd.f32 0.0, %v3898
        %v3900 = vpop.f32.mrb[0].mxu0
        %3901 = vmatprep.mubr.f32.mxu0 %v3726
        %3902 = vmatmul.mubr.f32.gmra.mrb[0].mxu0 %v3725
        %v3903 = vpop.f32.mrb[0].mxu0
        %v3904 = vadd.f32 0.0, %v3903
        %v3905 = vpop.f32.mrb[0].mxu0
        %3906 = vmatprep.mubr.f32.mxu0 %v3728
        %3907 = vmatmul.mubr.f32.gmra.mrb[0].mxu0 %v3727
        %v3908 = vpop.f32.mrb[0].mxu0
        %v3909 = vadd.f32 0.0, %v3908
        %v3910 = vpop.f32.mrb[0].mxu0
        %3911 = vmatprep.mubr.f32.mxu0 %v3730
        %3912 = vmatmul.mubr.f32.gmra.mrb[0].mxu0 %v3729
        %v3913 = vpop.f32.mrb[0].mxu0
        %v3914 = vadd.f32 0.0, %v3913
        %v3915 = vpop.f32.mrb[0].mxu0
        %3916 = vmatprep.mubr.f32.mxu0 %v3732
        %3917 = vmatmul.mubr.f32.gmra.mrb[0].mxu0 %v3731
        %v3918 = vpop.f32.mrb[0].mxu0
        %v3919 = vadd.f32 0.0, %v3918
        %v3920 = vpop.f32.mrb[0].mxu0
        %3921 = vmatprep.mubr.f32.mxu0 %v3734
        %3922 = vmatmul.mubr.f32.gmra.mrb[0].mxu0 %v3733
        %v3923 = vpop.f32.mrb[0].mxu0
        %v3924 = vadd.f32 0.0, %v3923
        %v3925 = vpop.f32.mrb[0].mxu0
        %3926 = vmatprep.mubr.f32.mxu0 %v3736
        %3927 = vmatmul.mubr.f32.gmra.mrb[0].mxu0 %v3735
        %v3928 = vpop.f32.mrb[0].mxu0
        %v3929 = vadd.f32 0.0, %v3928
        %v3930 = vpop.f32.mrb[0].mxu0
        %3931 = vmatprep.mubr.f32.mxu0 %v3738
        %3932 = vmatmul.mubr.f32.gmra.mrb[0].mxu0 %v3737
        %v3933 = vpop.f32.mrb[0].mxu0
        %v3934 = vadd.f32 0.0, %v3933
        %v3935 = vpop.f32.mrb[0].mxu0
        %3936 = vmatprep.mubr.f32.mxu0 %v3740
        %3937 = vmatmul.mubr.f32.gmra.mrb[0].mxu0 %v3739
        %v3938 = vpop.f32.mrb[0].mxu0
        %v3939 = vadd.f32 0.0, %v3938
        %v3940 = vpop.f32.mrb[0].mxu0
        %3941 = vmatprep.mubr.f32.mxu0 %v3742
        %3942 = vmatmul.mubr.f32.gmra.mrb[0].mxu0 %v3741
        %v3943 = vpop.f32.mrb[0].mxu0
        %v3944 = vadd.f32 0.0, %v3943
        %v3945 = vpop.f32.mrb[0].mxu0
        %3946 = vmatprep.mubr.f32.mxu0 %v3744
        %3947 = vmatmul.mubr.f32.gmra.mrb[0].mxu0 %v3743
        %v3948 = vpop.f32.mrb[0].mxu0
        %v3949 = vadd.f32 0.0, %v3948
        %v3950 = vpop.f32.mrb[0].mxu0
        %3951 = vmatprep.mubr.f32.mxu0 %v3746
        %3952 = vmatmul.mubr.f32.gmra.mrb[0].mxu0 %v3745
        %v3953 = vpop.f32.mrb[0].mxu0
        %v3954 = vadd.f32 0.0, %v3953
        %v3955 = vpop.f32.mrb[0].mxu0
        %3956 = vmatprep.mubr.f32.mxu0 %v3748
        %3957 = vmatmul.mubr.f32.gmra.mrb[0].mxu0 %v3747
        %v3958 = vpop.f32.mrb[0].mxu0
        %v3959 = vadd.f32 0.0, %v3958
        %v3960 = vpop.f32.mrb[0].mxu0
        %3961 = vmatprep.mubr.f32.mxu0 %v3750
        %3962 = vmatmul.mubr.f32.gmra.mrb[0].mxu0 %v3749
        %v3963 = vpop.f32.mrb[0].mxu0
        %v3964 = vadd.f32 0.0, %v3963
        %v3965 = vpop.f32.mrb[0].mxu0
        %3966 = vmatprep.mubr.f32.mxu0 %v3752
        %3967 = vmatmul.mubr.f32.gmra.mrb[0].mxu0 %v3751
        %v3968 = vpop.f32.mrb[0].mxu0
        %v3969 = vadd.f32 0.0, %v3968
        %v3970 = vpop.f32.mrb[0].mxu0
        %3971 = vmatprep.mubr.f32.mxu0 %v3754
        %3972 = vmatmul.mubr.f32.gmra.mrb[0].mxu0 %v3753
        %v3973 = vpop.f32.mrb[0].mxu0
        %v3974 = vadd.f32 0.0, %v3973
        %v3975 = vpop.f32.mrb[0].mxu0
        %3976 = vmatprep.mubr.f32.mxu0 %v3756
        %3977 = vmatmul.mubr.f32.gmra.mrb[0].mxu0 %v3755
        %v3978 = vpop.f32.mrb[0].mxu0
        %v3979 = vadd.f32 0.0, %v3978
        %v3980 = vpop.f32.mrb[0].mxu0
        %3981 = vdwg.mxu0
        %v3983 = vsel %vm1017, %v3824, 0
        %v3986 = vsel %vm1017, %v3829, 0
        %v3989 = vsel %vm1017, %v3834, 0
        %v3992 = vsel %vm1017, %v3839, 0
        %v3995 = vsel %vm1017, %v3844, 0
        %v3998 = vsel %vm1017, %v3849, 0
        %v4001 = vsel %vm1017, %v3854, 0
        %v4004 = vsel %vm1017, %v3859, 0
        %v4007 = vsel %vm1017, %v3864, 0
        %v4010 = vsel %vm1017, %v3869, 0
        %v4013 = vsel %vm1017, %v3874, 0
        %v4016 = vsel %vm1017, %v3879, 0
        %v4019 = vsel %vm1017, %v3884, 0
        %v4022 = vsel %vm1017, %v3889, 0
        %v4025 = vsel %vm1017, %v3894, 0
        %v4028 = vsel %vm1017, %v3899, 0
        %v4031 = vsel %vm1017, %v3904, 0
        %v4034 = vsel %vm1017, %v3909, 0
        %v4037 = vsel %vm1017, %v3914, 0
        %v4040 = vsel %vm1017, %v3919, 0
        %v4043 = vsel %vm1017, %v3924, 0
        %v4046 = vsel %vm1017, %v3929, 0
        %v4049 = vsel %vm1017, %v3934, 0
        %v4052 = vsel %vm1017, %v3939, 0
        %v4055 = vsel %vm1017, %v3944, 0
        %v4058 = vsel %vm1017, %v3949, 0
        %v4061 = vsel %vm1017, %v3954, 0
        %v4064 = vsel %vm1017, %v3959, 0
        %v4067 = vsel %vm1017, %v3964, 0
        %v4070 = vsel %vm1017, %v3969, 0
        %v4073 = vsel %vm1017, %v3974, 0
        %v4076 = vsel %vm1017, %v3979, 0
        %4078 = vmatprep.subr.mxu0 %v782
        %4079 = vmatpush1.msra.mxu0 %v781
        %4080 = vmatprep.subr.mxu0 %v784
        %4081 = vmatpush1.msra.mxu0 %v783
        %4082 = vmatprep.subr.mxu0 0.0
        %4083 = vmatpush1.msra.mxu0 0.0
        %4084 = vmatprep.subr.mxu0 0.0
        %4085 = vmatpush1.msra.mxu0 0.0
        %4086 = vmatprep.subr.mxu0 0.0
        %4087 = vmatpush1.msra.mxu0 0.0
        %4088 = vmatprep.subr.mxu0 0.0
        %4089 = vmatpush1.msra.mxu0 0.0
        %4090 = vmatprep.subr.mxu0 0.0
        %4091 = vmatpush1.msra.mxu0 0.0
        %4092 = vmatprep.subr.mxu0 0.0
        %4093 = vmatpush1.msra.mxu0 0.0
        %4094 = vmatprep.subr.mxu0 0.0
        %4095 = vmatpush1.msra.mxu0 0.0
        %4096 = vmatprep.subr.mxu0 0.0
        %4097 = vmatpush1.msra.mxu0 0.0
        %4098 = vmatprep.subr.mxu0 0.0
        %4099 = vmatpush1.msra.mxu0 0.0
        %4100 = vmatprep.subr.mxu0 0.0
        %4101 = vmatpush1.msra.mxu0 0.0
        %4102 = vmatprep.subr.mxu0 0.0
        %4103 = vmatpush1.msra.mxu0 0.0
        %4104 = vmatprep.subr.mxu0 0.0
        %4105 = vmatpush1.msra.mxu0 0.0
        %4106 = vmatprep.subr.mxu0 0.0
        %4107 = vmatpush1.msra.mxu0 0.0
        %4108 = vmatprep.subr.mxu0 0.0
        %4109 = vmatpush1.msra.mxu0 0.0
        %4110 = vmatprep.subr.mxu0 0.0
        %4111 = vmatpush1.msra.mxu0 0.0
        %4112 = vmatprep.subr.mxu0 0.0
        %4113 = vmatpush1.msra.mxu0 0.0
        %4114 = vmatprep.subr.mxu0 0.0
        %4115 = vmatpush1.msra.mxu0 0.0
        %4116 = vmatprep.subr.mxu0 0.0
        %4117 = vmatpush1.msra.mxu0 0.0
        %4118 = vmatprep.subr.mxu0 0.0
        %4119 = vmatpush1.msra.mxu0 0.0
        %4120 = vmatprep.subr.mxu0 0.0
        %4121 = vmatpush1.msra.mxu0 0.0
        %4122 = vmatprep.subr.mxu0 0.0
        %4123 = vmatpush1.msra.mxu0 0.0
        %4124 = vmatprep.subr.mxu0 0.0
        %4125 = vmatpush1.msra.mxu0 0.0
        %4126 = vmatprep.subr.mxu0 0.0
        %4127 = vmatpush1.msra.mxu0 0.0
        %4128 = vmatprep.subr.mxu0 0.0
        %4129 = vmatpush1.msra.mxu0 0.0
        %4130 = vmatprep.subr.mxu0 0.0
        %4131 = vmatpush1.msra.mxu0 0.0
        %4132 = vmatprep.subr.mxu0 0.0
        %4133 = vmatpush1.msra.mxu0 0.0
        %4134 = vmatprep.subr.mxu0 0.0
        %4135 = vmatpush1.msra.mxu0 0.0
        %4136 = vmatprep.subr.mxu0 0.0
        %4137 = vmatpush1.msra.mxu0 0.0
        %4138 = vmatprep.subr.mxu0 0.0
        %4139 = vmatpush1.msra.mxu0 0.0
        %4140 = vmatprep.subr.mxu0 0.0
        %4141 = vmatpush1.msra.mxu0 0.0
        %4142 = vmatprep.mubr.f32.mxu0 0.0
        %4143 = vmatmul.mubr.f32.gmra.mrb[0].mxu0 %v3983
        %v4144 = vpop.f32.mrb[0].mxu0
        %v4145 = vadd.f32 0.0, %v4144
        %v4146 = vpop.f32.mrb[0].mxu0
        %v4147 = vadd.f32 0.0, %v4146
        %4148 = vmatprep.mubr.f32.mxu0 0.0
        %4149 = vmatmul.mubr.f32.gmra.mrb[0].mxu0 %v3986
        %v4150 = vpop.f32.mrb[0].mxu0
        %v4151 = vadd.f32 0.0, %v4150
        %v4152 = vpop.f32.mrb[0].mxu0
        %v4153 = vadd.f32 0.0, %v4152
        %4154 = vmatprep.mubr.f32.mxu0 0.0
        %4155 = vmatmul.mubr.f32.gmra.mrb[0].mxu0 %v3989
        %v4156 = vpop.f32.mrb[0].mxu0
        %v4157 = vadd.f32 0.0, %v4156
        %v4158 = vpop.f32.mrb[0].mxu0
        %v4159 = vadd.f32 0.0, %v4158
        %4160 = vmatprep.mubr.f32.mxu0 0.0
        %4161 = vmatmul.mubr.f32.gmra.mrb[0].mxu0 %v3992
        %v4162 = vpop.f32.mrb[0].mxu0
        %v4163 = vadd.f32 0.0, %v4162
        %v4164 = vpop.f32.mrb[0].mxu0
        %v4165 = vadd.f32 0.0, %v4164
        %4166 = vmatprep.mubr.f32.mxu0 0.0
        %4167 = vmatmul.mubr.f32.gmra.mrb[0].mxu0 %v3995
        %v4168 = vpop.f32.mrb[0].mxu0
        %v4169 = vadd.f32 0.0, %v4168
        %v4170 = vpop.f32.mrb[0].mxu0
        %v4171 = vadd.f32 0.0, %v4170
        %4172 = vmatprep.mubr.f32.mxu0 0.0
        %4173 = vmatmul.mubr.f32.gmra.mrb[0].mxu0 %v3998
        %v4174 = vpop.f32.mrb[0].mxu0
        %v4175 = vadd.f32 0.0, %v4174
        %v4176 = vpop.f32.mrb[0].mxu0
        %v4177 = vadd.f32 0.0, %v4176
        %4178 = vmatprep.mubr.f32.mxu0 0.0
        %4179 = vmatmul.mubr.f32.gmra.mrb[0].mxu0 %v4001
        %v4180 = vpop.f32.mrb[0].mxu0
        %v4181 = vadd.f32 0.0, %v4180
        %v4182 = vpop.f32.mrb[0].mxu0
        %v4183 = vadd.f32 0.0, %v4182
        %4184 = vmatprep.mubr.f32.mxu0 0.0
        %4185 = vmatmul.mubr.f32.gmra.mrb[0].mxu0 %v4004
        %v4186 = vpop.f32.mrb[0].mxu0
        %v4187 = vadd.f32 0.0, %v4186
        %v4188 = vpop.f32.mrb[0].mxu0
        %v4189 = vadd.f32 0.0, %v4188
        %4190 = vmatprep.mubr.f32.mxu0 0.0
        %4191 = vmatmul.mubr.f32.gmra.mrb[0].mxu0 %v4007
        %v4192 = vpop.f32.mrb[0].mxu0
        %v4193 = vadd.f32 0.0, %v4192
        %v4194 = vpop.f32.mrb[0].mxu0
        %v4195 = vadd.f32 0.0, %v4194
        %4196 = vmatprep.mubr.f32.mxu0 0.0
        %4197 = vmatmul.mubr.f32.gmra.mrb[0].mxu0 %v4010
        %v4198 = vpop.f32.mrb[0].mxu0
        %v4199 = vadd.f32 0.0, %v4198
        %v4200 = vpop.f32.mrb[0].mxu0
        %v4201 = vadd.f32 0.0, %v4200
        %4202 = vmatprep.mubr.f32.mxu0 0.0
        %4203 = vmatmul.mubr.f32.gmra.mrb[0].mxu0 %v4013
        %v4204 = vpop.f32.mrb[0].mxu0
        %v4205 = vadd.f32 0.0, %v4204
        %v4206 = vpop.f32.mrb[0].mxu0
        %v4207 = vadd.f32 0.0, %v4206
        %4208 = vmatprep.mubr.f32.mxu0 0.0
        %4209 = vmatmul.mubr.f32.gmra.mrb[0].mxu0 %v4016
        %v4210 = vpop.f32.mrb[0].mxu0
        %v4211 = vadd.f32 0.0, %v4210
        %v4212 = vpop.f32.mrb[0].mxu0
        %v4213 = vadd.f32 0.0, %v4212
        %4214 = vmatprep.mubr.f32.mxu0 0.0
        %4215 = vmatmul.mubr.f32.gmra.mrb[0].mxu0 %v4019
        %v4216 = vpop.f32.mrb[0].mxu0
        %v4217 = vadd.f32 0.0, %v4216
        %v4218 = vpop.f32.mrb[0].mxu0
        %v4219 = vadd.f32 0.0, %v4218
        %4220 = vmatprep.mubr.f32.mxu0 0.0
        %4221 = vmatmul.mubr.f32.gmra.mrb[0].mxu0 %v4022
        %v4222 = vpop.f32.mrb[0].mxu0
        %v4223 = vadd.f32 0.0, %v4222
        %v4224 = vpop.f32.mrb[0].mxu0
        %v4225 = vadd.f32 0.0, %v4224
        %4226 = vmatprep.mubr.f32.mxu0 0.0
        %4227 = vmatmul.mubr.f32.gmra.mrb[0].mxu0 %v4025
        %v4228 = vpop.f32.mrb[0].mxu0
        %v4229 = vadd.f32 0.0, %v4228
        %v4230 = vpop.f32.mrb[0].mxu0
        %v4231 = vadd.f32 0.0, %v4230
        %4232 = vmatprep.mubr.f32.mxu0 0.0
        %4233 = vmatmul.mubr.f32.gmra.mrb[0].mxu0 %v4028
        %v4234 = vpop.f32.mrb[0].mxu0
        %v4235 = vadd.f32 0.0, %v4234
        %v4236 = vpop.f32.mrb[0].mxu0
        %v4237 = vadd.f32 0.0, %v4236
        %4238 = vmatprep.mubr.f32.mxu0 0.0
        %4239 = vmatmul.mubr.f32.gmra.mrb[0].mxu0 %v4031
        %v4240 = vpop.f32.mrb[0].mxu0
        %v4241 = vadd.f32 0.0, %v4240
        %v4242 = vpop.f32.mrb[0].mxu0
        %v4243 = vadd.f32 0.0, %v4242
        %4244 = vmatprep.mubr.f32.mxu0 0.0
        %4245 = vmatmul.mubr.f32.gmra.mrb[0].mxu0 %v4034
        %v4246 = vpop.f32.mrb[0].mxu0
        %v4247 = vadd.f32 0.0, %v4246
        %v4248 = vpop.f32.mrb[0].mxu0
        %v4249 = vadd.f32 0.0, %v4248
        %4250 = vmatprep.mubr.f32.mxu0 0.0
        %4251 = vmatmul.mubr.f32.gmra.mrb[0].mxu0 %v4037
        %v4252 = vpop.f32.mrb[0].mxu0
        %v4253 = vadd.f32 0.0, %v4252
        %v4254 = vpop.f32.mrb[0].mxu0
        %v4255 = vadd.f32 0.0, %v4254
        %4256 = vmatprep.mubr.f32.mxu0 0.0
        %4257 = vmatmul.mubr.f32.gmra.mrb[0].mxu0 %v4040
        %v4258 = vpop.f32.mrb[0].mxu0
        %v4259 = vadd.f32 0.0, %v4258
        %v4260 = vpop.f32.mrb[0].mxu0
        %v4261 = vadd.f32 0.0, %v4260
        %4262 = vmatprep.mubr.f32.mxu0 0.0
        %4263 = vmatmul.mubr.f32.gmra.mrb[0].mxu0 %v4043
        %v4264 = vpop.f32.mrb[0].mxu0
        %v4265 = vadd.f32 0.0, %v4264
        %v4266 = vpop.f32.mrb[0].mxu0
        %v4267 = vadd.f32 0.0, %v4266
        %4268 = vmatprep.mubr.f32.mxu0 0.0
        %4269 = vmatmul.mubr.f32.gmra.mrb[0].mxu0 %v4046
        %v4270 = vpop.f32.mrb[0].mxu0
        %v4271 = vadd.f32 0.0, %v4270
        %v4272 = vpop.f32.mrb[0].mxu0
        %v4273 = vadd.f32 0.0, %v4272
        %4274 = vmatprep.mubr.f32.mxu0 0.0
        %4275 = vmatmul.mubr.f32.gmra.mrb[0].mxu0 %v4049
        %v4276 = vpop.f32.mrb[0].mxu0
        %v4277 = vadd.f32 0.0, %v4276
        %v4278 = vpop.f32.mrb[0].mxu0
        %v4279 = vadd.f32 0.0, %v4278
        %4280 = vmatprep.mubr.f32.mxu0 0.0
        %4281 = vmatmul.mubr.f32.gmra.mrb[0].mxu0 %v4052
        %v4282 = vpop.f32.mrb[0].mxu0
        %v4283 = vadd.f32 0.0, %v4282
        %v4284 = vpop.f32.mrb[0].mxu0
        %v4285 = vadd.f32 0.0, %v4284
        %4286 = vmatprep.mubr.f32.mxu0 0.0
        %4287 = vmatmul.mubr.f32.gmra.mrb[0].mxu0 %v4055
        %v4288 = vpop.f32.mrb[0].mxu0
        %v4289 = vadd.f32 0.0, %v4288
        %v4290 = vpop.f32.mrb[0].mxu0
        %v4291 = vadd.f32 0.0, %v4290
        %4292 = vmatprep.mubr.f32.mxu0 0.0
        %4293 = vmatmul.mubr.f32.gmra.mrb[0].mxu0 %v4058
        %v4294 = vpop.f32.mrb[0].mxu0
        %v4295 = vadd.f32 0.0, %v4294
        %v4296 = vpop.f32.mrb[0].mxu0
        %v4297 = vadd.f32 0.0, %v4296
        %4298 = vmatprep.mubr.f32.mxu0 0.0
        %4299 = vmatmul.mubr.f32.gmra.mrb[0].mxu0 %v4061
        %v4300 = vpop.f32.mrb[0].mxu0
        %v4301 = vadd.f32 0.0, %v4300
        %v4302 = vpop.f32.mrb[0].mxu0
        %v4303 = vadd.f32 0.0, %v4302
        %4304 = vmatprep.mubr.f32.mxu0 0.0
        %4305 = vmatmul.mubr.f32.gmra.mrb[0].mxu0 %v4064
        %v4306 = vpop.f32.mrb[0].mxu0
        %v4307 = vadd.f32 0.0, %v4306
        %v4308 = vpop.f32.mrb[0].mxu0
        %v4309 = vadd.f32 0.0, %v4308
        %4310 = vmatprep.mubr.f32.mxu0 0.0
        %4311 = vmatmul.mubr.f32.gmra.mrb[0].mxu0 %v4067
        %v4312 = vpop.f32.mrb[0].mxu0
        %v4313 = vadd.f32 0.0, %v4312
        %v4314 = vpop.f32.mrb[0].mxu0
        %v4315 = vadd.f32 0.0, %v4314
        %4316 = vmatprep.mubr.f32.mxu0 0.0
        %4317 = vmatmul.mubr.f32.gmra.mrb[0].mxu0 %v4070
        %v4318 = vpop.f32.mrb[0].mxu0
        %v4319 = vadd.f32 0.0, %v4318
        %v4320 = vpop.f32.mrb[0].mxu0
        %v4321 = vadd.f32 0.0, %v4320
        %4322 = vmatprep.mubr.f32.mxu0 0.0
        %4323 = vmatmul.mubr.f32.gmra.mrb[0].mxu0 %v4073
        %v4324 = vpop.f32.mrb[0].mxu0
        %v4325 = vadd.f32 0.0, %v4324
        %v4326 = vpop.f32.mrb[0].mxu0
        %v4327 = vadd.f32 0.0, %v4326
        %4328 = vmatprep.mubr.f32.mxu0 0.0
        %4329 = vmatmul.mubr.f32.gmra.mrb[0].mxu0 %v4076
        %v4330 = vpop.f32.mrb[0].mxu0
        %v4331 = vadd.f32 0.0, %v4330
        %v4332 = vpop.f32.mrb[0].mxu0
        %v4333 = vadd.f32 0.0, %v4332
        %4334 = vdwg.mxu0
        %v4335 = vmul.f32 %v4145, %v793
        %v4336 = vmul.f32 %v4147, %v794
        %v4337 = vmul.f32 %v4151, %v795
        %v4338 = vmul.f32 %v4153, %v796
        %v4339 = vmul.f32 %v4157, %v797
        %v4340 = vmul.f32 %v4159, %v798
        %v4341 = vmul.f32 %v4163, %v799
        %v4342 = vmul.f32 %v4165, %v800
        %v4343 = vmul.f32 %v4169, %v801
        %v4344 = vmul.f32 %v4171, %v802
        %v4345 = vmul.f32 %v4175, %v803
        %v4346 = vmul.f32 %v4177, %v804
        %v4347 = vmul.f32 %v4181, %v805
        %v4348 = vmul.f32 %v4183, %v806
        %v4349 = vmul.f32 %v4187, %v807
        %v4350 = vmul.f32 %v4189, %v808
        %v4351 = vmul.f32 %v4193, %v809
        %v4352 = vmul.f32 %v4195, %v810
        %v4353 = vmul.f32 %v4199, %v811
        %v4354 = vmul.f32 %v4201, %v812
        %v4355 = vmul.f32 %v4205, %v813
        %v4356 = vmul.f32 %v4207, %v814
        %v4357 = vmul.f32 %v4211, %v815
        %v4358 = vmul.f32 %v4213, %v816
        %v4359 = vmul.f32 %v4217, %v817
        %v4360 = vmul.f32 %v4219, %v818
        %v4361 = vmul.f32 %v4223, %v819
        %v4362 = vmul.f32 %v4225, %v820
        %v4363 = vmul.f32 %v4229, %v821
        %v4364 = vmul.f32 %v4231, %v822
        %v4365 = vmul.f32 %v4235, %v823
        %v4366 = vmul.f32 %v4237, %v824
        %v4367 = vmul.f32 %v4241, %v825
        %v4368 = vmul.f32 %v4243, %v826
        %v4369 = vmul.f32 %v4247, %v827
        %v4370 = vmul.f32 %v4249, %v828
        %v4371 = vmul.f32 %v4253, %v829
        %v4372 = vmul.f32 %v4255, %v830
        %v4373 = vmul.f32 %v4259, %v831
        %v4374 = vmul.f32 %v4261, %v832
        %v4375 = vmul.f32 %v4265, %v833
        %v4376 = vmul.f32 %v4267, %v834
        %v4377 = vmul.f32 %v4271, %v835
        %v4378 = vmul.f32 %v4273, %v836
        %v4379 = vmul.f32 %v4277, %v837
        %v4380 = vmul.f32 %v4279, %v838
        %v4381 = vmul.f32 %v4283, %v839
        %v4382 = vmul.f32 %v4285, %v840
        %v4383 = vmul.f32 %v4289, %v841
        %v4384 = vmul.f32 %v4291, %v842
        %v4385 = vmul.f32 %v4295, %v843
        %v4386 = vmul.f32 %v4297, %v844
        %v4387 = vmul.f32 %v4301, %v845
        %v4388 = vmul.f32 %v4303, %v846
        %v4389 = vmul.f32 %v4307, %v847
        %v4390 = vmul.f32 %v4309, %v848
        %v4391 = vmul.f32 %v4313, %v849
        %v4392 = vmul.f32 %v4315, %v850
        %v4393 = vmul.f32 %v4319, %v851
        %v4394 = vmul.f32 %v4321, %v852
        %v4395 = vmul.f32 %v4325, %v853
        %v4396 = vmul.f32 %v4327, %v854
        %v4397 = vmul.f32 %v4331, %v855
        %v4398 = vmul.f32 %v4333, %v856
        %4399 = vmatprep.subr.mxu0 %v4336
        %4400 = vmatpush1.msra.mxu0 %v4335
        %4401 = vmatprep.subr.mxu0 %v4338
        %4402 = vmatpush1.msra.mxu0 %v4337
        %4403 = vmatprep.subr.mxu0 %v4340
        %4404 = vmatpush1.msra.mxu0 %v4339
        %4405 = vmatprep.subr.mxu0 %v4342
        %4406 = vmatpush1.msra.mxu0 %v4341
        %4407 = vmatprep.subr.mxu0 %v4344
        %4408 = vmatpush1.msra.mxu0 %v4343
        %4409 = vmatprep.subr.mxu0 %v4346
        %4410 = vmatpush1.msra.mxu0 %v4345
        %4411 = vmatprep.subr.mxu0 %v4348
        %4412 = vmatpush1.msra.mxu0 %v4347
        %4413 = vmatprep.subr.mxu0 %v4350
        %4414 = vmatpush1.msra.mxu0 %v4349
        %4415 = vmatprep.subr.mxu0 %v4352
        %4416 = vmatpush1.msra.mxu0 %v4351
        %4417 = vmatprep.subr.mxu0 %v4354
        %4418 = vmatpush1.msra.mxu0 %v4353
        %4419 = vmatprep.subr.mxu0 %v4356
        %4420 = vmatpush1.msra.mxu0 %v4355
        %4421 = vmatprep.subr.mxu0 %v4358
        %4422 = vmatpush1.msra.mxu0 %v4357
        %4423 = vmatprep.subr.mxu0 %v4360
        %4424 = vmatpush1.msra.mxu0 %v4359
        %4425 = vmatprep.subr.mxu0 %v4362
        %4426 = vmatpush1.msra.mxu0 %v4361
        %4427 = vmatprep.subr.mxu0 %v4364
        %4428 = vmatpush1.msra.mxu0 %v4363
        %4429 = vmatprep.subr.mxu0 %v4366
        %4430 = vmatpush1.msra.mxu0 %v4365
        %4431 = vmatprep.subr.mxu0 %v4368
        %4432 = vmatpush1.msra.mxu0 %v4367
        %4433 = vmatprep.subr.mxu0 %v4370
        %4434 = vmatpush1.msra.mxu0 %v4369
        %4435 = vmatprep.subr.mxu0 %v4372
        %4436 = vmatpush1.msra.mxu0 %v4371
        %4437 = vmatprep.subr.mxu0 %v4374
        %4438 = vmatpush1.msra.mxu0 %v4373
        %4439 = vmatprep.subr.mxu0 %v4376
        %4440 = vmatpush1.msra.mxu0 %v4375
        %4441 = vmatprep.subr.mxu0 %v4378
        %4442 = vmatpush1.msra.mxu0 %v4377
        %4443 = vmatprep.subr.mxu0 %v4380
        %4444 = vmatpush1.msra.mxu0 %v4379
        %4445 = vmatprep.subr.mxu0 %v4382
        %4446 = vmatpush1.msra.mxu0 %v4381
        %4447 = vmatprep.subr.mxu0 %v4384
        %4448 = vmatpush1.msra.mxu0 %v4383
        %4449 = vmatprep.subr.mxu0 %v4386
        %4450 = vmatpush1.msra.mxu0 %v4385
        %4451 = vmatprep.subr.mxu0 %v4388
        %4452 = vmatpush1.msra.mxu0 %v4387
        %4453 = vmatprep.subr.mxu0 %v4390
        %4454 = vmatpush1.msra.mxu0 %v4389
        %4455 = vmatprep.subr.mxu0 %v4392
        %4456 = vmatpush1.msra.mxu0 %v4391
        %4457 = vmatprep.subr.mxu0 %v4394
        %4458 = vmatpush1.msra.mxu0 %v4393
        %4459 = vmatprep.subr.mxu0 %v4396
        %4460 = vmatpush1.msra.mxu0 %v4395
        %4461 = vmatprep.subr.mxu0 %v4398
        %4462 = vmatpush1.msra.mxu0 %v4397
        %4463 = vmatprep.mubr.f32.mxu0 %v786
        %4464 = vmatmul.mubr.f32.gmra.mrb[0].mxu0 %v785
        %v4465 = vpop.f32.mrb[0].mxu0
        %v4466 = vadd.f32 0.0, %v4465
        %v4467 = vpop.f32.mrb[0].mxu0
        %v4468 = vadd.f32 0.0, %v4467
        %4469 = vmatprep.mubr.f32.mxu0 %v788
        %4470 = vmatmul.mubr.f32.gmra.mrb[0].mxu0 %v787
        %v4471 = vpop.f32.mrb[0].mxu0
        %v4472 = vadd.f32 0.0, %v4471
        %v4473 = vpop.f32.mrb[0].mxu0
        %v4474 = vadd.f32 0.0, %v4473
        %4475 = vdwg.mxu0
        %4476 = vset.pattern.permute.xlu0 6
        %4477 = vperm.xlu0 %4476, %v2041
        %v4478 = vpop.permute.xlu0 %4477
        %4480 = vset.pattern.permute.xlu0 6
        %4481 = vperm.xlu0 %4480, %v2042
        %v4482 = vpop.permute.xlu0 %4481
        %v4484 = vmul.f32 %v4478, %v2068
        %v4485 = vmul.f32 %v4478, %v2069
        %v4486 = vmul.f32 %v4482, %v2070
        %v4487 = vmul.f32 %v4482, %v2071
        %4488 = vset.pattern.permute.xlu0 7
        %4489 = vperm.xlu0 %4488, %v2041
        %v4490 = vpop.permute.xlu0 %4489
        %4492 = vset.pattern.permute.xlu0 7
        %4493 = vperm.xlu0 %4492, %v2042
        %v4494 = vpop.permute.xlu0 %4493
        %v4496 = vmul.f32 %v4490, %v4466
        %v4497 = vmul.f32 %v4490, %v4468
        %v4498 = vmul.f32 %v4494, %v4472
        %v4499 = vmul.f32 %v4494, %v4474
        %v4500 = vadd.f32 %v4484, %v4496
        %v4501 = vadd.f32 %v4485, %v4497
        %v4502 = vadd.f32 %v4486, %v4498
        %v4503 = vadd.f32 %v4487, %v4499
        %4504 = vset.pattern.permute.xlu0 2
        %4505 = vperm.xlu0 %4504, %v2041
        %v4506 = vpop.permute.xlu0 %4505
        %4508 = vset.pattern.permute.xlu0 2
        %4509 = vperm.xlu0 %4508, %v2042
        %v4510 = vpop.permute.xlu0 %4509
        %v4512 = vadd.f32 %v4500, %v4506
        %v4513 = vadd.f32 %v4501, %v4506
        %v4514 = vadd.f32 %v4502, %v4510
        %v4515 = vadd.f32 %v4503, %v4510
        %v4516 = vadd.f32 %v4512, %v4513
        %4517 = vadd.xlane.f32.xlu0 %v4516
        %v4518 = vpop.xlane.xlu0 %4517
        %v4519 = vadd.f32 %v4514, %v4515
        %4520 = vadd.xlane.f32.xlu0 %v4519
        %v4521 = vpop.xlane.xlu0 %4520
        %v4522 = vrcp.pop 256.0
        %v4523 = vmul.f32 %v4518, %v4522
        %v4524 = vmul.f32 %v4521, %v4522
        %v4525 = vsub.f32 %v4512, %v4523
        %v4526 = vsub.f32 %v4513, %v4523
        %v4527 = vsub.f32 %v4514, %v4524
        %v4528 = vsub.f32 %v4515, %v4524
        %v4529 = vmul.f32 %v4525, %v4525
        %v4530 = vmul.f32 %v4526, %v4526
        %v4531 = vmul.f32 %v4527, %v4527
        %v4532 = vmul.f32 %v4528, %v4528
        %v4533 = vadd.f32 %v4529, %v4530
        %4534 = vadd.xlane.f32.xlu0 %v4533
        %v4535 = vpop.xlane.xlu0 %4534
        %v4536 = vadd.f32 %v4531, %v4532
        %4537 = vadd.xlane.f32.xlu0 %v4536
        %v4538 = vpop.xlane.xlu0 %4537
        %v4539 = vmul.f32 %v4535, %v4522
        %v4540 = vmul.f32 %v4538, %v4522
        %4541 = vset.pattern.permute.xlu0 4
        %4542 = vperm.xlu0 %4541, %v2041
        %v4543 = vpop.permute.xlu0 %4542
        %4545 = vset.pattern.permute.xlu0 4
        %4546 = vperm.xlu0 %4545, %v2042
        %v4547 = vpop.permute.xlu0 %4546
        %v4549 = vmul.f32 %v4543, %v4525
        %v4550 = vmul.f32 %v4543, %v4526
        %v4551 = vmul.f32 %v4547, %v4527
        %v4552 = vmul.f32 %v4547, %v4528
        %v4553 = vadd.f32 %v4539, 1e-06
        %v4554 = vadd.f32 %v4540, 1e-06
        %v4555 = vrsqrt.pop %v4553
        %v4556 = vrsqrt.pop %v4554
        %v4557 = vmul.f32 %v4549, %v4555
        %v4558 = vmul.f32 %v4550, %v4555
        %v4559 = vmul.f32 %v4551, %v4556
        %v4560 = vmul.f32 %v4552, %v4556
        %4561 = vset.pattern.permute.xlu0 5
        %4562 = vperm.xlu0 %4561, %v2041
        %v4563 = vpop.permute.xlu0 %4562
        %4565 = vset.pattern.permute.xlu0 5
        %4566 = vperm.xlu0 %4565, %v2042
        %v4567 = vpop.permute.xlu0 %4566
        %v4569 = vadd.f32 %v4557, %v4563
        %v4570 = vadd.f32 %v4558, %v4563
        %v4571 = vadd.f32 %v4559, %v4567
        %v4572 = vadd.f32 %v4560, %v4567
        %v4573 = vmax.f32 %v4569, 0.0
        %v4574 = vmax.f32 %v4570, 0.0
        %v4575 = vmax.f32 %v4571, 0.0
        %v4576 = vmax.f32 %v4572, 0.0
        %v4577 = vadd.f32 %v4573, %v2037
        %v4578 = vadd.f32 %v4574, %v2038
        %v4579 = vadd.f32 %v4575, %v2039
        %v4580 = vadd.f32 %v4576, %v2040
        %4581 = vset.pattern.permute.xlu0 3
        %4582 = vperm.xlu0 %4581, %v2041
        %v4583 = vpop.permute.xlu0 %4582
        %4585 = vset.pattern.permute.xlu0 3
        %4586 = vperm.xlu0 %4585, %v2042
        %v4587 = vpop.permute.xlu0 %4586
        %v4589 = vadd.f32 %v4577, %v4583
        %v4590 = vadd.f32 %v4578, %v4583
        %v4591 = vadd.f32 %v4579, %v4587
        %v4592 = vadd.f32 %v4580, %v4587
        %v4593 = vadd.f32 %v4589, %v4590
        %4594 = vadd.xlane.f32.xlu0 %v4593
        %v4595 = vpop.xlane.xlu0 %4594
        %v4596 = vadd.f32 %v4591, %v4592
        %4597 = vadd.xlane.f32.xlu0 %v4596
        %v4598 = vpop.xlane.xlu0 %4597
        %v4599 = vld [vmem:[%s12] sm:$0xff]
        %v4600 = vld [vmem:[%s12 + $0x8] sm:$0xff]
        %v4601 = vld [vmem:[%s12 + $0x10] sm:$0xff]
        %v4602 = vld [vmem:[%s12 + $0x18] sm:$0xff]
        %v4603 = vld [vmem:[%s12 + $0x20] sm:$0xff]
        %v4604 = vld [vmem:[%s12 + $0x28] sm:$0xff]
        %v4605 = vld [vmem:[%s12 + $0x30] sm:$0xff]
        %v4606 = vld [vmem:[%s12 + $0x38] sm:$0xff]
        %v4607 = vld [vmem:[%s12 + $0x40] sm:$0xff]
        %v4608 = vld [vmem:[%s12 + $0x48] sm:$0xff]
        %v4609 = vld [vmem:[%s12 + $0x50] sm:$0xff]
        %v4610 = vld [vmem:[%s12 + $0x58] sm:$0xff]
        %v4611 = vld [vmem:[%s12 + $0x60] sm:$0xff]
        %v4612 = vld [vmem:[%s12 + $0x68] sm:$0xff]
        %v4613 = vld [vmem:[%s12 + $0x70] sm:$0xff]
        %v4614 = vld [vmem:[%s12 + $0x78] sm:$0xff]
        %v4616 = vsel %vm1017, %v4599, 0
        %v4619 = vsel %vm1017, %v4600, 0
        %v4622 = vsel %vm1017, %v4601, 0
        %v4625 = vsel %vm1017, %v4602, 0
        %v4628 = vsel %vm1017, %v4603, 0
        %v4631 = vsel %vm1017, %v4604, 0
        %v4634 = vsel %vm1017, %v4605, 0
        %v4637 = vsel %vm1017, %v4606, 0
        %v4640 = vsel %vm1017, %v4607, 0
        %v4643 = vsel %vm1017, %v4608, 0
        %v4646 = vsel %vm1017, %v4609, 0
        %v4649 = vsel %vm1017, %v4610, 0
        %v4652 = vsel %vm1017, %v4611, 0
        %v4655 = vsel %vm1017, %v4612, 0
        %v4658 = vsel %vm1017, %v4613, 0
        %v4661 = vsel %vm1017, %v4614, 0
        %4663 = vmatprep.subr.mxu0 %v4590
        %4664 = vmatpush1.msra.mxu0 %v4589
        %4665 = vmatprep.subr.mxu0 %v4592
        %4666 = vmatpush1.msra.mxu0 %v4591
        %4667 = vmatprep.subr.mxu0 0.0
        %4668 = vmatpush1.msra.mxu0 0.0
        %4669 = vmatprep.subr.mxu0 0.0
        %4670 = vmatpush1.msra.mxu0 0.0
        %4671 = vmatprep.subr.mxu0 0.0
        %4672 = vmatpush1.msra.mxu0 0.0
        %4673 = vmatprep.subr.mxu0 0.0
        %4674 = vmatpush1.msra.mxu0 0.0
        %4675 = vmatprep.subr.mxu0 0.0
        %4676 = vmatpush1.msra.mxu0 0.0
        %4677 = vmatprep.subr.mxu0 0.0
        %4678 = vmatpush1.msra.mxu0 0.0
        %4679 = vmatprep.subr.mxu0 0.0
        %4680 = vmatpush1.msra.mxu0 0.0
        %4681 = vmatprep.subr.mxu0 0.0
        %4682 = vmatpush1.msra.mxu0 0.0
        %4683 = vmatprep.subr.mxu0 0.0
        %4684 = vmatpush1.msra.mxu0 0.0
        %4685 = vmatprep.subr.mxu0 0.0
        %4686 = vmatpush1.msra.mxu0 0.0
        %4687 = vmatprep.subr.mxu0 0.0
        %4688 = vmatpush1.msra.mxu0 0.0
        %4689 = vmatprep.subr.mxu0 0.0
        %4690 = vmatpush1.msra.mxu0 0.0
        %4691 = vmatprep.subr.mxu0 0.0
        %4692 = vmatpush1.msra.mxu0 0.0
        %4693 = vmatprep.subr.mxu0 0.0
        %4694 = vmatpush1.msra.mxu0 0.0
        %4695 = vmatprep.subr.mxu0 0.0
        %4696 = vmatpush1.msra.mxu0 0.0
        %4697 = vmatprep.subr.mxu0 0.0
        %4698 = vmatpush1.msra.mxu0 0.0
        %4699 = vmatprep.subr.mxu0 0.0
        %4700 = vmatpush1.msra.mxu0 0.0
        %4701 = vmatprep.subr.mxu0 0.0
        %4702 = vmatpush1.msra.mxu0 0.0
        %4703 = vmatprep.subr.mxu0 0.0
        %4704 = vmatpush1.msra.mxu0 0.0
        %4705 = vmatprep.subr.mxu0 0.0
        %4706 = vmatpush1.msra.mxu0 0.0
        %4707 = vmatprep.subr.mxu0 0.0
        %4708 = vmatpush1.msra.mxu0 0.0
        %4709 = vmatprep.subr.mxu0 0.0
        %4710 = vmatpush1.msra.mxu0 0.0
        %4711 = vmatprep.subr.mxu0 0.0
        %4712 = vmatpush1.msra.mxu0 0.0
        %4713 = vmatprep.subr.mxu0 0.0
        %4714 = vmatpush1.msra.mxu0 0.0
        %4715 = vmatprep.subr.mxu0 0.0
        %4716 = vmatpush1.msra.mxu0 0.0
        %4717 = vmatprep.subr.mxu0 0.0
        %4718 = vmatpush1.msra.mxu0 0.0
        %4719 = vmatprep.subr.mxu0 0.0
        %4720 = vmatpush1.msra.mxu0 0.0
        %4721 = vmatprep.subr.mxu0 0.0
        %4722 = vmatpush1.msra.mxu0 0.0
        %4723 = vmatprep.subr.mxu0 0.0
        %4724 = vmatpush1.msra.mxu0 0.0
        %4725 = vmatprep.subr.mxu0 0.0
        %4726 = vmatpush1.msra.mxu0 0.0
        %4727 = vmatprep.mubr.f32.mxu0 0.0
        %4728 = vmatmul.mubr.f32.gmra.mrb[0].mxu0 %v4616
        %v4729 = vpop.f32.mrb[0].mxu0
        %v4730 = vadd.f32 0.0, %v4729
        %v4731 = vpop.f32.mrb[0].mxu0
        %v4732 = vadd.f32 0.0, %v4731
        %4733 = vmatprep.mubr.f32.mxu0 0.0
        %4734 = vmatmul.mubr.f32.gmra.mrb[0].mxu0 %v4619
        %v4735 = vpop.f32.mrb[0].mxu0
        %v4736 = vadd.f32 0.0, %v4735
        %v4737 = vpop.f32.mrb[0].mxu0
        %v4738 = vadd.f32 0.0, %v4737
        %4739 = vmatprep.mubr.f32.mxu0 0.0
        %4740 = vmatmul.mubr.f32.gmra.mrb[0].mxu0 %v4622
        %v4741 = vpop.f32.mrb[0].mxu0
        %v4742 = vadd.f32 0.0, %v4741
        %v4743 = vpop.f32.mrb[0].mxu0
        %v4744 = vadd.f32 0.0, %v4743
        %4745 = vmatprep.mubr.f32.mxu0 0.0
        %4746 = vmatmul.mubr.f32.gmra.mrb[0].mxu0 %v4625
        %v4747 = vpop.f32.mrb[0].mxu0
        %v4748 = vadd.f32 0.0, %v4747
        %v4749 = vpop.f32.mrb[0].mxu0
        %v4750 = vadd.f32 0.0, %v4749
        %4751 = vmatprep.mubr.f32.mxu0 0.0
        %4752 = vmatmul.mubr.f32.gmra.mrb[0].mxu0 %v4628
        %v4753 = vpop.f32.mrb[0].mxu0
        %v4754 = vadd.f32 0.0, %v4753
        %v4755 = vpop.f32.mrb[0].mxu0
        %v4756 = vadd.f32 0.0, %v4755
        %4757 = vmatprep.mubr.f32.mxu0 0.0
        %4758 = vmatmul.mubr.f32.gmra.mrb[0].mxu0 %v4631
        %v4759 = vpop.f32.mrb[0].mxu0
        %v4760 = vadd.f32 0.0, %v4759
        %v4761 = vpop.f32.mrb[0].mxu0
        %v4762 = vadd.f32 0.0, %v4761
        %4763 = vmatprep.mubr.f32.mxu0 0.0
        %4764 = vmatmul.mubr.f32.gmra.mrb[0].mxu0 %v4634
        %v4765 = vpop.f32.mrb[0].mxu0
        %v4766 = vadd.f32 0.0, %v4765
        %v4767 = vpop.f32.mrb[0].mxu0
        %v4768 = vadd.f32 0.0, %v4767
        %4769 = vmatprep.mubr.f32.mxu0 0.0
        %4770 = vmatmul.mubr.f32.gmra.mrb[0].mxu0 %v4637
        %v4771 = vpop.f32.mrb[0].mxu0
        %v4772 = vadd.f32 0.0, %v4771
        %v4773 = vpop.f32.mrb[0].mxu0
        %v4774 = vadd.f32 0.0, %v4773
        %4775 = vmatprep.mubr.f32.mxu0 0.0
        %4776 = vmatmul.mubr.f32.gmra.mrb[0].mxu0 %v4640
        %v4777 = vpop.f32.mrb[0].mxu0
        %v4778 = vadd.f32 0.0, %v4777
        %v4779 = vpop.f32.mrb[0].mxu0
        %v4780 = vadd.f32 0.0, %v4779
        %4781 = vmatprep.mubr.f32.mxu0 0.0
        %4782 = vmatmul.mubr.f32.gmra.mrb[0].mxu0 %v4643
        %v4783 = vpop.f32.mrb[0].mxu0
        %v4784 = vadd.f32 0.0, %v4783
        %v4785 = vpop.f32.mrb[0].mxu0
        %v4786 = vadd.f32 0.0, %v4785
        %4787 = vmatprep.mubr.f32.mxu0 0.0
        %4788 = vmatmul.mubr.f32.gmra.mrb[0].mxu0 %v4646
        %v4789 = vpop.f32.mrb[0].mxu0
        %v4790 = vadd.f32 0.0, %v4789
        %v4791 = vpop.f32.mrb[0].mxu0
        %v4792 = vadd.f32 0.0, %v4791
        %4793 = vmatprep.mubr.f32.mxu0 0.0
        %4794 = vmatmul.mubr.f32.gmra.mrb[0].mxu0 %v4649
        %v4795 = vpop.f32.mrb[0].mxu0
        %v4796 = vadd.f32 0.0, %v4795
        %v4797 = vpop.f32.mrb[0].mxu0
        %v4798 = vadd.f32 0.0, %v4797
        %4799 = vmatprep.mubr.f32.mxu0 0.0
        %4800 = vmatmul.mubr.f32.gmra.mrb[0].mxu0 %v4652
        %v4801 = vpop.f32.mrb[0].mxu0
        %v4802 = vadd.f32 0.0, %v4801
        %v4803 = vpop.f32.mrb[0].mxu0
        %v4804 = vadd.f32 0.0, %v4803
        %4805 = vmatprep.mubr.f32.mxu0 0.0
        %4806 = vmatmul.mubr.f32.gmra.mrb[0].mxu0 %v4655
        %v4807 = vpop.f32.mrb[0].mxu0
        %v4808 = vadd.f32 0.0, %v4807
        %v4809 = vpop.f32.mrb[0].mxu0
        %v4810 = vadd.f32 0.0, %v4809
        %4811 = vmatprep.mubr.f32.mxu0 0.0
        %4812 = vmatmul.mubr.f32.gmra.mrb[0].mxu0 %v4658
        %v4813 = vpop.f32.mrb[0].mxu0
        %v4814 = vadd.f32 0.0, %v4813
        %v4815 = vpop.f32.mrb[0].mxu0
        %v4816 = vadd.f32 0.0, %v4815
        %4817 = vmatprep.mubr.f32.mxu0 0.0
        %4818 = vmatmul.mubr.f32.gmra.mrb[0].mxu0 %v4661
        %v4819 = vpop.f32.mrb[0].mxu0
        %v4820 = vadd.f32 0.0, %v4819
        %v4821 = vpop.f32.mrb[0].mxu0
        %v4822 = vadd.f32 0.0, %v4821
        %4823 = vdwg.mxu0
        %4824 = vmatprep.subr.mxu0 %v922
        %4825 = vmatpush1.xpose.msra.mxu0 %v921
        %4826 = vmatprep.subr.mxu0 %v924
        %4827 = vmatpush1.xpose.msra.mxu0 %v923
        %4828 = vmatprep.subr.mxu0 %v926
        %4829 = vmatpush1.xpose.msra.mxu0 %v925
        %4830 = vmatprep.subr.mxu0 %v928
        %4831 = vmatpush1.xpose.msra.mxu0 %v927
        %4832 = vmatprep.subr.mxu0 %v930
        %4833 = vmatpush1.xpose.msra.mxu0 %v929
        %4834 = vmatprep.subr.mxu0 %v932
        %4835 = vmatpush1.xpose.msra.mxu0 %v931
        %4836 = vmatprep.subr.mxu0 %v934
        %4837 = vmatpush1.xpose.msra.mxu0 %v933
        %4838 = vmatprep.subr.mxu0 %v936
        %4839 = vmatpush1.xpose.msra.mxu0 %v935
        %4840 = vmatprep.subr.mxu0 %v938
        %4841 = vmatpush1.xpose.msra.mxu0 %v937
        %4842 = vmatprep.subr.mxu0 %v940
        %4843 = vmatpush1.xpose.msra.mxu0 %v939
        %4844 = vmatprep.subr.mxu0 0.0
        %4845 = vmatpush1.xpose.msra.mxu0 0.0
        %4846 = vmatprep.subr.mxu0 0.0
        %4847 = vmatpush1.xpose.msra.mxu0 0.0
        %4848 = vmatprep.subr.mxu0 0.0
        %4849 = vmatpush1.xpose.msra.mxu0 0.0
        %4850 = vmatprep.subr.mxu0 0.0
        %4851 = vmatpush1.xpose.msra.mxu0 0.0
        %4852 = vmatprep.subr.mxu0 0.0
        %4853 = vmatpush1.xpose.msra.mxu0 0.0
        %4854 = vmatprep.subr.mxu0 0.0
        %4855 = vmatpush1.xpose.msra.mxu0 0.0
        %4856 = vmatprep.subr.mxu0 0.0
        %4857 = vmatpush1.xpose.msra.mxu0 0.0
        %4858 = vmatprep.subr.mxu0 0.0
        %4859 = vmatpush1.xpose.msra.mxu0 0.0
        %4860 = vmatprep.subr.mxu0 0.0
        %4861 = vmatpush1.xpose.msra.mxu0 0.0
        %4862 = vmatprep.subr.mxu0 0.0
        %4863 = vmatpush1.xpose.msra.mxu0 0.0
        %4864 = vmatprep.subr.mxu0 0.0
        %4865 = vmatpush1.xpose.msra.mxu0 0.0
        %4866 = vmatprep.subr.mxu0 0.0
        %4867 = vmatpush1.xpose.msra.mxu0 0.0
        %4868 = vmatprep.subr.mxu0 0.0
        %4869 = vmatpush1.xpose.msra.mxu0 0.0
        %4870 = vmatprep.subr.mxu0 0.0
        %4871 = vmatpush1.xpose.msra.mxu0 0.0
        %4872 = vmatprep.subr.mxu0 0.0
        %4873 = vmatpush1.xpose.msra.mxu0 0.0
        %4874 = vmatprep.subr.mxu0 0.0
        %4875 = vmatpush1.xpose.msra.mxu0 0.0
        %4876 = vmatprep.subr.mxu0 0.0
        %4877 = vmatpush1.xpose.msra.mxu0 0.0
        %4878 = vmatprep.subr.mxu0 0.0
        %4879 = vmatpush1.xpose.msra.mxu0 0.0
        %4880 = vmatprep.subr.mxu0 0.0
        %4881 = vmatpush1.xpose.msra.mxu0 0.0
        %4882 = vmatprep.subr.mxu0 0.0
        %4883 = vmatpush1.xpose.msra.mxu0 0.0
        %4884 = vmatprep.subr.mxu0 0.0
        %4885 = vmatpush1.xpose.msra.mxu0 0.0
        %4886 = vmatprep.subr.mxu0 0.0
        %4887 = vmatpush1.xpose.msra.mxu0 0.0
        %4888 = vmatprep.mubr.f32.mxu0 %v4590
        %4889 = vmatmul.mubr.f32.gmra.mrb[0].mxu0 %v4589
        %v4890 = vpop.f32.mrb[0].mxu0
        %v4891 = vadd.f32 0.0, %v4890
        %v4892 = vpop.f32.mrb[0].mxu0
        %4893 = vmatprep.mubr.f32.mxu0 %v4592
        %4894 = vmatmul.mubr.f32.gmra.mrb[0].mxu0 %v4591
        %v4895 = vpop.f32.mrb[0].mxu0
        %v4896 = vadd.f32 0.0, %v4895
        %v4897 = vpop.f32.mrb[0].mxu0
        %4898 = vdwg.mxu0
        %4899 = vst.msk [vmem:[#allocation2] sm:$0xff] %vm1017, %v4891
        %4900 = vst.msk [vmem:[#allocation2 + $0x8] sm:$0xff] %vm1017, %v4896
        %4903 = vrot.lane.b32.xlu0 %v4891, 112
        %v4904 = vpop.permute.xlu0 %4903
        %4905 = vrot.lane.b32.xlu0 %v4896, 112
        %v4906 = vpop.permute.xlu0 %4905
        %4909 = vst.msk [vmem:[#allocation2 + $0x10] sm:$0xff] %vm1017, %v4904
        %4910 = vst.msk [vmem:[#allocation2 + $0x18] sm:$0xff] %vm1017, %v4906
        %4911 = vrot.lane.b32.xlu0 %v4891, 96
        %v4912 = vpop.permute.xlu0 %4911
        %4913 = vrot.lane.b32.xlu0 %v4896, 96
        %v4914 = vpop.permute.xlu0 %4913
        %4917 = vst.msk [vmem:[#allocation2 + $0x20] sm:$0xff] %vm1017, %v4912
        %4918 = vst.msk [vmem:[#allocation2 + $0x28] sm:$0xff] %vm1017, %v4914
        %4919 = vrot.lane.b32.xlu0 %v4891, 80
        %v4920 = vpop.permute.xlu0 %4919
        %4921 = vrot.lane.b32.xlu0 %v4896, 80
        %v4922 = vpop.permute.xlu0 %4921
        %4925 = vst.msk [vmem:[#allocation2 + $0x30] sm:$0xff] %vm1017, %v4920
        %4926 = vst.msk [vmem:[#allocation2 + $0x38] sm:$0xff] %vm1017, %v4922
        %4927 = vrot.lane.b32.xlu0 %v4891, 64
        %v4928 = vpop.permute.xlu0 %4927
        %4929 = vrot.lane.b32.xlu0 %v4896, 64
        %v4930 = vpop.permute.xlu0 %4929
        %4933 = vst.msk [vmem:[#allocation2 + $0x40] sm:$0xff] %vm1017, %v4928
        %4934 = vst.msk [vmem:[#allocation2 + $0x48] sm:$0xff] %vm1017, %v4930
        %v4935 = vld [vmem:[%s13] sm:$0xff]
        %v4936 = vld [vmem:[%s13 + $0x8] sm:$0xff]
        %v4937 = vld [vmem:[%s13 + $0x10] sm:$0xff]
        %v4938 = vld [vmem:[%s13 + $0x18] sm:$0xff]
        %v4939 = vld [vmem:[%s13 + $0x20] sm:$0xff]
        %v4940 = vld [vmem:[%s13 + $0x28] sm:$0xff]
        %v4941 = vld [vmem:[%s13 + $0x30] sm:$0xff]
        %v4942 = vld [vmem:[%s13 + $0x38] sm:$0xff]
        %v4943 = vld [vmem:[%s13 + $0x40] sm:$0xff]
        %v4944 = vld [vmem:[%s13 + $0x48] sm:$0xff]
        %v4945 = vld [vmem:[%s13 + $0x50] sm:$0xff]
        %v4946 = vld [vmem:[%s13 + $0x58] sm:$0xff]
        %v4947 = vld [vmem:[%s13 + $0x60] sm:$0xff]
        %v4948 = vld [vmem:[%s13 + $0x68] sm:$0xff]
        %v4949 = vld [vmem:[%s13 + $0x70] sm:$0xff]
        %v4950 = vld [vmem:[%s13 + $0x78] sm:$0xff]
        %v4951 = vld [vmem:[%s13 + $0x80] sm:$0xff]
        %v4952 = vld [vmem:[%s13 + $0x88] sm:$0xff]
        %v4953 = vld [vmem:[%s13 + $0x90] sm:$0xff]
        %v4954 = vld [vmem:[%s13 + $0x98] sm:$0xff]
        %v4955 = vld [vmem:[%s13 + $0xa0] sm:$0xff]
        %v4956 = vld [vmem:[%s13 + $0xa8] sm:$0xff]
        %v4957 = vld [vmem:[%s13 + $0xb0] sm:$0xff]
        %v4958 = vld [vmem:[%s13 + $0xb8] sm:$0xff]
        %v4959 = vld [vmem:[#allocation2] sm:$0xff]
        %v4960 = vld [vmem:[#allocation2 + $0x8] sm:$0xff]
        %v4961 = vld [vmem:[#allocation2 + $0x10] sm:$0xff]
        %v4962 = vld [vmem:[#allocation2 + $0x18] sm:$0xff]
        %v4963 = vld [vmem:[#allocation2 + $0x20] sm:$0xff]
        %v4964 = vld [vmem:[#allocation2 + $0x28] sm:$0xff]
        %v4965 = vld [vmem:[#allocation2 + $0x30] sm:$0xff]
        %v4966 = vld [vmem:[#allocation2 + $0x38] sm:$0xff]
        %v4967 = vld [vmem:[#allocation2 + $0x40] sm:$0xff]
        %v4968 = vld [vmem:[#allocation2 + $0x48] sm:$0xff]
        %vm4969 = vcmask 654336
        %v4971 = vsel %vm4969, %v4935, 0
        %v4974 = vsel %vm4969, %v4936, 0
        %v4977 = vsel %vm4969, %v4937, 0
        %v4980 = vsel %vm4969, %v4938, 0
        %v4983 = vsel %vm4969, %v4939, 0
        %v4986 = vsel %vm4969, %v4940, 0
        %v4989 = vsel %vm4969, %v4941, 0
        %v4992 = vsel %vm4969, %v4942, 0
        %v4995 = vsel %vm4969, %v4943, 0
        %v4998 = vsel %vm4969, %v4944, 0
        %v5001 = vsel %vm4969, %v4945, 0
        %v5004 = vsel %vm4969, %v4946, 0
        %v5007 = vsel %vm4969, %v4947, 0
        %v5010 = vsel %vm4969, %v4948, 0
        %v5013 = vsel %vm4969, %v4949, 0
        %v5016 = vsel %vm4969, %v4950, 0
        %v5019 = vsel %vm4969, %v4951, 0
        %v5022 = vsel %vm4969, %v4952, 0
        %v5025 = vsel %vm4969, %v4953, 0
        %v5028 = vsel %vm4969, %v4954, 0
        %v5031 = vsel %vm4969, %v4955, 0
        %v5034 = vsel %vm4969, %v4956, 0
        %v5037 = vsel %vm4969, %v4957, 0
        %v5040 = vsel %vm4969, %v4958, 0
        %5042 = vmatprep.subr.mxu0 0.0
        %5043 = vmatpush1.msra.mxu0 %v4959
        %5044 = vmatprep.subr.mxu0 0.0
        %5045 = vmatpush1.msra.mxu0 %v4960
        %5046 = vmatprep.subr.mxu0 0.0
        %5047 = vmatpush1.msra.mxu0 %v4961
        %5048 = vmatprep.subr.mxu0 0.0
        %5049 = vmatpush1.msra.mxu0 %v4962
        %5050 = vmatprep.subr.mxu0 0.0
        %5051 = vmatpush1.msra.mxu0 %v4963
        %5052 = vmatprep.subr.mxu0 0.0
        %5053 = vmatpush1.msra.mxu0 %v4964
        %5054 = vmatprep.subr.mxu0 0.0
        %5055 = vmatpush1.msra.mxu0 %v4965
        %5056 = vmatprep.subr.mxu0 0.0
        %5057 = vmatpush1.msra.mxu0 %v4966
        %5058 = vmatprep.subr.mxu0 0.0
        %5059 = vmatpush1.msra.mxu0 %v4967
        %5060 = vmatprep.subr.mxu0 0.0
        %5061 = vmatpush1.msra.mxu0 %v4968
        %5062 = vmatprep.subr.mxu0 0.0
        %5063 = vmatpush1.msra.mxu0 0.0
        %5064 = vmatprep.subr.mxu0 0.0
        %5065 = vmatpush1.msra.mxu0 0.0
        %5066 = vmatprep.subr.mxu0 0.0
        %5067 = vmatpush1.msra.mxu0 0.0
        %5068 = vmatprep.subr.mxu0 0.0
        %5069 = vmatpush1.msra.mxu0 0.0
        %5070 = vmatprep.subr.mxu0 0.0
        %5071 = vmatpush1.msra.mxu0 0.0
        %5072 = vmatprep.subr.mxu0 0.0
        %5073 = vmatpush1.msra.mxu0 0.0
        %5074 = vmatprep.subr.mxu0 0.0
        %5075 = vmatpush1.msra.mxu0 0.0
        %5076 = vmatprep.subr.mxu0 0.0
        %5077 = vmatpush1.msra.mxu0 0.0
        %5078 = vmatprep.subr.mxu0 0.0
        %5079 = vmatpush1.msra.mxu0 0.0
        %5080 = vmatprep.subr.mxu0 0.0
        %5081 = vmatpush1.msra.mxu0 0.0
        %5082 = vmatprep.subr.mxu0 0.0
        %5083 = vmatpush1.msra.mxu0 0.0
        %5084 = vmatprep.subr.mxu0 0.0
        %5085 = vmatpush1.msra.mxu0 0.0
        %5086 = vmatprep.subr.mxu0 0.0
        %5087 = vmatpush1.msra.mxu0 0.0
        %5088 = vmatprep.subr.mxu0 0.0
        %5089 = vmatpush1.msra.mxu0 0.0
        %5090 = vmatprep.subr.mxu0 0.0
        %5091 = vmatpush1.msra.mxu0 0.0
        %5092 = vmatprep.subr.mxu0 0.0
        %5093 = vmatpush1.msra.mxu0 0.0
        %5094 = vmatprep.subr.mxu0 0.0
        %5095 = vmatpush1.msra.mxu0 0.0
        %5096 = vmatprep.subr.mxu0 0.0
        %5097 = vmatpush1.msra.mxu0 0.0
        %5098 = vmatprep.subr.mxu0 0.0
        %5099 = vmatpush1.msra.mxu0 0.0
        %5100 = vmatprep.subr.mxu0 0.0
        %5101 = vmatpush1.msra.mxu0 0.0
        %5102 = vmatprep.subr.mxu0 0.0
        %5103 = vmatpush1.msra.mxu0 0.0
        %5104 = vmatprep.subr.mxu0 0.0
        %5105 = vmatpush1.msra.mxu0 0.0
        %5106 = vmatprep.mubr.f32.mxu0 0.0
        %5107 = vmatmul.mubr.f32.gmra.mrb[0].mxu0 %v4971
        %v5108 = vpop.f32.mrb[0].mxu0
        %v5109 = vadd.f32 0.0, %v5108
        %v5110 = vpop.f32.mrb[0].mxu0
        %5111 = vmatprep.mubr.f32.mxu0 0.0
        %5112 = vmatmul.mubr.f32.gmra.mrb[0].mxu0 %v4974
        %v5113 = vpop.f32.mrb[0].mxu0
        %v5114 = vadd.f32 0.0, %v5113
        %v5115 = vpop.f32.mrb[0].mxu0
        %5116 = vmatprep.mubr.f32.mxu0 0.0
        %5117 = vmatmul.mubr.f32.gmra.mrb[0].mxu0 %v4977
        %v5118 = vpop.f32.mrb[0].mxu0
        %v5119 = vadd.f32 0.0, %v5118
        %v5120 = vpop.f32.mrb[0].mxu0
        %5121 = vmatprep.mubr.f32.mxu0 0.0
        %5122 = vmatmul.mubr.f32.gmra.mrb[0].mxu0 %v4980
        %v5123 = vpop.f32.mrb[0].mxu0
        %v5124 = vadd.f32 0.0, %v5123
        %v5125 = vpop.f32.mrb[0].mxu0
        %5126 = vmatprep.mubr.f32.mxu0 0.0
        %5127 = vmatmul.mubr.f32.gmra.mrb[0].mxu0 %v4983
        %v5128 = vpop.f32.mrb[0].mxu0
        %v5129 = vadd.f32 0.0, %v5128
        %v5130 = vpop.f32.mrb[0].mxu0
        %5131 = vmatprep.mubr.f32.mxu0 0.0
        %5132 = vmatmul.mubr.f32.gmra.mrb[0].mxu0 %v4986
        %v5133 = vpop.f32.mrb[0].mxu0
        %v5134 = vadd.f32 0.0, %v5133
        %v5135 = vpop.f32.mrb[0].mxu0
        %5136 = vmatprep.mubr.f32.mxu0 0.0
        %5137 = vmatmul.mubr.f32.gmra.mrb[0].mxu0 %v4989
        %v5138 = vpop.f32.mrb[0].mxu0
        %v5139 = vadd.f32 0.0, %v5138
        %v5140 = vpop.f32.mrb[0].mxu0
        %5141 = vmatprep.mubr.f32.mxu0 0.0
        %5142 = vmatmul.mubr.f32.gmra.mrb[0].mxu0 %v4992
        %v5143 = vpop.f32.mrb[0].mxu0
        %v5144 = vadd.f32 0.0, %v5143
        %v5145 = vpop.f32.mrb[0].mxu0
        %5146 = vmatprep.mubr.f32.mxu0 0.0
        %5147 = vmatmul.mubr.f32.gmra.mrb[0].mxu0 %v4995
        %v5148 = vpop.f32.mrb[0].mxu0
        %v5149 = vadd.f32 0.0, %v5148
        %v5150 = vpop.f32.mrb[0].mxu0
        %5151 = vmatprep.mubr.f32.mxu0 0.0
        %5152 = vmatmul.mubr.f32.gmra.mrb[0].mxu0 %v4998
        %v5153 = vpop.f32.mrb[0].mxu0
        %v5154 = vadd.f32 0.0, %v5153
        %v5155 = vpop.f32.mrb[0].mxu0
        %5156 = vmatprep.mubr.f32.mxu0 0.0
        %5157 = vmatmul.mubr.f32.gmra.mrb[0].mxu0 %v5001
        %v5158 = vpop.f32.mrb[0].mxu0
        %v5159 = vadd.f32 0.0, %v5158
        %v5160 = vpop.f32.mrb[0].mxu0
        %5161 = vmatprep.mubr.f32.mxu0 0.0
        %5162 = vmatmul.mubr.f32.gmra.mrb[0].mxu0 %v5004
        %v5163 = vpop.f32.mrb[0].mxu0
        %v5164 = vadd.f32 0.0, %v5163
        %v5165 = vpop.f32.mrb[0].mxu0
        %5166 = vmatprep.mubr.f32.mxu0 0.0
        %5167 = vmatmul.mubr.f32.gmra.mrb[0].mxu0 %v5007
        %v5168 = vpop.f32.mrb[0].mxu0
        %v5169 = vadd.f32 0.0, %v5168
        %v5170 = vpop.f32.mrb[0].mxu0
        %5171 = vmatprep.mubr.f32.mxu0 0.0
        %5172 = vmatmul.mubr.f32.gmra.mrb[0].mxu0 %v5010
        %v5173 = vpop.f32.mrb[0].mxu0
        %v5174 = vadd.f32 0.0, %v5173
        %v5175 = vpop.f32.mrb[0].mxu0
        %5176 = vmatprep.mubr.f32.mxu0 0.0
        %5177 = vmatmul.mubr.f32.gmra.mrb[0].mxu0 %v5013
        %v5178 = vpop.f32.mrb[0].mxu0
        %v5179 = vadd.f32 0.0, %v5178
        %v5180 = vpop.f32.mrb[0].mxu0
        %5181 = vmatprep.mubr.f32.mxu0 0.0
        %5182 = vmatmul.mubr.f32.gmra.mrb[0].mxu0 %v5016
        %v5183 = vpop.f32.mrb[0].mxu0
        %v5184 = vadd.f32 0.0, %v5183
        %v5185 = vpop.f32.mrb[0].mxu0
        %5186 = vmatprep.mubr.f32.mxu0 0.0
        %5187 = vmatmul.mubr.f32.gmra.mrb[0].mxu0 %v5019
        %v5188 = vpop.f32.mrb[0].mxu0
        %v5189 = vadd.f32 0.0, %v5188
        %v5190 = vpop.f32.mrb[0].mxu0
        %5191 = vmatprep.mubr.f32.mxu0 0.0
        %5192 = vmatmul.mubr.f32.gmra.mrb[0].mxu0 %v5022
        %v5193 = vpop.f32.mrb[0].mxu0
        %v5194 = vadd.f32 0.0, %v5193
        %v5195 = vpop.f32.mrb[0].mxu0
        %5196 = vmatprep.mubr.f32.mxu0 0.0
        %5197 = vmatmul.mubr.f32.gmra.mrb[0].mxu0 %v5025
        %v5198 = vpop.f32.mrb[0].mxu0
        %v5199 = vadd.f32 0.0, %v5198
        %v5200 = vpop.f32.mrb[0].mxu0
        %5201 = vmatprep.mubr.f32.mxu0 0.0
        %5202 = vmatmul.mubr.f32.gmra.mrb[0].mxu0 %v5028
        %v5203 = vpop.f32.mrb[0].mxu0
        %v5204 = vadd.f32 0.0, %v5203
        %v5205 = vpop.f32.mrb[0].mxu0
        %5206 = vmatprep.mubr.f32.mxu0 0.0
        %5207 = vmatmul.mubr.f32.gmra.mrb[0].mxu0 %v5031
        %v5208 = vpop.f32.mrb[0].mxu0
        %v5209 = vadd.f32 0.0, %v5208
        %v5210 = vpop.f32.mrb[0].mxu0
        %5211 = vmatprep.mubr.f32.mxu0 0.0
        %5212 = vmatmul.mubr.f32.gmra.mrb[0].mxu0 %v5034
        %v5213 = vpop.f32.mrb[0].mxu0
        %v5214 = vadd.f32 0.0, %v5213
        %v5215 = vpop.f32.mrb[0].mxu0
        %5216 = vmatprep.mubr.f32.mxu0 0.0
        %5217 = vmatmul.mubr.f32.gmra.mrb[0].mxu0 %v5037
        %v5218 = vpop.f32.mrb[0].mxu0
        %v5219 = vadd.f32 0.0, %v5218
        %v5220 = vpop.f32.mrb[0].mxu0
        %5221 = vmatprep.mubr.f32.mxu0 0.0
        %5222 = vmatmul.mubr.f32.gmra.mrb[0].mxu0 %v5040
        %v5223 = vpop.f32.mrb[0].mxu0
        %v5224 = vadd.f32 0.0, %v5223
        %v5225 = vpop.f32.mrb[0].mxu0
        %5226 = vdwg.mxu0
        %5227 = vst [vmem:[#allocation3] sm:$0xff] %v4778
        %5228 = vst [vmem:[#allocation3 + $0x8] sm:$0xff] %v4780
        %5229 = vst [vmem:[#allocation3 + $0x18] sm:$0xff] %v4784
        %5230 = vst [vmem:[#allocation3 + $0x20] sm:$0xff] %v4786
        %5231 = vst [vmem:[#allocation3 + $0x30] sm:$0xff] %v4790
        %5232 = vst [vmem:[#allocation3 + $0x38] sm:$0xff] %v4792
        %5233 = vst [vmem:[#allocation3 + $0x48] sm:$0xff] %v4796
        %5234 = vst [vmem:[#allocation3 + $0x50] sm:$0xff] %v4798
        %5235 = vst [vmem:[#allocation3 + $0x60] sm:$0xff] %v4802
        %5236 = vst [vmem:[#allocation3 + $0x68] sm:$0xff] %v4804
        %5237 = vst [vmem:[#allocation3 + $0x78] sm:$0xff] %v4808
        %5238 = vst [vmem:[#allocation3 + $0x80] sm:$0xff] %v4810
        %5239 = vst [vmem:[#allocation3 + $0x90] sm:$0xff] %v4814
        %5240 = vst [vmem:[#allocation3 + $0x98] sm:$0xff] %v4816
        %5241 = vst [vmem:[#allocation3 + $0xa8] sm:$0xff] %v4820
        %5242 = vst [vmem:[#allocation3 + $0xb0] sm:$0xff] %v4822
        %5243 = vst.msk [vmem:[#allocation3 + $0x10] sm:$0xff] %vm1017, %v5109
        %5244 = vst.msk [vmem:[#allocation3 + $0x28] sm:$0xff] %vm1017, %v5114
        %5245 = vst.msk [vmem:[#allocation3 + $0x40] sm:$0xff] %vm1017, %v5119
        %5246 = vst.msk [vmem:[#allocation3 + $0x58] sm:$0xff] %vm1017, %v5124
        %5247 = vst.msk [vmem:[#allocation3 + $0x70] sm:$0xff] %vm1017, %v5129
        %5248 = vst.msk [vmem:[#allocation3 + $0x88] sm:$0xff] %vm1017, %v5134
        %5249 = vst.msk [vmem:[#allocation3 + $0xa0] sm:$0xff] %vm1017, %v5139
        %5250 = vst.msk [vmem:[#allocation3 + $0xb8] sm:$0xff] %vm1017, %v5144
        %5259 = vrot.lane.b32.xlu0 %v5149, 16
        %v5260 = vpop.permute.xlu0 %5259
        %5261 = vrot.lane.b32.xlu0 %v5154, 16
        %v5262 = vpop.permute.xlu0 %5261
        %5263 = vrot.lane.b32.xlu0 %v5159, 16
        %v5264 = vpop.permute.xlu0 %5263
        %5265 = vrot.lane.b32.xlu0 %v5164, 16
        %v5266 = vpop.permute.xlu0 %5265
        %5267 = vrot.lane.b32.xlu0 %v5169, 16
        %v5268 = vpop.permute.xlu0 %5267
        %5269 = vrot.lane.b32.xlu0 %v5174, 16
        %v5270 = vpop.permute.xlu0 %5269
        %5271 = vrot.lane.b32.xlu0 %v5179, 16
        %v5272 = vpop.permute.xlu0 %5271
        %5273 = vrot.lane.b32.xlu0 %v5184, 16
        %v5274 = vpop.permute.xlu0 %5273
        %5283 = vst.msk [vmem:[#allocation3 + $0x10] sm:$0xff] %vm1700, %v5260
        %5284 = vst.msk [vmem:[#allocation3 + $0x28] sm:$0xff] %vm1700, %v5262
        %5285 = vst.msk [vmem:[#allocation3 + $0x40] sm:$0xff] %vm1700, %v5264
        %5286 = vst.msk [vmem:[#allocation3 + $0x58] sm:$0xff] %vm1700, %v5266
        %5287 = vst.msk [vmem:[#allocation3 + $0x70] sm:$0xff] %vm1700, %v5268
        %5288 = vst.msk [vmem:[#allocation3 + $0x88] sm:$0xff] %vm1700, %v5270
        %5289 = vst.msk [vmem:[#allocation3 + $0xa0] sm:$0xff] %vm1700, %v5272
        %5290 = vst.msk [vmem:[#allocation3 + $0xb8] sm:$0xff] %vm1700, %v5274
        %5299 = vrot.lane.b32.xlu0 %v5189, 32
        %v5300 = vpop.permute.xlu0 %5299
        %5301 = vrot.lane.b32.xlu0 %v5194, 32
        %v5302 = vpop.permute.xlu0 %5301
        %5303 = vrot.lane.b32.xlu0 %v5199, 32
        %v5304 = vpop.permute.xlu0 %5303
        %5305 = vrot.lane.b32.xlu0 %v5204, 32
        %v5306 = vpop.permute.xlu0 %5305
        %5307 = vrot.lane.b32.xlu0 %v5209, 32
        %v5308 = vpop.permute.xlu0 %5307
        %5309 = vrot.lane.b32.xlu0 %v5214, 32
        %v5310 = vpop.permute.xlu0 %5309
        %5311 = vrot.lane.b32.xlu0 %v5219, 32
        %v5312 = vpop.permute.xlu0 %5311
        %5313 = vrot.lane.b32.xlu0 %v5224, 32
        %v5314 = vpop.permute.xlu0 %5313
        %5323 = vst.msk [vmem:[#allocation3 + $0x10] sm:$0xff] %vm1741, %v5300
        %5324 = vst.msk [vmem:[#allocation3 + $0x28] sm:$0xff] %vm1741, %v5302
        %5325 = vst.msk [vmem:[#allocation3 + $0x40] sm:$0xff] %vm1741, %v5304
        %5326 = vst.msk [vmem:[#allocation3 + $0x58] sm:$0xff] %vm1741, %v5306
        %5327 = vst.msk [vmem:[#allocation3 + $0x70] sm:$0xff] %vm1741, %v5308
        %5328 = vst.msk [vmem:[#allocation3 + $0x88] sm:$0xff] %vm1741, %v5310
        %5329 = vst.msk [vmem:[#allocation3 + $0xa0] sm:$0xff] %vm1741, %v5312
        %5330 = vst.msk [vmem:[#allocation3 + $0xb8] sm:$0xff] %vm1741, %v5314
        %v5331 = vld [vmem:[#allocation3] sm:$0xff]
        %v5332 = vld [vmem:[#allocation3 + $0x8] sm:$0xff]
        %v5333 = vld [vmem:[#allocation3 + $0x10] sm:$0xff]
        %v5334 = vld [vmem:[#allocation3 + $0x18] sm:$0xff]
        %v5335 = vld [vmem:[#allocation3 + $0x20] sm:$0xff]
        %v5336 = vld [vmem:[#allocation3 + $0x28] sm:$0xff]
        %v5337 = vld [vmem:[#allocation3 + $0x30] sm:$0xff]
        %v5338 = vld [vmem:[#allocation3 + $0x38] sm:$0xff]
        %v5339 = vld [vmem:[#allocation3 + $0x40] sm:$0xff]
        %v5340 = vld [vmem:[#allocation3 + $0x48] sm:$0xff]
        %v5341 = vld [vmem:[#allocation3 + $0x50] sm:$0xff]
        %v5342 = vld [vmem:[#allocation3 + $0x58] sm:$0xff]
        %v5343 = vld [vmem:[#allocation3 + $0x60] sm:$0xff]
        %v5344 = vld [vmem:[#allocation3 + $0x68] sm:$0xff]
        %v5345 = vld [vmem:[#allocation3 + $0x70] sm:$0xff]
        %v5346 = vld [vmem:[#allocation3 + $0x78] sm:$0xff]
        %v5347 = vld [vmem:[#allocation3 + $0x80] sm:$0xff]
        %v5348 = vld [vmem:[#allocation3 + $0x88] sm:$0xff]
        %v5349 = vld [vmem:[#allocation3 + $0x90] sm:$0xff]
        %v5350 = vld [vmem:[#allocation3 + $0x98] sm:$0xff]
        %v5351 = vld [vmem:[#allocation3 + $0xa0] sm:$0xff]
        %v5352 = vld [vmem:[#allocation3 + $0xa8] sm:$0xff]
        %v5353 = vld [vmem:[#allocation3 + $0xb0] sm:$0xff]
        %v5354 = vld [vmem:[#allocation3 + $0xb8] sm:$0xff]
        %v5356 = vsel %vm1774, %v5333, 0
        %v5359 = vsel %vm1774, %v5336, 0
        %v5362 = vsel %vm1774, %v5339, 0
        %v5365 = vsel %vm1774, %v5342, 0
        %v5368 = vsel %vm1774, %v5345, 0
        %v5371 = vsel %vm1774, %v5348, 0
        %v5374 = vsel %vm1774, %v5351, 0
        %v5377 = vsel %vm1774, %v5354, 0
        %5379 = vmatprep.subr.mxu0 %v942
        %5380 = vmatpush1.msra.mxu0 %v941
        %5381 = vmatprep.subr.mxu0 %v944
        %5382 = vmatpush1.msra.mxu0 %v943
        %5383 = vmatprep.subr.mxu0 %v946
        %5384 = vmatpush1.msra.mxu0 %v945
        %5385 = vmatprep.subr.mxu0 %v948
        %5386 = vmatpush1.msra.mxu0 %v947
        %5387 = vmatprep.subr.mxu0 %v950
        %5388 = vmatpush1.msra.mxu0 %v949
        %5389 = vmatprep.subr.mxu0 %v952
        %5390 = vmatpush1.msra.mxu0 %v951
        %5391 = vmatprep.subr.mxu0 %v954
        %5392 = vmatpush1.msra.mxu0 %v953
        %5393 = vmatprep.subr.mxu0 %v956
        %5394 = vmatpush1.msra.mxu0 %v955
        %5395 = vmatprep.subr.mxu0 %v958
        %5396 = vmatpush1.msra.mxu0 %v957
        %5397 = vmatprep.subr.mxu0 %v960
        %5398 = vmatpush1.msra.mxu0 %v959
        %5399 = vmatprep.subr.mxu0 %v962
        %5400 = vmatpush1.msra.mxu0 %v961
        %5401 = vmatprep.subr.mxu0 %v964
        %5402 = vmatpush1.msra.mxu0 %v963
        %5403 = vmatprep.subr.mxu0 %v966
        %5404 = vmatpush1.msra.mxu0 %v965
        %5405 = vmatprep.subr.mxu0 %v968
        %5406 = vmatpush1.msra.mxu0 %v967
        %5407 = vmatprep.subr.mxu0 %v970
        %5408 = vmatpush1.msra.mxu0 %v969
        %5409 = vmatprep.subr.mxu0 %v972
        %5410 = vmatpush1.msra.mxu0 %v971
        %5411 = vmatprep.subr.mxu0 %v974
        %5412 = vmatpush1.msra.mxu0 %v973
        %5413 = vmatprep.subr.mxu0 %v976
        %5414 = vmatpush1.msra.mxu0 %v975
        %5415 = vmatprep.subr.mxu0 %v978
        %5416 = vmatpush1.msra.mxu0 %v977
        %5417 = vmatprep.subr.mxu0 %v980
        %5418 = vmatpush1.msra.mxu0 %v979
        %5419 = vmatprep.subr.mxu0 %v982
        %5420 = vmatpush1.msra.mxu0 %v981
        %5421 = vmatprep.subr.mxu0 %v984
        %5422 = vmatpush1.msra.mxu0 %v983
        %5423 = vmatprep.subr.mxu0 %v986
        %5424 = vmatpush1.msra.mxu0 %v985
        %5425 = vmatprep.subr.mxu0 %v988
        %5426 = vmatpush1.msra.mxu0 %v987
        %5427 = vmatprep.subr.mxu0 %v990
        %5428 = vmatpush1.msra.mxu0 %v989
        %5429 = vmatprep.subr.mxu0 %v992
        %5430 = vmatpush1.msra.mxu0 %v991
        %5431 = vmatprep.subr.mxu0 %v994
        %5432 = vmatpush1.msra.mxu0 %v993
        %5433 = vmatprep.subr.mxu0 %v996
        %5434 = vmatpush1.msra.mxu0 %v995
        %5435 = vmatprep.subr.mxu0 %v998
        %5436 = vmatpush1.msra.mxu0 %v997
        %5437 = vmatprep.subr.mxu0 %v1000
        %5438 = vmatpush1.msra.mxu0 %v999
        %5439 = vmatprep.subr.mxu0 %v1002
        %5440 = vmatpush1.msra.mxu0 %v1001
        %5441 = vmatprep.subr.mxu0 %v1004
        %5442 = vmatpush1.msra.mxu0 %v1003
        %5443 = vmatprep.mubr.f32.mxu0 %v5332
        %5444 = vmatmul.mubr.f32.gmra.mrb[0].mxu0 %v5331
        %v5445 = vpop.f32.mrb[0].mxu0
        %v5446 = vadd.f32 0.0, %v5445
        %v5447 = vpop.f32.mrb[0].mxu0
        %v5448 = vadd.f32 0.0, %v5447
        %5449 = vmatprep.mubr.f32.mxu0 %v5335
        %5450 = vmatmul.mubr.f32.gmra.mrb[0].mxu0 %v5334
        %v5451 = vpop.f32.mrb[0].mxu0
        %v5452 = vadd.f32 0.0, %v5451
        %v5453 = vpop.f32.mrb[0].mxu0
        %v5454 = vadd.f32 0.0, %v5453
        %5455 = vmatprep.mubr.f32.mxu0 %v5338
        %5456 = vmatmul.mubr.f32.gmra.mrb[0].mxu0 %v5337
        %v5457 = vpop.f32.mrb[0].mxu0
        %v5458 = vadd.f32 0.0, %v5457
        %v5459 = vpop.f32.mrb[0].mxu0
        %v5460 = vadd.f32 0.0, %v5459
        %5461 = vmatprep.mubr.f32.mxu0 %v5341
        %5462 = vmatmul.mubr.f32.gmra.mrb[0].mxu0 %v5340
        %v5463 = vpop.f32.mrb[0].mxu0
        %v5464 = vadd.f32 0.0, %v5463
        %v5465 = vpop.f32.mrb[0].mxu0
        %v5466 = vadd.f32 0.0, %v5465
        %5467 = vmatprep.mubr.f32.mxu0 %v5344
        %5468 = vmatmul.mubr.f32.gmra.mrb[0].mxu0 %v5343
        %v5469 = vpop.f32.mrb[0].mxu0
        %v5470 = vadd.f32 0.0, %v5469
        %v5471 = vpop.f32.mrb[0].mxu0
        %v5472 = vadd.f32 0.0, %v5471
        %5473 = vmatprep.mubr.f32.mxu0 %v5347
        %5474 = vmatmul.mubr.f32.gmra.mrb[0].mxu0 %v5346
        %v5475 = vpop.f32.mrb[0].mxu0
        %v5476 = vadd.f32 0.0, %v5475
        %v5477 = vpop.f32.mrb[0].mxu0
        %v5478 = vadd.f32 0.0, %v5477
        %5479 = vmatprep.mubr.f32.mxu0 %v5350
        %5480 = vmatmul.mubr.f32.gmra.mrb[0].mxu0 %v5349
        %v5481 = vpop.f32.mrb[0].mxu0
        %v5482 = vadd.f32 0.0, %v5481
        %v5483 = vpop.f32.mrb[0].mxu0
        %v5484 = vadd.f32 0.0, %v5483
        %5485 = vmatprep.mubr.f32.mxu0 %v5353
        %5486 = vmatmul.mubr.f32.gmra.mrb[0].mxu0 %v5352
        %v5487 = vpop.f32.mrb[0].mxu0
        %v5488 = vadd.f32 0.0, %v5487
        %v5489 = vpop.f32.mrb[0].mxu0
        %v5490 = vadd.f32 0.0, %v5489
        %5491 = vdwg.mxu0
        %5492 = vmatprep.subr.mxu0 %v1006
        %5493 = vmatpush1.msra.mxu0 %v1005
        %5494 = vmatprep.subr.mxu0 %v1008
        %5495 = vmatpush1.msra.mxu0 %v1007
        %5496 = vmatprep.subr.mxu0 %v1010
        %5497 = vmatpush1.msra.mxu0 %v1009
        %5498 = vmatprep.subr.mxu0 %v1012
        %5499 = vmatpush1.msra.mxu0 %v1011
        %5500 = vmatprep.subr.mxu0 %v1014
        %5501 = vmatpush1.msra.mxu0 %v1013
        %5502 = vmatprep.subr.mxu0 %v1016
        %5503 = vmatpush1.msra.mxu0 %v1015
        %5504 = vmatprep.subr.mxu0 0.0
        %5505 = vmatpush1.msra.mxu0 0.0
        %5506 = vmatprep.subr.mxu0 0.0
        %5507 = vmatpush1.msra.mxu0 0.0
        %5508 = vmatprep.subr.mxu0 0.0
        %5509 = vmatpush1.msra.mxu0 0.0
        %5510 = vmatprep.subr.mxu0 0.0
        %5511 = vmatpush1.msra.mxu0 0.0
        %5512 = vmatprep.subr.mxu0 0.0
        %5513 = vmatpush1.msra.mxu0 0.0
        %5514 = vmatprep.subr.mxu0 0.0
        %5515 = vmatpush1.msra.mxu0 0.0
        %5516 = vmatprep.subr.mxu0 0.0
        %5517 = vmatpush1.msra.mxu0 0.0
        %5518 = vmatprep.subr.mxu0 0.0
        %5519 = vmatpush1.msra.mxu0 0.0
        %5520 = vmatprep.subr.mxu0 0.0
        %5521 = vmatpush1.msra.mxu0 0.0
        %5522 = vmatprep.subr.mxu0 0.0
        %5523 = vmatpush1.msra.mxu0 0.0
        %5524 = vmatprep.subr.mxu0 0.0
        %5525 = vmatpush1.msra.mxu0 0.0
        %5526 = vmatprep.subr.mxu0 0.0
        %5527 = vmatpush1.msra.mxu0 0.0
        %5528 = vmatprep.subr.mxu0 0.0
        %5529 = vmatpush1.msra.mxu0 0.0
        %5530 = vmatprep.subr.mxu0 0.0
        %5531 = vmatpush1.msra.mxu0 0.0
        %5532 = vmatprep.subr.mxu0 0.0
        %5533 = vmatpush1.msra.mxu0 0.0
        %5534 = vmatprep.subr.mxu0 0.0
        %5535 = vmatpush1.msra.mxu0 0.0
        %5536 = vmatprep.subr.mxu0 0.0
        %5537 = vmatpush1.msra.mxu0 0.0
        %5538 = vmatprep.subr.mxu0 0.0
        %5539 = vmatpush1.msra.mxu0 0.0
        %5540 = vmatprep.subr.mxu0 0.0
        %5541 = vmatpush1.msra.mxu0 0.0
        %5542 = vmatprep.subr.mxu0 0.0
        %5543 = vmatpush1.msra.mxu0 0.0
        %5544 = vmatprep.subr.mxu0 0.0
        %5545 = vmatpush1.msra.mxu0 0.0
        %5546 = vmatprep.subr.mxu0 0.0
        %5547 = vmatpush1.msra.mxu0 0.0
        %5548 = vmatprep.subr.mxu0 0.0
        %5549 = vmatpush1.msra.mxu0 0.0
        %5550 = vmatprep.subr.mxu0 0.0
        %5551 = vmatpush1.msra.mxu0 0.0
        %5552 = vmatprep.subr.mxu0 0.0
        %5553 = vmatpush1.msra.mxu0 0.0
        %5554 = vmatprep.subr.mxu0 0.0
        %5555 = vmatpush1.msra.mxu0 0.0
        %5556 = vmatprep.mubr.f32.mxu0 0.0
        %5557 = vmatmul.mubr.f32.gmra.mrb[0].mxu0 %v5356
        %v5558 = vpop.f32.mrb[0].mxu0
        %v5559 = vadd.f32 %v5446, %v5558
        %v5560 = vpop.f32.mrb[0].mxu0
        %v5561 = vadd.f32 %v5448, %v5560
        %5562 = vmatprep.mubr.f32.mxu0 0.0
        %5563 = vmatmul.mubr.f32.gmra.mrb[0].mxu0 %v5359
        %v5564 = vpop.f32.mrb[0].mxu0
        %v5565 = vadd.f32 %v5452, %v5564
        %v5566 = vpop.f32.mrb[0].mxu0
        %v5567 = vadd.f32 %v5454, %v5566
        %5568 = vmatprep.mubr.f32.mxu0 0.0
        %5569 = vmatmul.mubr.f32.gmra.mrb[0].mxu0 %v5362
        %v5570 = vpop.f32.mrb[0].mxu0
        %v5571 = vadd.f32 %v5458, %v5570
        %v5572 = vpop.f32.mrb[0].mxu0
        %v5573 = vadd.f32 %v5460, %v5572
        %5574 = vmatprep.mubr.f32.mxu0 0.0
        %5575 = vmatmul.mubr.f32.gmra.mrb[0].mxu0 %v5365
        %v5576 = vpop.f32.mrb[0].mxu0
        %v5577 = vadd.f32 %v5464, %v5576
        %v5578 = vpop.f32.mrb[0].mxu0
        %v5579 = vadd.f32 %v5466, %v5578
        %5580 = vmatprep.mubr.f32.mxu0 0.0
        %5581 = vmatmul.mubr.f32.gmra.mrb[0].mxu0 %v5368
        %v5582 = vpop.f32.mrb[0].mxu0
        %v5583 = vadd.f32 %v5470, %v5582
        %v5584 = vpop.f32.mrb[0].mxu0
        %v5585 = vadd.f32 %v5472, %v5584
        %5586 = vmatprep.mubr.f32.mxu0 0.0
        %5587 = vmatmul.mubr.f32.gmra.mrb[0].mxu0 %v5371
        %v5588 = vpop.f32.mrb[0].mxu0
        %v5589 = vadd.f32 %v5476, %v5588
        %v5590 = vpop.f32.mrb[0].mxu0
        %v5591 = vadd.f32 %v5478, %v5590
        %5592 = vmatprep.mubr.f32.mxu0 0.0
        %5593 = vmatmul.mubr.f32.gmra.mrb[0].mxu0 %v5374
        %v5594 = vpop.f32.mrb[0].mxu0
        %v5595 = vadd.f32 %v5482, %v5594
        %v5596 = vpop.f32.mrb[0].mxu0
        %v5597 = vadd.f32 %v5484, %v5596
        %5598 = vmatprep.mubr.f32.mxu0 0.0
        %5599 = vmatmul.mubr.f32.gmra.mrb[0].mxu0 %v5377
        %v5600 = vpop.f32.mrb[0].mxu0
        %v5601 = vadd.f32 %v5488, %v5600
        %v5602 = vpop.f32.mrb[0].mxu0
        %v5603 = vadd.f32 %v5490, %v5602
        %5604 = vdwg.mxu0
        %v5605 = vadd.f32 %v4730, %v5559
        %v5606 = vadd.f32 %v4732, %v5561
        %v5607 = vadd.f32 %v4736, %v5565
        %v5608 = vadd.f32 %v4738, %v5567
        %v5609 = vadd.f32 %v4742, %v5571
        %v5610 = vadd.f32 %v4744, %v5573
        %v5611 = vadd.f32 %v4748, %v5577
        %v5612 = vadd.f32 %v4750, %v5579
        %v5613 = vadd.f32 %v4754, %v5583
        %v5614 = vadd.f32 %v4756, %v5585
        %v5615 = vadd.f32 %v4760, %v5589
        %v5616 = vadd.f32 %v4762, %v5591
        %v5617 = vadd.f32 %v4766, %v5595
        %v5618 = vadd.f32 %v4768, %v5597
        %v5619 = vadd.f32 %v4772, %v5601
        %v5620 = vadd.f32 %v4774, %v5603
        %v5621 = vld [vmem:[%s14] sm:$0xff]
        %v5622 = vld [vmem:[%s14 + $0x8] sm:$0xff]
        %5624 = vset.pattern.permute.xlu0 0
        %5625 = vperm.xlu0 %5624, %v5621
        %v5626 = vpop.permute.xlu0 %5625
        %5629 = vset.pattern.permute.xlu0 0
        %5630 = vperm.xlu0 %5629, %v5622
        %v5631 = vpop.permute.xlu0 %5630
        %v5633 = vmul.f32 %v5626, %v2057
        %v5634 = vmul.f32 %v5626, %v2061
        %v5635 = vmul.f32 %v5631, %v2057
        %v5636 = vmul.f32 %v5631, %v2061
        %v5637 = vadd.f32 %v5605, %v5633
        %v5638 = vadd.f32 %v5606, %v5634
        %v5639 = vadd.f32 %v5607, %v5635
        %v5640 = vadd.f32 %v5608, %v5636
        %5641 = vset.pattern.permute.xlu0 1
        %5642 = vperm.xlu0 %5641, %v5621
        %v5643 = vpop.permute.xlu0 %5642
        %5645 = vset.pattern.permute.xlu0 1
        %5646 = vperm.xlu0 %5645, %v5622
        %v5647 = vpop.permute.xlu0 %5646
        %v5649 = vmul.f32 %v5643, %v2057
        %v5650 = vmul.f32 %v5643, %v2061
        %v5651 = vmul.f32 %v5647, %v2057
        %v5652 = vmul.f32 %v5647, %v2061
        %v5653 = vadd.f32 %v5609, %v5649
        %v5654 = vadd.f32 %v5610, %v5650
        %v5655 = vadd.f32 %v5611, %v5651
        %v5656 = vadd.f32 %v5612, %v5652
        %5657 = vmatprep.subr.mxu0 %v5614
        %5658 = vmatpush1.msra.mxu0 %v5613
        %5659 = vmatprep.subr.mxu0 %v5616
        %5660 = vmatpush1.msra.mxu0 %v5615
        %5661 = vmatprep.subr.mxu0 0.0
        %5662 = vmatpush1.msra.mxu0 0.0
        %5663 = vmatprep.subr.mxu0 0.0
        %5664 = vmatpush1.msra.mxu0 0.0
        %5665 = vmatprep.subr.mxu0 0.0
        %5666 = vmatpush1.msra.mxu0 0.0
        %5667 = vmatprep.subr.mxu0 0.0
        %5668 = vmatpush1.msra.mxu0 0.0
        %5669 = vmatprep.subr.mxu0 0.0
        %5670 = vmatpush1.msra.mxu0 0.0
        %5671 = vmatprep.subr.mxu0 0.0
        %5672 = vmatpush1.msra.mxu0 0.0
        %5673 = vmatprep.subr.mxu0 0.0
        %5674 = vmatpush1.msra.mxu0 0.0
        %5675 = vmatprep.subr.mxu0 0.0
        %5676 = vmatpush1.msra.mxu0 0.0
        %5677 = vmatprep.subr.mxu0 0.0
        %5678 = vmatpush1.msra.mxu0 0.0
        %5679 = vmatprep.subr.mxu0 0.0
        %5680 = vmatpush1.msra.mxu0 0.0
        %5681 = vmatprep.subr.mxu0 0.0
        %5682 = vmatpush1.msra.mxu0 0.0
        %5683 = vmatprep.subr.mxu0 0.0
        %5684 = vmatpush1.msra.mxu0 0.0
        %5685 = vmatprep.subr.mxu0 0.0
        %5686 = vmatpush1.msra.mxu0 0.0
        %5687 = vmatprep.subr.mxu0 0.0
        %5688 = vmatpush1.msra.mxu0 0.0
        %5689 = vmatprep.subr.mxu0 0.0
        %5690 = vmatpush1.msra.mxu0 0.0
        %5691 = vmatprep.subr.mxu0 0.0
        %5692 = vmatpush1.msra.mxu0 0.0
        %5693 = vmatprep.subr.mxu0 0.0
        %5694 = vmatpush1.msra.mxu0 0.0
        %5695 = vmatprep.subr.mxu0 0.0
        %5696 = vmatpush1.msra.mxu0 0.0
        %5697 = vmatprep.subr.mxu0 0.0
        %5698 = vmatpush1.msra.mxu0 0.0
        %5699 = vmatprep.subr.mxu0 0.0
        %5700 = vmatpush1.msra.mxu0 0.0
        %5701 = vmatprep.subr.mxu0 0.0
        %5702 = vmatpush1.msra.mxu0 0.0
        %5703 = vmatprep.subr.mxu0 0.0
        %5704 = vmatpush1.msra.mxu0 0.0
        %5705 = vmatprep.subr.mxu0 0.0
        %5706 = vmatpush1.msra.mxu0 0.0
        %5707 = vmatprep.subr.mxu0 0.0
        %5708 = vmatpush1.msra.mxu0 0.0
        %5709 = vmatprep.subr.mxu0 0.0
        %5710 = vmatpush1.msra.mxu0 0.0
        %5711 = vmatprep.subr.mxu0 0.0
        %5712 = vmatpush1.msra.mxu0 0.0
        %5713 = vmatprep.subr.mxu0 0.0
        %5714 = vmatpush1.msra.mxu0 0.0
        %5715 = vmatprep.subr.mxu0 0.0
        %5716 = vmatpush1.msra.mxu0 0.0
        %5717 = vmatprep.subr.mxu0 0.0
        %5718 = vmatpush1.msra.mxu0 0.0
        %5719 = vmatprep.subr.mxu0 0.0
        %5720 = vmatpush1.msra.mxu0 0.0
        %5721 = vmatprep.mubr.f32.mxu0 0.0
        %5722 = vmatmul.mubr.f32.gmra.mrb[0].mxu0 %v2153
        %v5723 = vpop.f32.mrb[0].mxu0
        %v5724 = vadd.f32 0.0, %v5723
        %v5725 = vpop.f32.mrb[0].mxu0
        %v5726 = vadd.f32 0.0, %v5725
        %5727 = vmatprep.mubr.f32.mxu0 0.0
        %5728 = vmatmul.mubr.f32.gmra.mrb[0].mxu0 %v2156
        %v5729 = vpop.f32.mrb[0].mxu0
        %v5730 = vadd.f32 0.0, %v5729
        %v5731 = vpop.f32.mrb[0].mxu0
        %v5732 = vadd.f32 0.0, %v5731
        %5733 = vmatprep.mubr.f32.mxu0 0.0
        %5734 = vmatmul.mubr.f32.gmra.mrb[0].mxu0 %v2159
        %v5735 = vpop.f32.mrb[0].mxu0
        %v5736 = vadd.f32 0.0, %v5735
        %v5737 = vpop.f32.mrb[0].mxu0
        %v5738 = vadd.f32 0.0, %v5737
        %5739 = vmatprep.mubr.f32.mxu0 0.0
        %5740 = vmatmul.mubr.f32.gmra.mrb[0].mxu0 %v2162
        %v5741 = vpop.f32.mrb[0].mxu0
        %v5742 = vadd.f32 0.0, %v5741
        %v5743 = vpop.f32.mrb[0].mxu0
        %v5744 = vadd.f32 0.0, %v5743
        %5745 = vmatprep.mubr.f32.mxu0 0.0
        %5746 = vmatmul.mubr.f32.gmra.mrb[0].mxu0 %v2165
        %v5747 = vpop.f32.mrb[0].mxu0
        %v5748 = vadd.f32 0.0, %v5747
        %v5749 = vpop.f32.mrb[0].mxu0
        %v5750 = vadd.f32 0.0, %v5749
        %5751 = vmatprep.mubr.f32.mxu0 0.0
        %5752 = vmatmul.mubr.f32.gmra.mrb[0].mxu0 %v2168
        %v5753 = vpop.f32.mrb[0].mxu0
        %v5754 = vadd.f32 0.0, %v5753
        %v5755 = vpop.f32.mrb[0].mxu0
        %v5756 = vadd.f32 0.0, %v5755
        %5757 = vmatprep.mubr.f32.mxu0 0.0
        %5758 = vmatmul.mubr.f32.gmra.mrb[0].mxu0 %v2171
        %v5759 = vpop.f32.mrb[0].mxu0
        %v5760 = vadd.f32 0.0, %v5759
        %v5761 = vpop.f32.mrb[0].mxu0
        %v5762 = vadd.f32 0.0, %v5761
        %5763 = vmatprep.mubr.f32.mxu0 0.0
        %5764 = vmatmul.mubr.f32.gmra.mrb[0].mxu0 %v2174
        %v5765 = vpop.f32.mrb[0].mxu0
        %v5766 = vadd.f32 0.0, %v5765
        %v5767 = vpop.f32.mrb[0].mxu0
        %v5768 = vadd.f32 0.0, %v5767
        %5769 = vmatprep.mubr.f32.mxu0 0.0
        %5770 = vmatmul.mubr.f32.gmra.mrb[0].mxu0 %v2177
        %v5771 = vpop.f32.mrb[0].mxu0
        %v5772 = vadd.f32 0.0, %v5771
        %v5773 = vpop.f32.mrb[0].mxu0
        %v5774 = vadd.f32 0.0, %v5773
        %5775 = vmatprep.mubr.f32.mxu0 0.0
        %5776 = vmatmul.mubr.f32.gmra.mrb[0].mxu0 %v2180
        %v5777 = vpop.f32.mrb[0].mxu0
        %v5778 = vadd.f32 0.0, %v5777
        %v5779 = vpop.f32.mrb[0].mxu0
        %v5780 = vadd.f32 0.0, %v5779
        %5781 = vmatprep.mubr.f32.mxu0 0.0
        %5782 = vmatmul.mubr.f32.gmra.mrb[0].mxu0 %v2183
        %v5783 = vpop.f32.mrb[0].mxu0
        %v5784 = vadd.f32 0.0, %v5783
        %v5785 = vpop.f32.mrb[0].mxu0
        %v5786 = vadd.f32 0.0, %v5785
        %5787 = vmatprep.mubr.f32.mxu0 0.0
        %5788 = vmatmul.mubr.f32.gmra.mrb[0].mxu0 %v2186
        %v5789 = vpop.f32.mrb[0].mxu0
        %v5790 = vadd.f32 0.0, %v5789
        %v5791 = vpop.f32.mrb[0].mxu0
        %v5792 = vadd.f32 0.0, %v5791
        %5793 = vmatprep.mubr.f32.mxu0 0.0
        %5794 = vmatmul.mubr.f32.gmra.mrb[0].mxu0 %v2189
        %v5795 = vpop.f32.mrb[0].mxu0
        %v5796 = vadd.f32 0.0, %v5795
        %v5797 = vpop.f32.mrb[0].mxu0
        %v5798 = vadd.f32 0.0, %v5797
        %5799 = vmatprep.mubr.f32.mxu0 0.0
        %5800 = vmatmul.mubr.f32.gmra.mrb[0].mxu0 %v2192
        %v5801 = vpop.f32.mrb[0].mxu0
        %v5802 = vadd.f32 0.0, %v5801
        %v5803 = vpop.f32.mrb[0].mxu0
        %v5804 = vadd.f32 0.0, %v5803
        %5805 = vmatprep.mubr.f32.mxu0 0.0
        %5806 = vmatmul.mubr.f32.gmra.mrb[0].mxu0 %v2195
        %v5807 = vpop.f32.mrb[0].mxu0
        %v5808 = vadd.f32 0.0, %v5807
        %v5809 = vpop.f32.mrb[0].mxu0
        %v5810 = vadd.f32 0.0, %v5809
        %5811 = vmatprep.mubr.f32.mxu0 0.0
        %5812 = vmatmul.mubr.f32.gmra.mrb[0].mxu0 %v2198
        %v5813 = vpop.f32.mrb[0].mxu0
        %v5814 = vadd.f32 0.0, %v5813
        %v5815 = vpop.f32.mrb[0].mxu0
        %v5816 = vadd.f32 0.0, %v5815
        %5817 = vmatprep.mubr.f32.mxu0 0.0
        %5818 = vmatmul.mubr.f32.gmra.mrb[0].mxu0 %v2201
        %v5819 = vpop.f32.mrb[0].mxu0
        %v5820 = vadd.f32 0.0, %v5819
        %v5821 = vpop.f32.mrb[0].mxu0
        %v5822 = vadd.f32 0.0, %v5821
        %5823 = vmatprep.mubr.f32.mxu0 0.0
        %5824 = vmatmul.mubr.f32.gmra.mrb[0].mxu0 %v2204
        %v5825 = vpop.f32.mrb[0].mxu0
        %v5826 = vadd.f32 0.0, %v5825
        %v5827 = vpop.f32.mrb[0].mxu0
        %v5828 = vadd.f32 0.0, %v5827
        %5829 = vmatprep.mubr.f32.mxu0 0.0
        %5830 = vmatmul.mubr.f32.gmra.mrb[0].mxu0 %v2207
        %v5831 = vpop.f32.mrb[0].mxu0
        %v5832 = vadd.f32 0.0, %v5831
        %v5833 = vpop.f32.mrb[0].mxu0
        %v5834 = vadd.f32 0.0, %v5833
        %5835 = vmatprep.mubr.f32.mxu0 0.0
        %5836 = vmatmul.mubr.f32.gmra.mrb[0].mxu0 %v2210
        %v5837 = vpop.f32.mrb[0].mxu0
        %v5838 = vadd.f32 0.0, %v5837
        %v5839 = vpop.f32.mrb[0].mxu0
        %v5840 = vadd.f32 0.0, %v5839
        %5841 = vmatprep.mubr.f32.mxu0 0.0
        %5842 = vmatmul.mubr.f32.gmra.mrb[0].mxu0 %v2213
        %v5843 = vpop.f32.mrb[0].mxu0
        %v5844 = vadd.f32 0.0, %v5843
        %v5845 = vpop.f32.mrb[0].mxu0
        %v5846 = vadd.f32 0.0, %v5845
        %5847 = vmatprep.mubr.f32.mxu0 0.0
        %5848 = vmatmul.mubr.f32.gmra.mrb[0].mxu0 %v2216
        %v5849 = vpop.f32.mrb[0].mxu0
        %v5850 = vadd.f32 0.0, %v5849
        %v5851 = vpop.f32.mrb[0].mxu0
        %v5852 = vadd.f32 0.0, %v5851
        %5853 = vmatprep.mubr.f32.mxu0 0.0
        %5854 = vmatmul.mubr.f32.gmra.mrb[0].mxu0 %v2219
        %v5855 = vpop.f32.mrb[0].mxu0
        %v5856 = vadd.f32 0.0, %v5855
        %v5857 = vpop.f32.mrb[0].mxu0
        %v5858 = vadd.f32 0.0, %v5857
        %5859 = vmatprep.mubr.f32.mxu0 0.0
        %5860 = vmatmul.mubr.f32.gmra.mrb[0].mxu0 %v2222
        %v5861 = vpop.f32.mrb[0].mxu0
        %v5862 = vadd.f32 0.0, %v5861
        %v5863 = vpop.f32.mrb[0].mxu0
        %v5864 = vadd.f32 0.0, %v5863
        %5865 = vmatprep.mubr.f32.mxu0 0.0
        %5866 = vmatmul.mubr.f32.gmra.mrb[0].mxu0 %v2225
        %v5867 = vpop.f32.mrb[0].mxu0
        %v5868 = vadd.f32 0.0, %v5867
        %v5869 = vpop.f32.mrb[0].mxu0
        %v5870 = vadd.f32 0.0, %v5869
        %5871 = vmatprep.mubr.f32.mxu0 0.0
        %5872 = vmatmul.mubr.f32.gmra.mrb[0].mxu0 %v2228
        %v5873 = vpop.f32.mrb[0].mxu0
        %v5874 = vadd.f32 0.0, %v5873
        %v5875 = vpop.f32.mrb[0].mxu0
        %v5876 = vadd.f32 0.0, %v5875
        %5877 = vmatprep.mubr.f32.mxu0 0.0
        %5878 = vmatmul.mubr.f32.gmra.mrb[0].mxu0 %v2231
        %v5879 = vpop.f32.mrb[0].mxu0
        %v5880 = vadd.f32 0.0, %v5879
        %v5881 = vpop.f32.mrb[0].mxu0
        %v5882 = vadd.f32 0.0, %v5881
        %5883 = vmatprep.mubr.f32.mxu0 0.0
        %5884 = vmatmul.mubr.f32.gmra.mrb[0].mxu0 %v2234
        %v5885 = vpop.f32.mrb[0].mxu0
        %v5886 = vadd.f32 0.0, %v5885
        %v5887 = vpop.f32.mrb[0].mxu0
        %v5888 = vadd.f32 0.0, %v5887
        %5889 = vmatprep.mubr.f32.mxu0 0.0
        %5890 = vmatmul.mubr.f32.gmra.mrb[0].mxu0 %v2237
        %v5891 = vpop.f32.mrb[0].mxu0
        %v5892 = vadd.f32 0.0, %v5891
        %v5893 = vpop.f32.mrb[0].mxu0
        %v5894 = vadd.f32 0.0, %v5893
        %5895 = vmatprep.mubr.f32.mxu0 0.0
        %5896 = vmatmul.mubr.f32.gmra.mrb[0].mxu0 %v2240
        %v5897 = vpop.f32.mrb[0].mxu0
        %v5898 = vadd.f32 0.0, %v5897
        %v5899 = vpop.f32.mrb[0].mxu0
        %v5900 = vadd.f32 0.0, %v5899
        %5901 = vmatprep.mubr.f32.mxu0 0.0
        %5902 = vmatmul.mubr.f32.gmra.mrb[0].mxu0 %v2243
        %v5903 = vpop.f32.mrb[0].mxu0
        %v5904 = vadd.f32 0.0, %v5903
        %v5905 = vpop.f32.mrb[0].mxu0
        %v5906 = vadd.f32 0.0, %v5905
        %5907 = vmatprep.mubr.f32.mxu0 0.0
        %5908 = vmatmul.mubr.f32.gmra.mrb[0].mxu0 %v2246
        %v5909 = vpop.f32.mrb[0].mxu0
        %v5910 = vadd.f32 0.0, %v5909
        %v5911 = vpop.f32.mrb[0].mxu0
        %v5912 = vadd.f32 0.0, %v5911
        %5913 = vdwg.mxu0
        %v5914 = vmul.f32 %v5724, %v793
        %v5915 = vmul.f32 %v5726, %v794
        %v5916 = vmul.f32 %v5730, %v795
        %v5917 = vmul.f32 %v5732, %v796
        %v5918 = vmul.f32 %v5736, %v797
        %v5919 = vmul.f32 %v5738, %v798
        %v5920 = vmul.f32 %v5742, %v799
        %v5921 = vmul.f32 %v5744, %v800
        %v5922 = vmul.f32 %v5748, %v801
        %v5923 = vmul.f32 %v5750, %v802
        %v5924 = vmul.f32 %v5754, %v803
        %v5925 = vmul.f32 %v5756, %v804
        %v5926 = vmul.f32 %v5760, %v805
        %v5927 = vmul.f32 %v5762, %v806
        %v5928 = vmul.f32 %v5766, %v807
        %v5929 = vmul.f32 %v5768, %v808
        %v5930 = vmul.f32 %v5772, %v809
        %v5931 = vmul.f32 %v5774, %v810
        %v5932 = vmul.f32 %v5778, %v811
        %v5933 = vmul.f32 %v5780, %v812
        %v5934 = vmul.f32 %v5784, %v813
        %v5935 = vmul.f32 %v5786, %v814
        %v5936 = vmul.f32 %v5790, %v815
        %v5937 = vmul.f32 %v5792, %v816
        %v5938 = vmul.f32 %v5796, %v817
        %v5939 = vmul.f32 %v5798, %v818
        %v5940 = vmul.f32 %v5802, %v819
        %v5941 = vmul.f32 %v5804, %v820
        %v5942 = vmul.f32 %v5808, %v821
        %v5943 = vmul.f32 %v5810, %v822
        %v5944 = vmul.f32 %v5814, %v823
        %v5945 = vmul.f32 %v5816, %v824
        %v5946 = vmul.f32 %v5820, %v825
        %v5947 = vmul.f32 %v5822, %v826
        %v5948 = vmul.f32 %v5826, %v827
        %v5949 = vmul.f32 %v5828, %v828
        %v5950 = vmul.f32 %v5832, %v829
        %v5951 = vmul.f32 %v5834, %v830
        %v5952 = vmul.f32 %v5838, %v831
        %v5953 = vmul.f32 %v5840, %v832
        %v5954 = vmul.f32 %v5844, %v833
        %v5955 = vmul.f32 %v5846, %v834
        %v5956 = vmul.f32 %v5850, %v835
        %v5957 = vmul.f32 %v5852, %v836
        %v5958 = vmul.f32 %v5856, %v837
        %v5959 = vmul.f32 %v5858, %v838
        %v5960 = vmul.f32 %v5862, %v839
        %v5961 = vmul.f32 %v5864, %v840
        %v5962 = vmul.f32 %v5868, %v841
        %v5963 = vmul.f32 %v5870, %v842
        %v5964 = vmul.f32 %v5874, %v843
        %v5965 = vmul.f32 %v5876, %v844
        %v5966 = vmul.f32 %v5880, %v845
        %v5967 = vmul.f32 %v5882, %v846
        %v5968 = vmul.f32 %v5886, %v847
        %v5969 = vmul.f32 %v5888, %v848
        %v5970 = vmul.f32 %v5892, %v849
        %v5971 = vmul.f32 %v5894, %v850
        %v5972 = vmul.f32 %v5898, %v851
        %v5973 = vmul.f32 %v5900, %v852
        %v5974 = vmul.f32 %v5904, %v853
        %v5975 = vmul.f32 %v5906, %v854
        %v5976 = vmul.f32 %v5910, %v855
        %v5977 = vmul.f32 %v5912, %v856
        %5978 = vmatprep.subr.mxu0 %v782
        %5979 = vmatpush1.xpose.msra.mxu0 %v781
        %5980 = vmatprep.subr.mxu0 %v784
        %5981 = vmatpush1.xpose.msra.mxu0 %v783
        %5982 = vmatprep.subr.mxu0 0.0
        %5983 = vmatpush1.xpose.msra.mxu0 0.0
        %5984 = vmatprep.subr.mxu0 0.0
        %5985 = vmatpush1.xpose.msra.mxu0 0.0
        %5986 = vmatprep.subr.mxu0 0.0
        %5987 = vmatpush1.xpose.msra.mxu0 0.0
        %5988 = vmatprep.subr.mxu0 0.0
        %5989 = vmatpush1.xpose.msra.mxu0 0.0
        %5990 = vmatprep.subr.mxu0 0.0
        %5991 = vmatpush1.xpose.msra.mxu0 0.0
        %5992 = vmatprep.subr.mxu0 0.0
        %5993 = vmatpush1.xpose.msra.mxu0 0.0
        %5994 = vmatprep.subr.mxu0 0.0
        %5995 = vmatpush1.xpose.msra.mxu0 0.0
        %5996 = vmatprep.subr.mxu0 0.0
        %5997 = vmatpush1.xpose.msra.mxu0 0.0
        %5998 = vmatprep.subr.mxu0 0.0
        %5999 = vmatpush1.xpose.msra.mxu0 0.0
        %6000 = vmatprep.subr.mxu0 0.0
        %6001 = vmatpush1.xpose.msra.mxu0 0.0
        %6002 = vmatprep.subr.mxu0 0.0
        %6003 = vmatpush1.xpose.msra.mxu0 0.0
        %6004 = vmatprep.subr.mxu0 0.0
        %6005 = vmatpush1.xpose.msra.mxu0 0.0
        %6006 = vmatprep.subr.mxu0 0.0
        %6007 = vmatpush1.xpose.msra.mxu0 0.0
        %6008 = vmatprep.subr.mxu0 0.0
        %6009 = vmatpush1.xpose.msra.mxu0 0.0
        %6010 = vmatprep.subr.mxu0 0.0
        %6011 = vmatpush1.xpose.msra.mxu0 0.0
        %6012 = vmatprep.subr.mxu0 0.0
        %6013 = vmatpush1.xpose.msra.mxu0 0.0
        %6014 = vmatprep.subr.mxu0 0.0
        %6015 = vmatpush1.xpose.msra.mxu0 0.0
        %6016 = vmatprep.subr.mxu0 0.0
        %6017 = vmatpush1.xpose.msra.mxu0 0.0
        %6018 = vmatprep.subr.mxu0 0.0
        %6019 = vmatpush1.xpose.msra.mxu0 0.0
        %6020 = vmatprep.subr.mxu0 0.0
        %6021 = vmatpush1.xpose.msra.mxu0 0.0
        %6022 = vmatprep.subr.mxu0 0.0
        %6023 = vmatpush1.xpose.msra.mxu0 0.0
        %6024 = vmatprep.subr.mxu0 0.0
        %6025 = vmatpush1.xpose.msra.mxu0 0.0
        %6026 = vmatprep.subr.mxu0 0.0
        %6027 = vmatpush1.xpose.msra.mxu0 0.0
        %6028 = vmatprep.subr.mxu0 0.0
        %6029 = vmatpush1.xpose.msra.mxu0 0.0
        %6030 = vmatprep.subr.mxu0 0.0
        %6031 = vmatpush1.xpose.msra.mxu0 0.0
        %6032 = vmatprep.subr.mxu0 0.0
        %6033 = vmatpush1.xpose.msra.mxu0 0.0
        %6034 = vmatprep.subr.mxu0 0.0
        %6035 = vmatpush1.xpose.msra.mxu0 0.0
        %6036 = vmatprep.subr.mxu0 0.0
        %6037 = vmatpush1.xpose.msra.mxu0 0.0
        %6038 = vmatprep.subr.mxu0 0.0
        %6039 = vmatpush1.xpose.msra.mxu0 0.0
        %6040 = vmatprep.subr.mxu0 0.0
        %6041 = vmatpush1.xpose.msra.mxu0 0.0
        %6042 = vmatprep.mubr.f32.mxu0 %v5915
        %6043 = vmatmul.mubr.f32.gmra.mrb[0].mxu0 %v5914
        %v6044 = vpop.f32.mrb[0].mxu0
        %v6045 = vadd.f32 0.0, %v6044
        %v6046 = vpop.f32.mrb[0].mxu0
        %6047 = vmatprep.mubr.f32.mxu0 %v5917
        %6048 = vmatmul.mubr.f32.gmra.mrb[0].mxu0 %v5916
        %v6049 = vpop.f32.mrb[0].mxu0
        %v6050 = vadd.f32 0.0, %v6049
        %v6051 = vpop.f32.mrb[0].mxu0
        %6052 = vmatprep.mubr.f32.mxu0 %v5919
        %6053 = vmatmul.mubr.f32.gmra.mrb[0].mxu0 %v5918
        %v6054 = vpop.f32.mrb[0].mxu0
        %v6055 = vadd.f32 0.0, %v6054
        %v6056 = vpop.f32.mrb[0].mxu0
        %6057 = vmatprep.mubr.f32.mxu0 %v5921
        %6058 = vmatmul.mubr.f32.gmra.mrb[0].mxu0 %v5920
        %v6059 = vpop.f32.mrb[0].mxu0
        %v6060 = vadd.f32 0.0, %v6059
        %v6061 = vpop.f32.mrb[0].mxu0
        %6062 = vmatprep.mubr.f32.mxu0 %v5923
        %6063 = vmatmul.mubr.f32.gmra.mrb[0].mxu0 %v5922
        %v6064 = vpop.f32.mrb[0].mxu0
        %v6065 = vadd.f32 0.0, %v6064
        %v6066 = vpop.f32.mrb[0].mxu0
        %6067 = vmatprep.mubr.f32.mxu0 %v5925
        %6068 = vmatmul.mubr.f32.gmra.mrb[0].mxu0 %v5924
        %v6069 = vpop.f32.mrb[0].mxu0
        %v6070 = vadd.f32 0.0, %v6069
        %v6071 = vpop.f32.mrb[0].mxu0
        %6072 = vmatprep.mubr.f32.mxu0 %v5927
        %6073 = vmatmul.mubr.f32.gmra.mrb[0].mxu0 %v5926
        %v6074 = vpop.f32.mrb[0].mxu0
        %v6075 = vadd.f32 0.0, %v6074
        %v6076 = vpop.f32.mrb[0].mxu0
        %6077 = vmatprep.mubr.f32.mxu0 %v5929
        %6078 = vmatmul.mubr.f32.gmra.mrb[0].mxu0 %v5928
        %v6079 = vpop.f32.mrb[0].mxu0
        %v6080 = vadd.f32 0.0, %v6079
        %v6081 = vpop.f32.mrb[0].mxu0
        %6082 = vmatprep.mubr.f32.mxu0 %v5931
        %6083 = vmatmul.mubr.f32.gmra.mrb[0].mxu0 %v5930
        %v6084 = vpop.f32.mrb[0].mxu0
        %v6085 = vadd.f32 0.0, %v6084
        %v6086 = vpop.f32.mrb[0].mxu0
        %6087 = vmatprep.mubr.f32.mxu0 %v5933
        %6088 = vmatmul.mubr.f32.gmra.mrb[0].mxu0 %v5932
        %v6089 = vpop.f32.mrb[0].mxu0
        %v6090 = vadd.f32 0.0, %v6089
        %v6091 = vpop.f32.mrb[0].mxu0
        %6092 = vmatprep.mubr.f32.mxu0 %v5935
        %6093 = vmatmul.mubr.f32.gmra.mrb[0].mxu0 %v5934
        %v6094 = vpop.f32.mrb[0].mxu0
        %v6095 = vadd.f32 0.0, %v6094
        %v6096 = vpop.f32.mrb[0].mxu0
        %6097 = vmatprep.mubr.f32.mxu0 %v5937
        %6098 = vmatmul.mubr.f32.gmra.mrb[0].mxu0 %v5936
        %v6099 = vpop.f32.mrb[0].mxu0
        %v6100 = vadd.f32 0.0, %v6099
        %v6101 = vpop.f32.mrb[0].mxu0
        %6102 = vmatprep.mubr.f32.mxu0 %v5939
        %6103 = vmatmul.mubr.f32.gmra.mrb[0].mxu0 %v5938
        %v6104 = vpop.f32.mrb[0].mxu0
        %v6105 = vadd.f32 0.0, %v6104
        %v6106 = vpop.f32.mrb[0].mxu0
        %6107 = vmatprep.mubr.f32.mxu0 %v5941
        %6108 = vmatmul.mubr.f32.gmra.mrb[0].mxu0 %v5940
        %v6109 = vpop.f32.mrb[0].mxu0
        %v6110 = vadd.f32 0.0, %v6109
        %v6111 = vpop.f32.mrb[0].mxu0
        %6112 = vmatprep.mubr.f32.mxu0 %v5943
        %6113 = vmatmul.mubr.f32.gmra.mrb[0].mxu0 %v5942
        %v6114 = vpop.f32.mrb[0].mxu0
        %v6115 = vadd.f32 0.0, %v6114
        %v6116 = vpop.f32.mrb[0].mxu0
        %6117 = vmatprep.mubr.f32.mxu0 %v5945
        %6118 = vmatmul.mubr.f32.gmra.mrb[0].mxu0 %v5944
        %v6119 = vpop.f32.mrb[0].mxu0
        %v6120 = vadd.f32 0.0, %v6119
        %v6121 = vpop.f32.mrb[0].mxu0
        %6122 = vmatprep.mubr.f32.mxu0 %v5947
        %6123 = vmatmul.mubr.f32.gmra.mrb[0].mxu0 %v5946
        %v6124 = vpop.f32.mrb[0].mxu0
        %v6125 = vadd.f32 0.0, %v6124
        %v6126 = vpop.f32.mrb[0].mxu0
        %6127 = vmatprep.mubr.f32.mxu0 %v5949
        %6128 = vmatmul.mubr.f32.gmra.mrb[0].mxu0 %v5948
        %v6129 = vpop.f32.mrb[0].mxu0
        %v6130 = vadd.f32 0.0, %v6129
        %v6131 = vpop.f32.mrb[0].mxu0
        %6132 = vmatprep.mubr.f32.mxu0 %v5951
        %6133 = vmatmul.mubr.f32.gmra.mrb[0].mxu0 %v5950
        %v6134 = vpop.f32.mrb[0].mxu0
        %v6135 = vadd.f32 0.0, %v6134
        %v6136 = vpop.f32.mrb[0].mxu0
        %6137 = vmatprep.mubr.f32.mxu0 %v5953
        %6138 = vmatmul.mubr.f32.gmra.mrb[0].mxu0 %v5952
        %v6139 = vpop.f32.mrb[0].mxu0
        %v6140 = vadd.f32 0.0, %v6139
        %v6141 = vpop.f32.mrb[0].mxu0
        %6142 = vmatprep.mubr.f32.mxu0 %v5955
        %6143 = vmatmul.mubr.f32.gmra.mrb[0].mxu0 %v5954
        %v6144 = vpop.f32.mrb[0].mxu0
        %v6145 = vadd.f32 0.0, %v6144
        %v6146 = vpop.f32.mrb[0].mxu0
        %6147 = vmatprep.mubr.f32.mxu0 %v5957
        %6148 = vmatmul.mubr.f32.gmra.mrb[0].mxu0 %v5956
        %v6149 = vpop.f32.mrb[0].mxu0
        %v6150 = vadd.f32 0.0, %v6149
        %v6151 = vpop.f32.mrb[0].mxu0
        %6152 = vmatprep.mubr.f32.mxu0 %v5959
        %6153 = vmatmul.mubr.f32.gmra.mrb[0].mxu0 %v5958
        %v6154 = vpop.f32.mrb[0].mxu0
        %v6155 = vadd.f32 0.0, %v6154
        %v6156 = vpop.f32.mrb[0].mxu0
        %6157 = vmatprep.mubr.f32.mxu0 %v5961
        %6158 = vmatmul.mubr.f32.gmra.mrb[0].mxu0 %v5960
        %v6159 = vpop.f32.mrb[0].mxu0
        %v6160 = vadd.f32 0.0, %v6159
        %v6161 = vpop.f32.mrb[0].mxu0
        %6162 = vmatprep.mubr.f32.mxu0 %v5963
        %6163 = vmatmul.mubr.f32.gmra.mrb[0].mxu0 %v5962
        %v6164 = vpop.f32.mrb[0].mxu0
        %v6165 = vadd.f32 0.0, %v6164
        %v6166 = vpop.f32.mrb[0].mxu0
        %6167 = vmatprep.mubr.f32.mxu0 %v5965
        %6168 = vmatmul.mubr.f32.gmra.mrb[0].mxu0 %v5964
        %v6169 = vpop.f32.mrb[0].mxu0
        %v6170 = vadd.f32 0.0, %v6169
        %v6171 = vpop.f32.mrb[0].mxu0
        %6172 = vmatprep.mubr.f32.mxu0 %v5967
        %6173 = vmatmul.mubr.f32.gmra.mrb[0].mxu0 %v5966
        %v6174 = vpop.f32.mrb[0].mxu0
        %v6175 = vadd.f32 0.0, %v6174
        %v6176 = vpop.f32.mrb[0].mxu0
        %6177 = vmatprep.mubr.f32.mxu0 %v5969
        %6178 = vmatmul.mubr.f32.gmra.mrb[0].mxu0 %v5968
        %v6179 = vpop.f32.mrb[0].mxu0
        %v6180 = vadd.f32 0.0, %v6179
        %v6181 = vpop.f32.mrb[0].mxu0
        %6182 = vmatprep.mubr.f32.mxu0 %v5971
        %6183 = vmatmul.mubr.f32.gmra.mrb[0].mxu0 %v5970
        %v6184 = vpop.f32.mrb[0].mxu0
        %v6185 = vadd.f32 0.0, %v6184
        %v6186 = vpop.f32.mrb[0].mxu0
        %6187 = vmatprep.mubr.f32.mxu0 %v5973
        %6188 = vmatmul.mubr.f32.gmra.mrb[0].mxu0 %v5972
        %v6189 = vpop.f32.mrb[0].mxu0
        %v6190 = vadd.f32 0.0, %v6189
        %v6191 = vpop.f32.mrb[0].mxu0
        %6192 = vmatprep.mubr.f32.mxu0 %v5975
        %6193 = vmatmul.mubr.f32.gmra.mrb[0].mxu0 %v5974
        %v6194 = vpop.f32.mrb[0].mxu0
        %v6195 = vadd.f32 0.0, %v6194
        %v6196 = vpop.f32.mrb[0].mxu0
        %6197 = vmatprep.mubr.f32.mxu0 %v5977
        %6198 = vmatmul.mubr.f32.gmra.mrb[0].mxu0 %v5976
        %v6199 = vpop.f32.mrb[0].mxu0
        %v6200 = vadd.f32 0.0, %v6199
        %v6201 = vpop.f32.mrb[0].mxu0
        %6202 = vdwg.mxu0
        %6203 = vmatprep.subr.mxu0 %v5654
        %6204 = vmatpush1.msra.mxu0 %v5653
        %6205 = vmatprep.subr.mxu0 %v5656
        %6206 = vmatpush1.msra.mxu0 %v5655
        %6207 = vmatprep.subr.mxu0 0.0
        %6208 = vmatpush1.msra.mxu0 0.0
        %6209 = vmatprep.subr.mxu0 0.0
        %6210 = vmatpush1.msra.mxu0 0.0
        %6211 = vmatprep.subr.mxu0 0.0
        %6212 = vmatpush1.msra.mxu0 0.0
        %6213 = vmatprep.subr.mxu0 0.0
        %6214 = vmatpush1.msra.mxu0 0.0
        %6215 = vmatprep.subr.mxu0 0.0
        %6216 = vmatpush1.msra.mxu0 0.0
        %6217 = vmatprep.subr.mxu0 0.0
        %6218 = vmatpush1.msra.mxu0 0.0
        %6219 = vmatprep.subr.mxu0 0.0
        %6220 = vmatpush1.msra.mxu0 0.0
        %6221 = vmatprep.subr.mxu0 0.0
        %6222 = vmatpush1.msra.mxu0 0.0
        %6223 = vmatprep.subr.mxu0 0.0
        %6224 = vmatpush1.msra.mxu0 0.0
        %6225 = vmatprep.subr.mxu0 0.0
        %6226 = vmatpush1.msra.mxu0 0.0
        %6227 = vmatprep.subr.mxu0 0.0
        %6228 = vmatpush1.msra.mxu0 0.0
        %6229 = vmatprep.subr.mxu0 0.0
        %6230 = vmatpush1.msra.mxu0 0.0
        %6231 = vmatprep.subr.mxu0 0.0
        %6232 = vmatpush1.msra.mxu0 0.0
        %6233 = vmatprep.subr.mxu0 0.0
        %6234 = vmatpush1.msra.mxu0 0.0
        %6235 = vmatprep.subr.mxu0 0.0
        %6236 = vmatpush1.msra.mxu0 0.0
        %6237 = vmatprep.subr.mxu0 0.0
        %6238 = vmatpush1.msra.mxu0 0.0
        %6239 = vmatprep.subr.mxu0 0.0
        %6240 = vmatpush1.msra.mxu0 0.0
        %6241 = vmatprep.subr.mxu0 0.0
        %6242 = vmatpush1.msra.mxu0 0.0
        %6243 = vmatprep.subr.mxu0 0.0
        %6244 = vmatpush1.msra.mxu0 0.0
        %6245 = vmatprep.subr.mxu0 0.0
        %6246 = vmatpush1.msra.mxu0 0.0
        %6247 = vmatprep.subr.mxu0 0.0
        %6248 = vmatpush1.msra.mxu0 0.0
        %6249 = vmatprep.subr.mxu0 0.0
        %6250 = vmatpush1.msra.mxu0 0.0
        %6251 = vmatprep.subr.mxu0 0.0
        %6252 = vmatpush1.msra.mxu0 0.0
        %6253 = vmatprep.subr.mxu0 0.0
        %6254 = vmatpush1.msra.mxu0 0.0
        %6255 = vmatprep.subr.mxu0 0.0
        %6256 = vmatpush1.msra.mxu0 0.0
        %6257 = vmatprep.subr.mxu0 0.0
        %6258 = vmatpush1.msra.mxu0 0.0
        %6259 = vmatprep.subr.mxu0 0.0
        %6260 = vmatpush1.msra.mxu0 0.0
        %6261 = vmatprep.subr.mxu0 0.0
        %6262 = vmatpush1.msra.mxu0 0.0
        %6263 = vmatprep.subr.mxu0 0.0
        %6264 = vmatpush1.msra.mxu0 0.0
        %6265 = vmatprep.subr.mxu0 0.0
        %6266 = vmatpush1.msra.mxu0 0.0
        %6267 = vmatprep.mubr.f32.mxu0 0.0
        %6268 = vmatmul.mubr.f32.gmra.mrb[0].mxu0 %v2153
        %v6269 = vpop.f32.mrb[0].mxu0
        %v6270 = vadd.f32 0.0, %v6269
        %v6271 = vpop.f32.mrb[0].mxu0
        %v6272 = vadd.f32 0.0, %v6271
        %6273 = vmatprep.mubr.f32.mxu0 0.0
        %6274 = vmatmul.mubr.f32.gmra.mrb[0].mxu0 %v2156
        %v6275 = vpop.f32.mrb[0].mxu0
        %v6276 = vadd.f32 0.0, %v6275
        %v6277 = vpop.f32.mrb[0].mxu0
        %v6278 = vadd.f32 0.0, %v6277
        %6279 = vmatprep.mubr.f32.mxu0 0.0
        %6280 = vmatmul.mubr.f32.gmra.mrb[0].mxu0 %v2159
        %v6281 = vpop.f32.mrb[0].mxu0
        %v6282 = vadd.f32 0.0, %v6281
        %v6283 = vpop.f32.mrb[0].mxu0
        %v6284 = vadd.f32 0.0, %v6283
        %6285 = vmatprep.mubr.f32.mxu0 0.0
        %6286 = vmatmul.mubr.f32.gmra.mrb[0].mxu0 %v2162
        %v6287 = vpop.f32.mrb[0].mxu0
        %v6288 = vadd.f32 0.0, %v6287
        %v6289 = vpop.f32.mrb[0].mxu0
        %v6290 = vadd.f32 0.0, %v6289
        %6291 = vmatprep.mubr.f32.mxu0 0.0
        %6292 = vmatmul.mubr.f32.gmra.mrb[0].mxu0 %v2165
        %v6293 = vpop.f32.mrb[0].mxu0
        %v6294 = vadd.f32 0.0, %v6293
        %v6295 = vpop.f32.mrb[0].mxu0
        %v6296 = vadd.f32 0.0, %v6295
        %6297 = vmatprep.mubr.f32.mxu0 0.0
        %6298 = vmatmul.mubr.f32.gmra.mrb[0].mxu0 %v2168
        %v6299 = vpop.f32.mrb[0].mxu0
        %v6300 = vadd.f32 0.0, %v6299
        %v6301 = vpop.f32.mrb[0].mxu0
        %v6302 = vadd.f32 0.0, %v6301
        %6303 = vmatprep.mubr.f32.mxu0 0.0
        %6304 = vmatmul.mubr.f32.gmra.mrb[0].mxu0 %v2171
        %v6305 = vpop.f32.mrb[0].mxu0
        %v6306 = vadd.f32 0.0, %v6305
        %v6307 = vpop.f32.mrb[0].mxu0
        %v6308 = vadd.f32 0.0, %v6307
        %6309 = vmatprep.mubr.f32.mxu0 0.0
        %6310 = vmatmul.mubr.f32.gmra.mrb[0].mxu0 %v2174
        %v6311 = vpop.f32.mrb[0].mxu0
        %v6312 = vadd.f32 0.0, %v6311
        %v6313 = vpop.f32.mrb[0].mxu0
        %v6314 = vadd.f32 0.0, %v6313
        %6315 = vmatprep.mubr.f32.mxu0 0.0
        %6316 = vmatmul.mubr.f32.gmra.mrb[0].mxu0 %v2177
        %v6317 = vpop.f32.mrb[0].mxu0
        %v6318 = vadd.f32 0.0, %v6317
        %v6319 = vpop.f32.mrb[0].mxu0
        %v6320 = vadd.f32 0.0, %v6319
        %6321 = vmatprep.mubr.f32.mxu0 0.0
        %6322 = vmatmul.mubr.f32.gmra.mrb[0].mxu0 %v2180
        %v6323 = vpop.f32.mrb[0].mxu0
        %v6324 = vadd.f32 0.0, %v6323
        %v6325 = vpop.f32.mrb[0].mxu0
        %v6326 = vadd.f32 0.0, %v6325
        %6327 = vmatprep.mubr.f32.mxu0 0.0
        %6328 = vmatmul.mubr.f32.gmra.mrb[0].mxu0 %v2183
        %v6329 = vpop.f32.mrb[0].mxu0
        %v6330 = vadd.f32 0.0, %v6329
        %v6331 = vpop.f32.mrb[0].mxu0
        %v6332 = vadd.f32 0.0, %v6331
        %6333 = vmatprep.mubr.f32.mxu0 0.0
        %6334 = vmatmul.mubr.f32.gmra.mrb[0].mxu0 %v2186
        %v6335 = vpop.f32.mrb[0].mxu0
        %v6336 = vadd.f32 0.0, %v6335
        %v6337 = vpop.f32.mrb[0].mxu0
        %v6338 = vadd.f32 0.0, %v6337
        %6339 = vmatprep.mubr.f32.mxu0 0.0
        %6340 = vmatmul.mubr.f32.gmra.mrb[0].mxu0 %v2189
        %v6341 = vpop.f32.mrb[0].mxu0
        %v6342 = vadd.f32 0.0, %v6341
        %v6343 = vpop.f32.mrb[0].mxu0
        %v6344 = vadd.f32 0.0, %v6343
        %6345 = vmatprep.mubr.f32.mxu0 0.0
        %6346 = vmatmul.mubr.f32.gmra.mrb[0].mxu0 %v2192
        %v6347 = vpop.f32.mrb[0].mxu0
        %v6348 = vadd.f32 0.0, %v6347
        %v6349 = vpop.f32.mrb[0].mxu0
        %v6350 = vadd.f32 0.0, %v6349
        %6351 = vmatprep.mubr.f32.mxu0 0.0
        %6352 = vmatmul.mubr.f32.gmra.mrb[0].mxu0 %v2195
        %v6353 = vpop.f32.mrb[0].mxu0
        %v6354 = vadd.f32 0.0, %v6353
        %v6355 = vpop.f32.mrb[0].mxu0
        %v6356 = vadd.f32 0.0, %v6355
        %6357 = vmatprep.mubr.f32.mxu0 0.0
        %6358 = vmatmul.mubr.f32.gmra.mrb[0].mxu0 %v2198
        %v6359 = vpop.f32.mrb[0].mxu0
        %v6360 = vadd.f32 0.0, %v6359
        %v6361 = vpop.f32.mrb[0].mxu0
        %v6362 = vadd.f32 0.0, %v6361
        %6363 = vmatprep.mubr.f32.mxu0 0.0
        %6364 = vmatmul.mubr.f32.gmra.mrb[0].mxu0 %v2201
        %v6365 = vpop.f32.mrb[0].mxu0
        %v6366 = vadd.f32 0.0, %v6365
        %v6367 = vpop.f32.mrb[0].mxu0
        %v6368 = vadd.f32 0.0, %v6367
        %6369 = vmatprep.mubr.f32.mxu0 0.0
        %6370 = vmatmul.mubr.f32.gmra.mrb[0].mxu0 %v2204
        %v6371 = vpop.f32.mrb[0].mxu0
        %v6372 = vadd.f32 0.0, %v6371
        %v6373 = vpop.f32.mrb[0].mxu0
        %v6374 = vadd.f32 0.0, %v6373
        %6375 = vmatprep.mubr.f32.mxu0 0.0
        %6376 = vmatmul.mubr.f32.gmra.mrb[0].mxu0 %v2207
        %v6377 = vpop.f32.mrb[0].mxu0
        %v6378 = vadd.f32 0.0, %v6377
        %v6379 = vpop.f32.mrb[0].mxu0
        %v6380 = vadd.f32 0.0, %v6379
        %6381 = vmatprep.mubr.f32.mxu0 0.0
        %6382 = vmatmul.mubr.f32.gmra.mrb[0].mxu0 %v2210
        %v6383 = vpop.f32.mrb[0].mxu0
        %v6384 = vadd.f32 0.0, %v6383
        %v6385 = vpop.f32.mrb[0].mxu0
        %v6386 = vadd.f32 0.0, %v6385
        %6387 = vmatprep.mubr.f32.mxu0 0.0
        %6388 = vmatmul.mubr.f32.gmra.mrb[0].mxu0 %v2213
        %v6389 = vpop.f32.mrb[0].mxu0
        %v6390 = vadd.f32 0.0, %v6389
        %v6391 = vpop.f32.mrb[0].mxu0
        %v6392 = vadd.f32 0.0, %v6391
        %6393 = vmatprep.mubr.f32.mxu0 0.0
        %6394 = vmatmul.mubr.f32.gmra.mrb[0].mxu0 %v2216
        %v6395 = vpop.f32.mrb[0].mxu0
        %v6396 = vadd.f32 0.0, %v6395
        %v6397 = vpop.f32.mrb[0].mxu0
        %v6398 = vadd.f32 0.0, %v6397
        %6399 = vmatprep.mubr.f32.mxu0 0.0
        %6400 = vmatmul.mubr.f32.gmra.mrb[0].mxu0 %v2219
        %v6401 = vpop.f32.mrb[0].mxu0
        %v6402 = vadd.f32 0.0, %v6401
        %v6403 = vpop.f32.mrb[0].mxu0
        %v6404 = vadd.f32 0.0, %v6403
        %6405 = vmatprep.mubr.f32.mxu0 0.0
        %6406 = vmatmul.mubr.f32.gmra.mrb[0].mxu0 %v2222
        %v6407 = vpop.f32.mrb[0].mxu0
        %v6408 = vadd.f32 0.0, %v6407
        %v6409 = vpop.f32.mrb[0].mxu0
        %v6410 = vadd.f32 0.0, %v6409
        %6411 = vmatprep.mubr.f32.mxu0 0.0
        %6412 = vmatmul.mubr.f32.gmra.mrb[0].mxu0 %v2225
        %v6413 = vpop.f32.mrb[0].mxu0
        %v6414 = vadd.f32 0.0, %v6413
        %v6415 = vpop.f32.mrb[0].mxu0
        %v6416 = vadd.f32 0.0, %v6415
        %6417 = vmatprep.mubr.f32.mxu0 0.0
        %6418 = vmatmul.mubr.f32.gmra.mrb[0].mxu0 %v2228
        %v6419 = vpop.f32.mrb[0].mxu0
        %v6420 = vadd.f32 0.0, %v6419
        %v6421 = vpop.f32.mrb[0].mxu0
        %v6422 = vadd.f32 0.0, %v6421
        %6423 = vmatprep.mubr.f32.mxu0 0.0
        %6424 = vmatmul.mubr.f32.gmra.mrb[0].mxu0 %v2231
        %v6425 = vpop.f32.mrb[0].mxu0
        %v6426 = vadd.f32 0.0, %v6425
        %v6427 = vpop.f32.mrb[0].mxu0
        %v6428 = vadd.f32 0.0, %v6427
        %6429 = vmatprep.mubr.f32.mxu0 0.0
        %6430 = vmatmul.mubr.f32.gmra.mrb[0].mxu0 %v2234
        %v6431 = vpop.f32.mrb[0].mxu0
        %v6432 = vadd.f32 0.0, %v6431
        %v6433 = vpop.f32.mrb[0].mxu0
        %v6434 = vadd.f32 0.0, %v6433
        %6435 = vmatprep.mubr.f32.mxu0 0.0
        %6436 = vmatmul.mubr.f32.gmra.mrb[0].mxu0 %v2237
        %v6437 = vpop.f32.mrb[0].mxu0
        %v6438 = vadd.f32 0.0, %v6437
        %v6439 = vpop.f32.mrb[0].mxu0
        %v6440 = vadd.f32 0.0, %v6439
        %6441 = vmatprep.mubr.f32.mxu0 0.0
        %6442 = vmatmul.mubr.f32.gmra.mrb[0].mxu0 %v2240
        %v6443 = vpop.f32.mrb[0].mxu0
        %v6444 = vadd.f32 0.0, %v6443
        %v6445 = vpop.f32.mrb[0].mxu0
        %v6446 = vadd.f32 0.0, %v6445
        %6447 = vmatprep.mubr.f32.mxu0 0.0
        %6448 = vmatmul.mubr.f32.gmra.mrb[0].mxu0 %v2243
        %v6449 = vpop.f32.mrb[0].mxu0
        %v6450 = vadd.f32 0.0, %v6449
        %v6451 = vpop.f32.mrb[0].mxu0
        %v6452 = vadd.f32 0.0, %v6451
        %6453 = vmatprep.mubr.f32.mxu0 0.0
        %6454 = vmatmul.mubr.f32.gmra.mrb[0].mxu0 %v2246
        %v6455 = vpop.f32.mrb[0].mxu0
        %v6456 = vadd.f32 0.0, %v6455
        %v6457 = vpop.f32.mrb[0].mxu0
        %v6458 = vadd.f32 0.0, %v6457
        %6459 = vdwg.mxu0
        %v6460 = vmul.f32 %v6270, %v793
        %v6461 = vmul.f32 %v6272, %v794
        %v6462 = vmul.f32 %v6276, %v795
        %v6463 = vmul.f32 %v6278, %v796
        %v6464 = vmul.f32 %v6282, %v797
        %v6465 = vmul.f32 %v6284, %v798
        %v6466 = vmul.f32 %v6288, %v799
        %v6467 = vmul.f32 %v6290, %v800
        %v6468 = vmul.f32 %v6294, %v801
        %v6469 = vmul.f32 %v6296, %v802
        %v6470 = vmul.f32 %v6300, %v803
        %v6471 = vmul.f32 %v6302, %v804
        %v6472 = vmul.f32 %v6306, %v805
        %v6473 = vmul.f32 %v6308, %v806
        %v6474 = vmul.f32 %v6312, %v807
        %v6475 = vmul.f32 %v6314, %v808
        %v6476 = vmul.f32 %v6318, %v809
        %v6477 = vmul.f32 %v6320, %v810
        %v6478 = vmul.f32 %v6324, %v811
        %v6479 = vmul.f32 %v6326, %v812
        %v6480 = vmul.f32 %v6330, %v813
        %v6481 = vmul.f32 %v6332, %v814
        %v6482 = vmul.f32 %v6336, %v815
        %v6483 = vmul.f32 %v6338, %v816
        %v6484 = vmul.f32 %v6342, %v817
        %v6485 = vmul.f32 %v6344, %v818
        %v6486 = vmul.f32 %v6348, %v819
        %v6487 = vmul.f32 %v6350, %v820
        %v6488 = vmul.f32 %v6354, %v821
        %v6489 = vmul.f32 %v6356, %v822
        %v6490 = vmul.f32 %v6360, %v823
        %v6491 = vmul.f32 %v6362, %v824
        %v6492 = vmul.f32 %v6366, %v825
        %v6493 = vmul.f32 %v6368, %v826
        %v6494 = vmul.f32 %v6372, %v827
        %v6495 = vmul.f32 %v6374, %v828
        %v6496 = vmul.f32 %v6378, %v829
        %v6497 = vmul.f32 %v6380, %v830
        %v6498 = vmul.f32 %v6384, %v831
        %v6499 = vmul.f32 %v6386, %v832
        %v6500 = vmul.f32 %v6390, %v833
        %v6501 = vmul.f32 %v6392, %v834
        %v6502 = vmul.f32 %v6396, %v835
        %v6503 = vmul.f32 %v6398, %v836
        %v6504 = vmul.f32 %v6402, %v837
        %v6505 = vmul.f32 %v6404, %v838
        %v6506 = vmul.f32 %v6408, %v839
        %v6507 = vmul.f32 %v6410, %v840
        %v6508 = vmul.f32 %v6414, %v841
        %v6509 = vmul.f32 %v6416, %v842
        %v6510 = vmul.f32 %v6420, %v843
        %v6511 = vmul.f32 %v6422, %v844
        %v6512 = vmul.f32 %v6426, %v845
        %v6513 = vmul.f32 %v6428, %v846
        %v6514 = vmul.f32 %v6432, %v847
        %v6515 = vmul.f32 %v6434, %v848
        %v6516 = vmul.f32 %v6438, %v849
        %v6517 = vmul.f32 %v6440, %v850
        %v6518 = vmul.f32 %v6444, %v851
        %v6519 = vmul.f32 %v6446, %v852
        %v6520 = vmul.f32 %v6450, %v853
        %v6521 = vmul.f32 %v6452, %v854
        %v6522 = vmul.f32 %v6456, %v855
        %v6523 = vmul.f32 %v6458, %v856
        %6524 = vmatprep.subr.mxu0 %v782
        %6525 = vmatpush1.xpose.msra.mxu0 %v781
        %6526 = vmatprep.subr.mxu0 %v784
        %6527 = vmatpush1.xpose.msra.mxu0 %v783
        %6528 = vmatprep.subr.mxu0 0.0
        %6529 = vmatpush1.xpose.msra.mxu0 0.0
        %6530 = vmatprep.subr.mxu0 0.0
        %6531 = vmatpush1.xpose.msra.mxu0 0.0
        %6532 = vmatprep.subr.mxu0 0.0
        %6533 = vmatpush1.xpose.msra.mxu0 0.0
        %6534 = vmatprep.subr.mxu0 0.0
        %6535 = vmatpush1.xpose.msra.mxu0 0.0
        %6536 = vmatprep.subr.mxu0 0.0
        %6537 = vmatpush1.xpose.msra.mxu0 0.0
        %6538 = vmatprep.subr.mxu0 0.0
        %6539 = vmatpush1.xpose.msra.mxu0 0.0
        %6540 = vmatprep.subr.mxu0 0.0
        %6541 = vmatpush1.xpose.msra.mxu0 0.0
        %6542 = vmatprep.subr.mxu0 0.0
        %6543 = vmatpush1.xpose.msra.mxu0 0.0
        %6544 = vmatprep.subr.mxu0 0.0
        %6545 = vmatpush1.xpose.msra.mxu0 0.0
        %6546 = vmatprep.subr.mxu0 0.0
        %6547 = vmatpush1.xpose.msra.mxu0 0.0
        %6548 = vmatprep.subr.mxu0 0.0
        %6549 = vmatpush1.xpose.msra.mxu0 0.0
        %6550 = vmatprep.subr.mxu0 0.0
        %6551 = vmatpush1.xpose.msra.mxu0 0.0
        %6552 = vmatprep.subr.mxu0 0.0
        %6553 = vmatpush1.xpose.msra.mxu0 0.0
        %6554 = vmatprep.subr.mxu0 0.0
        %6555 = vmatpush1.xpose.msra.mxu0 0.0
        %6556 = vmatprep.subr.mxu0 0.0
        %6557 = vmatpush1.xpose.msra.mxu0 0.0
        %6558 = vmatprep.subr.mxu0 0.0
        %6559 = vmatpush1.xpose.msra.mxu0 0.0
        %6560 = vmatprep.subr.mxu0 0.0
        %6561 = vmatpush1.xpose.msra.mxu0 0.0
        %6562 = vmatprep.subr.mxu0 0.0
        %6563 = vmatpush1.xpose.msra.mxu0 0.0
        %6564 = vmatprep.subr.mxu0 0.0
        %6565 = vmatpush1.xpose.msra.mxu0 0.0
        %6566 = vmatprep.subr.mxu0 0.0
        %6567 = vmatpush1.xpose.msra.mxu0 0.0
        %6568 = vmatprep.subr.mxu0 0.0
        %6569 = vmatpush1.xpose.msra.mxu0 0.0
        %6570 = vmatprep.subr.mxu0 0.0
        %6571 = vmatpush1.xpose.msra.mxu0 0.0
        %6572 = vmatprep.subr.mxu0 0.0
        %6573 = vmatpush1.xpose.msra.mxu0 0.0
        %6574 = vmatprep.subr.mxu0 0.0
        %6575 = vmatpush1.xpose.msra.mxu0 0.0
        %6576 = vmatprep.subr.mxu0 0.0
        %6577 = vmatpush1.xpose.msra.mxu0 0.0
        %6578 = vmatprep.subr.mxu0 0.0
        %6579 = vmatpush1.xpose.msra.mxu0 0.0
        %6580 = vmatprep.subr.mxu0 0.0
        %6581 = vmatpush1.xpose.msra.mxu0 0.0
        %6582 = vmatprep.subr.mxu0 0.0
        %6583 = vmatpush1.xpose.msra.mxu0 0.0
        %6584 = vmatprep.subr.mxu0 0.0
        %6585 = vmatpush1.xpose.msra.mxu0 0.0
        %6586 = vmatprep.subr.mxu0 0.0
        %6587 = vmatpush1.xpose.msra.mxu0 0.0
        %6588 = vmatprep.mubr.f32.mxu0 %v6461
        %6589 = vmatmul.mubr.f32.gmra.mrb[0].mxu0 %v6460
        %v6590 = vpop.f32.mrb[0].mxu0
        %v6591 = vadd.f32 0.0, %v6590
        %v6592 = vpop.f32.mrb[0].mxu0
        %6593 = vmatprep.mubr.f32.mxu0 %v6463
        %6594 = vmatmul.mubr.f32.gmra.mrb[0].mxu0 %v6462
        %v6595 = vpop.f32.mrb[0].mxu0
        %v6596 = vadd.f32 0.0, %v6595
        %v6597 = vpop.f32.mrb[0].mxu0
        %6598 = vmatprep.mubr.f32.mxu0 %v6465
        %6599 = vmatmul.mubr.f32.gmra.mrb[0].mxu0 %v6464
        %v6600 = vpop.f32.mrb[0].mxu0
        %v6601 = vadd.f32 0.0, %v6600
        %v6602 = vpop.f32.mrb[0].mxu0
        %6603 = vmatprep.mubr.f32.mxu0 %v6467
        %6604 = vmatmul.mubr.f32.gmra.mrb[0].mxu0 %v6466
        %v6605 = vpop.f32.mrb[0].mxu0
        %v6606 = vadd.f32 0.0, %v6605
        %v6607 = vpop.f32.mrb[0].mxu0
        %6608 = vmatprep.mubr.f32.mxu0 %v6469
        %6609 = vmatmul.mubr.f32.gmra.mrb[0].mxu0 %v6468
        %v6610 = vpop.f32.mrb[0].mxu0
        %v6611 = vadd.f32 0.0, %v6610
        %v6612 = vpop.f32.mrb[0].mxu0
        %6613 = vmatprep.mubr.f32.mxu0 %v6471
        %6614 = vmatmul.mubr.f32.gmra.mrb[0].mxu0 %v6470
        %v6615 = vpop.f32.mrb[0].mxu0
        %v6616 = vadd.f32 0.0, %v6615
        %v6617 = vpop.f32.mrb[0].mxu0
        %6618 = vmatprep.mubr.f32.mxu0 %v6473
        %6619 = vmatmul.mubr.f32.gmra.mrb[0].mxu0 %v6472
        %v6620 = vpop.f32.mrb[0].mxu0
        %v6621 = vadd.f32 0.0, %v6620
        %v6622 = vpop.f32.mrb[0].mxu0
        %6623 = vmatprep.mubr.f32.mxu0 %v6475
        %6624 = vmatmul.mubr.f32.gmra.mrb[0].mxu0 %v6474
        %v6625 = vpop.f32.mrb[0].mxu0
        %v6626 = vadd.f32 0.0, %v6625
        %v6627 = vpop.f32.mrb[0].mxu0
        %6628 = vmatprep.mubr.f32.mxu0 %v6477
        %6629 = vmatmul.mubr.f32.gmra.mrb[0].mxu0 %v6476
        %v6630 = vpop.f32.mrb[0].mxu0
        %v6631 = vadd.f32 0.0, %v6630
        %v6632 = vpop.f32.mrb[0].mxu0
        %6633 = vmatprep.mubr.f32.mxu0 %v6479
        %6634 = vmatmul.mubr.f32.gmra.mrb[0].mxu0 %v6478
        %v6635 = vpop.f32.mrb[0].mxu0
        %v6636 = vadd.f32 0.0, %v6635
        %v6637 = vpop.f32.mrb[0].mxu0
        %6638 = vmatprep.mubr.f32.mxu0 %v6481
        %6639 = vmatmul.mubr.f32.gmra.mrb[0].mxu0 %v6480
        %v6640 = vpop.f32.mrb[0].mxu0
        %v6641 = vadd.f32 0.0, %v6640
        %v6642 = vpop.f32.mrb[0].mxu0
        %6643 = vmatprep.mubr.f32.mxu0 %v6483
        %6644 = vmatmul.mubr.f32.gmra.mrb[0].mxu0 %v6482
        %v6645 = vpop.f32.mrb[0].mxu0
        %v6646 = vadd.f32 0.0, %v6645
        %v6647 = vpop.f32.mrb[0].mxu0
        %6648 = vmatprep.mubr.f32.mxu0 %v6485
        %6649 = vmatmul.mubr.f32.gmra.mrb[0].mxu0 %v6484
        %v6650 = vpop.f32.mrb[0].mxu0
        %v6651 = vadd.f32 0.0, %v6650
        %v6652 = vpop.f32.mrb[0].mxu0
        %6653 = vmatprep.mubr.f32.mxu0 %v6487
        %6654 = vmatmul.mubr.f32.gmra.mrb[0].mxu0 %v6486
        %v6655 = vpop.f32.mrb[0].mxu0
        %v6656 = vadd.f32 0.0, %v6655
        %v6657 = vpop.f32.mrb[0].mxu0
        %6658 = vmatprep.mubr.f32.mxu0 %v6489
        %6659 = vmatmul.mubr.f32.gmra.mrb[0].mxu0 %v6488
        %v6660 = vpop.f32.mrb[0].mxu0
        %v6661 = vadd.f32 0.0, %v6660
        %v6662 = vpop.f32.mrb[0].mxu0
        %6663 = vmatprep.mubr.f32.mxu0 %v6491
        %6664 = vmatmul.mubr.f32.gmra.mrb[0].mxu0 %v6490
        %v6665 = vpop.f32.mrb[0].mxu0
        %v6666 = vadd.f32 0.0, %v6665
        %v6667 = vpop.f32.mrb[0].mxu0
        %6668 = vmatprep.mubr.f32.mxu0 %v6493
        %6669 = vmatmul.mubr.f32.gmra.mrb[0].mxu0 %v6492
        %v6670 = vpop.f32.mrb[0].mxu0
        %v6671 = vadd.f32 0.0, %v6670
        %v6672 = vpop.f32.mrb[0].mxu0
        %6673 = vmatprep.mubr.f32.mxu0 %v6495
        %6674 = vmatmul.mubr.f32.gmra.mrb[0].mxu0 %v6494
        %v6675 = vpop.f32.mrb[0].mxu0
        %v6676 = vadd.f32 0.0, %v6675
        %v6677 = vpop.f32.mrb[0].mxu0
        %6678 = vmatprep.mubr.f32.mxu0 %v6497
        %6679 = vmatmul.mubr.f32.gmra.mrb[0].mxu0 %v6496
        %v6680 = vpop.f32.mrb[0].mxu0
        %v6681 = vadd.f32 0.0, %v6680
        %v6682 = vpop.f32.mrb[0].mxu0
        %6683 = vmatprep.mubr.f32.mxu0 %v6499
        %6684 = vmatmul.mubr.f32.gmra.mrb[0].mxu0 %v6498
        %v6685 = vpop.f32.mrb[0].mxu0
        %v6686 = vadd.f32 0.0, %v6685
        %v6687 = vpop.f32.mrb[0].mxu0
        %6688 = vmatprep.mubr.f32.mxu0 %v6501
        %6689 = vmatmul.mubr.f32.gmra.mrb[0].mxu0 %v6500
        %v6690 = vpop.f32.mrb[0].mxu0
        %v6691 = vadd.f32 0.0, %v6690
        %v6692 = vpop.f32.mrb[0].mxu0
        %6693 = vmatprep.mubr.f32.mxu0 %v6503
        %6694 = vmatmul.mubr.f32.gmra.mrb[0].mxu0 %v6502
        %v6695 = vpop.f32.mrb[0].mxu0
        %v6696 = vadd.f32 0.0, %v6695
        %v6697 = vpop.f32.mrb[0].mxu0
        %6698 = vmatprep.mubr.f32.mxu0 %v6505
        %6699 = vmatmul.mubr.f32.gmra.mrb[0].mxu0 %v6504
        %v6700 = vpop.f32.mrb[0].mxu0
        %v6701 = vadd.f32 0.0, %v6700
        %v6702 = vpop.f32.mrb[0].mxu0
        %6703 = vmatprep.mubr.f32.mxu0 %v6507
        %6704 = vmatmul.mubr.f32.gmra.mrb[0].mxu0 %v6506
        %v6705 = vpop.f32.mrb[0].mxu0
        %v6706 = vadd.f32 0.0, %v6705
        %v6707 = vpop.f32.mrb[0].mxu0
        %6708 = vmatprep.mubr.f32.mxu0 %v6509
        %6709 = vmatmul.mubr.f32.gmra.mrb[0].mxu0 %v6508
        %v6710 = vpop.f32.mrb[0].mxu0
        %v6711 = vadd.f32 0.0, %v6710
        %v6712 = vpop.f32.mrb[0].mxu0
        %6713 = vmatprep.mubr.f32.mxu0 %v6511
        %6714 = vmatmul.mubr.f32.gmra.mrb[0].mxu0 %v6510
        %v6715 = vpop.f32.mrb[0].mxu0
        %v6716 = vadd.f32 0.0, %v6715
        %v6717 = vpop.f32.mrb[0].mxu0
        %6718 = vmatprep.mubr.f32.mxu0 %v6513
        %6719 = vmatmul.mubr.f32.gmra.mrb[0].mxu0 %v6512
        %v6720 = vpop.f32.mrb[0].mxu0
        %v6721 = vadd.f32 0.0, %v6720
        %v6722 = vpop.f32.mrb[0].mxu0
        %6723 = vmatprep.mubr.f32.mxu0 %v6515
        %6724 = vmatmul.mubr.f32.gmra.mrb[0].mxu0 %v6514
        %v6725 = vpop.f32.mrb[0].mxu0
        %v6726 = vadd.f32 0.0, %v6725
        %v6727 = vpop.f32.mrb[0].mxu0
        %6728 = vmatprep.mubr.f32.mxu0 %v6517
        %6729 = vmatmul.mubr.f32.gmra.mrb[0].mxu0 %v6516
        %v6730 = vpop.f32.mrb[0].mxu0
        %v6731 = vadd.f32 0.0, %v6730
        %v6732 = vpop.f32.mrb[0].mxu0
        %6733 = vmatprep.mubr.f32.mxu0 %v6519
        %6734 = vmatmul.mubr.f32.gmra.mrb[0].mxu0 %v6518
        %v6735 = vpop.f32.mrb[0].mxu0
        %v6736 = vadd.f32 0.0, %v6735
        %v6737 = vpop.f32.mrb[0].mxu0
        %6738 = vmatprep.mubr.f32.mxu0 %v6521
        %6739 = vmatmul.mubr.f32.gmra.mrb[0].mxu0 %v6520
        %v6740 = vpop.f32.mrb[0].mxu0
        %v6741 = vadd.f32 0.0, %v6740
        %v6742 = vpop.f32.mrb[0].mxu0
        %6743 = vmatprep.mubr.f32.mxu0 %v6523
        %6744 = vmatmul.mubr.f32.gmra.mrb[0].mxu0 %v6522
        %v6745 = vpop.f32.mrb[0].mxu0
        %v6746 = vadd.f32 0.0, %v6745
        %v6747 = vpop.f32.mrb[0].mxu0
        %6748 = vdwg.mxu0
        %v6750 = vsel %vm1017, %v6045, 0
        %v6753 = vsel %vm1017, %v6050, 0
        %v6756 = vsel %vm1017, %v6055, 0
        %v6759 = vsel %vm1017, %v6060, 0
        %v6762 = vsel %vm1017, %v6065, 0
        %v6765 = vsel %vm1017, %v6070, 0
        %v6768 = vsel %vm1017, %v6075, 0
        %v6771 = vsel %vm1017, %v6080, 0
        %v6774 = vsel %vm1017, %v6085, 0
        %v6777 = vsel %vm1017, %v6090, 0
        %v6780 = vsel %vm1017, %v6095, 0
        %v6783 = vsel %vm1017, %v6100, 0
        %v6786 = vsel %vm1017, %v6105, 0
        %v6789 = vsel %vm1017, %v6110, 0
        %v6792 = vsel %vm1017, %v6115, 0
        %v6795 = vsel %vm1017, %v6120, 0
        %v6798 = vsel %vm1017, %v6125, 0
        %v6801 = vsel %vm1017, %v6130, 0
        %v6804 = vsel %vm1017, %v6135, 0
        %v6807 = vsel %vm1017, %v6140, 0
        %v6810 = vsel %vm1017, %v6145, 0
        %v6813 = vsel %vm1017, %v6150, 0
        %v6816 = vsel %vm1017, %v6155, 0
        %v6819 = vsel %vm1017, %v6160, 0
        %v6822 = vsel %vm1017, %v6165, 0
        %v6825 = vsel %vm1017, %v6170, 0
        %v6828 = vsel %vm1017, %v6175, 0
        %v6831 = vsel %vm1017, %v6180, 0
        %v6834 = vsel %vm1017, %v6185, 0
        %v6837 = vsel %vm1017, %v6190, 0
        %v6840 = vsel %vm1017, %v6195, 0
        %v6843 = vsel %vm1017, %v6200, 0
        %6845 = vmatprep.subr.mxu0 %v790
        %6846 = vmatpush1.msra.mxu0 %v789
        %6847 = vmatprep.subr.mxu0 %v792
        %6848 = vmatpush1.msra.mxu0 %v791
        %6849 = vmatprep.subr.mxu0 0.0
        %6850 = vmatpush1.msra.mxu0 0.0
        %6851 = vmatprep.subr.mxu0 0.0
        %6852 = vmatpush1.msra.mxu0 0.0
        %6853 = vmatprep.subr.mxu0 0.0
        %6854 = vmatpush1.msra.mxu0 0.0
        %6855 = vmatprep.subr.mxu0 0.0
        %6856 = vmatpush1.msra.mxu0 0.0
        %6857 = vmatprep.subr.mxu0 0.0
        %6858 = vmatpush1.msra.mxu0 0.0
        %6859 = vmatprep.subr.mxu0 0.0
        %6860 = vmatpush1.msra.mxu0 0.0
        %6861 = vmatprep.subr.mxu0 0.0
        %6862 = vmatpush1.msra.mxu0 0.0
        %6863 = vmatprep.subr.mxu0 0.0
        %6864 = vmatpush1.msra.mxu0 0.0
        %6865 = vmatprep.subr.mxu0 0.0
        %6866 = vmatpush1.msra.mxu0 0.0
        %6867 = vmatprep.subr.mxu0 0.0
        %6868 = vmatpush1.msra.mxu0 0.0
        %6869 = vmatprep.subr.mxu0 0.0
        %6870 = vmatpush1.msra.mxu0 0.0
        %6871 = vmatprep.subr.mxu0 0.0
        %6872 = vmatpush1.msra.mxu0 0.0
        %6873 = vmatprep.subr.mxu0 0.0
        %6874 = vmatpush1.msra.mxu0 0.0
        %6875 = vmatprep.subr.mxu0 0.0
        %6876 = vmatpush1.msra.mxu0 0.0
        %6877 = vmatprep.subr.mxu0 0.0
        %6878 = vmatpush1.msra.mxu0 0.0
        %6879 = vmatprep.subr.mxu0 0.0
        %6880 = vmatpush1.msra.mxu0 0.0
        %6881 = vmatprep.subr.mxu0 0.0
        %6882 = vmatpush1.msra.mxu0 0.0
        %6883 = vmatprep.subr.mxu0 0.0
        %6884 = vmatpush1.msra.mxu0 0.0
        %6885 = vmatprep.subr.mxu0 0.0
        %6886 = vmatpush1.msra.mxu0 0.0
        %6887 = vmatprep.subr.mxu0 0.0
        %6888 = vmatpush1.msra.mxu0 0.0
        %6889 = vmatprep.subr.mxu0 0.0
        %6890 = vmatpush1.msra.mxu0 0.0
        %6891 = vmatprep.subr.mxu0 0.0
        %6892 = vmatpush1.msra.mxu0 0.0
        %6893 = vmatprep.subr.mxu0 0.0
        %6894 = vmatpush1.msra.mxu0 0.0
        %6895 = vmatprep.subr.mxu0 0.0
        %6896 = vmatpush1.msra.mxu0 0.0
        %6897 = vmatprep.subr.mxu0 0.0
        %6898 = vmatpush1.msra.mxu0 0.0
        %6899 = vmatprep.subr.mxu0 0.0
        %6900 = vmatpush1.msra.mxu0 0.0
        %6901 = vmatprep.subr.mxu0 0.0
        %6902 = vmatpush1.msra.mxu0 0.0
        %6903 = vmatprep.subr.mxu0 0.0
        %6904 = vmatpush1.msra.mxu0 0.0
        %6905 = vmatprep.subr.mxu0 0.0
        %6906 = vmatpush1.msra.mxu0 0.0
        %6907 = vmatprep.subr.mxu0 0.0
        %6908 = vmatpush1.msra.mxu0 0.0
        %6909 = vmatprep.mubr.f32.mxu0 0.0
        %6910 = vmatmul.mubr.f32.gmra.mrb[0].mxu0 %v6750
        %v6911 = vpop.f32.mrb[0].mxu0
        %v6912 = vadd.f32 0.0, %v6911
        %v6913 = vpop.f32.mrb[0].mxu0
        %v6914 = vadd.f32 0.0, %v6913
        %6915 = vmatprep.mubr.f32.mxu0 0.0
        %6916 = vmatmul.mubr.f32.gmra.mrb[0].mxu0 %v6753
        %v6917 = vpop.f32.mrb[0].mxu0
        %v6918 = vadd.f32 0.0, %v6917
        %v6919 = vpop.f32.mrb[0].mxu0
        %v6920 = vadd.f32 0.0, %v6919
        %6921 = vmatprep.mubr.f32.mxu0 0.0
        %6922 = vmatmul.mubr.f32.gmra.mrb[0].mxu0 %v6756
        %v6923 = vpop.f32.mrb[0].mxu0
        %v6924 = vadd.f32 0.0, %v6923
        %v6925 = vpop.f32.mrb[0].mxu0
        %v6926 = vadd.f32 0.0, %v6925
        %6927 = vmatprep.mubr.f32.mxu0 0.0
        %6928 = vmatmul.mubr.f32.gmra.mrb[0].mxu0 %v6759
        %v6929 = vpop.f32.mrb[0].mxu0
        %v6930 = vadd.f32 0.0, %v6929
        %v6931 = vpop.f32.mrb[0].mxu0
        %v6932 = vadd.f32 0.0, %v6931
        %6933 = vmatprep.mubr.f32.mxu0 0.0
        %6934 = vmatmul.mubr.f32.gmra.mrb[0].mxu0 %v6762
        %v6935 = vpop.f32.mrb[0].mxu0
        %v6936 = vadd.f32 0.0, %v6935
        %v6937 = vpop.f32.mrb[0].mxu0
        %v6938 = vadd.f32 0.0, %v6937
        %6939 = vmatprep.mubr.f32.mxu0 0.0
        %6940 = vmatmul.mubr.f32.gmra.mrb[0].mxu0 %v6765
        %v6941 = vpop.f32.mrb[0].mxu0
        %v6942 = vadd.f32 0.0, %v6941
        %v6943 = vpop.f32.mrb[0].mxu0
        %v6944 = vadd.f32 0.0, %v6943
        %6945 = vmatprep.mubr.f32.mxu0 0.0
        %6946 = vmatmul.mubr.f32.gmra.mrb[0].mxu0 %v6768
        %v6947 = vpop.f32.mrb[0].mxu0
        %v6948 = vadd.f32 0.0, %v6947
        %v6949 = vpop.f32.mrb[0].mxu0
        %v6950 = vadd.f32 0.0, %v6949
        %6951 = vmatprep.mubr.f32.mxu0 0.0
        %6952 = vmatmul.mubr.f32.gmra.mrb[0].mxu0 %v6771
        %v6953 = vpop.f32.mrb[0].mxu0
        %v6954 = vadd.f32 0.0, %v6953
        %v6955 = vpop.f32.mrb[0].mxu0
        %v6956 = vadd.f32 0.0, %v6955
        %6957 = vmatprep.mubr.f32.mxu0 0.0
        %6958 = vmatmul.mubr.f32.gmra.mrb[0].mxu0 %v6774
        %v6959 = vpop.f32.mrb[0].mxu0
        %v6960 = vadd.f32 0.0, %v6959
        %v6961 = vpop.f32.mrb[0].mxu0
        %v6962 = vadd.f32 0.0, %v6961
        %6963 = vmatprep.mubr.f32.mxu0 0.0
        %6964 = vmatmul.mubr.f32.gmra.mrb[0].mxu0 %v6777
        %v6965 = vpop.f32.mrb[0].mxu0
        %v6966 = vadd.f32 0.0, %v6965
        %v6967 = vpop.f32.mrb[0].mxu0
        %v6968 = vadd.f32 0.0, %v6967
        %6969 = vmatprep.mubr.f32.mxu0 0.0
        %6970 = vmatmul.mubr.f32.gmra.mrb[0].mxu0 %v6780
        %v6971 = vpop.f32.mrb[0].mxu0
        %v6972 = vadd.f32 0.0, %v6971
        %v6973 = vpop.f32.mrb[0].mxu0
        %v6974 = vadd.f32 0.0, %v6973
        %6975 = vmatprep.mubr.f32.mxu0 0.0
        %6976 = vmatmul.mubr.f32.gmra.mrb[0].mxu0 %v6783
        %v6977 = vpop.f32.mrb[0].mxu0
        %v6978 = vadd.f32 0.0, %v6977
        %v6979 = vpop.f32.mrb[0].mxu0
        %v6980 = vadd.f32 0.0, %v6979
        %6981 = vmatprep.mubr.f32.mxu0 0.0
        %6982 = vmatmul.mubr.f32.gmra.mrb[0].mxu0 %v6786
        %v6983 = vpop.f32.mrb[0].mxu0
        %v6984 = vadd.f32 0.0, %v6983
        %v6985 = vpop.f32.mrb[0].mxu0
        %v6986 = vadd.f32 0.0, %v6985
        %6987 = vmatprep.mubr.f32.mxu0 0.0
        %6988 = vmatmul.mubr.f32.gmra.mrb[0].mxu0 %v6789
        %v6989 = vpop.f32.mrb[0].mxu0
        %v6990 = vadd.f32 0.0, %v6989
        %v6991 = vpop.f32.mrb[0].mxu0
        %v6992 = vadd.f32 0.0, %v6991
        %6993 = vmatprep.mubr.f32.mxu0 0.0
        %6994 = vmatmul.mubr.f32.gmra.mrb[0].mxu0 %v6792
        %v6995 = vpop.f32.mrb[0].mxu0
        %v6996 = vadd.f32 0.0, %v6995
        %v6997 = vpop.f32.mrb[0].mxu0
        %v6998 = vadd.f32 0.0, %v6997
        %6999 = vmatprep.mubr.f32.mxu0 0.0
        %7000 = vmatmul.mubr.f32.gmra.mrb[0].mxu0 %v6795
        %v7001 = vpop.f32.mrb[0].mxu0
        %v7002 = vadd.f32 0.0, %v7001
        %v7003 = vpop.f32.mrb[0].mxu0
        %v7004 = vadd.f32 0.0, %v7003
        %7005 = vmatprep.mubr.f32.mxu0 0.0
        %7006 = vmatmul.mubr.f32.gmra.mrb[0].mxu0 %v6798
        %v7007 = vpop.f32.mrb[0].mxu0
        %v7008 = vadd.f32 0.0, %v7007
        %v7009 = vpop.f32.mrb[0].mxu0
        %v7010 = vadd.f32 0.0, %v7009
        %7011 = vmatprep.mubr.f32.mxu0 0.0
        %7012 = vmatmul.mubr.f32.gmra.mrb[0].mxu0 %v6801
        %v7013 = vpop.f32.mrb[0].mxu0
        %v7014 = vadd.f32 0.0, %v7013
        %v7015 = vpop.f32.mrb[0].mxu0
        %v7016 = vadd.f32 0.0, %v7015
        %7017 = vmatprep.mubr.f32.mxu0 0.0
        %7018 = vmatmul.mubr.f32.gmra.mrb[0].mxu0 %v6804
        %v7019 = vpop.f32.mrb[0].mxu0
        %v7020 = vadd.f32 0.0, %v7019
        %v7021 = vpop.f32.mrb[0].mxu0
        %v7022 = vadd.f32 0.0, %v7021
        %7023 = vmatprep.mubr.f32.mxu0 0.0
        %7024 = vmatmul.mubr.f32.gmra.mrb[0].mxu0 %v6807
        %v7025 = vpop.f32.mrb[0].mxu0
        %v7026 = vadd.f32 0.0, %v7025
        %v7027 = vpop.f32.mrb[0].mxu0
        %v7028 = vadd.f32 0.0, %v7027
        %7029 = vmatprep.mubr.f32.mxu0 0.0
        %7030 = vmatmul.mubr.f32.gmra.mrb[0].mxu0 %v6810
        %v7031 = vpop.f32.mrb[0].mxu0
        %v7032 = vadd.f32 0.0, %v7031
        %v7033 = vpop.f32.mrb[0].mxu0
        %v7034 = vadd.f32 0.0, %v7033
        %7035 = vmatprep.mubr.f32.mxu0 0.0
        %7036 = vmatmul.mubr.f32.gmra.mrb[0].mxu0 %v6813
        %v7037 = vpop.f32.mrb[0].mxu0
        %v7038 = vadd.f32 0.0, %v7037
        %v7039 = vpop.f32.mrb[0].mxu0
        %v7040 = vadd.f32 0.0, %v7039
        %7041 = vmatprep.mubr.f32.mxu0 0.0
        %7042 = vmatmul.mubr.f32.gmra.mrb[0].mxu0 %v6816
        %v7043 = vpop.f32.mrb[0].mxu0
        %v7044 = vadd.f32 0.0, %v7043
        %v7045 = vpop.f32.mrb[0].mxu0
        %v7046 = vadd.f32 0.0, %v7045
        %7047 = vmatprep.mubr.f32.mxu0 0.0
        %7048 = vmatmul.mubr.f32.gmra.mrb[0].mxu0 %v6819
        %v7049 = vpop.f32.mrb[0].mxu0
        %v7050 = vadd.f32 0.0, %v7049
        %v7051 = vpop.f32.mrb[0].mxu0
        %v7052 = vadd.f32 0.0, %v7051
        %7053 = vmatprep.mubr.f32.mxu0 0.0
        %7054 = vmatmul.mubr.f32.gmra.mrb[0].mxu0 %v6822
        %v7055 = vpop.f32.mrb[0].mxu0
        %v7056 = vadd.f32 0.0, %v7055
        %v7057 = vpop.f32.mrb[0].mxu0
        %v7058 = vadd.f32 0.0, %v7057
        %7059 = vmatprep.mubr.f32.mxu0 0.0
        %7060 = vmatmul.mubr.f32.gmra.mrb[0].mxu0 %v6825
        %v7061 = vpop.f32.mrb[0].mxu0
        %v7062 = vadd.f32 0.0, %v7061
        %v7063 = vpop.f32.mrb[0].mxu0
        %v7064 = vadd.f32 0.0, %v7063
        %7065 = vmatprep.mubr.f32.mxu0 0.0
        %7066 = vmatmul.mubr.f32.gmra.mrb[0].mxu0 %v6828
        %v7067 = vpop.f32.mrb[0].mxu0
        %v7068 = vadd.f32 0.0, %v7067
        %v7069 = vpop.f32.mrb[0].mxu0
        %v7070 = vadd.f32 0.0, %v7069
        %7071 = vmatprep.mubr.f32.mxu0 0.0
        %7072 = vmatmul.mubr.f32.gmra.mrb[0].mxu0 %v6831
        %v7073 = vpop.f32.mrb[0].mxu0
        %v7074 = vadd.f32 0.0, %v7073
        %v7075 = vpop.f32.mrb[0].mxu0
        %v7076 = vadd.f32 0.0, %v7075
        %7077 = vmatprep.mubr.f32.mxu0 0.0
        %7078 = vmatmul.mubr.f32.gmra.mrb[0].mxu0 %v6834
        %v7079 = vpop.f32.mrb[0].mxu0
        %v7080 = vadd.f32 0.0, %v7079
        %v7081 = vpop.f32.mrb[0].mxu0
        %v7082 = vadd.f32 0.0, %v7081
        %7083 = vmatprep.mubr.f32.mxu0 0.0
        %7084 = vmatmul.mubr.f32.gmra.mrb[0].mxu0 %v6837
        %v7085 = vpop.f32.mrb[0].mxu0
        %v7086 = vadd.f32 0.0, %v7085
        %v7087 = vpop.f32.mrb[0].mxu0
        %v7088 = vadd.f32 0.0, %v7087
        %7089 = vmatprep.mubr.f32.mxu0 0.0
        %7090 = vmatmul.mubr.f32.gmra.mrb[0].mxu0 %v6840
        %v7091 = vpop.f32.mrb[0].mxu0
        %v7092 = vadd.f32 0.0, %v7091
        %v7093 = vpop.f32.mrb[0].mxu0
        %v7094 = vadd.f32 0.0, %v7093
        %7095 = vmatprep.mubr.f32.mxu0 0.0
        %7096 = vmatmul.mubr.f32.gmra.mrb[0].mxu0 %v6843
        %v7097 = vpop.f32.mrb[0].mxu0
        %v7098 = vadd.f32 0.0, %v7097
        %v7099 = vpop.f32.mrb[0].mxu0
        %v7100 = vadd.f32 0.0, %v7099
        %7101 = vdwg.mxu0
        %v7102 = vmul.f32 %v6912, %v857
        %v7103 = vmul.f32 %v6914, %v858
        %v7104 = vmul.f32 %v6918, %v859
        %v7105 = vmul.f32 %v6920, %v860
        %v7106 = vmul.f32 %v6924, %v861
        %v7107 = vmul.f32 %v6926, %v862
        %v7108 = vmul.f32 %v6930, %v863
        %v7109 = vmul.f32 %v6932, %v864
        %v7110 = vmul.f32 %v6936, %v865
        %v7111 = vmul.f32 %v6938, %v866
        %v7112 = vmul.f32 %v6942, %v867
        %v7113 = vmul.f32 %v6944, %v868
        %v7114 = vmul.f32 %v6948, %v869
        %v7115 = vmul.f32 %v6950, %v870
        %v7116 = vmul.f32 %v6954, %v871
        %v7117 = vmul.f32 %v6956, %v872
        %v7118 = vmul.f32 %v6960, %v873
        %v7119 = vmul.f32 %v6962, %v874
        %v7120 = vmul.f32 %v6966, %v875
        %v7121 = vmul.f32 %v6968, %v876
        %v7122 = vmul.f32 %v6972, %v877
        %v7123 = vmul.f32 %v6974, %v878
        %v7124 = vmul.f32 %v6978, %v879
        %v7125 = vmul.f32 %v6980, %v880
        %v7126 = vmul.f32 %v6984, %v881
        %v7127 = vmul.f32 %v6986, %v882
        %v7128 = vmul.f32 %v6990, %v883
        %v7129 = vmul.f32 %v6992, %v884
        %v7130 = vmul.f32 %v6996, %v885
        %v7131 = vmul.f32 %v6998, %v886
        %v7132 = vmul.f32 %v7002, %v887
        %v7133 = vmul.f32 %v7004, %v888
        %v7134 = vmul.f32 %v7008, %v889
        %v7135 = vmul.f32 %v7010, %v890
        %v7136 = vmul.f32 %v7014, %v891
        %v7137 = vmul.f32 %v7016, %v892
        %v7138 = vmul.f32 %v7020, %v893
        %v7139 = vmul.f32 %v7022, %v894
        %v7140 = vmul.f32 %v7026, %v895
        %v7141 = vmul.f32 %v7028, %v896
        %v7142 = vmul.f32 %v7032, %v897
        %v7143 = vmul.f32 %v7034, %v898
        %v7144 = vmul.f32 %v7038, %v899
        %v7145 = vmul.f32 %v7040, %v900
        %v7146 = vmul.f32 %v7044, %v901
        %v7147 = vmul.f32 %v7046, %v902
        %v7148 = vmul.f32 %v7050, %v903
        %v7149 = vmul.f32 %v7052, %v904
        %v7150 = vmul.f32 %v7056, %v905
        %v7151 = vmul.f32 %v7058, %v906
        %v7152 = vmul.f32 %v7062, %v907
        %v7153 = vmul.f32 %v7064, %v908
        %v7154 = vmul.f32 %v7068, %v909
        %v7155 = vmul.f32 %v7070, %v910
        %v7156 = vmul.f32 %v7074, %v911
        %v7157 = vmul.f32 %v7076, %v912
        %v7158 = vmul.f32 %v7080, %v913
        %v7159 = vmul.f32 %v7082, %v914
        %v7160 = vmul.f32 %v7086, %v915
        %v7161 = vmul.f32 %v7088, %v916
        %v7162 = vmul.f32 %v7092, %v917
        %v7163 = vmul.f32 %v7094, %v918
        %v7164 = vmul.f32 %v7098, %v919
        %v7165 = vmul.f32 %v7100, %v920
        %7166 = vmatprep.subr.mxu0 0.0
        %7167 = vmatpush1.msra.mxu0 %v6591
        %7168 = vmatprep.subr.mxu0 0.0
        %7169 = vmatpush1.msra.mxu0 %v6596
        %7170 = vmatprep.subr.mxu0 0.0
        %7171 = vmatpush1.msra.mxu0 %v6601
        %7172 = vmatprep.subr.mxu0 0.0
        %7173 = vmatpush1.msra.mxu0 %v6606
        %7174 = vmatprep.subr.mxu0 0.0
        %7175 = vmatpush1.msra.mxu0 %v6611
        %7176 = vmatprep.subr.mxu0 0.0
        %7177 = vmatpush1.msra.mxu0 %v6616
        %7178 = vmatprep.subr.mxu0 0.0
        %7179 = vmatpush1.msra.mxu0 %v6621
        %7180 = vmatprep.subr.mxu0 0.0
        %7181 = vmatpush1.msra.mxu0 %v6626
        %7182 = vmatprep.subr.mxu0 0.0
        %7183 = vmatpush1.msra.mxu0 %v6631
        %7184 = vmatprep.subr.mxu0 0.0
        %7185 = vmatpush1.msra.mxu0 %v6636
        %7186 = vmatprep.subr.mxu0 0.0
        %7187 = vmatpush1.msra.mxu0 %v6641
        %7188 = vmatprep.subr.mxu0 0.0
        %7189 = vmatpush1.msra.mxu0 %v6646
        %7190 = vmatprep.subr.mxu0 0.0
        %7191 = vmatpush1.msra.mxu0 %v6651
        %7192 = vmatprep.subr.mxu0 0.0
        %7193 = vmatpush1.msra.mxu0 %v6656
        %7194 = vmatprep.subr.mxu0 0.0
        %7195 = vmatpush1.msra.mxu0 %v6661
        %7196 = vmatprep.subr.mxu0 0.0
        %7197 = vmatpush1.msra.mxu0 %v6666
        %7198 = vmatprep.subr.mxu0 0.0
        %7199 = vmatpush1.msra.mxu0 %v6671
        %7200 = vmatprep.subr.mxu0 0.0
        %7201 = vmatpush1.msra.mxu0 %v6676
        %7202 = vmatprep.subr.mxu0 0.0
        %7203 = vmatpush1.msra.mxu0 %v6681
        %7204 = vmatprep.subr.mxu0 0.0
        %7205 = vmatpush1.msra.mxu0 %v6686
        %7206 = vmatprep.subr.mxu0 0.0
        %7207 = vmatpush1.msra.mxu0 %v6691
        %7208 = vmatprep.subr.mxu0 0.0
        %7209 = vmatpush1.msra.mxu0 %v6696
        %7210 = vmatprep.subr.mxu0 0.0
        %7211 = vmatpush1.msra.mxu0 %v6701
        %7212 = vmatprep.subr.mxu0 0.0
        %7213 = vmatpush1.msra.mxu0 %v6706
        %7214 = vmatprep.subr.mxu0 0.0
        %7215 = vmatpush1.msra.mxu0 %v6711
        %7216 = vmatprep.subr.mxu0 0.0
        %7217 = vmatpush1.msra.mxu0 %v6716
        %7218 = vmatprep.subr.mxu0 0.0
        %7219 = vmatpush1.msra.mxu0 %v6721
        %7220 = vmatprep.subr.mxu0 0.0
        %7221 = vmatpush1.msra.mxu0 %v6726
        %7222 = vmatprep.subr.mxu0 0.0
        %7223 = vmatpush1.msra.mxu0 %v6731
        %7224 = vmatprep.subr.mxu0 0.0
        %7225 = vmatpush1.msra.mxu0 %v6736
        %7226 = vmatprep.subr.mxu0 0.0
        %7227 = vmatpush1.msra.mxu0 %v6741
        %7228 = vmatprep.subr.mxu0 0.0
        %7229 = vmatpush1.msra.mxu0 %v6746
        %7230 = vmatprep.mubr.f32.mxu0 %v7103
        %7231 = vmatmul.mubr.f32.gmra.mrb[0].mxu0 %v7102
        %v7232 = vpop.f32.mrb[0].mxu0
        %v7233 = vadd.f32 0.0, %v7232
        %v7234 = vpop.f32.mrb[0].mxu0
        %7235 = vmatprep.mubr.f32.mxu0 %v7105
        %7236 = vmatmul.mubr.f32.gmra.mrb[0].mxu0 %v7104
        %v7237 = vpop.f32.mrb[0].mxu0
        %v7238 = vadd.f32 0.0, %v7237
        %v7239 = vpop.f32.mrb[0].mxu0
        %7240 = vmatprep.mubr.f32.mxu0 %v7107
        %7241 = vmatmul.mubr.f32.gmra.mrb[0].mxu0 %v7106
        %v7242 = vpop.f32.mrb[0].mxu0
        %v7243 = vadd.f32 0.0, %v7242
        %v7244 = vpop.f32.mrb[0].mxu0
        %7245 = vmatprep.mubr.f32.mxu0 %v7109
        %7246 = vmatmul.mubr.f32.gmra.mrb[0].mxu0 %v7108
        %v7247 = vpop.f32.mrb[0].mxu0
        %v7248 = vadd.f32 0.0, %v7247
        %v7249 = vpop.f32.mrb[0].mxu0
        %7250 = vmatprep.mubr.f32.mxu0 %v7111
        %7251 = vmatmul.mubr.f32.gmra.mrb[0].mxu0 %v7110
        %v7252 = vpop.f32.mrb[0].mxu0
        %v7253 = vadd.f32 0.0, %v7252
        %v7254 = vpop.f32.mrb[0].mxu0
        %7255 = vmatprep.mubr.f32.mxu0 %v7113
        %7256 = vmatmul.mubr.f32.gmra.mrb[0].mxu0 %v7112
        %v7257 = vpop.f32.mrb[0].mxu0
        %v7258 = vadd.f32 0.0, %v7257
        %v7259 = vpop.f32.mrb[0].mxu0
        %7260 = vmatprep.mubr.f32.mxu0 %v7115
        %7261 = vmatmul.mubr.f32.gmra.mrb[0].mxu0 %v7114
        %v7262 = vpop.f32.mrb[0].mxu0
        %v7263 = vadd.f32 0.0, %v7262
        %v7264 = vpop.f32.mrb[0].mxu0
        %7265 = vmatprep.mubr.f32.mxu0 %v7117
        %7266 = vmatmul.mubr.f32.gmra.mrb[0].mxu0 %v7116
        %v7267 = vpop.f32.mrb[0].mxu0
        %v7268 = vadd.f32 0.0, %v7267
        %v7269 = vpop.f32.mrb[0].mxu0
        %7270 = vmatprep.mubr.f32.mxu0 %v7119
        %7271 = vmatmul.mubr.f32.gmra.mrb[0].mxu0 %v7118
        %v7272 = vpop.f32.mrb[0].mxu0
        %v7273 = vadd.f32 0.0, %v7272
        %v7274 = vpop.f32.mrb[0].mxu0
        %7275 = vmatprep.mubr.f32.mxu0 %v7121
        %7276 = vmatmul.mubr.f32.gmra.mrb[0].mxu0 %v7120
        %v7277 = vpop.f32.mrb[0].mxu0
        %v7278 = vadd.f32 0.0, %v7277
        %v7279 = vpop.f32.mrb[0].mxu0
        %7280 = vmatprep.mubr.f32.mxu0 %v7123
        %7281 = vmatmul.mubr.f32.gmra.mrb[0].mxu0 %v7122
        %v7282 = vpop.f32.mrb[0].mxu0
        %v7283 = vadd.f32 0.0, %v7282
        %v7284 = vpop.f32.mrb[0].mxu0
        %7285 = vmatprep.mubr.f32.mxu0 %v7125
        %7286 = vmatmul.mubr.f32.gmra.mrb[0].mxu0 %v7124
        %v7287 = vpop.f32.mrb[0].mxu0
        %v7288 = vadd.f32 0.0, %v7287
        %v7289 = vpop.f32.mrb[0].mxu0
        %7290 = vmatprep.mubr.f32.mxu0 %v7127
        %7291 = vmatmul.mubr.f32.gmra.mrb[0].mxu0 %v7126
        %v7292 = vpop.f32.mrb[0].mxu0
        %v7293 = vadd.f32 0.0, %v7292
        %v7294 = vpop.f32.mrb[0].mxu0
        %7295 = vmatprep.mubr.f32.mxu0 %v7129
        %7296 = vmatmul.mubr.f32.gmra.mrb[0].mxu0 %v7128
        %v7297 = vpop.f32.mrb[0].mxu0
        %v7298 = vadd.f32 0.0, %v7297
        %v7299 = vpop.f32.mrb[0].mxu0
        %7300 = vmatprep.mubr.f32.mxu0 %v7131
        %7301 = vmatmul.mubr.f32.gmra.mrb[0].mxu0 %v7130
        %v7302 = vpop.f32.mrb[0].mxu0
        %v7303 = vadd.f32 0.0, %v7302
        %v7304 = vpop.f32.mrb[0].mxu0
        %7305 = vmatprep.mubr.f32.mxu0 %v7133
        %7306 = vmatmul.mubr.f32.gmra.mrb[0].mxu0 %v7132
        %v7307 = vpop.f32.mrb[0].mxu0
        %v7308 = vadd.f32 0.0, %v7307
        %v7309 = vpop.f32.mrb[0].mxu0
        %7310 = vmatprep.mubr.f32.mxu0 %v7135
        %7311 = vmatmul.mubr.f32.gmra.mrb[0].mxu0 %v7134
        %v7312 = vpop.f32.mrb[0].mxu0
        %v7313 = vadd.f32 0.0, %v7312
        %v7314 = vpop.f32.mrb[0].mxu0
        %7315 = vmatprep.mubr.f32.mxu0 %v7137
        %7316 = vmatmul.mubr.f32.gmra.mrb[0].mxu0 %v7136
        %v7317 = vpop.f32.mrb[0].mxu0
        %v7318 = vadd.f32 0.0, %v7317
        %v7319 = vpop.f32.mrb[0].mxu0
        %7320 = vmatprep.mubr.f32.mxu0 %v7139
        %7321 = vmatmul.mubr.f32.gmra.mrb[0].mxu0 %v7138
        %v7322 = vpop.f32.mrb[0].mxu0
        %v7323 = vadd.f32 0.0, %v7322
        %v7324 = vpop.f32.mrb[0].mxu0
        %7325 = vmatprep.mubr.f32.mxu0 %v7141
        %7326 = vmatmul.mubr.f32.gmra.mrb[0].mxu0 %v7140
        %v7327 = vpop.f32.mrb[0].mxu0
        %v7328 = vadd.f32 0.0, %v7327
        %v7329 = vpop.f32.mrb[0].mxu0
        %7330 = vmatprep.mubr.f32.mxu0 %v7143
        %7331 = vmatmul.mubr.f32.gmra.mrb[0].mxu0 %v7142
        %v7332 = vpop.f32.mrb[0].mxu0
        %v7333 = vadd.f32 0.0, %v7332
        %v7334 = vpop.f32.mrb[0].mxu0
        %7335 = vmatprep.mubr.f32.mxu0 %v7145
        %7336 = vmatmul.mubr.f32.gmra.mrb[0].mxu0 %v7144
        %v7337 = vpop.f32.mrb[0].mxu0
        %v7338 = vadd.f32 0.0, %v7337
        %v7339 = vpop.f32.mrb[0].mxu0
        %7340 = vmatprep.mubr.f32.mxu0 %v7147
        %7341 = vmatmul.mubr.f32.gmra.mrb[0].mxu0 %v7146
        %v7342 = vpop.f32.mrb[0].mxu0
        %v7343 = vadd.f32 0.0, %v7342
        %v7344 = vpop.f32.mrb[0].mxu0
        %7345 = vmatprep.mubr.f32.mxu0 %v7149
        %7346 = vmatmul.mubr.f32.gmra.mrb[0].mxu0 %v7148
        %v7347 = vpop.f32.mrb[0].mxu0
        %v7348 = vadd.f32 0.0, %v7347
        %v7349 = vpop.f32.mrb[0].mxu0
        %7350 = vmatprep.mubr.f32.mxu0 %v7151
        %7351 = vmatmul.mubr.f32.gmra.mrb[0].mxu0 %v7150
        %v7352 = vpop.f32.mrb[0].mxu0
        %v7353 = vadd.f32 0.0, %v7352
        %v7354 = vpop.f32.mrb[0].mxu0
        %7355 = vmatprep.mubr.f32.mxu0 %v7153
        %7356 = vmatmul.mubr.f32.gmra.mrb[0].mxu0 %v7152
        %v7357 = vpop.f32.mrb[0].mxu0
        %v7358 = vadd.f32 0.0, %v7357
        %v7359 = vpop.f32.mrb[0].mxu0
        %7360 = vmatprep.mubr.f32.mxu0 %v7155
        %7361 = vmatmul.mubr.f32.gmra.mrb[0].mxu0 %v7154
        %v7362 = vpop.f32.mrb[0].mxu0
        %v7363 = vadd.f32 0.0, %v7362
        %v7364 = vpop.f32.mrb[0].mxu0
        %7365 = vmatprep.mubr.f32.mxu0 %v7157
        %7366 = vmatmul.mubr.f32.gmra.mrb[0].mxu0 %v7156
        %v7367 = vpop.f32.mrb[0].mxu0
        %v7368 = vadd.f32 0.0, %v7367
        %v7369 = vpop.f32.mrb[0].mxu0
        %7370 = vmatprep.mubr.f32.mxu0 %v7159
        %7371 = vmatmul.mubr.f32.gmra.mrb[0].mxu0 %v7158
        %v7372 = vpop.f32.mrb[0].mxu0
        %v7373 = vadd.f32 0.0, %v7372
        %v7374 = vpop.f32.mrb[0].mxu0
        %7375 = vmatprep.mubr.f32.mxu0 %v7161
        %7376 = vmatmul.mubr.f32.gmra.mrb[0].mxu0 %v7160
        %v7377 = vpop.f32.mrb[0].mxu0
        %v7378 = vadd.f32 0.0, %v7377
        %v7379 = vpop.f32.mrb[0].mxu0
        %7380 = vmatprep.mubr.f32.mxu0 %v7163
        %7381 = vmatmul.mubr.f32.gmra.mrb[0].mxu0 %v7162
        %v7382 = vpop.f32.mrb[0].mxu0
        %v7383 = vadd.f32 0.0, %v7382
        %v7384 = vpop.f32.mrb[0].mxu0
        %7385 = vmatprep.mubr.f32.mxu0 %v7165
        %7386 = vmatmul.mubr.f32.gmra.mrb[0].mxu0 %v7164
        %v7387 = vpop.f32.mrb[0].mxu0
        %v7388 = vadd.f32 0.0, %v7387
        %v7389 = vpop.f32.mrb[0].mxu0
        %7390 = vdwg.mxu0
        %v7392 = vsel %vm1017, %v7233, 0
        %v7395 = vsel %vm1017, %v7238, 0
        %v7398 = vsel %vm1017, %v7243, 0
        %v7401 = vsel %vm1017, %v7248, 0
        %v7404 = vsel %vm1017, %v7253, 0
        %v7407 = vsel %vm1017, %v7258, 0
        %v7410 = vsel %vm1017, %v7263, 0
        %v7413 = vsel %vm1017, %v7268, 0
        %v7416 = vsel %vm1017, %v7273, 0
        %v7419 = vsel %vm1017, %v7278, 0
        %v7422 = vsel %vm1017, %v7283, 0
        %v7425 = vsel %vm1017, %v7288, 0
        %v7428 = vsel %vm1017, %v7293, 0
        %v7431 = vsel %vm1017, %v7298, 0
        %v7434 = vsel %vm1017, %v7303, 0
        %v7437 = vsel %vm1017, %v7308, 0
        %v7440 = vsel %vm1017, %v7313, 0
        %v7443 = vsel %vm1017, %v7318, 0
        %v7446 = vsel %vm1017, %v7323, 0
        %v7449 = vsel %vm1017, %v7328, 0
        %v7452 = vsel %vm1017, %v7333, 0
        %v7455 = vsel %vm1017, %v7338, 0
        %v7458 = vsel %vm1017, %v7343, 0
        %v7461 = vsel %vm1017, %v7348, 0
        %v7464 = vsel %vm1017, %v7353, 0
        %v7467 = vsel %vm1017, %v7358, 0
        %v7470 = vsel %vm1017, %v7363, 0
        %v7473 = vsel %vm1017, %v7368, 0
        %v7476 = vsel %vm1017, %v7373, 0
        %v7479 = vsel %vm1017, %v7378, 0
        %v7482 = vsel %vm1017, %v7383, 0
        %v7485 = vsel %vm1017, %v7388, 0
        %7487 = vmatprep.subr.mxu0 %v782
        %7488 = vmatpush1.msra.mxu0 %v781
        %7489 = vmatprep.subr.mxu0 %v784
        %7490 = vmatpush1.msra.mxu0 %v783
        %7491 = vmatprep.subr.mxu0 0.0
        %7492 = vmatpush1.msra.mxu0 0.0
        %7493 = vmatprep.subr.mxu0 0.0
        %7494 = vmatpush1.msra.mxu0 0.0
        %7495 = vmatprep.subr.mxu0 0.0
        %7496 = vmatpush1.msra.mxu0 0.0
        %7497 = vmatprep.subr.mxu0 0.0
        %7498 = vmatpush1.msra.mxu0 0.0
        %7499 = vmatprep.subr.mxu0 0.0
        %7500 = vmatpush1.msra.mxu0 0.0
        %7501 = vmatprep.subr.mxu0 0.0
        %7502 = vmatpush1.msra.mxu0 0.0
        %7503 = vmatprep.subr.mxu0 0.0
        %7504 = vmatpush1.msra.mxu0 0.0
        %7505 = vmatprep.subr.mxu0 0.0
        %7506 = vmatpush1.msra.mxu0 0.0
        %7507 = vmatprep.subr.mxu0 0.0
        %7508 = vmatpush1.msra.mxu0 0.0
        %7509 = vmatprep.subr.mxu0 0.0
        %7510 = vmatpush1.msra.mxu0 0.0
        %7511 = vmatprep.subr.mxu0 0.0
        %7512 = vmatpush1.msra.mxu0 0.0
        %7513 = vmatprep.subr.mxu0 0.0
        %7514 = vmatpush1.msra.mxu0 0.0
        %7515 = vmatprep.subr.mxu0 0.0
        %7516 = vmatpush1.msra.mxu0 0.0
        %7517 = vmatprep.subr.mxu0 0.0
        %7518 = vmatpush1.msra.mxu0 0.0
        %7519 = vmatprep.subr.mxu0 0.0
        %7520 = vmatpush1.msra.mxu0 0.0
        %7521 = vmatprep.subr.mxu0 0.0
        %7522 = vmatpush1.msra.mxu0 0.0
        %7523 = vmatprep.subr.mxu0 0.0
        %7524 = vmatpush1.msra.mxu0 0.0
        %7525 = vmatprep.subr.mxu0 0.0
        %7526 = vmatpush1.msra.mxu0 0.0
        %7527 = vmatprep.subr.mxu0 0.0
        %7528 = vmatpush1.msra.mxu0 0.0
        %7529 = vmatprep.subr.mxu0 0.0
        %7530 = vmatpush1.msra.mxu0 0.0
        %7531 = vmatprep.subr.mxu0 0.0
        %7532 = vmatpush1.msra.mxu0 0.0
        %7533 = vmatprep.subr.mxu0 0.0
        %7534 = vmatpush1.msra.mxu0 0.0
        %7535 = vmatprep.subr.mxu0 0.0
        %7536 = vmatpush1.msra.mxu0 0.0
        %7537 = vmatprep.subr.mxu0 0.0
        %7538 = vmatpush1.msra.mxu0 0.0
        %7539 = vmatprep.subr.mxu0 0.0
        %7540 = vmatpush1.msra.mxu0 0.0
        %7541 = vmatprep.subr.mxu0 0.0
        %7542 = vmatpush1.msra.mxu0 0.0
        %7543 = vmatprep.subr.mxu0 0.0
        %7544 = vmatpush1.msra.mxu0 0.0
        %7545 = vmatprep.subr.mxu0 0.0
        %7546 = vmatpush1.msra.mxu0 0.0
        %7547 = vmatprep.subr.mxu0 0.0
        %7548 = vmatpush1.msra.mxu0 0.0
        %7549 = vmatprep.subr.mxu0 0.0
        %7550 = vmatpush1.msra.mxu0 0.0
        %7551 = vmatprep.mubr.f32.mxu0 0.0
        %7552 = vmatmul.mubr.f32.gmra.mrb[0].mxu0 %v7392
        %v7553 = vpop.f32.mrb[0].mxu0
        %v7554 = vadd.f32 0.0, %v7553
        %v7555 = vpop.f32.mrb[0].mxu0
        %v7556 = vadd.f32 0.0, %v7555
        %7557 = vmatprep.mubr.f32.mxu0 0.0
        %7558 = vmatmul.mubr.f32.gmra.mrb[0].mxu0 %v7395
        %v7559 = vpop.f32.mrb[0].mxu0
        %v7560 = vadd.f32 0.0, %v7559
        %v7561 = vpop.f32.mrb[0].mxu0
        %v7562 = vadd.f32 0.0, %v7561
        %7563 = vmatprep.mubr.f32.mxu0 0.0
        %7564 = vmatmul.mubr.f32.gmra.mrb[0].mxu0 %v7398
        %v7565 = vpop.f32.mrb[0].mxu0
        %v7566 = vadd.f32 0.0, %v7565
        %v7567 = vpop.f32.mrb[0].mxu0
        %v7568 = vadd.f32 0.0, %v7567
        %7569 = vmatprep.mubr.f32.mxu0 0.0
        %7570 = vmatmul.mubr.f32.gmra.mrb[0].mxu0 %v7401
        %v7571 = vpop.f32.mrb[0].mxu0
        %v7572 = vadd.f32 0.0, %v7571
        %v7573 = vpop.f32.mrb[0].mxu0
        %v7574 = vadd.f32 0.0, %v7573
        %7575 = vmatprep.mubr.f32.mxu0 0.0
        %7576 = vmatmul.mubr.f32.gmra.mrb[0].mxu0 %v7404
        %v7577 = vpop.f32.mrb[0].mxu0
        %v7578 = vadd.f32 0.0, %v7577
        %v7579 = vpop.f32.mrb[0].mxu0
        %v7580 = vadd.f32 0.0, %v7579
        %7581 = vmatprep.mubr.f32.mxu0 0.0
        %7582 = vmatmul.mubr.f32.gmra.mrb[0].mxu0 %v7407
        %v7583 = vpop.f32.mrb[0].mxu0
        %v7584 = vadd.f32 0.0, %v7583
        %v7585 = vpop.f32.mrb[0].mxu0
        %v7586 = vadd.f32 0.0, %v7585
        %7587 = vmatprep.mubr.f32.mxu0 0.0
        %7588 = vmatmul.mubr.f32.gmra.mrb[0].mxu0 %v7410
        %v7589 = vpop.f32.mrb[0].mxu0
        %v7590 = vadd.f32 0.0, %v7589
        %v7591 = vpop.f32.mrb[0].mxu0
        %v7592 = vadd.f32 0.0, %v7591
        %7593 = vmatprep.mubr.f32.mxu0 0.0
        %7594 = vmatmul.mubr.f32.gmra.mrb[0].mxu0 %v7413
        %v7595 = vpop.f32.mrb[0].mxu0
        %v7596 = vadd.f32 0.0, %v7595
        %v7597 = vpop.f32.mrb[0].mxu0
        %v7598 = vadd.f32 0.0, %v7597
        %7599 = vmatprep.mubr.f32.mxu0 0.0
        %7600 = vmatmul.mubr.f32.gmra.mrb[0].mxu0 %v7416
        %v7601 = vpop.f32.mrb[0].mxu0
        %v7602 = vadd.f32 0.0, %v7601
        %v7603 = vpop.f32.mrb[0].mxu0
        %v7604 = vadd.f32 0.0, %v7603
        %7605 = vmatprep.mubr.f32.mxu0 0.0
        %7606 = vmatmul.mubr.f32.gmra.mrb[0].mxu0 %v7419
        %v7607 = vpop.f32.mrb[0].mxu0
        %v7608 = vadd.f32 0.0, %v7607
        %v7609 = vpop.f32.mrb[0].mxu0
        %v7610 = vadd.f32 0.0, %v7609
        %7611 = vmatprep.mubr.f32.mxu0 0.0
        %7612 = vmatmul.mubr.f32.gmra.mrb[0].mxu0 %v7422
        %v7613 = vpop.f32.mrb[0].mxu0
        %v7614 = vadd.f32 0.0, %v7613
        %v7615 = vpop.f32.mrb[0].mxu0
        %v7616 = vadd.f32 0.0, %v7615
        %7617 = vmatprep.mubr.f32.mxu0 0.0
        %7618 = vmatmul.mubr.f32.gmra.mrb[0].mxu0 %v7425
        %v7619 = vpop.f32.mrb[0].mxu0
        %v7620 = vadd.f32 0.0, %v7619
        %v7621 = vpop.f32.mrb[0].mxu0
        %v7622 = vadd.f32 0.0, %v7621
        %7623 = vmatprep.mubr.f32.mxu0 0.0
        %7624 = vmatmul.mubr.f32.gmra.mrb[0].mxu0 %v7428
        %v7625 = vpop.f32.mrb[0].mxu0
        %v7626 = vadd.f32 0.0, %v7625
        %v7627 = vpop.f32.mrb[0].mxu0
        %v7628 = vadd.f32 0.0, %v7627
        %7629 = vmatprep.mubr.f32.mxu0 0.0
        %7630 = vmatmul.mubr.f32.gmra.mrb[0].mxu0 %v7431
        %v7631 = vpop.f32.mrb[0].mxu0
        %v7632 = vadd.f32 0.0, %v7631
        %v7633 = vpop.f32.mrb[0].mxu0
        %v7634 = vadd.f32 0.0, %v7633
        %7635 = vmatprep.mubr.f32.mxu0 0.0
        %7636 = vmatmul.mubr.f32.gmra.mrb[0].mxu0 %v7434
        %v7637 = vpop.f32.mrb[0].mxu0
        %v7638 = vadd.f32 0.0, %v7637
        %v7639 = vpop.f32.mrb[0].mxu0
        %v7640 = vadd.f32 0.0, %v7639
        %7641 = vmatprep.mubr.f32.mxu0 0.0
        %7642 = vmatmul.mubr.f32.gmra.mrb[0].mxu0 %v7437
        %v7643 = vpop.f32.mrb[0].mxu0
        %v7644 = vadd.f32 0.0, %v7643
        %v7645 = vpop.f32.mrb[0].mxu0
        %v7646 = vadd.f32 0.0, %v7645
        %7647 = vmatprep.mubr.f32.mxu0 0.0
        %7648 = vmatmul.mubr.f32.gmra.mrb[0].mxu0 %v7440
        %v7649 = vpop.f32.mrb[0].mxu0
        %v7650 = vadd.f32 0.0, %v7649
        %v7651 = vpop.f32.mrb[0].mxu0
        %v7652 = vadd.f32 0.0, %v7651
        %7653 = vmatprep.mubr.f32.mxu0 0.0
        %7654 = vmatmul.mubr.f32.gmra.mrb[0].mxu0 %v7443
        %v7655 = vpop.f32.mrb[0].mxu0
        %v7656 = vadd.f32 0.0, %v7655
        %v7657 = vpop.f32.mrb[0].mxu0
        %v7658 = vadd.f32 0.0, %v7657
        %7659 = vmatprep.mubr.f32.mxu0 0.0
        %7660 = vmatmul.mubr.f32.gmra.mrb[0].mxu0 %v7446
        %v7661 = vpop.f32.mrb[0].mxu0
        %v7662 = vadd.f32 0.0, %v7661
        %v7663 = vpop.f32.mrb[0].mxu0
        %v7664 = vadd.f32 0.0, %v7663
        %7665 = vmatprep.mubr.f32.mxu0 0.0
        %7666 = vmatmul.mubr.f32.gmra.mrb[0].mxu0 %v7449
        %v7667 = vpop.f32.mrb[0].mxu0
        %v7668 = vadd.f32 0.0, %v7667
        %v7669 = vpop.f32.mrb[0].mxu0
        %v7670 = vadd.f32 0.0, %v7669
        %7671 = vmatprep.mubr.f32.mxu0 0.0
        %7672 = vmatmul.mubr.f32.gmra.mrb[0].mxu0 %v7452
        %v7673 = vpop.f32.mrb[0].mxu0
        %v7674 = vadd.f32 0.0, %v7673
        %v7675 = vpop.f32.mrb[0].mxu0
        %v7676 = vadd.f32 0.0, %v7675
        %7677 = vmatprep.mubr.f32.mxu0 0.0
        %7678 = vmatmul.mubr.f32.gmra.mrb[0].mxu0 %v7455
        %v7679 = vpop.f32.mrb[0].mxu0
        %v7680 = vadd.f32 0.0, %v7679
        %v7681 = vpop.f32.mrb[0].mxu0
        %v7682 = vadd.f32 0.0, %v7681
        %7683 = vmatprep.mubr.f32.mxu0 0.0
        %7684 = vmatmul.mubr.f32.gmra.mrb[0].mxu0 %v7458
        %v7685 = vpop.f32.mrb[0].mxu0
        %v7686 = vadd.f32 0.0, %v7685
        %v7687 = vpop.f32.mrb[0].mxu0
        %v7688 = vadd.f32 0.0, %v7687
        %7689 = vmatprep.mubr.f32.mxu0 0.0
        %7690 = vmatmul.mubr.f32.gmra.mrb[0].mxu0 %v7461
        %v7691 = vpop.f32.mrb[0].mxu0
        %v7692 = vadd.f32 0.0, %v7691
        %v7693 = vpop.f32.mrb[0].mxu0
        %v7694 = vadd.f32 0.0, %v7693
        %7695 = vmatprep.mubr.f32.mxu0 0.0
        %7696 = vmatmul.mubr.f32.gmra.mrb[0].mxu0 %v7464
        %v7697 = vpop.f32.mrb[0].mxu0
        %v7698 = vadd.f32 0.0, %v7697
        %v7699 = vpop.f32.mrb[0].mxu0
        %v7700 = vadd.f32 0.0, %v7699
        %7701 = vmatprep.mubr.f32.mxu0 0.0
        %7702 = vmatmul.mubr.f32.gmra.mrb[0].mxu0 %v7467
        %v7703 = vpop.f32.mrb[0].mxu0
        %v7704 = vadd.f32 0.0, %v7703
        %v7705 = vpop.f32.mrb[0].mxu0
        %v7706 = vadd.f32 0.0, %v7705
        %7707 = vmatprep.mubr.f32.mxu0 0.0
        %7708 = vmatmul.mubr.f32.gmra.mrb[0].mxu0 %v7470
        %v7709 = vpop.f32.mrb[0].mxu0
        %v7710 = vadd.f32 0.0, %v7709
        %v7711 = vpop.f32.mrb[0].mxu0
        %v7712 = vadd.f32 0.0, %v7711
        %7713 = vmatprep.mubr.f32.mxu0 0.0
        %7714 = vmatmul.mubr.f32.gmra.mrb[0].mxu0 %v7473
        %v7715 = vpop.f32.mrb[0].mxu0
        %v7716 = vadd.f32 0.0, %v7715
        %v7717 = vpop.f32.mrb[0].mxu0
        %v7718 = vadd.f32 0.0, %v7717
        %7719 = vmatprep.mubr.f32.mxu0 0.0
        %7720 = vmatmul.mubr.f32.gmra.mrb[0].mxu0 %v7476
        %v7721 = vpop.f32.mrb[0].mxu0
        %v7722 = vadd.f32 0.0, %v7721
        %v7723 = vpop.f32.mrb[0].mxu0
        %v7724 = vadd.f32 0.0, %v7723
        %7725 = vmatprep.mubr.f32.mxu0 0.0
        %7726 = vmatmul.mubr.f32.gmra.mrb[0].mxu0 %v7479
        %v7727 = vpop.f32.mrb[0].mxu0
        %v7728 = vadd.f32 0.0, %v7727
        %v7729 = vpop.f32.mrb[0].mxu0
        %v7730 = vadd.f32 0.0, %v7729
        %7731 = vmatprep.mubr.f32.mxu0 0.0
        %7732 = vmatmul.mubr.f32.gmra.mrb[0].mxu0 %v7482
        %v7733 = vpop.f32.mrb[0].mxu0
        %v7734 = vadd.f32 0.0, %v7733
        %v7735 = vpop.f32.mrb[0].mxu0
        %v7736 = vadd.f32 0.0, %v7735
        %7737 = vmatprep.mubr.f32.mxu0 0.0
        %7738 = vmatmul.mubr.f32.gmra.mrb[0].mxu0 %v7485
        %v7739 = vpop.f32.mrb[0].mxu0
        %v7740 = vadd.f32 0.0, %v7739
        %v7741 = vpop.f32.mrb[0].mxu0
        %v7742 = vadd.f32 0.0, %v7741
        %7743 = vdwg.mxu0
        %v7744 = vmul.f32 %v7554, %v793
        %v7745 = vmul.f32 %v7556, %v794
        %v7746 = vmul.f32 %v7560, %v795
        %v7747 = vmul.f32 %v7562, %v796
        %v7748 = vmul.f32 %v7566, %v797
        %v7749 = vmul.f32 %v7568, %v798
        %v7750 = vmul.f32 %v7572, %v799
        %v7751 = vmul.f32 %v7574, %v800
        %v7752 = vmul.f32 %v7578, %v801
        %v7753 = vmul.f32 %v7580, %v802
        %v7754 = vmul.f32 %v7584, %v803
        %v7755 = vmul.f32 %v7586, %v804
        %v7756 = vmul.f32 %v7590, %v805
        %v7757 = vmul.f32 %v7592, %v806
        %v7758 = vmul.f32 %v7596, %v807
        %v7759 = vmul.f32 %v7598, %v808
        %v7760 = vmul.f32 %v7602, %v809
        %v7761 = vmul.f32 %v7604, %v810
        %v7762 = vmul.f32 %v7608, %v811
        %v7763 = vmul.f32 %v7610, %v812
        %v7764 = vmul.f32 %v7614, %v813
        %v7765 = vmul.f32 %v7616, %v814
        %v7766 = vmul.f32 %v7620, %v815
        %v7767 = vmul.f32 %v7622, %v816
        %v7768 = vmul.f32 %v7626, %v817
        %v7769 = vmul.f32 %v7628, %v818
        %v7770 = vmul.f32 %v7632, %v819
        %v7771 = vmul.f32 %v7634, %v820
        %v7772 = vmul.f32 %v7638, %v821
        %v7773 = vmul.f32 %v7640, %v822
        %v7774 = vmul.f32 %v7644, %v823
        %v7775 = vmul.f32 %v7646, %v824
        %v7776 = vmul.f32 %v7650, %v825
        %v7777 = vmul.f32 %v7652, %v826
        %v7778 = vmul.f32 %v7656, %v827
        %v7779 = vmul.f32 %v7658, %v828
        %v7780 = vmul.f32 %v7662, %v829
        %v7781 = vmul.f32 %v7664, %v830
        %v7782 = vmul.f32 %v7668, %v831
        %v7783 = vmul.f32 %v7670, %v832
        %v7784 = vmul.f32 %v7674, %v833
        %v7785 = vmul.f32 %v7676, %v834
        %v7786 = vmul.f32 %v7680, %v835
        %v7787 = vmul.f32 %v7682, %v836
        %v7788 = vmul.f32 %v7686, %v837
        %v7789 = vmul.f32 %v7688, %v838
        %v7790 = vmul.f32 %v7692, %v839
        %v7791 = vmul.f32 %v7694, %v840
        %v7792 = vmul.f32 %v7698, %v841
        %v7793 = vmul.f32 %v7700, %v842
        %v7794 = vmul.f32 %v7704, %v843
        %v7795 = vmul.f32 %v7706, %v844
        %v7796 = vmul.f32 %v7710, %v845
        %v7797 = vmul.f32 %v7712, %v846
        %v7798 = vmul.f32 %v7716, %v847
        %v7799 = vmul.f32 %v7718, %v848
        %v7800 = vmul.f32 %v7722, %v849
        %v7801 = vmul.f32 %v7724, %v850
        %v7802 = vmul.f32 %v7728, %v851
        %v7803 = vmul.f32 %v7730, %v852
        %v7804 = vmul.f32 %v7734, %v853
        %v7805 = vmul.f32 %v7736, %v854
        %v7806 = vmul.f32 %v7740, %v855
        %v7807 = vmul.f32 %v7742, %v856
        %7808 = vmatprep.subr.mxu0 %v7745
        %7809 = vmatpush1.msra.mxu0 %v7744
        %7810 = vmatprep.subr.mxu0 %v7747
        %7811 = vmatpush1.msra.mxu0 %v7746
        %7812 = vmatprep.subr.mxu0 %v7749
        %7813 = vmatpush1.msra.mxu0 %v7748
        %7814 = vmatprep.subr.mxu0 %v7751
        %7815 = vmatpush1.msra.mxu0 %v7750
        %7816 = vmatprep.subr.mxu0 %v7753
        %7817 = vmatpush1.msra.mxu0 %v7752
        %7818 = vmatprep.subr.mxu0 %v7755
        %7819 = vmatpush1.msra.mxu0 %v7754
        %7820 = vmatprep.subr.mxu0 %v7757
        %7821 = vmatpush1.msra.mxu0 %v7756
        %7822 = vmatprep.subr.mxu0 %v7759
        %7823 = vmatpush1.msra.mxu0 %v7758
        %7824 = vmatprep.subr.mxu0 %v7761
        %7825 = vmatpush1.msra.mxu0 %v7760
        %7826 = vmatprep.subr.mxu0 %v7763
        %7827 = vmatpush1.msra.mxu0 %v7762
        %7828 = vmatprep.subr.mxu0 %v7765
        %7829 = vmatpush1.msra.mxu0 %v7764
        %7830 = vmatprep.subr.mxu0 %v7767
        %7831 = vmatpush1.msra.mxu0 %v7766
        %7832 = vmatprep.subr.mxu0 %v7769
        %7833 = vmatpush1.msra.mxu0 %v7768
        %7834 = vmatprep.subr.mxu0 %v7771
        %7835 = vmatpush1.msra.mxu0 %v7770
        %7836 = vmatprep.subr.mxu0 %v7773
        %7837 = vmatpush1.msra.mxu0 %v7772
        %7838 = vmatprep.subr.mxu0 %v7775
        %7839 = vmatpush1.msra.mxu0 %v7774
        %7840 = vmatprep.subr.mxu0 %v7777
        %7841 = vmatpush1.msra.mxu0 %v7776
        %7842 = vmatprep.subr.mxu0 %v7779
        %7843 = vmatpush1.msra.mxu0 %v7778
        %7844 = vmatprep.subr.mxu0 %v7781
        %7845 = vmatpush1.msra.mxu0 %v7780
        %7846 = vmatprep.subr.mxu0 %v7783
        %7847 = vmatpush1.msra.mxu0 %v7782
        %7848 = vmatprep.subr.mxu0 %v7785
        %7849 = vmatpush1.msra.mxu0 %v7784
        %7850 = vmatprep.subr.mxu0 %v7787
        %7851 = vmatpush1.msra.mxu0 %v7786
        %7852 = vmatprep.subr.mxu0 %v7789
        %7853 = vmatpush1.msra.mxu0 %v7788
        %7854 = vmatprep.subr.mxu0 %v7791
        %7855 = vmatpush1.msra.mxu0 %v7790
        %7856 = vmatprep.subr.mxu0 %v7793
        %7857 = vmatpush1.msra.mxu0 %v7792
        %7858 = vmatprep.subr.mxu0 %v7795
        %7859 = vmatpush1.msra.mxu0 %v7794
        %7860 = vmatprep.subr.mxu0 %v7797
        %7861 = vmatpush1.msra.mxu0 %v7796
        %7862 = vmatprep.subr.mxu0 %v7799
        %7863 = vmatpush1.msra.mxu0 %v7798
        %7864 = vmatprep.subr.mxu0 %v7801
        %7865 = vmatpush1.msra.mxu0 %v7800
        %7866 = vmatprep.subr.mxu0 %v7803
        %7867 = vmatpush1.msra.mxu0 %v7802
        %7868 = vmatprep.subr.mxu0 %v7805
        %7869 = vmatpush1.msra.mxu0 %v7804
        %7870 = vmatprep.subr.mxu0 %v7807
        %7871 = vmatpush1.msra.mxu0 %v7806
        %7872 = vmatprep.mubr.f32.mxu0 %v786
        %7873 = vmatmul.mubr.f32.gmra.mrb[0].mxu0 %v785
        %v7874 = vpop.f32.mrb[0].mxu0
        %v7875 = vadd.f32 0.0, %v7874
        %v7876 = vpop.f32.mrb[0].mxu0
        %v7877 = vadd.f32 0.0, %v7876
        %7878 = vmatprep.mubr.f32.mxu0 %v788
        %7879 = vmatmul.mubr.f32.gmra.mrb[0].mxu0 %v787
        %v7880 = vpop.f32.mrb[0].mxu0
        %v7881 = vadd.f32 0.0, %v7880
        %v7882 = vpop.f32.mrb[0].mxu0
        %v7883 = vadd.f32 0.0, %v7882
        %7884 = vdwg.mxu0
        %7885 = vset.pattern.permute.xlu0 6
        %7886 = vperm.xlu0 %7885, %v5621
        %v7887 = vpop.permute.xlu0 %7886
        %7889 = vset.pattern.permute.xlu0 6
        %7890 = vperm.xlu0 %7889, %v5622
        %v7891 = vpop.permute.xlu0 %7890
        %v7893 = vmul.f32 %v7887, %v5637
        %v7894 = vmul.f32 %v7887, %v5638
        %v7895 = vmul.f32 %v7891, %v5639
        %v7896 = vmul.f32 %v7891, %v5640
        %7897 = vset.pattern.permute.xlu0 7
        %7898 = vperm.xlu0 %7897, %v5621
        %v7899 = vpop.permute.xlu0 %7898
        %7901 = vset.pattern.permute.xlu0 7
        %7902 = vperm.xlu0 %7901, %v5622
        %v7903 = vpop.permute.xlu0 %7902
        %v7905 = vmul.f32 %v7899, %v7875
        %v7906 = vmul.f32 %v7899, %v7877
        %v7907 = vmul.f32 %v7903, %v7881
        %v7908 = vmul.f32 %v7903, %v7883
        %v7909 = vadd.f32 %v7893, %v7905
        %v7910 = vadd.f32 %v7894, %v7906
        %v7911 = vadd.f32 %v7895, %v7907
        %v7912 = vadd.f32 %v7896, %v7908
        %7913 = vset.pattern.permute.xlu0 2
        %7914 = vperm.xlu0 %7913, %v5621
        %v7915 = vpop.permute.xlu0 %7914
        %7917 = vset.pattern.permute.xlu0 2
        %7918 = vperm.xlu0 %7917, %v5622
        %v7919 = vpop.permute.xlu0 %7918
        %v7921 = vadd.f32 %v7909, %v7915
        %v7922 = vadd.f32 %v7910, %v7915
        %v7923 = vadd.f32 %v7911, %v7919
        %v7924 = vadd.f32 %v7912, %v7919
        %v7925 = vadd.f32 %v7921, %v7922
        %7926 = vadd.xlane.f32.xlu0 %v7925
        %v7927 = vpop.xlane.xlu0 %7926
        %v7928 = vadd.f32 %v7923, %v7924
        %7929 = vadd.xlane.f32.xlu0 %v7928
        %v7930 = vpop.xlane.xlu0 %7929
        %v7931 = vmul.f32 %v7927, %v4522
        %v7932 = vmul.f32 %v7930, %v4522
        %v7933 = vsub.f32 %v7921, %v7931
        %v7934 = vsub.f32 %v7922, %v7931
        %v7935 = vsub.f32 %v7923, %v7932
        %v7936 = vsub.f32 %v7924, %v7932
        %v7937 = vmul.f32 %v7933, %v7933
        %v7938 = vmul.f32 %v7934, %v7934
        %v7939 = vmul.f32 %v7935, %v7935
        %v7940 = vmul.f32 %v7936, %v7936
        %v7941 = vadd.f32 %v7937, %v7938
        %7942 = vadd.xlane.f32.xlu0 %v7941
        %v7943 = vpop.xlane.xlu0 %7942
        %v7944 = vadd.f32 %v7939, %v7940
        %7945 = vadd.xlane.f32.xlu0 %v7944
        %v7946 = vpop.xlane.xlu0 %7945
        %v7947 = vmul.f32 %v7943, %v4522
        %v7948 = vmul.f32 %v7946, %v4522
        %7949 = vset.pattern.permute.xlu0 4
        %7950 = vperm.xlu0 %7949, %v5621
        %v7951 = vpop.permute.xlu0 %7950
        %7953 = vset.pattern.permute.xlu0 4
        %7954 = vperm.xlu0 %7953, %v5622
        %v7955 = vpop.permute.xlu0 %7954
        %v7957 = vmul.f32 %v7951, %v7933
        %v7958 = vmul.f32 %v7951, %v7934
        %v7959 = vmul.f32 %v7955, %v7935
        %v7960 = vmul.f32 %v7955, %v7936
        %v7961 = vadd.f32 %v7947, 1e-06
        %v7962 = vadd.f32 %v7948, 1e-06
        %v7963 = vrsqrt.pop %v7961
        %v7964 = vrsqrt.pop %v7962
        %v7965 = vmul.f32 %v7957, %v7963
        %v7966 = vmul.f32 %v7958, %v7963
        %v7967 = vmul.f32 %v7959, %v7964
        %v7968 = vmul.f32 %v7960, %v7964
        %7969 = vset.pattern.permute.xlu0 5
        %7970 = vperm.xlu0 %7969, %v5621
        %v7971 = vpop.permute.xlu0 %7970
        %7973 = vset.pattern.permute.xlu0 5
        %7974 = vperm.xlu0 %7973, %v5622
        %v7975 = vpop.permute.xlu0 %7974
        %v7977 = vadd.f32 %v7965, %v7971
        %v7978 = vadd.f32 %v7966, %v7971
        %v7979 = vadd.f32 %v7967, %v7975
        %v7980 = vadd.f32 %v7968, %v7975
        %v7981 = vmax.f32 %v7977, 0.0
        %v7982 = vmax.f32 %v7978, 0.0
        %v7983 = vmax.f32 %v7979, 0.0
        %v7984 = vmax.f32 %v7980, 0.0
        %v7985 = vadd.f32 %v7981, %v5617
        %v7986 = vadd.f32 %v7982, %v5618
        %v7987 = vadd.f32 %v7983, %v5619
        %v7988 = vadd.f32 %v7984, %v5620
        %7989 = vset.pattern.permute.xlu0 3
        %7990 = vperm.xlu0 %7989, %v5621
        %v7991 = vpop.permute.xlu0 %7990
        %7993 = vset.pattern.permute.xlu0 3
        %7994 = vperm.xlu0 %7993, %v5622
        %v7995 = vpop.permute.xlu0 %7994
        %v7997 = vadd.f32 %v7985, %v7991
        %v7998 = vadd.f32 %v7986, %v7991
        %v7999 = vadd.f32 %v7987, %v7995
        %v8000 = vadd.f32 %v7988, %v7995
        %v8001 = vadd.f32 %v7997, %v7998
        %8002 = vadd.xlane.f32.xlu0 %v8001
        %v8003 = vpop.xlane.xlu0 %8002
        %v8004 = vadd.f32 %v7999, %v8000
        %8005 = vadd.xlane.f32.xlu0 %v8004
        %v8006 = vpop.xlane.xlu0 %8005
        %v8007 = vld [vmem:[%s18] sm:$0x1]
        %v8008 = vld [vmem:[%s15] sm:$0x1f]
        %8009 = vxpose.xlu0.b32.start [1/16] %v1035, 128
        %8010 = vxpose.xlu0.b32.cont [2/16] 0.0, 128
        %8011 = vxpose.xlu0.b32.cont [3/16] 0.0, 128
        %8012 = vxpose.xlu0.b32.cont [4/16] 0.0, 128
        %8013 = vxpose.xlu0.b32.cont [5/16] 0.0, 128
        %8014 = vxpose.xlu0.b32.cont [6/16] 0.0, 128
        %8015 = vxpose.xlu0.b32.cont [7/16] 0.0, 128
        %8016 = vxpose.xlu0.b32.cont [8/16] 0.0, 128
        %8017 = vxpose.xlu0.b32.cont [9/16] 0.0, 128
        %8018 = vxpose.xlu0.b32.cont [10/16] 0.0, 128
        %8019 = vxpose.xlu0.b32.cont [11/16] 0.0, 128
        %8020 = vxpose.xlu0.b32.cont [12/16] 0.0, 128
        %8021 = vxpose.xlu0.b32.cont [13/16] 0.0, 128
        %8022 = vxpose.xlu0.b32.cont [14/16] 0.0, 128
        %8023 = vxpose.xlu0.b32.cont [15/16] 0.0, 128
        %8024 = vxpose.xlu0.b32.end [16/16] 0.0, 128
        %v8025 = vpop.trf.xlu0
        %v8026 = vpop.trf.xlu0
        %v8027 = vpop.trf.xlu0
        %v8028 = vpop.trf.xlu0
        %v8029 = vpop.trf.xlu0
        %v8030 = vpop.trf.xlu0
        %v8031 = vpop.trf.xlu0
        %v8032 = vpop.trf.xlu0
        %v8033 = vpop.trf.xlu0
        %v8034 = vpop.trf.xlu0
        %v8035 = vpop.trf.xlu0
        %v8036 = vpop.trf.xlu0
        %v8037 = vpop.trf.xlu0
        %v8038 = vpop.trf.xlu0
        %v8039 = vpop.trf.xlu0
        %v8040 = vpop.trf.xlu0
        %v8042 = vsel %vm1052, %v8025, 0
        %v8045 = vsel %vm1030, %v8008, 0
        %8047 = vmatprep.subr.mxu0 0.0
        %8048 = vmatpush1.msra.mxu0 %v8045
        %8049 = vmatprep.subr.mxu0 0.0
        %8050 = vmatpush1.msra.mxu0 0.0
        %8051 = vmatprep.subr.mxu0 0.0
        %8052 = vmatpush1.msra.mxu0 0.0
        %8053 = vmatprep.subr.mxu0 0.0
        %8054 = vmatpush1.msra.mxu0 0.0
        %8055 = vmatprep.subr.mxu0 0.0
        %8056 = vmatpush1.msra.mxu0 0.0
        %8057 = vmatprep.subr.mxu0 0.0
        %8058 = vmatpush1.msra.mxu0 0.0
        %8059 = vmatprep.subr.mxu0 0.0
        %8060 = vmatpush1.msra.mxu0 0.0
        %8061 = vmatprep.subr.mxu0 0.0
        %8062 = vmatpush1.msra.mxu0 0.0
        %8063 = vmatprep.subr.mxu0 0.0
        %8064 = vmatpush1.msra.mxu0 0.0
        %8065 = vmatprep.subr.mxu0 0.0
        %8066 = vmatpush1.msra.mxu0 0.0
        %8067 = vmatprep.subr.mxu0 0.0
        %8068 = vmatpush1.msra.mxu0 0.0
        %8069 = vmatprep.subr.mxu0 0.0
        %8070 = vmatpush1.msra.mxu0 0.0
        %8071 = vmatprep.subr.mxu0 0.0
        %8072 = vmatpush1.msra.mxu0 0.0
        %8073 = vmatprep.subr.mxu0 0.0
        %8074 = vmatpush1.msra.mxu0 0.0
        %8075 = vmatprep.subr.mxu0 0.0
        %8076 = vmatpush1.msra.mxu0 0.0
        %8077 = vmatprep.subr.mxu0 0.0
        %8078 = vmatpush1.msra.mxu0 0.0
        %8079 = vmatprep.subr.mxu0 0.0
        %8080 = vmatpush1.msra.mxu0 0.0
        %8081 = vmatprep.subr.mxu0 0.0
        %8082 = vmatpush1.msra.mxu0 0.0
        %8083 = vmatprep.subr.mxu0 0.0
        %8084 = vmatpush1.msra.mxu0 0.0
        %8085 = vmatprep.subr.mxu0 0.0
        %8086 = vmatpush1.msra.mxu0 0.0
        %8087 = vmatprep.subr.mxu0 0.0
        %8088 = vmatpush1.msra.mxu0 0.0
        %8089 = vmatprep.subr.mxu0 0.0
        %8090 = vmatpush1.msra.mxu0 0.0
        %8091 = vmatprep.subr.mxu0 0.0
        %8092 = vmatpush1.msra.mxu0 0.0
        %8093 = vmatprep.subr.mxu0 0.0
        %8094 = vmatpush1.msra.mxu0 0.0
        %8095 = vmatprep.subr.mxu0 0.0
        %8096 = vmatpush1.msra.mxu0 0.0
        %8097 = vmatprep.subr.mxu0 0.0
        %8098 = vmatpush1.msra.mxu0 0.0
        %8099 = vmatprep.subr.mxu0 0.0
        %8100 = vmatpush1.msra.mxu0 0.0
        %8101 = vmatprep.subr.mxu0 0.0
        %8102 = vmatpush1.msra.mxu0 0.0
        %8103 = vmatprep.subr.mxu0 0.0
        %8104 = vmatpush1.msra.mxu0 0.0
        %8105 = vmatprep.subr.mxu0 0.0
        %8106 = vmatpush1.msra.mxu0 0.0
        %8107 = vmatprep.subr.mxu0 0.0
        %8108 = vmatpush1.msra.mxu0 0.0
        %8109 = vmatprep.subr.mxu0 0.0
        %8110 = vmatpush1.msra.mxu0 0.0
        %8111 = vmatprep.mubr.f32.mxu0 0.0
        %8112 = vmatmul.mubr.f32.gmra.mrb[0].mxu0 %v8042
        %v8113 = vpop.f32.mrb[0].mxu0
        %v8114 = vadd.f32 0.0, %v8113
        %v8115 = vpop.f32.mrb[0].mxu0
        %8116 = vdwg.mxu0
        %v8117 = vadd.f32 %v8007, %v8114
        %v8118 = vld [vmem:[%s16] sm:$0xff]
        %v8119 = vld [vmem:[%s16 + $0x8] sm:$0xff]
        %8120 = vxpose.xlu0.b32.start [1/16] %v4595, 128
        %8121 = vxpose.xlu0.b32.cont [2/16] %v4598, 128
        %8122 = vxpose.xlu0.b32.cont [3/16] 0.0, 128
        %8123 = vxpose.xlu0.b32.cont [4/16] 0.0, 128
        %8124 = vxpose.xlu0.b32.cont [5/16] 0.0, 128
        %8125 = vxpose.xlu0.b32.cont [6/16] 0.0, 128
        %8126 = vxpose.xlu0.b32.cont [7/16] 0.0, 128
        %8127 = vxpose.xlu0.b32.cont [8/16] 0.0, 128
        %8128 = vxpose.xlu0.b32.cont [9/16] 0.0, 128
        %8129 = vxpose.xlu0.b32.cont [10/16] 0.0, 128
        %8130 = vxpose.xlu0.b32.cont [11/16] 0.0, 128
        %8131 = vxpose.xlu0.b32.cont [12/16] 0.0, 128
        %8132 = vxpose.xlu0.b32.cont [13/16] 0.0, 128
        %8133 = vxpose.xlu0.b32.cont [14/16] 0.0, 128
        %8134 = vxpose.xlu0.b32.cont [15/16] 0.0, 128
        %8135 = vxpose.xlu0.b32.end [16/16] 0.0, 128
        %v8136 = vpop.trf.xlu0
        %v8137 = vpop.trf.xlu0
        %v8138 = vpop.trf.xlu0
        %v8139 = vpop.trf.xlu0
        %v8140 = vpop.trf.xlu0
        %v8141 = vpop.trf.xlu0
        %v8142 = vpop.trf.xlu0
        %v8143 = vpop.trf.xlu0
        %v8144 = vpop.trf.xlu0
        %v8145 = vpop.trf.xlu0
        %v8146 = vpop.trf.xlu0
        %v8147 = vpop.trf.xlu0
        %v8148 = vpop.trf.xlu0
        %v8149 = vpop.trf.xlu0
        %v8150 = vpop.trf.xlu0
        %v8151 = vpop.trf.xlu0
        %v8153 = vsel %vm1017, %v8136, 0
        %8155 = vmatprep.subr.mxu0 0.0
        %8156 = vmatpush1.msra.mxu0 %v8118
        %8157 = vmatprep.subr.mxu0 0.0
        %8158 = vmatpush1.msra.mxu0 %v8119
        %8159 = vmatprep.subr.mxu0 0.0
        %8160 = vmatpush1.msra.mxu0 0.0
        %8161 = vmatprep.subr.mxu0 0.0
        %8162 = vmatpush1.msra.mxu0 0.0
        %8163 = vmatprep.subr.mxu0 0.0
        %8164 = vmatpush1.msra.mxu0 0.0
        %8165 = vmatprep.subr.mxu0 0.0
        %8166 = vmatpush1.msra.mxu0 0.0
        %8167 = vmatprep.subr.mxu0 0.0
        %8168 = vmatpush1.msra.mxu0 0.0
        %8169 = vmatprep.subr.mxu0 0.0
        %8170 = vmatpush1.msra.mxu0 0.0
        %8171 = vmatprep.subr.mxu0 0.0
        %8172 = vmatpush1.msra.mxu0 0.0
        %8173 = vmatprep.subr.mxu0 0.0
        %8174 = vmatpush1.msra.mxu0 0.0
        %8175 = vmatprep.subr.mxu0 0.0
        %8176 = vmatpush1.msra.mxu0 0.0
        %8177 = vmatprep.subr.mxu0 0.0
        %8178 = vmatpush1.msra.mxu0 0.0
        %8179 = vmatprep.subr.mxu0 0.0
        %8180 = vmatpush1.msra.mxu0 0.0
        %8181 = vmatprep.subr.mxu0 0.0
        %8182 = vmatpush1.msra.mxu0 0.0
        %8183 = vmatprep.subr.mxu0 0.0
        %8184 = vmatpush1.msra.mxu0 0.0
        %8185 = vmatprep.subr.mxu0 0.0
        %8186 = vmatpush1.msra.mxu0 0.0
        %8187 = vmatprep.subr.mxu0 0.0
        %8188 = vmatpush1.msra.mxu0 0.0
        %8189 = vmatprep.subr.mxu0 0.0
        %8190 = vmatpush1.msra.mxu0 0.0
        %8191 = vmatprep.subr.mxu0 0.0
        %8192 = vmatpush1.msra.mxu0 0.0
        %8193 = vmatprep.subr.mxu0 0.0
        %8194 = vmatpush1.msra.mxu0 0.0
        %8195 = vmatprep.subr.mxu0 0.0
        %8196 = vmatpush1.msra.mxu0 0.0
        %8197 = vmatprep.subr.mxu0 0.0
        %8198 = vmatpush1.msra.mxu0 0.0
        %8199 = vmatprep.subr.mxu0 0.0
        %8200 = vmatpush1.msra.mxu0 0.0
        %8201 = vmatprep.subr.mxu0 0.0
        %8202 = vmatpush1.msra.mxu0 0.0
        %8203 = vmatprep.subr.mxu0 0.0
        %8204 = vmatpush1.msra.mxu0 0.0
        %8205 = vmatprep.subr.mxu0 0.0
        %8206 = vmatpush1.msra.mxu0 0.0
        %8207 = vmatprep.subr.mxu0 0.0
        %8208 = vmatpush1.msra.mxu0 0.0
        %8209 = vmatprep.subr.mxu0 0.0
        %8210 = vmatpush1.msra.mxu0 0.0
        %8211 = vmatprep.subr.mxu0 0.0
        %8212 = vmatpush1.msra.mxu0 0.0
        %8213 = vmatprep.subr.mxu0 0.0
        %8214 = vmatpush1.msra.mxu0 0.0
        %8215 = vmatprep.subr.mxu0 0.0
        %8216 = vmatpush1.msra.mxu0 0.0
        %8217 = vmatprep.subr.mxu0 0.0
        %8218 = vmatpush1.msra.mxu0 0.0
        %8219 = vmatprep.mubr.f32.mxu0 0.0
        %8220 = vmatmul.mubr.f32.gmra.mrb[0].mxu0 %v8153
        %v8221 = vpop.f32.mrb[0].mxu0
        %v8222 = vadd.f32 0.0, %v8221
        %v8223 = vpop.f32.mrb[0].mxu0
        %8224 = vdwg.mxu0
        %v8225 = vadd.f32 %v8117, %v8222
        %v8226 = vld [vmem:[%s17] sm:$0xff]
        %v8227 = vld [vmem:[%s17 + $0x8] sm:$0xff]
        %8228 = vxpose.xlu0.b32.start [1/16] %v8003, 128
        %8229 = vxpose.xlu0.b32.cont [2/16] %v8006, 128
        %8230 = vxpose.xlu0.b32.cont [3/16] 0.0, 128
        %8231 = vxpose.xlu0.b32.cont [4/16] 0.0, 128
        %8232 = vxpose.xlu0.b32.cont [5/16] 0.0, 128
        %8233 = vxpose.xlu0.b32.cont [6/16] 0.0, 128
        %8234 = vxpose.xlu0.b32.cont [7/16] 0.0, 128
        %8235 = vxpose.xlu0.b32.cont [8/16] 0.0, 128
        %8236 = vxpose.xlu0.b32.cont [9/16] 0.0, 128
        %8237 = vxpose.xlu0.b32.cont [10/16] 0.0, 128
        %8238 = vxpose.xlu0.b32.cont [11/16] 0.0, 128
        %8239 = vxpose.xlu0.b32.cont [12/16] 0.0, 128
        %8240 = vxpose.xlu0.b32.cont [13/16] 0.0, 128
        %8241 = vxpose.xlu0.b32.cont [14/16] 0.0, 128
        %8242 = vxpose.xlu0.b32.cont [15/16] 0.0, 128
        %8243 = vxpose.xlu0.b32.end [16/16] 0.0, 128
        %v8244 = vpop.trf.xlu0
        %v8245 = vpop.trf.xlu0
        %v8246 = vpop.trf.xlu0
        %v8247 = vpop.trf.xlu0
        %v8248 = vpop.trf.xlu0
        %v8249 = vpop.trf.xlu0
        %v8250 = vpop.trf.xlu0
        %v8251 = vpop.trf.xlu0
        %v8252 = vpop.trf.xlu0
        %v8253 = vpop.trf.xlu0
        %v8254 = vpop.trf.xlu0
        %v8255 = vpop.trf.xlu0
        %v8256 = vpop.trf.xlu0
        %v8257 = vpop.trf.xlu0
        %v8258 = vpop.trf.xlu0
        %v8259 = vpop.trf.xlu0
        %v8261 = vsel %vm1017, %v8244, 0
        %8263 = vmatprep.subr.mxu0 0.0
        %8264 = vmatpush1.msra.mxu0 %v8226
        %8265 = vmatprep.subr.mxu0 0.0
        %8266 = vmatpush1.msra.mxu0 %v8227
        %8267 = vmatprep.subr.mxu0 0.0
        %8268 = vmatpush1.msra.mxu0 0.0
        %8269 = vmatprep.subr.mxu0 0.0
        %8270 = vmatpush1.msra.mxu0 0.0
        %8271 = vmatprep.subr.mxu0 0.0
        %8272 = vmatpush1.msra.mxu0 0.0
        %8273 = vmatprep.subr.mxu0 0.0
        %8274 = vmatpush1.msra.mxu0 0.0
        %8275 = vmatprep.subr.mxu0 0.0
        %8276 = vmatpush1.msra.mxu0 0.0
        %8277 = vmatprep.subr.mxu0 0.0
        %8278 = vmatpush1.msra.mxu0 0.0
        %8279 = vmatprep.subr.mxu0 0.0
        %8280 = vmatpush1.msra.mxu0 0.0
        %8281 = vmatprep.subr.mxu0 0.0
        %8282 = vmatpush1.msra.mxu0 0.0
        %8283 = vmatprep.subr.mxu0 0.0
        %8284 = vmatpush1.msra.mxu0 0.0
        %8285 = vmatprep.subr.mxu0 0.0
        %8286 = vmatpush1.msra.mxu0 0.0
        %8287 = vmatprep.subr.mxu0 0.0
        %8288 = vmatpush1.msra.mxu0 0.0
        %8289 = vmatprep.subr.mxu0 0.0
        %8290 = vmatpush1.msra.mxu0 0.0
        %8291 = vmatprep.subr.mxu0 0.0
        %8292 = vmatpush1.msra.mxu0 0.0
        %8293 = vmatprep.subr.mxu0 0.0
        %8294 = vmatpush1.msra.mxu0 0.0
        %8295 = vmatprep.subr.mxu0 0.0
        %8296 = vmatpush1.msra.mxu0 0.0
        %8297 = vmatprep.subr.mxu0 0.0
        %8298 = vmatpush1.msra.mxu0 0.0
        %8299 = vmatprep.subr.mxu0 0.0
        %8300 = vmatpush1.msra.mxu0 0.0
        %8301 = vmatprep.subr.mxu0 0.0
        %8302 = vmatpush1.msra.mxu0 0.0
        %8303 = vmatprep.subr.mxu0 0.0
        %8304 = vmatpush1.msra.mxu0 0.0
        %8305 = vmatprep.subr.mxu0 0.0
        %8306 = vmatpush1.msra.mxu0 0.0
        %8307 = vmatprep.subr.mxu0 0.0
        %8308 = vmatpush1.msra.mxu0 0.0
        %8309 = vmatprep.subr.mxu0 0.0
        %8310 = vmatpush1.msra.mxu0 0.0
        %8311 = vmatprep.subr.mxu0 0.0
        %8312 = vmatpush1.msra.mxu0 0.0
        %8313 = vmatprep.subr.mxu0 0.0
        %8314 = vmatpush1.msra.mxu0 0.0
        %8315 = vmatprep.subr.mxu0 0.0
        %8316 = vmatpush1.msra.mxu0 0.0
        %8317 = vmatprep.subr.mxu0 0.0
        %8318 = vmatpush1.msra.mxu0 0.0
        %8319 = vmatprep.subr.mxu0 0.0
        %8320 = vmatpush1.msra.mxu0 0.0
        %8321 = vmatprep.subr.mxu0 0.0
        %8322 = vmatpush1.msra.mxu0 0.0
        %8323 = vmatprep.subr.mxu0 0.0
        %8324 = vmatpush1.msra.mxu0 0.0
        %8325 = vmatprep.subr.mxu0 0.0
        %8326 = vmatpush1.msra.mxu0 0.0
        %8327 = vmatprep.mubr.f32.mxu0 0.0
        %8328 = vmatmul.mubr.f32.gmra.mrb[0].mxu0 %v8261
        %v8329 = vpop.f32.mrb[0].mxu0
        %v8330 = vadd.f32 0.0, %v8329
        %v8331 = vpop.f32.mrb[0].mxu0
        %8332 = vdwg.mxu0
        %v8333 = vadd.f32 %v8225, %v8330
        %v8334 = vmax.f32 %v8333, 0.0
        %v8335 = vld [vmem:[%s19] sm:$0xff]
        %v8336 = vld [vmem:[%s19 + $0x8] sm:$0xff]
        %v8337 = vld [vmem:[%s19 + $0x10] sm:$0x3]
        %v8338 = vld [vmem:[#allocation12] sm:$0x1]
        %vm8339 = vcmask 146432
        %v8341 = vsel %vm8339, %v8334, 0
        %vm8343 = vcmask 1041408
        %v8345 = vsel %vm8343, %v8337, 0
        %8347 = vmatprep.subr.mxu0 0.0
        %8348 = vmatpush1.msra.mxu0 %v8335
        %8349 = vmatprep.subr.mxu0 0.0
        %8350 = vmatpush1.msra.mxu0 %v8336
        %8351 = vmatprep.subr.mxu0 0.0
        %8352 = vmatpush1.msra.mxu0 %v8345
        %8353 = vmatprep.subr.mxu0 0.0
        %8354 = vmatpush1.msra.mxu0 0.0
        %8355 = vmatprep.subr.mxu0 0.0
        %8356 = vmatpush1.msra.mxu0 0.0
        %8357 = vmatprep.subr.mxu0 0.0
        %8358 = vmatpush1.msra.mxu0 0.0
        %8359 = vmatprep.subr.mxu0 0.0
        %8360 = vmatpush1.msra.mxu0 0.0
        %8361 = vmatprep.subr.mxu0 0.0
        %8362 = vmatpush1.msra.mxu0 0.0
        %8363 = vmatprep.subr.mxu0 0.0
        %8364 = vmatpush1.msra.mxu0 0.0
        %8365 = vmatprep.subr.mxu0 0.0
        %8366 = vmatpush1.msra.mxu0 0.0
        %8367 = vmatprep.subr.mxu0 0.0
        %8368 = vmatpush1.msra.mxu0 0.0
        %8369 = vmatprep.subr.mxu0 0.0
        %8370 = vmatpush1.msra.mxu0 0.0
        %8371 = vmatprep.subr.mxu0 0.0
        %8372 = vmatpush1.msra.mxu0 0.0
        %8373 = vmatprep.subr.mxu0 0.0
        %8374 = vmatpush1.msra.mxu0 0.0
        %8375 = vmatprep.subr.mxu0 0.0
        %8376 = vmatpush1.msra.mxu0 0.0
        %8377 = vmatprep.subr.mxu0 0.0
        %8378 = vmatpush1.msra.mxu0 0.0
        %8379 = vmatprep.subr.mxu0 0.0
        %8380 = vmatpush1.msra.mxu0 0.0
        %8381 = vmatprep.subr.mxu0 0.0
        %8382 = vmatpush1.msra.mxu0 0.0
        %8383 = vmatprep.subr.mxu0 0.0
        %8384 = vmatpush1.msra.mxu0 0.0
        %8385 = vmatprep.subr.mxu0 0.0
        %8386 = vmatpush1.msra.mxu0 0.0
        %8387 = vmatprep.subr.mxu0 0.0
        %8388 = vmatpush1.msra.mxu0 0.0
        %8389 = vmatprep.subr.mxu0 0.0
        %8390 = vmatpush1.msra.mxu0 0.0
        %8391 = vmatprep.subr.mxu0 0.0
        %8392 = vmatpush1.msra.mxu0 0.0
        %8393 = vmatprep.subr.mxu0 0.0
        %8394 = vmatpush1.msra.mxu0 0.0
        %8395 = vmatprep.subr.mxu0 0.0
        %8396 = vmatpush1.msra.mxu0 0.0
        %8397 = vmatprep.subr.mxu0 0.0
        %8398 = vmatpush1.msra.mxu0 0.0
        %8399 = vmatprep.subr.mxu0 0.0
        %8400 = vmatpush1.msra.mxu0 0.0
        %8401 = vmatprep.subr.mxu0 0.0
        %8402 = vmatpush1.msra.mxu0 0.0
        %8403 = vmatprep.subr.mxu0 0.0
        %8404 = vmatpush1.msra.mxu0 0.0
        %8405 = vmatprep.subr.mxu0 0.0
        %8406 = vmatpush1.msra.mxu0 0.0
        %8407 = vmatprep.subr.mxu0 0.0
        %8408 = vmatpush1.msra.mxu0 0.0
        %8409 = vmatprep.subr.mxu0 0.0
        %8410 = vmatpush1.msra.mxu0 0.0
        %8411 = vmatprep.mubr.f32.mxu0 0.0
        %8412 = vmatmul.mubr.f32.gmra.mrb[0].mxu0 %v8341
        %v8413 = vpop.f32.mrb[0].mxu0
        %v8414 = vadd.f32 %v8338, %v8413
        %v8415 = vpop.f32.mrb[0].mxu0
        %8416 = vdwg.mxu0
        %v8417 = vmax.f32 %v8414, 0.0
        %v8418 = vld [vmem:[%s21] sm:$0xff]
        %v8419 = vld [vmem:[%s21 + $0x8] sm:$0x1]
        %v8420 = vld [vmem:[#allocation4] sm:$0x1]
        %vm8421 = vcmask 72704
        %v8423 = vsel %vm8421, %v8417, 0
        %vm8425 = vcmask 1040384
        %v8427 = vsel %vm8425, %v8419, 0
        %8429 = vmatprep.subr.mxu0 0.0
        %8430 = vmatpush1.msra.mxu0 %v8418
        %8431 = vmatprep.subr.mxu0 0.0
        %8432 = vmatpush1.msra.mxu0 %v8427
        %8433 = vmatprep.subr.mxu0 0.0
        %8434 = vmatpush1.msra.mxu0 0.0
        %8435 = vmatprep.subr.mxu0 0.0
        %8436 = vmatpush1.msra.mxu0 0.0
        %8437 = vmatprep.subr.mxu0 0.0
        %8438 = vmatpush1.msra.mxu0 0.0
        %8439 = vmatprep.subr.mxu0 0.0
        %8440 = vmatpush1.msra.mxu0 0.0
        %8441 = vmatprep.subr.mxu0 0.0
        %8442 = vmatpush1.msra.mxu0 0.0
        %8443 = vmatprep.subr.mxu0 0.0
        %8444 = vmatpush1.msra.mxu0 0.0
        %8445 = vmatprep.subr.mxu0 0.0
        %8446 = vmatpush1.msra.mxu0 0.0
        %8447 = vmatprep.subr.mxu0 0.0
        %8448 = vmatpush1.msra.mxu0 0.0
        %8449 = vmatprep.subr.mxu0 0.0
        %8450 = vmatpush1.msra.mxu0 0.0
        %8451 = vmatprep.subr.mxu0 0.0
        %8452 = vmatpush1.msra.mxu0 0.0
        %8453 = vmatprep.subr.mxu0 0.0
        %8454 = vmatpush1.msra.mxu0 0.0
        %8455 = vmatprep.subr.mxu0 0.0
        %8456 = vmatpush1.msra.mxu0 0.0
        %8457 = vmatprep.subr.mxu0 0.0
        %8458 = vmatpush1.msra.mxu0 0.0
        %8459 = vmatprep.subr.mxu0 0.0
        %8460 = vmatpush1.msra.mxu0 0.0
        %8461 = vmatprep.subr.mxu0 0.0
        %8462 = vmatpush1.msra.mxu0 0.0
        %8463 = vmatprep.subr.mxu0 0.0
        %8464 = vmatpush1.msra.mxu0 0.0
        %8465 = vmatprep.subr.mxu0 0.0
        %8466 = vmatpush1.msra.mxu0 0.0
        %8467 = vmatprep.subr.mxu0 0.0
        %8468 = vmatpush1.msra.mxu0 0.0
        %8469 = vmatprep.subr.mxu0 0.0
        %8470 = vmatpush1.msra.mxu0 0.0
        %8471 = vmatprep.subr.mxu0 0.0
        %8472 = vmatpush1.msra.mxu0 0.0
        %8473 = vmatprep.subr.mxu0 0.0
        %8474 = vmatpush1.msra.mxu0 0.0
        %8475 = vmatprep.subr.mxu0 0.0
        %8476 = vmatpush1.msra.mxu0 0.0
        %8477 = vmatprep.subr.mxu0 0.0
        %8478 = vmatpush1.msra.mxu0 0.0
        %8479 = vmatprep.subr.mxu0 0.0
        %8480 = vmatpush1.msra.mxu0 0.0
        %8481 = vmatprep.subr.mxu0 0.0
        %8482 = vmatpush1.msra.mxu0 0.0
        %8483 = vmatprep.subr.mxu0 0.0
        %8484 = vmatpush1.msra.mxu0 0.0
        %8485 = vmatprep.subr.mxu0 0.0
        %8486 = vmatpush1.msra.mxu0 0.0
        %8487 = vmatprep.subr.mxu0 0.0
        %8488 = vmatpush1.msra.mxu0 0.0
        %8489 = vmatprep.subr.mxu0 0.0
        %8490 = vmatpush1.msra.mxu0 0.0
        %8491 = vmatprep.subr.mxu0 0.0
        %8492 = vmatpush1.msra.mxu0 0.0
        %8493 = vmatprep.mubr.f32.mxu0 0.0
        %8494 = vmatmul.mubr.f32.gmra.mrb[0].mxu0 %v8423
        %v8495 = vpop.f32.mrb[0].mxu0
        %v8496 = vadd.f32 %v8420, %v8495
        %v8497 = vpop.f32.mrb[0].mxu0
        %8498 = vdwg.mxu0
        %vm8499 = vcmask 0
        %8500 = vst.msk [vmem:[%s779] sm:$0x1] %vm8499, %v8496
        %p8501 = scmp.lt.s32.totalorder %s39, 1
        %s8502 = scalar_select %p8501, %s39, 1
        %s8503 = scalar_lea.vmem %s23, %s8502
        // Predicated region
        $region133: #{ring_gnn_forward.1} parent=111 // pred_check
          %p8504 = pneg %p545
        $region134: #{ring_gnn_forward.1} parent=111 // pred_check_branch
          %8506 = sbr.rel (%p8504) target = $region136
        $region135: #{ring_gnn_forward.1} parent=111 // pred_region
          _
        $region136: #{ring_gnn_forward.1} parent=111 // pred_fallthru
          _
      $region112: #{ring_gnn_forward.1} parent=5 // pred_fallthru
        _
      %p8507 = scmp.le.s32.totalorder 2, %s34
      // Predicated region
      $region137: #{ring_gnn_forward.1} parent=5 // pred_check
        %p8508 = pneg %p8507
      $region138: #{ring_gnn_forward.1} parent=5 // pred_check_branch
        %8510 = sbr.rel (%p8508) target = $region140
      $region139: #{ring_gnn_forward.1} parent=5 // pred_region
        %s8511 = ssub.s32 %s34, 2
        // Predicated region
        $region141: #{ring_gnn_forward.1} parent=139 // pred_check
          %p8512 = pneg %p551
        $region142: #{ring_gnn_forward.1} parent=139 // pred_check_branch
          %8514 = sbr.rel (%p8512) target = $region144
        $region143: #{ring_gnn_forward.1} parent=139 // pred_region
          %p8515 = scmp.lt.s32.totalorder %s40, 1
          %s8516 = scalar_select %p8515, %s40, 1
          %s8517 = scalar_lea.vmem %s23, %s8516
        $region144: #{ring_gnn_forward.1} parent=139 // pred_fallthru
          _
      $region140: #{ring_gnn_forward.1} parent=5 // pred_fallthru
        _
    $region6: #{ring_gnn_forward.1} parent=1 // loop_footer
      %s38 = sadd.s32 1, %s34
    $region7: #{ring_gnn_forward.1} parent=1 // loop_footer_branch
      %33 = sbr.rel target = $region3
    $region8: #{ring_gnn_forward.1} parent=1 // loop_exit
      _
    %8518 = vsyncpa [#allocation6], 1
    %s8519 = scalar_lea.sflag [#allocation6], 1
    %8520 = vsyncpa %s8519, 1
    %8521 = vsyncpa [#allocation8], 1
    %8522 = vsyncpa [#allocation11], 1

</llo_original>
